<compile_context>
chip_gen: v7x
topology: tpu7x:2x2x1
jax: 0.10.0
libtpu: 0.0.40
codegen_flags: <defaults>
</compile_context>

<pallas_src>
import functools

import jax
import jax.numpy as jnp
from jax.experimental import pallas as pl
from jax.experimental.pallas import tpu as pltpu


# -----------------------------------------------------------------------------
# Fused kernel: (Conv3x3 + BN + ReLU) x 2 on one image.
#
# Flat formulation: for a row-flattened image with row stride wq, a 3x3
# "valid" conv over `rows` output positions is 9 shifted matmuls where tap
# (di, dj) reads the contiguous window [di*wq + dj, di*wq + dj + rows).
# With the input padded by 2:
#   conv1 produces m1 = pg - (2*wq + 2) rows; masking its ring/junk to zero
#   turns it into conv2's zero-padded input, and conv2 then produces
#   m2 = m1 - (2*wq + 2) rows.  Flat row i*wq + j of the conv2 result is
#   output pixel (i, j) for j < W (junk columns are sliced off outside).
# -----------------------------------------------------------------------------
def _conv_layer_kernel(x_ref, mask_ref, w1_ref, s1_ref, c1_ref,
                       w2_ref, s2_ref, c2_ref, o_ref, *, wq, m1, m2):
    # Load once; keep the sliced operands on the unpacked f32 path and feed the
    # MXU bf16 per tap.
    xf = x_ref[0].astype(jnp.float32)                       # (pg, Cin)

    def conv3x3_flat(src_f32, w_ref_, rows):
        n_out = w_ref_.shape[-1]
        acc = jnp.zeros((rows, n_out), jnp.float32)
        for di in range(3):
            for dj in range(3):
                off = di * wq + dj
                acc = acc + jnp.dot(
                    src_f32[off:off + rows, :].astype(jnp.bfloat16),
                    w_ref_[di * 3 + dj],
                    preferred_element_type=jnp.float32)
        return acc

    # Stage 1: conv + folded BN + ReLU, then zero the padding ring / junk cols
    # (those zeros are exactly conv2's implicit zero padding).
    y1 = jnp.maximum(conv3x3_flat(xf, w1_ref, m1) * s1_ref[...] + c1_ref[...],
                     0.0)
    y1 = y1 * mask_ref[...]                                  # (m1, O1), stays in VMEM

    # Stage 2: conv + folded BN + ReLU.
    y2 = jnp.maximum(conv3x3_flat(y1, w2_ref, m2) * s2_ref[...] + c2_ref[...],
                     0.0)
    o_ref[0] = y2.astype(o_ref.dtype)


# -----------------------------------------------------------------------------
# One-time parameter preparation (hoisted out of the forward pass)
# -----------------------------------------------------------------------------
def fold_conv_bn_params(w, b, gamma, beta, mean, var, eps=1e-5):
    """Fold Conv2d bias + BatchNorm running stats into a per-channel affine and
    pre-layout the conv weight as (9, Cin, O) bf16 taps (tap = di*3 + dj)."""
    o, ci, kh, kw = w.shape
    scale = gamma * jax.lax.rsqrt(var + eps)
    shift = beta - mean * scale + b * scale
    w9 = jnp.transpose(w, (2, 3, 1, 0)).reshape(kh * kw, ci, o)
    return (w9.astype(jnp.bfloat16),
            scale.reshape(1, o).astype(jnp.float32),
            shift.reshape(1, o).astype(jnp.float32))


# -----------------------------------------------------------------------------
# ConvLayer.forward:  Conv3x3 -> BN -> ReLU -> Conv3x3 -> BN -> ReLU
# -----------------------------------------------------------------------------
def conv_layer_forward(x_nchw, folded):
    w1, s1, c1 = folded['c1']
    w2, s2, c2 = folded['c2']
    B, Cin, H, W = x_nchw.shape
    O1 = w1.shape[-1]
    O2 = w2.shape[-1]

    wq = W + 4                       # row stride of the pad-2 flattened image
    pg = (H + 4) * wq                # rows of the flattened pad-2 input
    halo = 2 * wq + 2
    m1 = pg - halo                   # conv1 flat rows
    m2 = m1 - halo                   # conv2 flat rows (= H*wq - 4)

    # NCHW -> NHWC, spatial zero-pad by 2, row-flatten (bf16 halves HBM read).
    x = jnp.transpose(x_nchw, (0, 2, 3, 1)).astype(jnp.bfloat16)
    xp = jnp.pad(x, ((0, 0), (2, 2), (2, 2), (0, 0))).reshape(B, pg, Cin)

    # Interior mask for conv1's flat output (compile-time constant under jit):
    # flat row m sits at padded coordinate p = m + wq + 1; it is a real conv1
    # output iff p is strictly inside the 2-wide padding ring.
    p = jnp.arange(m1, dtype=jnp.int32) + (wq + 1)
    r = p // wq
    c = p - r * wq
    interior = (r >= 2) & (r <= H + 1) & (c >= 2) & (c <= W + 1)
    mask = interior.astype(jnp.float32).reshape(m1, 1)

    z = pl.pallas_call(
        functools.partial(_conv_layer_kernel, wq=wq, m1=m1, m2=m2),
        out_shape=jax.ShapeDtypeStruct((B, m2, O2), jnp.float32),
        grid_spec=pltpu.PrefetchScalarGridSpec(
            num_scalar_prefetch=0,
            grid=(B,),
            in_specs=[
                pl.BlockSpec((1, pg, Cin), lambda b: (b, 0, 0)),
                pl.BlockSpec((m1, 1), lambda b: (0, 0)),
                pl.BlockSpec((9, Cin, O1), lambda b: (0, 0, 0)),
                pl.BlockSpec((1, O1), lambda b: (0, 0)),
                pl.BlockSpec((1, O1), lambda b: (0, 0)),
                pl.BlockSpec((9, O1, O2), lambda b: (0, 0, 0)),
                pl.BlockSpec((1, O2), lambda b: (0, 0)),
                pl.BlockSpec((1, O2), lambda b: (0, 0)),
            ],
            out_specs=pl.BlockSpec((1, m2, O2), lambda b: (b, 0, 0)),
        ),
        compiler_params=pltpu.CompilerParams(
            dimension_semantics=("parallel",)),
    )(xp, mask, w1, s1, c1, w2, s2, c2)

    # Flat row i*wq + j == output pixel (i, j) for j < W; drop the junk cols.
    z = jnp.pad(z, ((0, 0), (0, H * wq - m2), (0, 0))).reshape(B, H, wq, O2)
    y = z[:, :, :W, :]
    return jnp.transpose(y, (0, 3, 1, 2))                    # NHWC -> NCHW


# -----------------------------------------------------------------------------
# Pure-JAX reference (f32) for a correctness check
# -----------------------------------------------------------------------------
def _reference_forward(x_nchw, p1, p2, eps=1e-5):
    x = jnp.transpose(x_nchw, (0, 2, 3, 1))

    def block(h, p):
        y = jax.lax.conv_general_dilated(
            h, jnp.transpose(p['w'], (2, 3, 1, 0)),
            window_strides=(1, 1), padding=((1, 1), (1, 1)),
            dimension_numbers=('NHWC', 'HWIO', 'NHWC'))
        y = y + p['b']
        y = (y - p['mean']) * jax.lax.rsqrt(p['var'] + eps) * p['gamma'] + p['beta']
        return jnp.maximum(y, 0.0)

    return jnp.transpose(block(block(x, p1), p2), (0, 3, 1, 2))


# -----------------------------------------------------------------------------
if __name__ == "__main__":
    B, in_ch, out_ch, size = 2, 4, 16, 16
    key = jax.random.PRNGKey(0)

    def make_conv_bn(k, ci, co):
        ks = jax.random.split(k, 6)
        return {
            'w': 0.1 * jax.random.normal(ks[0], (co, ci, 3, 3), jnp.float32),
            'b': 0.1 * jax.random.normal(ks[1], (co,), jnp.float32),
            'gamma': 1.0 + 0.1 * jax.random.normal(ks[2], (co,), jnp.float32),
            'beta': 0.1 * jax.random.normal(ks[3], (co,), jnp.float32),
            'mean': 0.1 * jax.random.normal(ks[4], (co,), jnp.float32),
            'var': 1.0 + jnp.abs(0.1 * jax.random.normal(ks[5], (co,), jnp.float32)),
        }

    kx, k1, k2 = jax.random.split(key, 3)
    x = jax.random.normal(kx, (B, in_ch, size, size), jnp.float32)
    p1 = make_conv_bn(k1, in_ch, out_ch)
    p2 = make_conv_bn(k2, out_ch, out_ch)

    # One-time weight prep / BN folding (outside the jitted forward).
    folded = {'c1': fold_conv_bn_params(**p1), 'c2': fold_conv_bn_params(**p2)}

    fwd = jax.jit(conv_layer_forward)
    y = jax.block_until_ready(fwd(x, folded))

    assert y.shape == (B, out_ch, size, size), y.shape
    assert bool(jnp.all(jnp.isfinite(y)))

    ref = _reference_forward(x, p1, p2)
    max_err = float(jnp.max(jnp.abs(y - ref)))
    assert max_err < 1e-1, max_err   # bf16 MXU path vs. f32 reference

    print("KERNEL_OK")
</pallas_src>

<mosaic_0001>
module attributes {stable_mosaic.version = 11 : i64} {
  func.func @_conv_layer_kernel(%arg0: i32, %arg1: memref<1x400x4xbf16, #tpu.memory_space<vmem>>, %arg2: memref<358x1xf32, #tpu.memory_space<vmem>>, %arg3: memref<9x4x16xbf16, #tpu.memory_space<vmem>>, %arg4: memref<1x16xf32, #tpu.memory_space<vmem>>, %arg5: memref<1x16xf32, #tpu.memory_space<vmem>>, %arg6: memref<9x16x16xbf16, #tpu.memory_space<vmem>>, %arg7: memref<1x16xf32, #tpu.memory_space<vmem>>, %arg8: memref<1x16xf32, #tpu.memory_space<vmem>>, %arg9: memref<1x316x16xf32, #tpu.memory_space<vmem>>) attributes {dimension_semantics = [#tpu.dimension_semantics<parallel>], iteration_bounds = array<i64: 2>, scalar_prefetch = 0 : i64, scratch_operands = 0 : i64, tpu.core_type = #tpu.core_type<tc>, window_params = [{transform_indices = @transform_0, window_bounds = array<i64: 1, 400, 4>}, {pipeline_mode = #tpu.pipeline_mode<synchronous>, transform_indices = @transform_1, window_bounds = array<i64: 358, 1>}, {pipeline_mode = #tpu.pipeline_mode<synchronous>, transform_indices = @transform_2, window_bounds = array<i64: 9, 4, 16>}, {pipeline_mode = #tpu.pipeline_mode<synchronous>, transform_indices = @transform_3, window_bounds = array<i64: 1, 16>}, {pipeline_mode = #tpu.pipeline_mode<synchronous>, transform_indices = @transform_4, window_bounds = array<i64: 1, 16>}, {pipeline_mode = #tpu.pipeline_mode<synchronous>, transform_indices = @transform_5, window_bounds = array<i64: 9, 16, 16>}, {pipeline_mode = #tpu.pipeline_mode<synchronous>, transform_indices = @transform_6, window_bounds = array<i64: 1, 16>}, {pipeline_mode = #tpu.pipeline_mode<synchronous>, transform_indices = @transform_7, window_bounds = array<i64: 1, 16>}, {transform_indices = @transform_8, window_bounds = array<i64: 1, 316, 16>}]} {
    %c0 = arith.constant 0 : index
    %c0_0 = arith.constant 0 : index
    %c0_1 = arith.constant 0 : index
    %0 = vector.load %arg1[%c0, %c0_0, %c0_1] : memref<1x400x4xbf16, #tpu.memory_space<vmem>>, vector<1x400x4xbf16>
    %1 = vector.shape_cast %0 : vector<1x400x4xbf16> to vector<400x4xbf16>
    %2 = arith.extf %1 : vector<400x4xbf16> to vector<400x4xf32>
    %cst = arith.constant 0.000000e+00 : f32
    %3 = vector.broadcast %cst : f32 to vector<358x16xf32>
    %4 = vector.extract_strided_slice %2 {offsets = [0, 0], sizes = [358, 4], strides = [1, 1]} : vector<400x4xf32> to vector<358x4xf32>
    %5 = arith.truncf %4 : vector<358x4xf32> to vector<358x4xbf16>
    %c0_2 = arith.constant 0 : index
    %c0_3 = arith.constant 0 : index
    %c0_4 = arith.constant 0 : index
    %6 = vector.load %arg3[%c0_2, %c0_3, %c0_4] : memref<9x4x16xbf16, #tpu.memory_space<vmem>>, vector<1x4x16xbf16>
    %7 = vector.shape_cast %6 : vector<1x4x16xbf16> to vector<4x16xbf16>
    %cst_5 = arith.constant dense<0.000000e+00> : vector<358x16xf32>
    %8 = tpu.matmul %5, %7, %cst_5 {dimension_numbers = #tpu.dot_dimension_numbers<[1], [0], [0], [1], [0, 0, 1, 1], [], []>} : vector<358x4xbf16>, vector<4x16xbf16>, vector<358x16xf32> -> vector<358x16xf32>
    %9 = arith.addf %3, %8 : vector<358x16xf32>
    %10 = vector.extract_strided_slice %2 {offsets = [1, 0], sizes = [358, 4], strides = [1, 1]} : vector<400x4xf32> to vector<358x4xf32>
    %11 = arith.truncf %10 : vector<358x4xf32> to vector<358x4xbf16>
    %c1 = arith.constant 1 : index
    %c0_6 = arith.constant 0 : index
    %c0_7 = arith.constant 0 : index
    %12 = vector.load %arg3[%c1, %c0_6, %c0_7] : memref<9x4x16xbf16, #tpu.memory_space<vmem>>, vector<1x4x16xbf16>
    %13 = vector.shape_cast %12 : vector<1x4x16xbf16> to vector<4x16xbf16>
    %cst_8 = arith.constant dense<0.000000e+00> : vector<358x16xf32>
    %14 = tpu.matmul %11, %13, %cst_8 {dimension_numbers = #tpu.dot_dimension_numbers<[1], [0], [0], [1], [0, 0, 1, 1], [], []>} : vector<358x4xbf16>, vector<4x16xbf16>, vector<358x16xf32> -> vector<358x16xf32>
    %15 = arith.addf %9, %14 : vector<358x16xf32>
    %16 = vector.extract_strided_slice %2 {offsets = [2, 0], sizes = [358, 4], strides = [1, 1]} : vector<400x4xf32> to vector<358x4xf32>
    %17 = arith.truncf %16 : vector<358x4xf32> to vector<358x4xbf16>
    %c2 = arith.constant 2 : index
    %c0_9 = arith.constant 0 : index
    %c0_10 = arith.constant 0 : index
    %18 = vector.load %arg3[%c2, %c0_9, %c0_10] : memref<9x4x16xbf16, #tpu.memory_space<vmem>>, vector<1x4x16xbf16>
    %19 = vector.shape_cast %18 : vector<1x4x16xbf16> to vector<4x16xbf16>
    %cst_11 = arith.constant dense<0.000000e+00> : vector<358x16xf32>
    %20 = tpu.matmul %17, %19, %cst_11 {dimension_numbers = #tpu.dot_dimension_numbers<[1], [0], [0], [1], [0, 0, 1, 1], [], []>} : vector<358x4xbf16>, vector<4x16xbf16>, vector<358x16xf32> -> vector<358x16xf32>
    %21 = arith.addf %15, %20 : vector<358x16xf32>
    %22 = vector.extract_strided_slice %2 {offsets = [20, 0], sizes = [358, 4], strides = [1, 1]} : vector<400x4xf32> to vector<358x4xf32>
    %23 = arith.truncf %22 : vector<358x4xf32> to vector<358x4xbf16>
    %c3 = arith.constant 3 : index
    %c0_12 = arith.constant 0 : index
    %c0_13 = arith.constant 0 : index
    %24 = vector.load %arg3[%c3, %c0_12, %c0_13] : memref<9x4x16xbf16, #tpu.memory_space<vmem>>, vector<1x4x16xbf16>
    %25 = vector.shape_cast %24 : vector<1x4x16xbf16> to vector<4x16xbf16>
    %cst_14 = arith.constant dense<0.000000e+00> : vector<358x16xf32>
    %26 = tpu.matmul %23, %25, %cst_14 {dimension_numbers = #tpu.dot_dimension_numbers<[1], [0], [0], [1], [0, 0, 1, 1], [], []>} : vector<358x4xbf16>, vector<4x16xbf16>, vector<358x16xf32> -> vector<358x16xf32>
    %27 = arith.addf %21, %26 : vector<358x16xf32>
    %28 = vector.extract_strided_slice %2 {offsets = [21, 0], sizes = [358, 4], strides = [1, 1]} : vector<400x4xf32> to vector<358x4xf32>
    %29 = arith.truncf %28 : vector<358x4xf32> to vector<358x4xbf16>
    %c4 = arith.constant 4 : index
    %c0_15 = arith.constant 0 : index
    %c0_16 = arith.constant 0 : index
    %30 = vector.load %arg3[%c4, %c0_15, %c0_16] : memref<9x4x16xbf16, #tpu.memory_space<vmem>>, vector<1x4x16xbf16>
    %31 = vector.shape_cast %30 : vector<1x4x16xbf16> to vector<4x16xbf16>
    %cst_17 = arith.constant dense<0.000000e+00> : vector<358x16xf32>
    %32 = tpu.matmul %29, %31, %cst_17 {dimension_numbers = #tpu.dot_dimension_numbers<[1], [0], [0], [1], [0, 0, 1, 1], [], []>} : vector<358x4xbf16>, vector<4x16xbf16>, vector<358x16xf32> -> vector<358x16xf32>
    %33 = arith.addf %27, %32 : vector<358x16xf32>
    %34 = vector.extract_strided_slice %2 {offsets = [22, 0], sizes = [358, 4], strides = [1, 1]} : vector<400x4xf32> to vector<358x4xf32>
    %35 = arith.truncf %34 : vector<358x4xf32> to vector<358x4xbf16>
    %c5 = arith.constant 5 : index
    %c0_18 = arith.constant 0 : index
    %c0_19 = arith.constant 0 : index
    %36 = vector.load %arg3[%c5, %c0_18, %c0_19] : memref<9x4x16xbf16, #tpu.memory_space<vmem>>, vector<1x4x16xbf16>
    %37 = vector.shape_cast %36 : vector<1x4x16xbf16> to vector<4x16xbf16>
    %cst_20 = arith.constant dense<0.000000e+00> : vector<358x16xf32>
    %38 = tpu.matmul %35, %37, %cst_20 {dimension_numbers = #tpu.dot_dimension_numbers<[1], [0], [0], [1], [0, 0, 1, 1], [], []>} : vector<358x4xbf16>, vector<4x16xbf16>, vector<358x16xf32> -> vector<358x16xf32>
    %39 = arith.addf %33, %38 : vector<358x16xf32>
    %40 = vector.extract_strided_slice %2 {offsets = [40, 0], sizes = [358, 4], strides = [1, 1]} : vector<400x4xf32> to vector<358x4xf32>
    %41 = arith.truncf %40 : vector<358x4xf32> to vector<358x4xbf16>
    %c6 = arith.constant 6 : index
    %c0_21 = arith.constant 0 : index
    %c0_22 = arith.constant 0 : index
    %42 = vector.load %arg3[%c6, %c0_21, %c0_22] : memref<9x4x16xbf16, #tpu.memory_space<vmem>>, vector<1x4x16xbf16>
    %43 = vector.shape_cast %42 : vector<1x4x16xbf16> to vector<4x16xbf16>
    %cst_23 = arith.constant dense<0.000000e+00> : vector<358x16xf32>
    %44 = tpu.matmul %41, %43, %cst_23 {dimension_numbers = #tpu.dot_dimension_numbers<[1], [0], [0], [1], [0, 0, 1, 1], [], []>} : vector<358x4xbf16>, vector<4x16xbf16>, vector<358x16xf32> -> vector<358x16xf32>
    %45 = arith.addf %39, %44 : vector<358x16xf32>
    %46 = vector.extract_strided_slice %2 {offsets = [41, 0], sizes = [358, 4], strides = [1, 1]} : vector<400x4xf32> to vector<358x4xf32>
    %47 = arith.truncf %46 : vector<358x4xf32> to vector<358x4xbf16>
    %c7 = arith.constant 7 : index
    %c0_24 = arith.constant 0 : index
    %c0_25 = arith.constant 0 : index
    %48 = vector.load %arg3[%c7, %c0_24, %c0_25] : memref<9x4x16xbf16, #tpu.memory_space<vmem>>, vector<1x4x16xbf16>
    %49 = vector.shape_cast %48 : vector<1x4x16xbf16> to vector<4x16xbf16>
    %cst_26 = arith.constant dense<0.000000e+00> : vector<358x16xf32>
    %50 = tpu.matmul %47, %49, %cst_26 {dimension_numbers = #tpu.dot_dimension_numbers<[1], [0], [0], [1], [0, 0, 1, 1], [], []>} : vector<358x4xbf16>, vector<4x16xbf16>, vector<358x16xf32> -> vector<358x16xf32>
    %51 = arith.addf %45, %50 : vector<358x16xf32>
    %52 = vector.extract_strided_slice %2 {offsets = [42, 0], sizes = [358, 4], strides = [1, 1]} : vector<400x4xf32> to vector<358x4xf32>
    %53 = arith.truncf %52 : vector<358x4xf32> to vector<358x4xbf16>
    %c8 = arith.constant 8 : index
    %c0_27 = arith.constant 0 : index
    %c0_28 = arith.constant 0 : index
    %54 = vector.load %arg3[%c8, %c0_27, %c0_28] : memref<9x4x16xbf16, #tpu.memory_space<vmem>>, vector<1x4x16xbf16>
    %55 = vector.shape_cast %54 : vector<1x4x16xbf16> to vector<4x16xbf16>
    %cst_29 = arith.constant dense<0.000000e+00> : vector<358x16xf32>
    %56 = tpu.matmul %53, %55, %cst_29 {dimension_numbers = #tpu.dot_dimension_numbers<[1], [0], [0], [1], [0, 0, 1, 1], [], []>} : vector<358x4xbf16>, vector<4x16xbf16>, vector<358x16xf32> -> vector<358x16xf32>
    %57 = arith.addf %51, %56 : vector<358x16xf32>
    %c0_30 = arith.constant 0 : index
    %c0_31 = arith.constant 0 : index
    %58 = vector.load %arg4[%c0_30, %c0_31] : memref<1x16xf32, #tpu.memory_space<vmem>>, vector<1x16xf32>
    %59 = vector.broadcast %58 : vector<1x16xf32> to vector<358x16xf32>
    %60 = arith.mulf %57, %59 : vector<358x16xf32>
    %c0_32 = arith.constant 0 : index
    %c0_33 = arith.constant 0 : index
    %61 = vector.load %arg5[%c0_32, %c0_33] : memref<1x16xf32, #tpu.memory_space<vmem>>, vector<1x16xf32>
    %62 = vector.broadcast %61 : vector<1x16xf32> to vector<358x16xf32>
    %63 = arith.addf %60, %62 : vector<358x16xf32>
    %cst_34 = arith.constant 0.000000e+00 : f32
    %64 = vector.broadcast %cst_34 : f32 to vector<358x16xf32>
    %65 = arith.maximumf %63, %64 : vector<358x16xf32>
    %c0_35 = arith.constant 0 : index
    %c0_36 = arith.constant 0 : index
    %66 = vector.load %arg2[%c0_35, %c0_36] : memref<358x1xf32, #tpu.memory_space<vmem>>, vector<358x1xf32>
    %67 = vector.broadcast %66 : vector<358x1xf32> to vector<358x16xf32>
    %68 = arith.mulf %65, %67 : vector<358x16xf32>
    %cst_37 = arith.constant 0.000000e+00 : f32
    %69 = vector.broadcast %cst_37 : f32 to vector<316x16xf32>
    %70 = vector.extract_strided_slice %68 {offsets = [0, 0], sizes = [316, 16], strides = [1, 1]} : vector<358x16xf32> to vector<316x16xf32>
    %71 = arith.truncf %70 : vector<316x16xf32> to vector<316x16xbf16>
    %c0_38 = arith.constant 0 : index
    %c0_39 = arith.constant 0 : index
    %c0_40 = arith.constant 0 : index
    %72 = vector.load %arg6[%c0_38, %c0_39, %c0_40] : memref<9x16x16xbf16, #tpu.memory_space<vmem>>, vector<1x16x16xbf16>
    %73 = vector.shape_cast %72 : vector<1x16x16xbf16> to vector<16x16xbf16>
    %cst_41 = arith.constant dense<0.000000e+00> : vector<316x16xf32>
    %74 = tpu.matmul %71, %73, %cst_41 {dimension_numbers = #tpu.dot_dimension_numbers<[1], [0], [0], [1], [0, 0, 1, 1], [], []>} : vector<316x16xbf16>, vector<16x16xbf16>, vector<316x16xf32> -> vector<316x16xf32>
    %75 = arith.addf %69, %74 : vector<316x16xf32>
    %76 = vector.extract_strided_slice %68 {offsets = [1, 0], sizes = [316, 16], strides = [1, 1]} : vector<358x16xf32> to vector<316x16xf32>
    %77 = arith.truncf %76 : vector<316x16xf32> to vector<316x16xbf16>
    %c1_42 = arith.constant 1 : index
    %c0_43 = arith.constant 0 : index
    %c0_44 = arith.constant 0 : index
    %78 = vector.load %arg6[%c1_42, %c0_43, %c0_44] : memref<9x16x16xbf16, #tpu.memory_space<vmem>>, vector<1x16x16xbf16>
    %79 = vector.shape_cast %78 : vector<1x16x16xbf16> to vector<16x16xbf16>
    %cst_45 = arith.constant dense<0.000000e+00> : vector<316x16xf32>
    %80 = tpu.matmul %77, %79, %cst_45 {dimension_numbers = #tpu.dot_dimension_numbers<[1], [0], [0], [1], [0, 0, 1, 1], [], []>} : vector<316x16xbf16>, vector<16x16xbf16>, vector<316x16xf32> -> vector<316x16xf32>
    %81 = arith.addf %75, %80 : vector<316x16xf32>
    %82 = vector.extract_strided_slice %68 {offsets = [2, 0], sizes = [316, 16], strides = [1, 1]} : vector<358x16xf32> to vector<316x16xf32>
    %83 = arith.truncf %82 : vector<316x16xf32> to vector<316x16xbf16>
    %c2_46 = arith.constant 2 : index
    %c0_47 = arith.constant 0 : index
    %c0_48 = arith.constant 0 : index
    %84 = vector.load %arg6[%c2_46, %c0_47, %c0_48] : memref<9x16x16xbf16, #tpu.memory_space<vmem>>, vector<1x16x16xbf16>
    %85 = vector.shape_cast %84 : vector<1x16x16xbf16> to vector<16x16xbf16>
    %cst_49 = arith.constant dense<0.000000e+00> : vector<316x16xf32>
    %86 = tpu.matmul %83, %85, %cst_49 {dimension_numbers = #tpu.dot_dimension_numbers<[1], [0], [0], [1], [0, 0, 1, 1], [], []>} : vector<316x16xbf16>, vector<16x16xbf16>, vector<316x16xf32> -> vector<316x16xf32>
    %87 = arith.addf %81, %86 : vector<316x16xf32>
    %88 = vector.extract_strided_slice %68 {offsets = [20, 0], sizes = [316, 16], strides = [1, 1]} : vector<358x16xf32> to vector<316x16xf32>
    %89 = arith.truncf %88 : vector<316x16xf32> to vector<316x16xbf16>
    %c3_50 = arith.constant 3 : index
    %c0_51 = arith.constant 0 : index
    %c0_52 = arith.constant 0 : index
    %90 = vector.load %arg6[%c3_50, %c0_51, %c0_52] : memref<9x16x16xbf16, #tpu.memory_space<vmem>>, vector<1x16x16xbf16>
    %91 = vector.shape_cast %90 : vector<1x16x16xbf16> to vector<16x16xbf16>
    %cst_53 = arith.constant dense<0.000000e+00> : vector<316x16xf32>
    %92 = tpu.matmul %89, %91, %cst_53 {dimension_numbers = #tpu.dot_dimension_numbers<[1], [0], [0], [1], [0, 0, 1, 1], [], []>} : vector<316x16xbf16>, vector<16x16xbf16>, vector<316x16xf32> -> vector<316x16xf32>
    %93 = arith.addf %87, %92 : vector<316x16xf32>
    %94 = vector.extract_strided_slice %68 {offsets = [21, 0], sizes = [316, 16], strides = [1, 1]} : vector<358x16xf32> to vector<316x16xf32>
    %95 = arith.truncf %94 : vector<316x16xf32> to vector<316x16xbf16>
    %c4_54 = arith.constant 4 : index
    %c0_55 = arith.constant 0 : index
    %c0_56 = arith.constant 0 : index
    %96 = vector.load %arg6[%c4_54, %c0_55, %c0_56] : memref<9x16x16xbf16, #tpu.memory_space<vmem>>, vector<1x16x16xbf16>
    %97 = vector.shape_cast %96 : vector<1x16x16xbf16> to vector<16x16xbf16>
    %cst_57 = arith.constant dense<0.000000e+00> : vector<316x16xf32>
    %98 = tpu.matmul %95, %97, %cst_57 {dimension_numbers = #tpu.dot_dimension_numbers<[1], [0], [0], [1], [0, 0, 1, 1], [], []>} : vector<316x16xbf16>, vector<16x16xbf16>, vector<316x16xf32> -> vector<316x16xf32>
    %99 = arith.addf %93, %98 : vector<316x16xf32>
    %100 = vector.extract_strided_slice %68 {offsets = [22, 0], sizes = [316, 16], strides = [1, 1]} : vector<358x16xf32> to vector<316x16xf32>
    %101 = arith.truncf %100 : vector<316x16xf32> to vector<316x16xbf16>
    %c5_58 = arith.constant 5 : index
    %c0_59 = arith.constant 0 : index
    %c0_60 = arith.constant 0 : index
    %102 = vector.load %arg6[%c5_58, %c0_59, %c0_60] : memref<9x16x16xbf16, #tpu.memory_space<vmem>>, vector<1x16x16xbf16>
    %103 = vector.shape_cast %102 : vector<1x16x16xbf16> to vector<16x16xbf16>
    %cst_61 = arith.constant dense<0.000000e+00> : vector<316x16xf32>
    %104 = tpu.matmul %101, %103, %cst_61 {dimension_numbers = #tpu.dot_dimension_numbers<[1], [0], [0], [1], [0, 0, 1, 1], [], []>} : vector<316x16xbf16>, vector<16x16xbf16>, vector<316x16xf32> -> vector<316x16xf32>
    %105 = arith.addf %99, %104 : vector<316x16xf32>
    %106 = vector.extract_strided_slice %68 {offsets = [40, 0], sizes = [316, 16], strides = [1, 1]} : vector<358x16xf32> to vector<316x16xf32>
    %107 = arith.truncf %106 : vector<316x16xf32> to vector<316x16xbf16>
    %c6_62 = arith.constant 6 : index
    %c0_63 = arith.constant 0 : index
    %c0_64 = arith.constant 0 : index
    %108 = vector.load %arg6[%c6_62, %c0_63, %c0_64] : memref<9x16x16xbf16, #tpu.memory_space<vmem>>, vector<1x16x16xbf16>
    %109 = vector.shape_cast %108 : vector<1x16x16xbf16> to vector<16x16xbf16>
    %cst_65 = arith.constant dense<0.000000e+00> : vector<316x16xf32>
    %110 = tpu.matmul %107, %109, %cst_65 {dimension_numbers = #tpu.dot_dimension_numbers<[1], [0], [0], [1], [0, 0, 1, 1], [], []>} : vector<316x16xbf16>, vector<16x16xbf16>, vector<316x16xf32> -> vector<316x16xf32>
    %111 = arith.addf %105, %110 : vector<316x16xf32>
    %112 = vector.extract_strided_slice %68 {offsets = [41, 0], sizes = [316, 16], strides = [1, 1]} : vector<358x16xf32> to vector<316x16xf32>
    %113 = arith.truncf %112 : vector<316x16xf32> to vector<316x16xbf16>
    %c7_66 = arith.constant 7 : index
    %c0_67 = arith.constant 0 : index
    %c0_68 = arith.constant 0 : index
    %114 = vector.load %arg6[%c7_66, %c0_67, %c0_68] : memref<9x16x16xbf16, #tpu.memory_space<vmem>>, vector<1x16x16xbf16>
    %115 = vector.shape_cast %114 : vector<1x16x16xbf16> to vector<16x16xbf16>
    %cst_69 = arith.constant dense<0.000000e+00> : vector<316x16xf32>
    %116 = tpu.matmul %113, %115, %cst_69 {dimension_numbers = #tpu.dot_dimension_numbers<[1], [0], [0], [1], [0, 0, 1, 1], [], []>} : vector<316x16xbf16>, vector<16x16xbf16>, vector<316x16xf32> -> vector<316x16xf32>
    %117 = arith.addf %111, %116 : vector<316x16xf32>
    %118 = vector.extract_strided_slice %68 {offsets = [42, 0], sizes = [316, 16], strides = [1, 1]} : vector<358x16xf32> to vector<316x16xf32>
    %119 = arith.truncf %118 : vector<316x16xf32> to vector<316x16xbf16>
    %c8_70 = arith.constant 8 : index
    %c0_71 = arith.constant 0 : index
    %c0_72 = arith.constant 0 : index
    %120 = vector.load %arg6[%c8_70, %c0_71, %c0_72] : memref<9x16x16xbf16, #tpu.memory_space<vmem>>, vector<1x16x16xbf16>
    %121 = vector.shape_cast %120 : vector<1x16x16xbf16> to vector<16x16xbf16>
    %cst_73 = arith.constant dense<0.000000e+00> : vector<316x16xf32>
    %122 = tpu.matmul %119, %121, %cst_73 {dimension_numbers = #tpu.dot_dimension_numbers<[1], [0], [0], [1], [0, 0, 1, 1], [], []>} : vector<316x16xbf16>, vector<16x16xbf16>, vector<316x16xf32> -> vector<316x16xf32>
    %123 = arith.addf %117, %122 : vector<316x16xf32>
    %c0_74 = arith.constant 0 : index
    %c0_75 = arith.constant 0 : index
    %124 = vector.load %arg7[%c0_74, %c0_75] : memref<1x16xf32, #tpu.memory_space<vmem>>, vector<1x16xf32>
    %125 = vector.broadcast %124 : vector<1x16xf32> to vector<316x16xf32>
    %126 = arith.mulf %123, %125 : vector<316x16xf32>
    %c0_76 = arith.constant 0 : index
    %c0_77 = arith.constant 0 : index
    %127 = vector.load %arg8[%c0_76, %c0_77] : memref<1x16xf32, #tpu.memory_space<vmem>>, vector<1x16xf32>
    %128 = vector.broadcast %127 : vector<1x16xf32> to vector<316x16xf32>
    %129 = arith.addf %126, %128 : vector<316x16xf32>
    %cst_78 = arith.constant 0.000000e+00 : f32
    %130 = vector.broadcast %cst_78 : f32 to vector<316x16xf32>
    %131 = arith.maximumf %129, %130 : vector<316x16xf32>
    %c0_79 = arith.constant 0 : index
    %c0_80 = arith.constant 0 : index
    %c0_81 = arith.constant 0 : index
    %132 = vector.load %arg9[%c0_79, %c0_80, %c0_81] : memref<1x316x16xf32, #tpu.memory_space<vmem>>, vector<1x316x16xf32>
    %133 = vector.shape_cast %132 : vector<1x316x16xf32> to vector<316x16xf32>
    %134 = vector.shape_cast %131 : vector<316x16xf32> to vector<1x316x16xf32>
    tpu.vector_store %arg9[%c0_79, %c0_80, %c0_81], %134 {strides = array<i32>} : memref<1x316x16xf32, #tpu.memory_space<vmem>>, vector<1x316x16xf32>,
    return
  }
  func.func @transform_0(%arg0: i32) -> (i32, i32, i32) {
    %c0_i32 = arith.constant 0 : i32
    %c0_i32_0 = arith.constant 0 : i32
    %c0_i32_1 = arith.constant 0 : i32
    return %arg0, %c0_i32, %c0_i32_0 : i32, i32, i32
  }
  func.func @transform_1(%arg0: i32) -> (i32, i32) {
    %c0_i32 = arith.constant 0 : i32
    %c0_i32_0 = arith.constant 0 : i32
    %c0_i32_1 = arith.constant 0 : i32
    return %c0_i32, %c0_i32_0 : i32, i32
  }
  func.func @transform_2(%arg0: i32) -> (i32, i32, i32) {
    %c0_i32 = arith.constant 0 : i32
    %c0_i32_0 = arith.constant 0 : i32
    %c0_i32_1 = arith.constant 0 : i32
    %c0_i32_2 = arith.constant 0 : i32
    return %c0_i32, %c0_i32_0, %c0_i32_1 : i32, i32, i32
  }
  func.func @transform_3(%arg0: i32) -> (i32, i32) {
    %c0_i32 = arith.constant 0 : i32
    %c0_i32_0 = arith.constant 0 : i32
    %c0_i32_1 = arith.constant 0 : i32
    return %c0_i32, %c0_i32_0 : i32, i32
  }
  func.func @transform_4(%arg0: i32) -> (i32, i32) {
    %c0_i32 = arith.constant 0 : i32
    %c0_i32_0 = arith.constant 0 : i32
    %c0_i32_1 = arith.constant 0 : i32
    return %c0_i32, %c0_i32_0 : i32, i32
  }
  func.func @transform_5(%arg0: i32) -> (i32, i32, i32) {
    %c0_i32 = arith.constant 0 : i32
    %c0_i32_0 = arith.constant 0 : i32
    %c0_i32_1 = arith.constant 0 : i32
    %c0_i32_2 = arith.constant 0 : i32
    return %c0_i32, %c0_i32_0, %c0_i32_1 : i32, i32, i32
  }
  func.func @transform_6(%arg0: i32) -> (i32, i32) {
    %c0_i32 = arith.constant 0 : i32
    %c0_i32_0 = arith.constant 0 : i32
    %c0_i32_1 = arith.constant 0 : i32
    return %c0_i32, %c0_i32_0 : i32, i32
  }
  func.func @transform_7(%arg0: i32) -> (i32, i32) {
    %c0_i32 = arith.constant 0 : i32
    %c0_i32_0 = arith.constant 0 : i32
    %c0_i32_1 = arith.constant 0 : i32
    return %c0_i32, %c0_i32_0 : i32, i32
  }
  func.func @transform_8(%arg0: i32) -> (i32, i32, i32) {
    %c0_i32 = arith.constant 0 : i32
    %c0_i32_0 = arith.constant 0 : i32
    %c0_i32_1 = arith.constant 0 : i32
    return %arg0, %c0_i32, %c0_i32_0 : i32, i32, i32
  }
}

</mosaic_0001>

<llo_original>
// kernel: conv_layer_forward.1
$region0: #{conv_layer_forward.1}
  #allocation0 [shape = 'u32[]', space=smem, size = 0x4, offset = 0x4, fixed_abs, tag = 'smem constant byte address 0x4 - core index']
  #allocation1 [shape = 'u32[144,128]{1,0:T(1,128)}', space=vmem, size = 0x12000, scoped, tag = 'internal scratch']
  %s0 = inlined_call_operand.vmem [shape: bf16[2,400,4], index: 0, kind: input, shape index: {}]
  %s1 = inlined_call_operand.vmem [shape: f32[358,1], index: 1, kind: input, shape index: {}]
  %s2 = inlined_call_operand.vmem [shape: bf16[9,4,16], index: 2, kind: input, shape index: {}]
  %s3 = inlined_call_operand.vmem [shape: f32[1,16], index: 3, kind: input, shape index: {}]
  %s4 = inlined_call_operand.vmem [shape: f32[1,16], index: 4, kind: input, shape index: {}]
  %s5 = inlined_call_operand.vmem [shape: bf16[9,16,16], index: 5, kind: input, shape index: {}]
  %s6 = inlined_call_operand.vmem [shape: f32[1,16], index: 6, kind: input, shape index: {}]
  %s7 = inlined_call_operand.vmem [shape: f32[1,16], index: 7, kind: input, shape index: {}]
  %s8 = inlined_call_operand.vmem [shape: f32[2,316,16], index: 8, kind: output, shape index: {}]
  %s9 = sld [smem:[#allocation0]]
  $region65: #{conv_layer_forward.1} parent=0
    _
  %s11 = ssub.s32 1, %s9
  %s12 = scalar_select 0, %s11, %s9
  loop: start=0, step=1, limit=4
  $region2: #{conv_layer_forward.1} parent=0 // loop_pre_header
    _
  $region3: #{conv_layer_forward.1} parent=0 // loop_header
    %s14 = sphi 0, %s18
    %p15 = scmp.ge.s32.totalorder %s14, 4
    %s24 = sphi 0, %s26
    %s27 = sphi 0, %s24
    %s28 = sphi 0, %s27
    %s44 = sphi 0, %s28
    %s48 = sphi 0, %s48
    %s50 = sphi 0, %s48
    %s51 = sphi 0, %s50
    %s65 = sphi 0, %s51
    %s69 = sphi 0, %s69
    %s71 = sphi 0, %s69
    %s72 = sphi 0, %s71
    %s86 = sphi 0, %s72
    %s90 = sphi 0, %s90
    %s92 = sphi 0, %s90
    %s93 = sphi 0, %s92
    %s107 = sphi 0, %s93
    %s111 = sphi 0, %s111
    %s113 = sphi 0, %s111
    %s114 = sphi 0, %s113
    %s128 = sphi 0, %s114
    %s132 = sphi 0, %s132
    %s134 = sphi 0, %s132
    %s135 = sphi 0, %s134
    %s149 = sphi 0, %s135
    %s153 = sphi 0, %s153
    %s155 = sphi 0, %s153
    %s156 = sphi 0, %s155
    %s170 = sphi 0, %s156
    %s174 = sphi 0, %s174
    %s176 = sphi 0, %s174
    %s177 = sphi 0, %s176
    %s191 = sphi 0, %s177
    %s197 = sphi 0, %s199
    %s200 = sphi 0, %s197
    %s201 = sphi 0, %s200
    %s217 = sphi 0, %s201
  $region4: #{conv_layer_forward.1} parent=0 // loop_header_branch
    %17 = sbr.rel (%p15) target = $region8
  $region5: #{conv_layer_forward.1} parent=0 // loop_body
    %s19 = ssub.s32 %s14, 1
    %s20 = ssub.s32 %s14, 2
    %s21 = sadd.s32 %s14, 1
    %s22 = ssub.s32 %s14, %s21
    %p23 = scmp.eq.s32.totalorder %s22, 0
    %s25 = sadd.s32 %s24, 1
    %s26 = scalar_select %p23, %s24, %s25
    %p29 = pneg %p23
    %p30 = scmp.eq.s32.totalorder %s14, 1
    %p31 = por %p29, %p30
    %p32 = scmp.ne.s32.totalorder %s24, %s27
    %p33 = scmp.eq.s32.totalorder %s14, 0
    %p34 = por %p32, %p33
    %p35 = scmp.ne.s32.totalorder %s24, %s27
    %p36 = scmp.eq.s32.totalorder %s19, 1
    %p37 = por %p35, %p36
    %p38 = scmp.ne.s32.totalorder %s27, %s28
    %p39 = scmp.eq.s32.totalorder %s19, 0
    %p40 = por %p38, %p39
    %p41 = scmp.ne.s32.totalorder %s27, %s28
    %p42 = scmp.eq.s32.totalorder %s20, 1
    %p43 = por %p41, %p42
    %p45 = scmp.ne.s32.totalorder %s28, %s44
    %p46 = scmp.eq.s32.totalorder %s20, 0
    %p47 = por %p45, %p46
    %s49 = sadd.s32 %s48, 1
    %p52 = scmp.eq.s32.totalorder %s14, 1
    %p53 = scmp.ne.s32.totalorder %s48, %s50
    %p54 = scmp.eq.s32.totalorder %s14, 0
    %p55 = por %p53, %p54
    %p56 = scmp.ne.s32.totalorder %s48, %s50
    %p57 = scmp.eq.s32.totalorder %s19, 1
    %p58 = por %p56, %p57
    %p59 = scmp.ne.s32.totalorder %s50, %s51
    %p60 = scmp.eq.s32.totalorder %s19, 0
    %p61 = por %p59, %p60
    %p62 = scmp.ne.s32.totalorder %s50, %s51
    %p63 = scmp.eq.s32.totalorder %s20, 1
    %p64 = por %p62, %p63
    %p66 = scmp.ne.s32.totalorder %s51, %s65
    %p67 = scmp.eq.s32.totalorder %s20, 0
    %p68 = por %p66, %p67
    %s70 = sadd.s32 %s69, 1
    %p73 = scmp.eq.s32.totalorder %s14, 1
    %p74 = scmp.ne.s32.totalorder %s69, %s71
    %p75 = scmp.eq.s32.totalorder %s14, 0
    %p76 = por %p74, %p75
    %p77 = scmp.ne.s32.totalorder %s69, %s71
    %p78 = scmp.eq.s32.totalorder %s19, 1
    %p79 = por %p77, %p78
    %p80 = scmp.ne.s32.totalorder %s71, %s72
    %p81 = scmp.eq.s32.totalorder %s19, 0
    %p82 = por %p80, %p81
    %p83 = scmp.ne.s32.totalorder %s71, %s72
    %p84 = scmp.eq.s32.totalorder %s20, 1
    %p85 = por %p83, %p84
    %p87 = scmp.ne.s32.totalorder %s72, %s86
    %p88 = scmp.eq.s32.totalorder %s20, 0
    %p89 = por %p87, %p88
    %s91 = sadd.s32 %s90, 1
    %p94 = scmp.eq.s32.totalorder %s14, 1
    %p95 = scmp.ne.s32.totalorder %s90, %s92
    %p96 = scmp.eq.s32.totalorder %s14, 0
    %p97 = por %p95, %p96
    %p98 = scmp.ne.s32.totalorder %s90, %s92
    %p99 = scmp.eq.s32.totalorder %s19, 1
    %p100 = por %p98, %p99
    %p101 = scmp.ne.s32.totalorder %s92, %s93
    %p102 = scmp.eq.s32.totalorder %s19, 0
    %p103 = por %p101, %p102
    %p104 = scmp.ne.s32.totalorder %s92, %s93
    %p105 = scmp.eq.s32.totalorder %s20, 1
    %p106 = por %p104, %p105
    %p108 = scmp.ne.s32.totalorder %s93, %s107
    %p109 = scmp.eq.s32.totalorder %s20, 0
    %p110 = por %p108, %p109
    %s112 = sadd.s32 %s111, 1
    %p115 = scmp.eq.s32.totalorder %s14, 1
    %p116 = scmp.ne.s32.totalorder %s111, %s113
    %p117 = scmp.eq.s32.totalorder %s14, 0
    %p118 = por %p116, %p117
    %p119 = scmp.ne.s32.totalorder %s111, %s113
    %p120 = scmp.eq.s32.totalorder %s19, 1
    %p121 = por %p119, %p120
    %p122 = scmp.ne.s32.totalorder %s113, %s114
    %p123 = scmp.eq.s32.totalorder %s19, 0
    %p124 = por %p122, %p123
    %p125 = scmp.ne.s32.totalorder %s113, %s114
    %p126 = scmp.eq.s32.totalorder %s20, 1
    %p127 = por %p125, %p126
    %p129 = scmp.ne.s32.totalorder %s114, %s128
    %p130 = scmp.eq.s32.totalorder %s20, 0
    %p131 = por %p129, %p130
    %s133 = sadd.s32 %s132, 1
    %p136 = scmp.eq.s32.totalorder %s14, 1
    %p137 = scmp.ne.s32.totalorder %s132, %s134
    %p138 = scmp.eq.s32.totalorder %s14, 0
    %p139 = por %p137, %p138
    %p140 = scmp.ne.s32.totalorder %s132, %s134
    %p141 = scmp.eq.s32.totalorder %s19, 1
    %p142 = por %p140, %p141
    %p143 = scmp.ne.s32.totalorder %s134, %s135
    %p144 = scmp.eq.s32.totalorder %s19, 0
    %p145 = por %p143, %p144
    %p146 = scmp.ne.s32.totalorder %s134, %s135
    %p147 = scmp.eq.s32.totalorder %s20, 1
    %p148 = por %p146, %p147
    %p150 = scmp.ne.s32.totalorder %s135, %s149
    %p151 = scmp.eq.s32.totalorder %s20, 0
    %p152 = por %p150, %p151
    %s154 = sadd.s32 %s153, 1
    %p157 = scmp.eq.s32.totalorder %s14, 1
    %p158 = scmp.ne.s32.totalorder %s153, %s155
    %p159 = scmp.eq.s32.totalorder %s14, 0
    %p160 = por %p158, %p159
    %p161 = scmp.ne.s32.totalorder %s153, %s155
    %p162 = scmp.eq.s32.totalorder %s19, 1
    %p163 = por %p161, %p162
    %p164 = scmp.ne.s32.totalorder %s155, %s156
    %p165 = scmp.eq.s32.totalorder %s19, 0
    %p166 = por %p164, %p165
    %p167 = scmp.ne.s32.totalorder %s155, %s156
    %p168 = scmp.eq.s32.totalorder %s20, 1
    %p169 = por %p167, %p168
    %p171 = scmp.ne.s32.totalorder %s156, %s170
    %p172 = scmp.eq.s32.totalorder %s20, 0
    %p173 = por %p171, %p172
    %s175 = sadd.s32 %s174, 1
    %p178 = scmp.eq.s32.totalorder %s14, 1
    %p179 = scmp.ne.s32.totalorder %s174, %s176
    %p180 = scmp.eq.s32.totalorder %s14, 0
    %p181 = por %p179, %p180
    %p182 = scmp.ne.s32.totalorder %s174, %s176
    %p183 = scmp.eq.s32.totalorder %s19, 1
    %p184 = por %p182, %p183
    %p185 = scmp.ne.s32.totalorder %s176, %s177
    %p186 = scmp.eq.s32.totalorder %s19, 0
    %p187 = por %p185, %p186
    %p188 = scmp.ne.s32.totalorder %s176, %s177
    %p189 = scmp.eq.s32.totalorder %s20, 1
    %p190 = por %p188, %p189
    %p192 = scmp.ne.s32.totalorder %s177, %s191
    %p193 = scmp.eq.s32.totalorder %s20, 0
    %p194 = por %p192, %p193
    %s195 = ssub.s32 %s14, %s21
    %p196 = scmp.eq.s32.totalorder %s195, 0
    %s198 = sadd.s32 %s197, 1
    %s199 = scalar_select %p196, %s197, %s198
    %p202 = pneg %p196
    %p203 = scmp.eq.s32.totalorder %s14, 1
    %p204 = por %p202, %p203
    %p205 = scmp.ne.s32.totalorder %s197, %s200
    %p206 = scmp.eq.s32.totalorder %s14, 0
    %p207 = por %p205, %p206
    %p208 = scmp.ne.s32.totalorder %s197, %s200
    %p209 = scmp.eq.s32.totalorder %s19, 1
    %p210 = por %p208, %p209
    %p211 = scmp.ne.s32.totalorder %s200, %s201
    %p212 = scmp.eq.s32.totalorder %s19, 0
    %p213 = por %p211, %p212
    %p214 = scmp.ne.s32.totalorder %s200, %s201
    %p215 = scmp.eq.s32.totalorder %s20, 1
    %p216 = por %p214, %p215
    %p218 = scmp.ne.s32.totalorder %s201, %s217
    %p219 = scmp.eq.s32.totalorder %s20, 0
    %p220 = por %p218, %p219
    %p221 = scmp.le.s32.totalorder 1, %s14
    %p222 = scmp.lt.s32.totalorder %s14, 3
    %p223 = pnand %p221, %p222
    %p224 = pneg %p223
    // Predicated region
    $region9: #{conv_layer_forward.1} parent=5 // pred_check
      _
    $region10: #{conv_layer_forward.1} parent=5 // pred_check_branch
      %226 = sbr.rel (%p223) target = $region12
    $region11: #{conv_layer_forward.1} parent=5 // pred_region
      %s227 = ssub.s32 %s14, 1
      // Predicated region
      $region13: #{conv_layer_forward.1} parent=11 // pred_check
        %p228 = pneg %p61
      $region14: #{conv_layer_forward.1} parent=11 // pred_check_branch
        %230 = sbr.rel (%p228) target = $region16
      $region15: #{conv_layer_forward.1} parent=11 // pred_region
        _
      $region16: #{conv_layer_forward.1} parent=11 // pred_fallthru
        _
      // Predicated region
      $region17: #{conv_layer_forward.1} parent=11 // pred_check
        %p231 = pneg %p82
      $region18: #{conv_layer_forward.1} parent=11 // pred_check_branch
        %233 = sbr.rel (%p231) target = $region20
      $region19: #{conv_layer_forward.1} parent=11 // pred_region
        _
      $region20: #{conv_layer_forward.1} parent=11 // pred_fallthru
        _
      // Predicated region
      $region21: #{conv_layer_forward.1} parent=11 // pred_check
        %p234 = pneg %p103
      $region22: #{conv_layer_forward.1} parent=11 // pred_check_branch
        %236 = sbr.rel (%p234) target = $region24
      $region23: #{conv_layer_forward.1} parent=11 // pred_region
        _
      $region24: #{conv_layer_forward.1} parent=11 // pred_fallthru
        _
      // Predicated region
      $region25: #{conv_layer_forward.1} parent=11 // pred_check
        %p237 = pneg %p124
      $region26: #{conv_layer_forward.1} parent=11 // pred_check_branch
        %239 = sbr.rel (%p237) target = $region28
      $region27: #{conv_layer_forward.1} parent=11 // pred_region
        _
      $region28: #{conv_layer_forward.1} parent=11 // pred_fallthru
        _
      // Predicated region
      $region29: #{conv_layer_forward.1} parent=11 // pred_check
        %p240 = pneg %p145
      $region30: #{conv_layer_forward.1} parent=11 // pred_check_branch
        %242 = sbr.rel (%p240) target = $region32
      $region31: #{conv_layer_forward.1} parent=11 // pred_region
        _
      $region32: #{conv_layer_forward.1} parent=11 // pred_fallthru
        _
      // Predicated region
      $region33: #{conv_layer_forward.1} parent=11 // pred_check
        %p243 = pneg %p166
      $region34: #{conv_layer_forward.1} parent=11 // pred_check_branch
        %245 = sbr.rel (%p243) target = $region36
      $region35: #{conv_layer_forward.1} parent=11 // pred_region
        _
      $region36: #{conv_layer_forward.1} parent=11 // pred_fallthru
        _
      // Predicated region
      $region37: #{conv_layer_forward.1} parent=11 // pred_check
        %p246 = pneg %p187
      $region38: #{conv_layer_forward.1} parent=11 // pred_check_branch
        %248 = sbr.rel (%p246) target = $region40
      $region39: #{conv_layer_forward.1} parent=11 // pred_region
        _
      $region40: #{conv_layer_forward.1} parent=11 // pred_fallthru
        _
    $region12: #{conv_layer_forward.1} parent=5 // pred_fallthru
      _
    %p249 = scmp.lt.s32.totalorder %s14, 2
    // Predicated region
    $region41: #{conv_layer_forward.1} parent=5 // pred_check
      %p250 = pneg %p249
    $region42: #{conv_layer_forward.1} parent=5 // pred_check_branch
      %252 = sbr.rel (%p250) target = $region44
    $region43: #{conv_layer_forward.1} parent=5 // pred_region
      // Predicated region
      $region45: #{conv_layer_forward.1} parent=43 // pred_check
        %p253 = pneg %p34
      $region46: #{conv_layer_forward.1} parent=43 // pred_check_branch
        %255 = sbr.rel (%p253) target = $region48
      $region47: #{conv_layer_forward.1} parent=43 // pred_region
        %p256 = scmp.lt.s32.totalorder %s14, 1
        %s257 = scalar_select %p256, %s14, 1
        %s258 = smul.addr %s257, 50
        %s259 = smul.addr %s258, 4
        %s260 = scalar_lea.vmem %s0, %s259
      $region48: #{conv_layer_forward.1} parent=43 // pred_fallthru
        _
    $region44: #{conv_layer_forward.1} parent=5 // pred_fallthru
      _
    %p261 = scmp.le.s32.totalorder 1, %s14
    %p262 = scmp.lt.s32.totalorder %s14, 3
    %p263 = pnand %p261, %p262
    %p264 = pneg %p263
    // Predicated region
    $region49: #{conv_layer_forward.1} parent=5 // pred_check
      _
    $region50: #{conv_layer_forward.1} parent=5 // pred_check_branch
      %266 = sbr.rel (%p263) target = $region52
    $region51: #{conv_layer_forward.1} parent=5 // pred_region
      %s267 = ssub.s32 %s14, 1
      %p268 = scmp.lt.s32.totalorder %s19, 1
      %s269 = scalar_select %p268, %s19, 1
      %s270 = smul.addr %s269, 50
      %s271 = smul.addr %s270, 4
      %s272 = scalar_lea.vmem %s0, %s271
      %p273 = pneg %p40
      %p274 = pneg %p37
      %p275 = pneg %p61
      %p276 = pneg %p58
      %p277 = pneg %p82
      %p278 = pneg %p79
      %p279 = pneg %p103
      %p280 = pneg %p100
      %p281 = pneg %p124
      %p282 = pneg %p121
      %p283 = pneg %p145
      %p284 = pneg %p142
      %p285 = pneg %p166
      %p286 = pneg %p163
      %p287 = pneg %p187
      %p288 = pneg %p184
      %p289 = pneg %p213
      %p290 = pneg %p210
      %p291 = scmp.lt.s32.totalorder %s19, 1
      %s292 = scalar_select %p291, %s19, 1
      %s293 = smul.addr %s292, 40
      %s294 = smul.addr %s293, 8
      %s295 = scalar_lea.vmem %s8, %s294
      %p296 = scmp.lt.s32.totalorder %s19, 1
      %s297 = scalar_select %p296, %s19, 1
      %s298 = smul.addr %s297, 50
      %s299 = smul.addr %s298, 4
      %s300 = scalar_lea.vmem %s0, %s299
      %p301 = scmp.lt.s32.totalorder %s19, 1
      %s302 = scalar_select %p301, %s19, 1
      %s303 = smul.addr %s302, 40
      %s304 = smul.addr %s303, 8
      %s305 = scalar_lea.vmem %s8, %s304
      %v307 = vld [vmem:[%s300] sm:$0xf]
      %v308 = vld [vmem:[%s300 + $0x4] sm:$0xf]
      %v309 = vld [vmem:[%s300 + $0x8] sm:$0xf]
      %v310 = vld [vmem:[%s300 + $0xc] sm:$0xf]
      %v311 = vld [vmem:[%s300 + $0x10] sm:$0xf]
      %v312 = vld [vmem:[%s300 + $0x14] sm:$0xf]
      %v313 = vld [vmem:[%s300 + $0x18] sm:$0xf]
      %v314 = vld [vmem:[%s300 + $0x1c] sm:$0xf]
      %v315 = vld [vmem:[%s300 + $0x20] sm:$0xf]
      %v316 = vld [vmem:[%s300 + $0x24] sm:$0xf]
      %v317 = vld [vmem:[%s300 + $0x28] sm:$0xf]
      %v318 = vld [vmem:[%s300 + $0x2c] sm:$0xf]
      %v319 = vld [vmem:[%s300 + $0x30] sm:$0xf]
      %v320 = vld [vmem:[%s300 + $0x34] sm:$0xf]
      %v321 = vld [vmem:[%s300 + $0x38] sm:$0xf]
      %v322 = vld [vmem:[%s300 + $0x3c] sm:$0xf]
      %v323 = vld [vmem:[%s300 + $0x40] sm:$0xf]
      %v324 = vld [vmem:[%s300 + $0x44] sm:$0xf]
      %v325 = vld [vmem:[%s300 + $0x48] sm:$0xf]
      %v326 = vld [vmem:[%s300 + $0x4c] sm:$0xf]
      %v327 = vld [vmem:[%s300 + $0x50] sm:$0xf]
      %v328 = vld [vmem:[%s300 + $0x54] sm:$0xf]
      %v329 = vld [vmem:[%s300 + $0x58] sm:$0xf]
      %v330 = vld [vmem:[%s300 + $0x5c] sm:$0xf]
      %v331 = vld [vmem:[%s300 + $0x60] sm:$0xf]
      %v332 = vld [vmem:[%s300 + $0x64] sm:$0xf]
      %v333 = vld [vmem:[%s300 + $0x68] sm:$0xf]
      %v334 = vld [vmem:[%s300 + $0x6c] sm:$0xf]
      %v335 = vld [vmem:[%s300 + $0x70] sm:$0xf]
      %v336 = vld [vmem:[%s300 + $0x74] sm:$0xf]
      %v337 = vld [vmem:[%s300 + $0x78] sm:$0xf]
      %v338 = vld [vmem:[%s300 + $0x7c] sm:$0xf]
      %v339 = vld [vmem:[%s300 + $0x80] sm:$0xf]
      %v340 = vld [vmem:[%s300 + $0x84] sm:$0xf]
      %v341 = vld [vmem:[%s300 + $0x88] sm:$0xf]
      %v342 = vld [vmem:[%s300 + $0x8c] sm:$0xf]
      %v343 = vld [vmem:[%s300 + $0x90] sm:$0xf]
      %v344 = vld [vmem:[%s300 + $0x94] sm:$0xf]
      %v345 = vld [vmem:[%s300 + $0x98] sm:$0xf]
      %v346 = vld [vmem:[%s300 + $0x9c] sm:$0xf]
      %v347 = vld [vmem:[%s300 + $0xa0] sm:$0xf]
      %v348 = vld [vmem:[%s300 + $0xa4] sm:$0xf]
      %v349 = vld [vmem:[%s300 + $0xa8] sm:$0xf]
      %v350 = vld [vmem:[%s300 + $0xac] sm:$0xf]
      %v351 = vld [vmem:[%s300 + $0xb0] sm:$0xf]
      %v352 = vld [vmem:[%s300 + $0xb4] sm:$0xf]
      %v353 = vld [vmem:[%s300 + $0xb8] sm:$0xf]
      %v354 = vld [vmem:[%s300 + $0xbc] sm:$0xf]
      %v355 = vld [vmem:[%s300 + $0xc0] sm:$0xf]
      %v356 = vld [vmem:[%s300 + $0xc4] sm:$0xf]
      %v357 = vunpack.c.l.bf16 %v307
      %v358 = vunpack.c.l.bf16 %v308
      %v359 = vunpack.c.l.bf16 %v309
      %v360 = vunpack.c.l.bf16 %v310
      %v361 = vunpack.c.l.bf16 %v311
      %v362 = vunpack.c.l.bf16 %v312
      %v363 = vunpack.c.l.bf16 %v313
      %v364 = vunpack.c.l.bf16 %v314
      %v365 = vunpack.c.l.bf16 %v315
      %v366 = vunpack.c.l.bf16 %v316
      %v367 = vunpack.c.l.bf16 %v317
      %v368 = vunpack.c.l.bf16 %v318
      %v369 = vunpack.c.l.bf16 %v319
      %v370 = vunpack.c.l.bf16 %v320
      %v371 = vunpack.c.l.bf16 %v321
      %v372 = vunpack.c.l.bf16 %v322
      %v373 = vunpack.c.l.bf16 %v323
      %v374 = vunpack.c.l.bf16 %v324
      %v375 = vunpack.c.l.bf16 %v325
      %v376 = vunpack.c.l.bf16 %v326
      %v377 = vunpack.c.l.bf16 %v327
      %v378 = vunpack.c.l.bf16 %v328
      %v379 = vunpack.c.l.bf16 %v329
      %v380 = vunpack.c.l.bf16 %v330
      %v381 = vunpack.c.l.bf16 %v331
      %v382 = vunpack.c.l.bf16 %v332
      %v383 = vunpack.c.l.bf16 %v333
      %v384 = vunpack.c.l.bf16 %v334
      %v385 = vunpack.c.l.bf16 %v335
      %v386 = vunpack.c.l.bf16 %v336
      %v387 = vunpack.c.l.bf16 %v337
      %v388 = vunpack.c.l.bf16 %v338
      %v389 = vunpack.c.l.bf16 %v339
      %v390 = vunpack.c.l.bf16 %v340
      %v391 = vunpack.c.l.bf16 %v341
      %v392 = vunpack.c.l.bf16 %v342
      %v393 = vunpack.c.l.bf16 %v343
      %v394 = vunpack.c.l.bf16 %v344
      %v395 = vunpack.c.l.bf16 %v345
      %v396 = vunpack.c.l.bf16 %v346
      %v397 = vunpack.c.l.bf16 %v347
      %v398 = vunpack.c.l.bf16 %v348
      %v399 = vunpack.c.l.bf16 %v349
      %v400 = vunpack.c.l.bf16 %v350
      %v401 = vunpack.c.l.bf16 %v351
      %v402 = vunpack.c.l.bf16 %v352
      %v403 = vunpack.c.l.bf16 %v353
      %v404 = vunpack.c.l.bf16 %v354
      %v405 = vunpack.c.l.bf16 %v355
      %v406 = vunpack.c.l.bf16 %v356
      %v407 = vpack.c.bf16 %v358, %v357
      %v408 = vpack.c.bf16 %v360, %v359
      %v409 = vpack.c.bf16 %v362, %v361
      %v410 = vpack.c.bf16 %v364, %v363
      %v411 = vpack.c.bf16 %v366, %v365
      %v412 = vpack.c.bf16 %v368, %v367
      %v413 = vpack.c.bf16 %v370, %v369
      %v414 = vpack.c.bf16 %v372, %v371
      %v415 = vpack.c.bf16 %v374, %v373
      %v416 = vpack.c.bf16 %v376, %v375
      %v417 = vpack.c.bf16 %v378, %v377
      %v418 = vpack.c.bf16 %v380, %v379
      %v419 = vpack.c.bf16 %v382, %v381
      %v420 = vpack.c.bf16 %v384, %v383
      %v421 = vpack.c.bf16 %v386, %v385
      %v422 = vpack.c.bf16 %v388, %v387
      %v423 = vpack.c.bf16 %v390, %v389
      %v424 = vpack.c.bf16 %v392, %v391
      %v425 = vpack.c.bf16 %v394, %v393
      %v426 = vpack.c.bf16 %v396, %v395
      %v427 = vpack.c.bf16 %v398, %v397
      %v428 = vpack.c.bf16 %v400, %v399
      %v429 = vpack.c.bf16 %v401, %v401
      %v430 = vld [vmem:[%s2] sm:$0x3]
      %s431 = scalar_lea.vmem %s2, 2
      %v432 = vld [vmem:[%s431] sm:$0x3]
      %vm433 = vsmask.f32 7424
      %v435 = vshrl.u32 %v407, 16
      %v437 = vshll.u32 %v407, 16
      %v439 = vrot.slane %v437, 1
      %v440 = vor.u32 %v435, %v439
      %v442 = vshll.u32 %v408, 16
      %v444 = vrot.slane %v442, 1
      %v445 = vsel %vm433, %v440, %v444
      %v446 = vshrl.u32 %v408, 16
      %v448 = vor.u32 %v446, %v444
      %v450 = vshll.u32 %v409, 16
      %v452 = vrot.slane %v450, 1
      %v453 = vsel %vm433, %v448, %v452
      %v454 = vshrl.u32 %v409, 16
      %v456 = vor.u32 %v454, %v452
      %v458 = vshll.u32 %v410, 16
      %v460 = vrot.slane %v458, 1
      %v461 = vsel %vm433, %v456, %v460
      %v462 = vshrl.u32 %v410, 16
      %v464 = vor.u32 %v462, %v460
      %v466 = vshll.u32 %v411, 16
      %v468 = vrot.slane %v466, 1
      %v469 = vsel %vm433, %v464, %v468
      %v470 = vshrl.u32 %v411, 16
      %v472 = vor.u32 %v470, %v468
      %v474 = vshll.u32 %v412, 16
      %v476 = vrot.slane %v474, 1
      %v477 = vsel %vm433, %v472, %v476
      %v478 = vshrl.u32 %v412, 16
      %v480 = vor.u32 %v478, %v476
      %v482 = vshll.u32 %v413, 16
      %v484 = vrot.slane %v482, 1
      %v485 = vsel %vm433, %v480, %v484
      %v486 = vshrl.u32 %v413, 16
      %v488 = vor.u32 %v486, %v484
      %v490 = vshll.u32 %v414, 16
      %v492 = vrot.slane %v490, 1
      %v493 = vsel %vm433, %v488, %v492
      %v494 = vshrl.u32 %v414, 16
      %v496 = vor.u32 %v494, %v492
      %v498 = vshll.u32 %v415, 16
      %v500 = vrot.slane %v498, 1
      %v501 = vsel %vm433, %v496, %v500
      %v502 = vshrl.u32 %v415, 16
      %v504 = vor.u32 %v502, %v500
      %v506 = vshll.u32 %v416, 16
      %v508 = vrot.slane %v506, 1
      %v509 = vsel %vm433, %v504, %v508
      %v510 = vshrl.u32 %v416, 16
      %v512 = vor.u32 %v510, %v508
      %v514 = vshll.u32 %v417, 16
      %v516 = vrot.slane %v514, 1
      %v517 = vsel %vm433, %v512, %v516
      %v518 = vshrl.u32 %v417, 16
      %v520 = vor.u32 %v518, %v516
      %v522 = vshll.u32 %v418, 16
      %v524 = vrot.slane %v522, 1
      %v525 = vsel %vm433, %v520, %v524
      %v526 = vshrl.u32 %v418, 16
      %v528 = vor.u32 %v526, %v524
      %v530 = vshll.u32 %v419, 16
      %v532 = vrot.slane %v530, 1
      %v533 = vsel %vm433, %v528, %v532
      %v534 = vshrl.u32 %v419, 16
      %v536 = vor.u32 %v534, %v532
      %v538 = vshll.u32 %v420, 16
      %v540 = vrot.slane %v538, 1
      %v541 = vsel %vm433, %v536, %v540
      %v542 = vshrl.u32 %v420, 16
      %v544 = vor.u32 %v542, %v540
      %v546 = vshll.u32 %v421, 16
      %v548 = vrot.slane %v546, 1
      %v549 = vsel %vm433, %v544, %v548
      %v550 = vshrl.u32 %v421, 16
      %v552 = vor.u32 %v550, %v548
      %v554 = vshll.u32 %v422, 16
      %v556 = vrot.slane %v554, 1
      %v557 = vsel %vm433, %v552, %v556
      %v558 = vshrl.u32 %v422, 16
      %v560 = vor.u32 %v558, %v556
      %v562 = vshll.u32 %v423, 16
      %v564 = vrot.slane %v562, 1
      %v565 = vsel %vm433, %v560, %v564
      %v566 = vshrl.u32 %v423, 16
      %v568 = vor.u32 %v566, %v564
      %v570 = vshll.u32 %v424, 16
      %v572 = vrot.slane %v570, 1
      %v573 = vsel %vm433, %v568, %v572
      %v574 = vshrl.u32 %v424, 16
      %v576 = vor.u32 %v574, %v572
      %v578 = vshll.u32 %v425, 16
      %v580 = vrot.slane %v578, 1
      %v581 = vsel %vm433, %v576, %v580
      %v582 = vshrl.u32 %v425, 16
      %v584 = vor.u32 %v582, %v580
      %v586 = vshll.u32 %v426, 16
      %v588 = vrot.slane %v586, 1
      %v589 = vsel %vm433, %v584, %v588
      %v590 = vshrl.u32 %v426, 16
      %v592 = vor.u32 %v590, %v588
      %v594 = vshll.u32 %v427, 16
      %v596 = vrot.slane %v594, 1
      %v597 = vsel %vm433, %v592, %v596
      %v598 = vshrl.u32 %v427, 16
      %v600 = vor.u32 %v598, %v596
      %v602 = vshll.u32 %v428, 16
      %v604 = vrot.slane %v602, 1
      %v605 = vsel %vm433, %v600, %v604
      %v606 = vshrl.u32 %v428, 16
      %v608 = vor.u32 %v606, %v604
      %v610 = vshll.u32 %v429, 16
      %v612 = vrot.slane %v610, 1
      %v613 = vsel %vm433, %v608, %v612
      %v614 = vshrl.u32 %v429, 16
      %v616 = vor.u32 %v614, %v612
      %vm617 = vcmask 31744
      %v619 = vsel %vm617, %v445, 0
      %v622 = vsel %vm617, %v453, 0
      %v625 = vsel %vm617, %v461, 0
      %v628 = vsel %vm617, %v469, 0
      %v631 = vsel %vm617, %v477, 0
      %v634 = vsel %vm617, %v485, 0
      %v637 = vsel %vm617, %v493, 0
      %v640 = vsel %vm617, %v501, 0
      %v643 = vsel %vm617, %v509, 0
      %v646 = vsel %vm617, %v517, 0
      %v649 = vsel %vm617, %v525, 0
      %v652 = vsel %vm617, %v533, 0
      %v655 = vsel %vm617, %v541, 0
      %v658 = vsel %vm617, %v549, 0
      %v661 = vsel %vm617, %v557, 0
      %v664 = vsel %vm617, %v565, 0
      %v667 = vsel %vm617, %v573, 0
      %v670 = vsel %vm617, %v581, 0
      %v673 = vsel %vm617, %v589, 0
      %v676 = vsel %vm617, %v597, 0
      %v679 = vsel %vm617, %v605, 0
      %v682 = vsel %vm617, %v613, 0
      %v685 = vsel %vm617, %v616, 0
      %vm687 = vcmask 1041408
      %v689 = vsel %vm687, %v432, 0
      %691 = vmatprep.subr.bf16.mxu0 0
      %692 = vmatpush1.bf16.msra.mxu0 %v689
      %693 = vmatprep.subr.bf16.mxu0 0
      %694 = vmatpush1.bf16.msra.mxu0 0
      %695 = vmatprep.subr.bf16.mxu0 0
      %696 = vmatpush1.bf16.msra.mxu0 0
      %697 = vmatprep.subr.bf16.mxu0 0
      %698 = vmatpush1.bf16.msra.mxu0 0
      %699 = vmatprep.subr.bf16.mxu0 0
      %700 = vmatpush1.bf16.msra.mxu0 0
      %701 = vmatprep.subr.bf16.mxu0 0
      %702 = vmatpush1.bf16.msra.mxu0 0
      %703 = vmatprep.subr.bf16.mxu0 0
      %704 = vmatpush1.bf16.msra.mxu0 0
      %705 = vmatprep.subr.bf16.mxu0 0
      %706 = vmatpush1.bf16.msra.mxu0 0
      %707 = vmatprep.subr.bf16.mxu0 0
      %708 = vmatpush1.bf16.msra.mxu0 0
      %709 = vmatprep.subr.bf16.mxu0 0
      %710 = vmatpush1.bf16.msra.mxu0 0
      %711 = vmatprep.subr.bf16.mxu0 0
      %712 = vmatpush1.bf16.msra.mxu0 0
      %713 = vmatprep.subr.bf16.mxu0 0
      %714 = vmatpush1.bf16.msra.mxu0 0
      %715 = vmatprep.subr.bf16.mxu0 0
      %716 = vmatpush1.bf16.msra.mxu0 0
      %717 = vmatprep.subr.bf16.mxu0 0
      %718 = vmatpush1.bf16.msra.mxu0 0
      %719 = vmatprep.subr.bf16.mxu0 0
      %720 = vmatpush1.bf16.msra.mxu0 0
      %721 = vmatprep.subr.bf16.mxu0 0
      %722 = vmatpush1.bf16.msra.mxu0 0
      %723 = vmatprep.mubr.bf16.mxu0 0
      %724 = vmatmul.mubr.bf16.gmra.mrb[0].mxu0 %v619
      %v725 = vpop.f32.mrb[0].mxu0
      %v726 = vadd.f32 0.0, %v725
      %v727 = vpop.f32.mrb[0].mxu0
      %v728 = vpop.f32.mrb[0].mxu0
      %v729 = vadd.f32 0.0, %v728
      %v730 = vpop.f32.mrb[0].mxu0
      %731 = vmatprep.mubr.bf16.mxu0 0
      %732 = vmatmul.mubr.bf16.gmra.mrb[0].mxu0 %v622
      %v733 = vpop.f32.mrb[0].mxu0
      %v734 = vadd.f32 0.0, %v733
      %v735 = vpop.f32.mrb[0].mxu0
      %v736 = vpop.f32.mrb[0].mxu0
      %v737 = vadd.f32 0.0, %v736
      %v738 = vpop.f32.mrb[0].mxu0
      %739 = vmatprep.mubr.bf16.mxu0 0
      %740 = vmatmul.mubr.bf16.gmra.mrb[0].mxu0 %v625
      %v741 = vpop.f32.mrb[0].mxu0
      %v742 = vadd.f32 0.0, %v741
      %v743 = vpop.f32.mrb[0].mxu0
      %v744 = vpop.f32.mrb[0].mxu0
      %v745 = vadd.f32 0.0, %v744
      %v746 = vpop.f32.mrb[0].mxu0
      %747 = vmatprep.mubr.bf16.mxu0 0
      %748 = vmatmul.mubr.bf16.gmra.mrb[0].mxu0 %v628
      %v749 = vpop.f32.mrb[0].mxu0
      %v750 = vadd.f32 0.0, %v749
      %v751 = vpop.f32.mrb[0].mxu0
      %v752 = vpop.f32.mrb[0].mxu0
      %v753 = vadd.f32 0.0, %v752
      %v754 = vpop.f32.mrb[0].mxu0
      %755 = vmatprep.mubr.bf16.mxu0 0
      %756 = vmatmul.mubr.bf16.gmra.mrb[0].mxu0 %v631
      %v757 = vpop.f32.mrb[0].mxu0
      %v758 = vadd.f32 0.0, %v757
      %v759 = vpop.f32.mrb[0].mxu0
      %v760 = vpop.f32.mrb[0].mxu0
      %v761 = vadd.f32 0.0, %v760
      %v762 = vpop.f32.mrb[0].mxu0
      %763 = vmatprep.mubr.bf16.mxu0 0
      %764 = vmatmul.mubr.bf16.gmra.mrb[0].mxu0 %v634
      %v765 = vpop.f32.mrb[0].mxu0
      %v766 = vadd.f32 0.0, %v765
      %v767 = vpop.f32.mrb[0].mxu0
      %v768 = vpop.f32.mrb[0].mxu0
      %v769 = vadd.f32 0.0, %v768
      %v770 = vpop.f32.mrb[0].mxu0
      %771 = vmatprep.mubr.bf16.mxu0 0
      %772 = vmatmul.mubr.bf16.gmra.mrb[0].mxu0 %v637
      %v773 = vpop.f32.mrb[0].mxu0
      %v774 = vadd.f32 0.0, %v773
      %v775 = vpop.f32.mrb[0].mxu0
      %v776 = vpop.f32.mrb[0].mxu0
      %v777 = vadd.f32 0.0, %v776
      %v778 = vpop.f32.mrb[0].mxu0
      %779 = vmatprep.mubr.bf16.mxu0 0
      %780 = vmatmul.mubr.bf16.gmra.mrb[0].mxu0 %v640
      %v781 = vpop.f32.mrb[0].mxu0
      %v782 = vadd.f32 0.0, %v781
      %v783 = vpop.f32.mrb[0].mxu0
      %v784 = vpop.f32.mrb[0].mxu0
      %v785 = vadd.f32 0.0, %v784
      %v786 = vpop.f32.mrb[0].mxu0
      %787 = vmatprep.mubr.bf16.mxu0 0
      %788 = vmatmul.mubr.bf16.gmra.mrb[0].mxu0 %v643
      %v789 = vpop.f32.mrb[0].mxu0
      %v790 = vadd.f32 0.0, %v789
      %v791 = vpop.f32.mrb[0].mxu0
      %v792 = vpop.f32.mrb[0].mxu0
      %v793 = vadd.f32 0.0, %v792
      %v794 = vpop.f32.mrb[0].mxu0
      %795 = vmatprep.mubr.bf16.mxu0 0
      %796 = vmatmul.mubr.bf16.gmra.mrb[0].mxu0 %v646
      %v797 = vpop.f32.mrb[0].mxu0
      %v798 = vadd.f32 0.0, %v797
      %v799 = vpop.f32.mrb[0].mxu0
      %v800 = vpop.f32.mrb[0].mxu0
      %v801 = vadd.f32 0.0, %v800
      %v802 = vpop.f32.mrb[0].mxu0
      %803 = vmatprep.mubr.bf16.mxu0 0
      %804 = vmatmul.mubr.bf16.gmra.mrb[0].mxu0 %v649
      %v805 = vpop.f32.mrb[0].mxu0
      %v806 = vadd.f32 0.0, %v805
      %v807 = vpop.f32.mrb[0].mxu0
      %v808 = vpop.f32.mrb[0].mxu0
      %v809 = vadd.f32 0.0, %v808
      %v810 = vpop.f32.mrb[0].mxu0
      %811 = vmatprep.mubr.bf16.mxu0 0
      %812 = vmatmul.mubr.bf16.gmra.mrb[0].mxu0 %v652
      %v813 = vpop.f32.mrb[0].mxu0
      %v814 = vadd.f32 0.0, %v813
      %v815 = vpop.f32.mrb[0].mxu0
      %v816 = vpop.f32.mrb[0].mxu0
      %v817 = vadd.f32 0.0, %v816
      %v818 = vpop.f32.mrb[0].mxu0
      %819 = vmatprep.mubr.bf16.mxu0 0
      %820 = vmatmul.mubr.bf16.gmra.mrb[0].mxu0 %v655
      %v821 = vpop.f32.mrb[0].mxu0
      %v822 = vadd.f32 0.0, %v821
      %v823 = vpop.f32.mrb[0].mxu0
      %v824 = vpop.f32.mrb[0].mxu0
      %v825 = vadd.f32 0.0, %v824
      %v826 = vpop.f32.mrb[0].mxu0
      %827 = vmatprep.mubr.bf16.mxu0 0
      %828 = vmatmul.mubr.bf16.gmra.mrb[0].mxu0 %v658
      %v829 = vpop.f32.mrb[0].mxu0
      %v830 = vadd.f32 0.0, %v829
      %v831 = vpop.f32.mrb[0].mxu0
      %v832 = vpop.f32.mrb[0].mxu0
      %v833 = vadd.f32 0.0, %v832
      %v834 = vpop.f32.mrb[0].mxu0
      %835 = vmatprep.mubr.bf16.mxu0 0
      %836 = vmatmul.mubr.bf16.gmra.mrb[0].mxu0 %v661
      %v837 = vpop.f32.mrb[0].mxu0
      %v838 = vadd.f32 0.0, %v837
      %v839 = vpop.f32.mrb[0].mxu0
      %v840 = vpop.f32.mrb[0].mxu0
      %v841 = vadd.f32 0.0, %v840
      %v842 = vpop.f32.mrb[0].mxu0
      %843 = vmatprep.mubr.bf16.mxu0 0
      %844 = vmatmul.mubr.bf16.gmra.mrb[0].mxu0 %v664
      %v845 = vpop.f32.mrb[0].mxu0
      %v846 = vadd.f32 0.0, %v845
      %v847 = vpop.f32.mrb[0].mxu0
      %v848 = vpop.f32.mrb[0].mxu0
      %v849 = vadd.f32 0.0, %v848
      %v850 = vpop.f32.mrb[0].mxu0
      %851 = vmatprep.mubr.bf16.mxu0 0
      %852 = vmatmul.mubr.bf16.gmra.mrb[0].mxu0 %v667
      %v853 = vpop.f32.mrb[0].mxu0
      %v854 = vadd.f32 0.0, %v853
      %v855 = vpop.f32.mrb[0].mxu0
      %v856 = vpop.f32.mrb[0].mxu0
      %v857 = vadd.f32 0.0, %v856
      %v858 = vpop.f32.mrb[0].mxu0
      %859 = vmatprep.mubr.bf16.mxu0 0
      %860 = vmatmul.mubr.bf16.gmra.mrb[0].mxu0 %v670
      %v861 = vpop.f32.mrb[0].mxu0
      %v862 = vadd.f32 0.0, %v861
      %v863 = vpop.f32.mrb[0].mxu0
      %v864 = vpop.f32.mrb[0].mxu0
      %v865 = vadd.f32 0.0, %v864
      %v866 = vpop.f32.mrb[0].mxu0
      %867 = vmatprep.mubr.bf16.mxu0 0
      %868 = vmatmul.mubr.bf16.gmra.mrb[0].mxu0 %v673
      %v869 = vpop.f32.mrb[0].mxu0
      %v870 = vadd.f32 0.0, %v869
      %v871 = vpop.f32.mrb[0].mxu0
      %v872 = vpop.f32.mrb[0].mxu0
      %v873 = vadd.f32 0.0, %v872
      %v874 = vpop.f32.mrb[0].mxu0
      %875 = vmatprep.mubr.bf16.mxu0 0
      %876 = vmatmul.mubr.bf16.gmra.mrb[0].mxu0 %v676
      %v877 = vpop.f32.mrb[0].mxu0
      %v878 = vadd.f32 0.0, %v877
      %v879 = vpop.f32.mrb[0].mxu0
      %v880 = vpop.f32.mrb[0].mxu0
      %v881 = vadd.f32 0.0, %v880
      %v882 = vpop.f32.mrb[0].mxu0
      %883 = vmatprep.mubr.bf16.mxu0 0
      %884 = vmatmul.mubr.bf16.gmra.mrb[0].mxu0 %v679
      %v885 = vpop.f32.mrb[0].mxu0
      %v886 = vadd.f32 0.0, %v885
      %v887 = vpop.f32.mrb[0].mxu0
      %v888 = vpop.f32.mrb[0].mxu0
      %v889 = vadd.f32 0.0, %v888
      %v890 = vpop.f32.mrb[0].mxu0
      %891 = vmatprep.mubr.bf16.mxu0 0
      %892 = vmatmul.mubr.bf16.gmra.mrb[0].mxu0 %v682
      %v893 = vpop.f32.mrb[0].mxu0
      %v894 = vadd.f32 0.0, %v893
      %v895 = vpop.f32.mrb[0].mxu0
      %v896 = vpop.f32.mrb[0].mxu0
      %v897 = vadd.f32 0.0, %v896
      %v898 = vpop.f32.mrb[0].mxu0
      %899 = vmatprep.mubr.bf16.mxu0 0
      %900 = vmatmul.mubr.bf16.gmra.mrb[0].mxu0 %v685
      %v901 = vpop.f32.mrb[0].mxu0
      %v902 = vadd.f32 0.0, %v901
      %v903 = vpop.f32.mrb[0].mxu0
      %v904 = vpop.f32.mrb[0].mxu0
      %v905 = vpop.f32.mrb[0].mxu0
      %906 = vdwg.mxu0
      %v907 = vsel %vm617, %v407, 0
      %v909 = vsel %vm617, %v408, 0
      %v911 = vsel %vm617, %v409, 0
      %v913 = vsel %vm617, %v410, 0
      %v915 = vsel %vm617, %v411, 0
      %v917 = vsel %vm617, %v412, 0
      %v919 = vsel %vm617, %v413, 0
      %v921 = vsel %vm617, %v414, 0
      %v923 = vsel %vm617, %v415, 0
      %v925 = vsel %vm617, %v416, 0
      %v927 = vsel %vm617, %v417, 0
      %v929 = vsel %vm617, %v418, 0
      %v931 = vsel %vm617, %v419, 0
      %v933 = vsel %vm617, %v420, 0
      %v935 = vsel %vm617, %v421, 0
      %v937 = vsel %vm617, %v422, 0
      %v939 = vsel %vm617, %v423, 0
      %v941 = vsel %vm617, %v424, 0
      %v943 = vsel %vm617, %v425, 0
      %v945 = vsel %vm617, %v426, 0
      %v947 = vsel %vm617, %v427, 0
      %v949 = vsel %vm617, %v428, 0
      %v951 = vsel %vm617, %v429, 0
      %v954 = vsel %vm687, %v430, 0
      %956 = vmatprep.subr.bf16.mxu0 0
      %957 = vmatpush1.bf16.msra.mxu0 %v954
      %958 = vmatprep.subr.bf16.mxu0 0
      %959 = vmatpush1.bf16.msra.mxu0 0
      %960 = vmatprep.subr.bf16.mxu0 0
      %961 = vmatpush1.bf16.msra.mxu0 0
      %962 = vmatprep.subr.bf16.mxu0 0
      %963 = vmatpush1.bf16.msra.mxu0 0
      %964 = vmatprep.subr.bf16.mxu0 0
      %965 = vmatpush1.bf16.msra.mxu0 0
      %966 = vmatprep.subr.bf16.mxu0 0
      %967 = vmatpush1.bf16.msra.mxu0 0
      %968 = vmatprep.subr.bf16.mxu0 0
      %969 = vmatpush1.bf16.msra.mxu0 0
      %970 = vmatprep.subr.bf16.mxu0 0
      %971 = vmatpush1.bf16.msra.mxu0 0
      %972 = vmatprep.subr.bf16.mxu0 0
      %973 = vmatpush1.bf16.msra.mxu0 0
      %974 = vmatprep.subr.bf16.mxu0 0
      %975 = vmatpush1.bf16.msra.mxu0 0
      %976 = vmatprep.subr.bf16.mxu0 0
      %977 = vmatpush1.bf16.msra.mxu0 0
      %978 = vmatprep.subr.bf16.mxu0 0
      %979 = vmatpush1.bf16.msra.mxu0 0
      %980 = vmatprep.subr.bf16.mxu0 0
      %981 = vmatpush1.bf16.msra.mxu0 0
      %982 = vmatprep.subr.bf16.mxu0 0
      %983 = vmatpush1.bf16.msra.mxu0 0
      %984 = vmatprep.subr.bf16.mxu0 0
      %985 = vmatpush1.bf16.msra.mxu0 0
      %986 = vmatprep.subr.bf16.mxu0 0
      %987 = vmatpush1.bf16.msra.mxu0 0
      %988 = vmatprep.mubr.bf16.mxu0 0
      %989 = vmatmul.mubr.bf16.gmra.mrb[0].mxu0 %v907
      %v990 = vpop.f32.mrb[0].mxu0
      %v991 = vadd.f32 %v726, %v990
      %v992 = vpop.f32.mrb[0].mxu0
      %v993 = vpop.f32.mrb[0].mxu0
      %v994 = vadd.f32 %v729, %v993
      %v995 = vpop.f32.mrb[0].mxu0
      %996 = vmatprep.mubr.bf16.mxu0 0
      %997 = vmatmul.mubr.bf16.gmra.mrb[0].mxu0 %v909
      %v998 = vpop.f32.mrb[0].mxu0
      %v999 = vadd.f32 %v734, %v998
      %v1000 = vpop.f32.mrb[0].mxu0
      %v1001 = vpop.f32.mrb[0].mxu0
      %v1002 = vadd.f32 %v737, %v1001
      %v1003 = vpop.f32.mrb[0].mxu0
      %1004 = vmatprep.mubr.bf16.mxu0 0
      %1005 = vmatmul.mubr.bf16.gmra.mrb[0].mxu0 %v911
      %v1006 = vpop.f32.mrb[0].mxu0
      %v1007 = vadd.f32 %v742, %v1006
      %v1008 = vpop.f32.mrb[0].mxu0
      %v1009 = vpop.f32.mrb[0].mxu0
      %v1010 = vadd.f32 %v745, %v1009
      %v1011 = vpop.f32.mrb[0].mxu0
      %1012 = vmatprep.mubr.bf16.mxu0 0
      %1013 = vmatmul.mubr.bf16.gmra.mrb[0].mxu0 %v913
      %v1014 = vpop.f32.mrb[0].mxu0
      %v1015 = vadd.f32 %v750, %v1014
      %v1016 = vpop.f32.mrb[0].mxu0
      %v1017 = vpop.f32.mrb[0].mxu0
      %v1018 = vadd.f32 %v753, %v1017
      %v1019 = vpop.f32.mrb[0].mxu0
      %1020 = vmatprep.mubr.bf16.mxu0 0
      %1021 = vmatmul.mubr.bf16.gmra.mrb[0].mxu0 %v915
      %v1022 = vpop.f32.mrb[0].mxu0
      %v1023 = vadd.f32 %v758, %v1022
      %v1024 = vpop.f32.mrb[0].mxu0
      %v1025 = vpop.f32.mrb[0].mxu0
      %v1026 = vadd.f32 %v761, %v1025
      %v1027 = vpop.f32.mrb[0].mxu0
      %1028 = vmatprep.mubr.bf16.mxu0 0
      %1029 = vmatmul.mubr.bf16.gmra.mrb[0].mxu0 %v917
      %v1030 = vpop.f32.mrb[0].mxu0
      %v1031 = vadd.f32 %v766, %v1030
      %v1032 = vpop.f32.mrb[0].mxu0
      %v1033 = vpop.f32.mrb[0].mxu0
      %v1034 = vadd.f32 %v769, %v1033
      %v1035 = vpop.f32.mrb[0].mxu0
      %1036 = vmatprep.mubr.bf16.mxu0 0
      %1037 = vmatmul.mubr.bf16.gmra.mrb[0].mxu0 %v919
      %v1038 = vpop.f32.mrb[0].mxu0
      %v1039 = vadd.f32 %v774, %v1038
      %v1040 = vpop.f32.mrb[0].mxu0
      %v1041 = vpop.f32.mrb[0].mxu0
      %v1042 = vadd.f32 %v777, %v1041
      %v1043 = vpop.f32.mrb[0].mxu0
      %1044 = vmatprep.mubr.bf16.mxu0 0
      %1045 = vmatmul.mubr.bf16.gmra.mrb[0].mxu0 %v921
      %v1046 = vpop.f32.mrb[0].mxu0
      %v1047 = vadd.f32 %v782, %v1046
      %v1048 = vpop.f32.mrb[0].mxu0
      %v1049 = vpop.f32.mrb[0].mxu0
      %v1050 = vadd.f32 %v785, %v1049
      %v1051 = vpop.f32.mrb[0].mxu0
      %1052 = vmatprep.mubr.bf16.mxu0 0
      %1053 = vmatmul.mubr.bf16.gmra.mrb[0].mxu0 %v923
      %v1054 = vpop.f32.mrb[0].mxu0
      %v1055 = vadd.f32 %v790, %v1054
      %v1056 = vpop.f32.mrb[0].mxu0
      %v1057 = vpop.f32.mrb[0].mxu0
      %v1058 = vadd.f32 %v793, %v1057
      %v1059 = vpop.f32.mrb[0].mxu0
      %1060 = vmatprep.mubr.bf16.mxu0 0
      %1061 = vmatmul.mubr.bf16.gmra.mrb[0].mxu0 %v925
      %v1062 = vpop.f32.mrb[0].mxu0
      %v1063 = vadd.f32 %v798, %v1062
      %v1064 = vpop.f32.mrb[0].mxu0
      %v1065 = vpop.f32.mrb[0].mxu0
      %v1066 = vadd.f32 %v801, %v1065
      %v1067 = vpop.f32.mrb[0].mxu0
      %1068 = vmatprep.mubr.bf16.mxu0 0
      %1069 = vmatmul.mubr.bf16.gmra.mrb[0].mxu0 %v927
      %v1070 = vpop.f32.mrb[0].mxu0
      %v1071 = vadd.f32 %v806, %v1070
      %v1072 = vpop.f32.mrb[0].mxu0
      %v1073 = vpop.f32.mrb[0].mxu0
      %v1074 = vadd.f32 %v809, %v1073
      %v1075 = vpop.f32.mrb[0].mxu0
      %1076 = vmatprep.mubr.bf16.mxu0 0
      %1077 = vmatmul.mubr.bf16.gmra.mrb[0].mxu0 %v929
      %v1078 = vpop.f32.mrb[0].mxu0
      %v1079 = vadd.f32 %v814, %v1078
      %v1080 = vpop.f32.mrb[0].mxu0
      %v1081 = vpop.f32.mrb[0].mxu0
      %v1082 = vadd.f32 %v817, %v1081
      %v1083 = vpop.f32.mrb[0].mxu0
      %1084 = vmatprep.mubr.bf16.mxu0 0
      %1085 = vmatmul.mubr.bf16.gmra.mrb[0].mxu0 %v931
      %v1086 = vpop.f32.mrb[0].mxu0
      %v1087 = vadd.f32 %v822, %v1086
      %v1088 = vpop.f32.mrb[0].mxu0
      %v1089 = vpop.f32.mrb[0].mxu0
      %v1090 = vadd.f32 %v825, %v1089
      %v1091 = vpop.f32.mrb[0].mxu0
      %1092 = vmatprep.mubr.bf16.mxu0 0
      %1093 = vmatmul.mubr.bf16.gmra.mrb[0].mxu0 %v933
      %v1094 = vpop.f32.mrb[0].mxu0
      %v1095 = vadd.f32 %v830, %v1094
      %v1096 = vpop.f32.mrb[0].mxu0
      %v1097 = vpop.f32.mrb[0].mxu0
      %v1098 = vadd.f32 %v833, %v1097
      %v1099 = vpop.f32.mrb[0].mxu0
      %1100 = vmatprep.mubr.bf16.mxu0 0
      %1101 = vmatmul.mubr.bf16.gmra.mrb[0].mxu0 %v935
      %v1102 = vpop.f32.mrb[0].mxu0
      %v1103 = vadd.f32 %v838, %v1102
      %v1104 = vpop.f32.mrb[0].mxu0
      %v1105 = vpop.f32.mrb[0].mxu0
      %v1106 = vadd.f32 %v841, %v1105
      %v1107 = vpop.f32.mrb[0].mxu0
      %1108 = vmatprep.mubr.bf16.mxu0 0
      %1109 = vmatmul.mubr.bf16.gmra.mrb[0].mxu0 %v937
      %v1110 = vpop.f32.mrb[0].mxu0
      %v1111 = vadd.f32 %v846, %v1110
      %v1112 = vpop.f32.mrb[0].mxu0
      %v1113 = vpop.f32.mrb[0].mxu0
      %v1114 = vadd.f32 %v849, %v1113
      %v1115 = vpop.f32.mrb[0].mxu0
      %1116 = vmatprep.mubr.bf16.mxu0 0
      %1117 = vmatmul.mubr.bf16.gmra.mrb[0].mxu0 %v939
      %v1118 = vpop.f32.mrb[0].mxu0
      %v1119 = vadd.f32 %v854, %v1118
      %v1120 = vpop.f32.mrb[0].mxu0
      %v1121 = vpop.f32.mrb[0].mxu0
      %v1122 = vadd.f32 %v857, %v1121
      %v1123 = vpop.f32.mrb[0].mxu0
      %1124 = vmatprep.mubr.bf16.mxu0 0
      %1125 = vmatmul.mubr.bf16.gmra.mrb[0].mxu0 %v941
      %v1126 = vpop.f32.mrb[0].mxu0
      %v1127 = vadd.f32 %v862, %v1126
      %v1128 = vpop.f32.mrb[0].mxu0
      %v1129 = vpop.f32.mrb[0].mxu0
      %v1130 = vadd.f32 %v865, %v1129
      %v1131 = vpop.f32.mrb[0].mxu0
      %1132 = vmatprep.mubr.bf16.mxu0 0
      %1133 = vmatmul.mubr.bf16.gmra.mrb[0].mxu0 %v943
      %v1134 = vpop.f32.mrb[0].mxu0
      %v1135 = vadd.f32 %v870, %v1134
      %v1136 = vpop.f32.mrb[0].mxu0
      %v1137 = vpop.f32.mrb[0].mxu0
      %v1138 = vadd.f32 %v873, %v1137
      %v1139 = vpop.f32.mrb[0].mxu0
      %1140 = vmatprep.mubr.bf16.mxu0 0
      %1141 = vmatmul.mubr.bf16.gmra.mrb[0].mxu0 %v945
      %v1142 = vpop.f32.mrb[0].mxu0
      %v1143 = vadd.f32 %v878, %v1142
      %v1144 = vpop.f32.mrb[0].mxu0
      %v1145 = vpop.f32.mrb[0].mxu0
      %v1146 = vadd.f32 %v881, %v1145
      %v1147 = vpop.f32.mrb[0].mxu0
      %1148 = vmatprep.mubr.bf16.mxu0 0
      %1149 = vmatmul.mubr.bf16.gmra.mrb[0].mxu0 %v947
      %v1150 = vpop.f32.mrb[0].mxu0
      %v1151 = vadd.f32 %v886, %v1150
      %v1152 = vpop.f32.mrb[0].mxu0
      %v1153 = vpop.f32.mrb[0].mxu0
      %v1154 = vadd.f32 %v889, %v1153
      %v1155 = vpop.f32.mrb[0].mxu0
      %1156 = vmatprep.mubr.bf16.mxu0 0
      %1157 = vmatmul.mubr.bf16.gmra.mrb[0].mxu0 %v949
      %v1158 = vpop.f32.mrb[0].mxu0
      %v1159 = vadd.f32 %v894, %v1158
      %v1160 = vpop.f32.mrb[0].mxu0
      %v1161 = vpop.f32.mrb[0].mxu0
      %v1162 = vadd.f32 %v897, %v1161
      %v1163 = vpop.f32.mrb[0].mxu0
      %1164 = vmatprep.mubr.bf16.mxu0 0
      %1165 = vmatmul.mubr.bf16.gmra.mrb[0].mxu0 %v951
      %v1166 = vpop.f32.mrb[0].mxu0
      %v1167 = vadd.f32 %v902, %v1166
      %v1168 = vpop.f32.mrb[0].mxu0
      %v1169 = vpop.f32.mrb[0].mxu0
      %v1170 = vpop.f32.mrb[0].mxu0
      %1171 = vdwg.mxu0
      %s1172 = scalar_lea.vmem %s2, 4
      %v1173 = vld [vmem:[%s1172] sm:$0x3]
      %vm1197 = vcmask 1046528
      %v1198 = vrot.slane %v407, 1
      %v1199 = vrot.slane %v408, 1
      %v1200 = vsel %vm1197, %v1198, %v1199
      %v1201 = vrot.slane %v409, 1
      %v1202 = vsel %vm1197, %v1199, %v1201
      %v1203 = vrot.slane %v410, 1
      %v1204 = vsel %vm1197, %v1201, %v1203
      %v1205 = vrot.slane %v411, 1
      %v1206 = vsel %vm1197, %v1203, %v1205
      %v1207 = vrot.slane %v412, 1
      %v1208 = vsel %vm1197, %v1205, %v1207
      %v1209 = vrot.slane %v413, 1
      %v1210 = vsel %vm1197, %v1207, %v1209
      %v1211 = vrot.slane %v414, 1
      %v1212 = vsel %vm1197, %v1209, %v1211
      %v1213 = vrot.slane %v415, 1
      %v1214 = vsel %vm1197, %v1211, %v1213
      %v1215 = vrot.slane %v416, 1
      %v1216 = vsel %vm1197, %v1213, %v1215
      %v1217 = vrot.slane %v417, 1
      %v1218 = vsel %vm1197, %v1215, %v1217
      %v1219 = vrot.slane %v418, 1
      %v1220 = vsel %vm1197, %v1217, %v1219
      %v1221 = vrot.slane %v419, 1
      %v1222 = vsel %vm1197, %v1219, %v1221
      %v1223 = vrot.slane %v420, 1
      %v1224 = vsel %vm1197, %v1221, %v1223
      %v1225 = vrot.slane %v421, 1
      %v1226 = vsel %vm1197, %v1223, %v1225
      %v1227 = vrot.slane %v422, 1
      %v1228 = vsel %vm1197, %v1225, %v1227
      %v1229 = vrot.slane %v423, 1
      %v1230 = vsel %vm1197, %v1227, %v1229
      %v1231 = vrot.slane %v424, 1
      %v1232 = vsel %vm1197, %v1229, %v1231
      %v1233 = vrot.slane %v425, 1
      %v1234 = vsel %vm1197, %v1231, %v1233
      %v1235 = vrot.slane %v426, 1
      %v1236 = vsel %vm1197, %v1233, %v1235
      %v1237 = vrot.slane %v427, 1
      %v1238 = vsel %vm1197, %v1235, %v1237
      %v1239 = vrot.slane %v428, 1
      %v1240 = vsel %vm1197, %v1237, %v1239
      %v1241 = vrot.slane %v429, 1
      %v1242 = vsel %vm1197, %v1239, %v1241
      %v1244 = vsel %vm617, %v1200, 0
      %v1247 = vsel %vm617, %v1202, 0
      %v1250 = vsel %vm617, %v1204, 0
      %v1253 = vsel %vm617, %v1206, 0
      %v1256 = vsel %vm617, %v1208, 0
      %v1259 = vsel %vm617, %v1210, 0
      %v1262 = vsel %vm617, %v1212, 0
      %v1265 = vsel %vm617, %v1214, 0
      %v1268 = vsel %vm617, %v1216, 0
      %v1271 = vsel %vm617, %v1218, 0
      %v1274 = vsel %vm617, %v1220, 0
      %v1277 = vsel %vm617, %v1222, 0
      %v1280 = vsel %vm617, %v1224, 0
      %v1283 = vsel %vm617, %v1226, 0
      %v1286 = vsel %vm617, %v1228, 0
      %v1289 = vsel %vm617, %v1230, 0
      %v1292 = vsel %vm617, %v1232, 0
      %v1295 = vsel %vm617, %v1234, 0
      %v1298 = vsel %vm617, %v1236, 0
      %v1301 = vsel %vm617, %v1238, 0
      %v1304 = vsel %vm617, %v1240, 0
      %v1307 = vsel %vm617, %v1242, 0
      %v1310 = vsel %vm617, %v1241, 0
      %v1313 = vsel %vm687, %v1173, 0
      %1315 = vmatprep.subr.bf16.mxu0 0
      %1316 = vmatpush1.bf16.msra.mxu0 %v1313
      %1317 = vmatprep.subr.bf16.mxu0 0
      %1318 = vmatpush1.bf16.msra.mxu0 0
      %1319 = vmatprep.subr.bf16.mxu0 0
      %1320 = vmatpush1.bf16.msra.mxu0 0
      %1321 = vmatprep.subr.bf16.mxu0 0
      %1322 = vmatpush1.bf16.msra.mxu0 0
      %1323 = vmatprep.subr.bf16.mxu0 0
      %1324 = vmatpush1.bf16.msra.mxu0 0
      %1325 = vmatprep.subr.bf16.mxu0 0
      %1326 = vmatpush1.bf16.msra.mxu0 0
      %1327 = vmatprep.subr.bf16.mxu0 0
      %1328 = vmatpush1.bf16.msra.mxu0 0
      %1329 = vmatprep.subr.bf16.mxu0 0
      %1330 = vmatpush1.bf16.msra.mxu0 0
      %1331 = vmatprep.subr.bf16.mxu0 0
      %1332 = vmatpush1.bf16.msra.mxu0 0
      %1333 = vmatprep.subr.bf16.mxu0 0
      %1334 = vmatpush1.bf16.msra.mxu0 0
      %1335 = vmatprep.subr.bf16.mxu0 0
      %1336 = vmatpush1.bf16.msra.mxu0 0
      %1337 = vmatprep.subr.bf16.mxu0 0
      %1338 = vmatpush1.bf16.msra.mxu0 0
      %1339 = vmatprep.subr.bf16.mxu0 0
      %1340 = vmatpush1.bf16.msra.mxu0 0
      %1341 = vmatprep.subr.bf16.mxu0 0
      %1342 = vmatpush1.bf16.msra.mxu0 0
      %1343 = vmatprep.subr.bf16.mxu0 0
      %1344 = vmatpush1.bf16.msra.mxu0 0
      %1345 = vmatprep.subr.bf16.mxu0 0
      %1346 = vmatpush1.bf16.msra.mxu0 0
      %1347 = vmatprep.mubr.bf16.mxu0 0
      %1348 = vmatmul.mubr.bf16.gmra.mrb[0].mxu0 %v1244
      %v1349 = vpop.f32.mrb[0].mxu0
      %v1350 = vadd.f32 0.0, %v1349
      %v1351 = vpop.f32.mrb[0].mxu0
      %v1352 = vpop.f32.mrb[0].mxu0
      %v1353 = vadd.f32 0.0, %v1352
      %v1354 = vpop.f32.mrb[0].mxu0
      %1355 = vmatprep.mubr.bf16.mxu0 0
      %1356 = vmatmul.mubr.bf16.gmra.mrb[0].mxu0 %v1247
      %v1357 = vpop.f32.mrb[0].mxu0
      %v1358 = vadd.f32 0.0, %v1357
      %v1359 = vpop.f32.mrb[0].mxu0
      %v1360 = vpop.f32.mrb[0].mxu0
      %v1361 = vadd.f32 0.0, %v1360
      %v1362 = vpop.f32.mrb[0].mxu0
      %1363 = vmatprep.mubr.bf16.mxu0 0
      %1364 = vmatmul.mubr.bf16.gmra.mrb[0].mxu0 %v1250
      %v1365 = vpop.f32.mrb[0].mxu0
      %v1366 = vadd.f32 0.0, %v1365
      %v1367 = vpop.f32.mrb[0].mxu0
      %v1368 = vpop.f32.mrb[0].mxu0
      %v1369 = vadd.f32 0.0, %v1368
      %v1370 = vpop.f32.mrb[0].mxu0
      %1371 = vmatprep.mubr.bf16.mxu0 0
      %1372 = vmatmul.mubr.bf16.gmra.mrb[0].mxu0 %v1253
      %v1373 = vpop.f32.mrb[0].mxu0
      %v1374 = vadd.f32 0.0, %v1373
      %v1375 = vpop.f32.mrb[0].mxu0
      %v1376 = vpop.f32.mrb[0].mxu0
      %v1377 = vadd.f32 0.0, %v1376
      %v1378 = vpop.f32.mrb[0].mxu0
      %1379 = vmatprep.mubr.bf16.mxu0 0
      %1380 = vmatmul.mubr.bf16.gmra.mrb[0].mxu0 %v1256
      %v1381 = vpop.f32.mrb[0].mxu0
      %v1382 = vadd.f32 0.0, %v1381
      %v1383 = vpop.f32.mrb[0].mxu0
      %v1384 = vpop.f32.mrb[0].mxu0
      %v1385 = vadd.f32 0.0, %v1384
      %v1386 = vpop.f32.mrb[0].mxu0
      %1387 = vmatprep.mubr.bf16.mxu0 0
      %1388 = vmatmul.mubr.bf16.gmra.mrb[0].mxu0 %v1259
      %v1389 = vpop.f32.mrb[0].mxu0
      %v1390 = vadd.f32 0.0, %v1389
      %v1391 = vpop.f32.mrb[0].mxu0
      %v1392 = vpop.f32.mrb[0].mxu0
      %v1393 = vadd.f32 0.0, %v1392
      %v1394 = vpop.f32.mrb[0].mxu0
      %1395 = vmatprep.mubr.bf16.mxu0 0
      %1396 = vmatmul.mubr.bf16.gmra.mrb[0].mxu0 %v1262
      %v1397 = vpop.f32.mrb[0].mxu0
      %v1398 = vadd.f32 0.0, %v1397
      %v1399 = vpop.f32.mrb[0].mxu0
      %v1400 = vpop.f32.mrb[0].mxu0
      %v1401 = vadd.f32 0.0, %v1400
      %v1402 = vpop.f32.mrb[0].mxu0
      %1403 = vmatprep.mubr.bf16.mxu0 0
      %1404 = vmatmul.mubr.bf16.gmra.mrb[0].mxu0 %v1265
      %v1405 = vpop.f32.mrb[0].mxu0
      %v1406 = vadd.f32 0.0, %v1405
      %v1407 = vpop.f32.mrb[0].mxu0
      %v1408 = vpop.f32.mrb[0].mxu0
      %v1409 = vadd.f32 0.0, %v1408
      %v1410 = vpop.f32.mrb[0].mxu0
      %1411 = vmatprep.mubr.bf16.mxu0 0
      %1412 = vmatmul.mubr.bf16.gmra.mrb[0].mxu0 %v1268
      %v1413 = vpop.f32.mrb[0].mxu0
      %v1414 = vadd.f32 0.0, %v1413
      %v1415 = vpop.f32.mrb[0].mxu0
      %v1416 = vpop.f32.mrb[0].mxu0
      %v1417 = vadd.f32 0.0, %v1416
      %v1418 = vpop.f32.mrb[0].mxu0
      %1419 = vmatprep.mubr.bf16.mxu0 0
      %1420 = vmatmul.mubr.bf16.gmra.mrb[0].mxu0 %v1271
      %v1421 = vpop.f32.mrb[0].mxu0
      %v1422 = vadd.f32 0.0, %v1421
      %v1423 = vpop.f32.mrb[0].mxu0
      %v1424 = vpop.f32.mrb[0].mxu0
      %v1425 = vadd.f32 0.0, %v1424
      %v1426 = vpop.f32.mrb[0].mxu0
      %1427 = vmatprep.mubr.bf16.mxu0 0
      %1428 = vmatmul.mubr.bf16.gmra.mrb[0].mxu0 %v1274
      %v1429 = vpop.f32.mrb[0].mxu0
      %v1430 = vadd.f32 0.0, %v1429
      %v1431 = vpop.f32.mrb[0].mxu0
      %v1432 = vpop.f32.mrb[0].mxu0
      %v1433 = vadd.f32 0.0, %v1432
      %v1434 = vpop.f32.mrb[0].mxu0
      %1435 = vmatprep.mubr.bf16.mxu0 0
      %1436 = vmatmul.mubr.bf16.gmra.mrb[0].mxu0 %v1277
      %v1437 = vpop.f32.mrb[0].mxu0
      %v1438 = vadd.f32 0.0, %v1437
      %v1439 = vpop.f32.mrb[0].mxu0
      %v1440 = vpop.f32.mrb[0].mxu0
      %v1441 = vadd.f32 0.0, %v1440
      %v1442 = vpop.f32.mrb[0].mxu0
      %1443 = vmatprep.mubr.bf16.mxu0 0
      %1444 = vmatmul.mubr.bf16.gmra.mrb[0].mxu0 %v1280
      %v1445 = vpop.f32.mrb[0].mxu0
      %v1446 = vadd.f32 0.0, %v1445
      %v1447 = vpop.f32.mrb[0].mxu0
      %v1448 = vpop.f32.mrb[0].mxu0
      %v1449 = vadd.f32 0.0, %v1448
      %v1450 = vpop.f32.mrb[0].mxu0
      %1451 = vmatprep.mubr.bf16.mxu0 0
      %1452 = vmatmul.mubr.bf16.gmra.mrb[0].mxu0 %v1283
      %v1453 = vpop.f32.mrb[0].mxu0
      %v1454 = vadd.f32 0.0, %v1453
      %v1455 = vpop.f32.mrb[0].mxu0
      %v1456 = vpop.f32.mrb[0].mxu0
      %v1457 = vadd.f32 0.0, %v1456
      %v1458 = vpop.f32.mrb[0].mxu0
      %1459 = vmatprep.mubr.bf16.mxu0 0
      %1460 = vmatmul.mubr.bf16.gmra.mrb[0].mxu0 %v1286
      %v1461 = vpop.f32.mrb[0].mxu0
      %v1462 = vadd.f32 0.0, %v1461
      %v1463 = vpop.f32.mrb[0].mxu0
      %v1464 = vpop.f32.mrb[0].mxu0
      %v1465 = vadd.f32 0.0, %v1464
      %v1466 = vpop.f32.mrb[0].mxu0
      %1467 = vmatprep.mubr.bf16.mxu0 0
      %1468 = vmatmul.mubr.bf16.gmra.mrb[0].mxu0 %v1289
      %v1469 = vpop.f32.mrb[0].mxu0
      %v1470 = vadd.f32 0.0, %v1469
      %v1471 = vpop.f32.mrb[0].mxu0
      %v1472 = vpop.f32.mrb[0].mxu0
      %v1473 = vadd.f32 0.0, %v1472
      %v1474 = vpop.f32.mrb[0].mxu0
      %1475 = vmatprep.mubr.bf16.mxu0 0
      %1476 = vmatmul.mubr.bf16.gmra.mrb[0].mxu0 %v1292
      %v1477 = vpop.f32.mrb[0].mxu0
      %v1478 = vadd.f32 0.0, %v1477
      %v1479 = vpop.f32.mrb[0].mxu0
      %v1480 = vpop.f32.mrb[0].mxu0
      %v1481 = vadd.f32 0.0, %v1480
      %v1482 = vpop.f32.mrb[0].mxu0
      %1483 = vmatprep.mubr.bf16.mxu0 0
      %1484 = vmatmul.mubr.bf16.gmra.mrb[0].mxu0 %v1295
      %v1485 = vpop.f32.mrb[0].mxu0
      %v1486 = vadd.f32 0.0, %v1485
      %v1487 = vpop.f32.mrb[0].mxu0
      %v1488 = vpop.f32.mrb[0].mxu0
      %v1489 = vadd.f32 0.0, %v1488
      %v1490 = vpop.f32.mrb[0].mxu0
      %1491 = vmatprep.mubr.bf16.mxu0 0
      %1492 = vmatmul.mubr.bf16.gmra.mrb[0].mxu0 %v1298
      %v1493 = vpop.f32.mrb[0].mxu0
      %v1494 = vadd.f32 0.0, %v1493
      %v1495 = vpop.f32.mrb[0].mxu0
      %v1496 = vpop.f32.mrb[0].mxu0
      %v1497 = vadd.f32 0.0, %v1496
      %v1498 = vpop.f32.mrb[0].mxu0
      %1499 = vmatprep.mubr.bf16.mxu0 0
      %1500 = vmatmul.mubr.bf16.gmra.mrb[0].mxu0 %v1301
      %v1501 = vpop.f32.mrb[0].mxu0
      %v1502 = vadd.f32 0.0, %v1501
      %v1503 = vpop.f32.mrb[0].mxu0
      %v1504 = vpop.f32.mrb[0].mxu0
      %v1505 = vadd.f32 0.0, %v1504
      %v1506 = vpop.f32.mrb[0].mxu0
      %1507 = vmatprep.mubr.bf16.mxu0 0
      %1508 = vmatmul.mubr.bf16.gmra.mrb[0].mxu0 %v1304
      %v1509 = vpop.f32.mrb[0].mxu0
      %v1510 = vadd.f32 0.0, %v1509
      %v1511 = vpop.f32.mrb[0].mxu0
      %v1512 = vpop.f32.mrb[0].mxu0
      %v1513 = vadd.f32 0.0, %v1512
      %v1514 = vpop.f32.mrb[0].mxu0
      %1515 = vmatprep.mubr.bf16.mxu0 0
      %1516 = vmatmul.mubr.bf16.gmra.mrb[0].mxu0 %v1307
      %v1517 = vpop.f32.mrb[0].mxu0
      %v1518 = vadd.f32 0.0, %v1517
      %v1519 = vpop.f32.mrb[0].mxu0
      %v1520 = vpop.f32.mrb[0].mxu0
      %v1521 = vadd.f32 0.0, %v1520
      %v1522 = vpop.f32.mrb[0].mxu0
      %1523 = vmatprep.mubr.bf16.mxu0 0
      %1524 = vmatmul.mubr.bf16.gmra.mrb[0].mxu0 %v1310
      %v1525 = vpop.f32.mrb[0].mxu0
      %v1526 = vadd.f32 0.0, %v1525
      %v1527 = vpop.f32.mrb[0].mxu0
      %v1528 = vpop.f32.mrb[0].mxu0
      %v1529 = vpop.f32.mrb[0].mxu0
      %1530 = vdwg.mxu0
      %v1531 = vadd.f32 %v991, %v1350
      %v1532 = vadd.f32 %v994, %v1353
      %v1533 = vadd.f32 %v999, %v1358
      %v1534 = vadd.f32 %v1002, %v1361
      %v1535 = vadd.f32 %v1007, %v1366
      %v1536 = vadd.f32 %v1010, %v1369
      %v1537 = vadd.f32 %v1015, %v1374
      %v1538 = vadd.f32 %v1018, %v1377
      %v1539 = vadd.f32 %v1023, %v1382
      %v1540 = vadd.f32 %v1026, %v1385
      %v1541 = vadd.f32 %v1031, %v1390
      %v1542 = vadd.f32 %v1034, %v1393
      %v1543 = vadd.f32 %v1039, %v1398
      %v1544 = vadd.f32 %v1042, %v1401
      %v1545 = vadd.f32 %v1047, %v1406
      %v1546 = vadd.f32 %v1050, %v1409
      %v1547 = vadd.f32 %v1055, %v1414
      %v1548 = vadd.f32 %v1058, %v1417
      %v1549 = vadd.f32 %v1063, %v1422
      %v1550 = vadd.f32 %v1066, %v1425
      %v1551 = vadd.f32 %v1071, %v1430
      %v1552 = vadd.f32 %v1074, %v1433
      %v1553 = vadd.f32 %v1079, %v1438
      %v1554 = vadd.f32 %v1082, %v1441
      %v1555 = vadd.f32 %v1087, %v1446
      %v1556 = vadd.f32 %v1090, %v1449
      %v1557 = vadd.f32 %v1095, %v1454
      %v1558 = vadd.f32 %v1098, %v1457
      %v1559 = vadd.f32 %v1103, %v1462
      %v1560 = vadd.f32 %v1106, %v1465
      %v1561 = vadd.f32 %v1111, %v1470
      %v1562 = vadd.f32 %v1114, %v1473
      %v1563 = vadd.f32 %v1119, %v1478
      %v1564 = vadd.f32 %v1122, %v1481
      %v1565 = vadd.f32 %v1127, %v1486
      %v1566 = vadd.f32 %v1130, %v1489
      %v1567 = vadd.f32 %v1135, %v1494
      %v1568 = vadd.f32 %v1138, %v1497
      %v1569 = vadd.f32 %v1143, %v1502
      %v1570 = vadd.f32 %v1146, %v1505
      %v1571 = vadd.f32 %v1151, %v1510
      %v1572 = vadd.f32 %v1154, %v1513
      %v1573 = vadd.f32 %v1159, %v1518
      %v1574 = vadd.f32 %v1162, %v1521
      %v1575 = vadd.f32 %v1167, %v1526
      %v1576 = vpack.c.bf16 %v402, %v401
      %v1577 = vpack.c.bf16 %v404, %v403
      %s1578 = scalar_lea.vmem %s2, 6
      %v1579 = vld [vmem:[%s1578] sm:$0x3]
      %vm1582 = vcmask 1045504
      %v1583 = vrot.slane %v408, 2
      %v1584 = vrot.slane %v409, 2
      %v1585 = vsel %vm1582, %v1583, %v1584
      %v1586 = vrot.slane %v410, 2
      %v1587 = vsel %vm1582, %v1584, %v1586
      %v1588 = vrot.slane %v411, 2
      %v1589 = vsel %vm1582, %v1586, %v1588
      %v1590 = vrot.slane %v412, 2
      %v1591 = vsel %vm1582, %v1588, %v1590
      %v1592 = vrot.slane %v413, 2
      %v1593 = vsel %vm1582, %v1590, %v1592
      %v1594 = vrot.slane %v414, 2
      %v1595 = vsel %vm1582, %v1592, %v1594
      %v1596 = vrot.slane %v415, 2
      %v1597 = vsel %vm1582, %v1594, %v1596
      %v1598 = vrot.slane %v416, 2
      %v1599 = vsel %vm1582, %v1596, %v1598
      %v1600 = vrot.slane %v417, 2
      %v1601 = vsel %vm1582, %v1598, %v1600
      %v1602 = vrot.slane %v418, 2
      %v1603 = vsel %vm1582, %v1600, %v1602
      %v1604 = vrot.slane %v419, 2
      %v1605 = vsel %vm1582, %v1602, %v1604
      %v1606 = vrot.slane %v420, 2
      %v1607 = vsel %vm1582, %v1604, %v1606
      %v1608 = vrot.slane %v421, 2
      %v1609 = vsel %vm1582, %v1606, %v1608
      %v1610 = vrot.slane %v422, 2
      %v1611 = vsel %vm1582, %v1608, %v1610
      %v1612 = vrot.slane %v423, 2
      %v1613 = vsel %vm1582, %v1610, %v1612
      %v1614 = vrot.slane %v424, 2
      %v1615 = vsel %vm1582, %v1612, %v1614
      %v1616 = vrot.slane %v425, 2
      %v1617 = vsel %vm1582, %v1614, %v1616
      %v1618 = vrot.slane %v426, 2
      %v1619 = vsel %vm1582, %v1616, %v1618
      %v1620 = vrot.slane %v427, 2
      %v1621 = vsel %vm1582, %v1618, %v1620
      %v1622 = vrot.slane %v428, 2
      %v1623 = vsel %vm1582, %v1620, %v1622
      %v1624 = vrot.slane %v1576, 2
      %v1625 = vsel %vm1582, %v1622, %v1624
      %v1626 = vrot.slane %v1577, 2
      %v1627 = vsel %vm1582, %v1624, %v1626
      %v1629 = vsel %vm617, %v1585, 0
      %v1632 = vsel %vm617, %v1587, 0
      %v1635 = vsel %vm617, %v1589, 0
      %v1638 = vsel %vm617, %v1591, 0
      %v1641 = vsel %vm617, %v1593, 0
      %v1644 = vsel %vm617, %v1595, 0
      %v1647 = vsel %vm617, %v1597, 0
      %v1650 = vsel %vm617, %v1599, 0
      %v1653 = vsel %vm617, %v1601, 0
      %v1656 = vsel %vm617, %v1603, 0
      %v1659 = vsel %vm617, %v1605, 0
      %v1662 = vsel %vm617, %v1607, 0
      %v1665 = vsel %vm617, %v1609, 0
      %v1668 = vsel %vm617, %v1611, 0
      %v1671 = vsel %vm617, %v1613, 0
      %v1674 = vsel %vm617, %v1615, 0
      %v1677 = vsel %vm617, %v1617, 0
      %v1680 = vsel %vm617, %v1619, 0
      %v1683 = vsel %vm617, %v1621, 0
      %v1686 = vsel %vm617, %v1623, 0
      %v1689 = vsel %vm617, %v1625, 0
      %v1692 = vsel %vm617, %v1627, 0
      %v1695 = vsel %vm617, %v1626, 0
      %v1698 = vsel %vm687, %v1579, 0
      %1700 = vmatprep.subr.bf16.mxu0 0
      %1701 = vmatpush1.bf16.msra.mxu0 %v1698
      %1702 = vmatprep.subr.bf16.mxu0 0
      %1703 = vmatpush1.bf16.msra.mxu0 0
      %1704 = vmatprep.subr.bf16.mxu0 0
      %1705 = vmatpush1.bf16.msra.mxu0 0
      %1706 = vmatprep.subr.bf16.mxu0 0
      %1707 = vmatpush1.bf16.msra.mxu0 0
      %1708 = vmatprep.subr.bf16.mxu0 0
      %1709 = vmatpush1.bf16.msra.mxu0 0
      %1710 = vmatprep.subr.bf16.mxu0 0
      %1711 = vmatpush1.bf16.msra.mxu0 0
      %1712 = vmatprep.subr.bf16.mxu0 0
      %1713 = vmatpush1.bf16.msra.mxu0 0
      %1714 = vmatprep.subr.bf16.mxu0 0
      %1715 = vmatpush1.bf16.msra.mxu0 0
      %1716 = vmatprep.subr.bf16.mxu0 0
      %1717 = vmatpush1.bf16.msra.mxu0 0
      %1718 = vmatprep.subr.bf16.mxu0 0
      %1719 = vmatpush1.bf16.msra.mxu0 0
      %1720 = vmatprep.subr.bf16.mxu0 0
      %1721 = vmatpush1.bf16.msra.mxu0 0
      %1722 = vmatprep.subr.bf16.mxu0 0
      %1723 = vmatpush1.bf16.msra.mxu0 0
      %1724 = vmatprep.subr.bf16.mxu0 0
      %1725 = vmatpush1.bf16.msra.mxu0 0
      %1726 = vmatprep.subr.bf16.mxu0 0
      %1727 = vmatpush1.bf16.msra.mxu0 0
      %1728 = vmatprep.subr.bf16.mxu0 0
      %1729 = vmatpush1.bf16.msra.mxu0 0
      %1730 = vmatprep.subr.bf16.mxu0 0
      %1731 = vmatpush1.bf16.msra.mxu0 0
      %1732 = vmatprep.mubr.bf16.mxu0 0
      %1733 = vmatmul.mubr.bf16.gmra.mrb[0].mxu0 %v1629
      %v1734 = vpop.f32.mrb[0].mxu0
      %v1735 = vadd.f32 0.0, %v1734
      %v1736 = vpop.f32.mrb[0].mxu0
      %v1737 = vpop.f32.mrb[0].mxu0
      %v1738 = vadd.f32 0.0, %v1737
      %v1739 = vpop.f32.mrb[0].mxu0
      %1740 = vmatprep.mubr.bf16.mxu0 0
      %1741 = vmatmul.mubr.bf16.gmra.mrb[0].mxu0 %v1632
      %v1742 = vpop.f32.mrb[0].mxu0
      %v1743 = vadd.f32 0.0, %v1742
      %v1744 = vpop.f32.mrb[0].mxu0
      %v1745 = vpop.f32.mrb[0].mxu0
      %v1746 = vadd.f32 0.0, %v1745
      %v1747 = vpop.f32.mrb[0].mxu0
      %1748 = vmatprep.mubr.bf16.mxu0 0
      %1749 = vmatmul.mubr.bf16.gmra.mrb[0].mxu0 %v1635
      %v1750 = vpop.f32.mrb[0].mxu0
      %v1751 = vadd.f32 0.0, %v1750
      %v1752 = vpop.f32.mrb[0].mxu0
      %v1753 = vpop.f32.mrb[0].mxu0
      %v1754 = vadd.f32 0.0, %v1753
      %v1755 = vpop.f32.mrb[0].mxu0
      %1756 = vmatprep.mubr.bf16.mxu0 0
      %1757 = vmatmul.mubr.bf16.gmra.mrb[0].mxu0 %v1638
      %v1758 = vpop.f32.mrb[0].mxu0
      %v1759 = vadd.f32 0.0, %v1758
      %v1760 = vpop.f32.mrb[0].mxu0
      %v1761 = vpop.f32.mrb[0].mxu0
      %v1762 = vadd.f32 0.0, %v1761
      %v1763 = vpop.f32.mrb[0].mxu0
      %1764 = vmatprep.mubr.bf16.mxu0 0
      %1765 = vmatmul.mubr.bf16.gmra.mrb[0].mxu0 %v1641
      %v1766 = vpop.f32.mrb[0].mxu0
      %v1767 = vadd.f32 0.0, %v1766
      %v1768 = vpop.f32.mrb[0].mxu0
      %v1769 = vpop.f32.mrb[0].mxu0
      %v1770 = vadd.f32 0.0, %v1769
      %v1771 = vpop.f32.mrb[0].mxu0
      %1772 = vmatprep.mubr.bf16.mxu0 0
      %1773 = vmatmul.mubr.bf16.gmra.mrb[0].mxu0 %v1644
      %v1774 = vpop.f32.mrb[0].mxu0
      %v1775 = vadd.f32 0.0, %v1774
      %v1776 = vpop.f32.mrb[0].mxu0
      %v1777 = vpop.f32.mrb[0].mxu0
      %v1778 = vadd.f32 0.0, %v1777
      %v1779 = vpop.f32.mrb[0].mxu0
      %1780 = vmatprep.mubr.bf16.mxu0 0
      %1781 = vmatmul.mubr.bf16.gmra.mrb[0].mxu0 %v1647
      %v1782 = vpop.f32.mrb[0].mxu0
      %v1783 = vadd.f32 0.0, %v1782
      %v1784 = vpop.f32.mrb[0].mxu0
      %v1785 = vpop.f32.mrb[0].mxu0
      %v1786 = vadd.f32 0.0, %v1785
      %v1787 = vpop.f32.mrb[0].mxu0
      %1788 = vmatprep.mubr.bf16.mxu0 0
      %1789 = vmatmul.mubr.bf16.gmra.mrb[0].mxu0 %v1650
      %v1790 = vpop.f32.mrb[0].mxu0
      %v1791 = vadd.f32 0.0, %v1790
      %v1792 = vpop.f32.mrb[0].mxu0
      %v1793 = vpop.f32.mrb[0].mxu0
      %v1794 = vadd.f32 0.0, %v1793
      %v1795 = vpop.f32.mrb[0].mxu0
      %1796 = vmatprep.mubr.bf16.mxu0 0
      %1797 = vmatmul.mubr.bf16.gmra.mrb[0].mxu0 %v1653
      %v1798 = vpop.f32.mrb[0].mxu0
      %v1799 = vadd.f32 0.0, %v1798
      %v1800 = vpop.f32.mrb[0].mxu0
      %v1801 = vpop.f32.mrb[0].mxu0
      %v1802 = vadd.f32 0.0, %v1801
      %v1803 = vpop.f32.mrb[0].mxu0
      %1804 = vmatprep.mubr.bf16.mxu0 0
      %1805 = vmatmul.mubr.bf16.gmra.mrb[0].mxu0 %v1656
      %v1806 = vpop.f32.mrb[0].mxu0
      %v1807 = vadd.f32 0.0, %v1806
      %v1808 = vpop.f32.mrb[0].mxu0
      %v1809 = vpop.f32.mrb[0].mxu0
      %v1810 = vadd.f32 0.0, %v1809
      %v1811 = vpop.f32.mrb[0].mxu0
      %1812 = vmatprep.mubr.bf16.mxu0 0
      %1813 = vmatmul.mubr.bf16.gmra.mrb[0].mxu0 %v1659
      %v1814 = vpop.f32.mrb[0].mxu0
      %v1815 = vadd.f32 0.0, %v1814
      %v1816 = vpop.f32.mrb[0].mxu0
      %v1817 = vpop.f32.mrb[0].mxu0
      %v1818 = vadd.f32 0.0, %v1817
      %v1819 = vpop.f32.mrb[0].mxu0
      %1820 = vmatprep.mubr.bf16.mxu0 0
      %1821 = vmatmul.mubr.bf16.gmra.mrb[0].mxu0 %v1662
      %v1822 = vpop.f32.mrb[0].mxu0
      %v1823 = vadd.f32 0.0, %v1822
      %v1824 = vpop.f32.mrb[0].mxu0
      %v1825 = vpop.f32.mrb[0].mxu0
      %v1826 = vadd.f32 0.0, %v1825
      %v1827 = vpop.f32.mrb[0].mxu0
      %1828 = vmatprep.mubr.bf16.mxu0 0
      %1829 = vmatmul.mubr.bf16.gmra.mrb[0].mxu0 %v1665
      %v1830 = vpop.f32.mrb[0].mxu0
      %v1831 = vadd.f32 0.0, %v1830
      %v1832 = vpop.f32.mrb[0].mxu0
      %v1833 = vpop.f32.mrb[0].mxu0
      %v1834 = vadd.f32 0.0, %v1833
      %v1835 = vpop.f32.mrb[0].mxu0
      %1836 = vmatprep.mubr.bf16.mxu0 0
      %1837 = vmatmul.mubr.bf16.gmra.mrb[0].mxu0 %v1668
      %v1838 = vpop.f32.mrb[0].mxu0
      %v1839 = vadd.f32 0.0, %v1838
      %v1840 = vpop.f32.mrb[0].mxu0
      %v1841 = vpop.f32.mrb[0].mxu0
      %v1842 = vadd.f32 0.0, %v1841
      %v1843 = vpop.f32.mrb[0].mxu0
      %1844 = vmatprep.mubr.bf16.mxu0 0
      %1845 = vmatmul.mubr.bf16.gmra.mrb[0].mxu0 %v1671
      %v1846 = vpop.f32.mrb[0].mxu0
      %v1847 = vadd.f32 0.0, %v1846
      %v1848 = vpop.f32.mrb[0].mxu0
      %v1849 = vpop.f32.mrb[0].mxu0
      %v1850 = vadd.f32 0.0, %v1849
      %v1851 = vpop.f32.mrb[0].mxu0
      %1852 = vmatprep.mubr.bf16.mxu0 0
      %1853 = vmatmul.mubr.bf16.gmra.mrb[0].mxu0 %v1674
      %v1854 = vpop.f32.mrb[0].mxu0
      %v1855 = vadd.f32 0.0, %v1854
      %v1856 = vpop.f32.mrb[0].mxu0
      %v1857 = vpop.f32.mrb[0].mxu0
      %v1858 = vadd.f32 0.0, %v1857
      %v1859 = vpop.f32.mrb[0].mxu0
      %1860 = vmatprep.mubr.bf16.mxu0 0
      %1861 = vmatmul.mubr.bf16.gmra.mrb[0].mxu0 %v1677
      %v1862 = vpop.f32.mrb[0].mxu0
      %v1863 = vadd.f32 0.0, %v1862
      %v1864 = vpop.f32.mrb[0].mxu0
      %v1865 = vpop.f32.mrb[0].mxu0
      %v1866 = vadd.f32 0.0, %v1865
      %v1867 = vpop.f32.mrb[0].mxu0
      %1868 = vmatprep.mubr.bf16.mxu0 0
      %1869 = vmatmul.mubr.bf16.gmra.mrb[0].mxu0 %v1680
      %v1870 = vpop.f32.mrb[0].mxu0
      %v1871 = vadd.f32 0.0, %v1870
      %v1872 = vpop.f32.mrb[0].mxu0
      %v1873 = vpop.f32.mrb[0].mxu0
      %v1874 = vadd.f32 0.0, %v1873
      %v1875 = vpop.f32.mrb[0].mxu0
      %1876 = vmatprep.mubr.bf16.mxu0 0
      %1877 = vmatmul.mubr.bf16.gmra.mrb[0].mxu0 %v1683
      %v1878 = vpop.f32.mrb[0].mxu0
      %v1879 = vadd.f32 0.0, %v1878
      %v1880 = vpop.f32.mrb[0].mxu0
      %v1881 = vpop.f32.mrb[0].mxu0
      %v1882 = vadd.f32 0.0, %v1881
      %v1883 = vpop.f32.mrb[0].mxu0
      %1884 = vmatprep.mubr.bf16.mxu0 0
      %1885 = vmatmul.mubr.bf16.gmra.mrb[0].mxu0 %v1686
      %v1886 = vpop.f32.mrb[0].mxu0
      %v1887 = vadd.f32 0.0, %v1886
      %v1888 = vpop.f32.mrb[0].mxu0
      %v1889 = vpop.f32.mrb[0].mxu0
      %v1890 = vadd.f32 0.0, %v1889
      %v1891 = vpop.f32.mrb[0].mxu0
      %1892 = vmatprep.mubr.bf16.mxu0 0
      %1893 = vmatmul.mubr.bf16.gmra.mrb[0].mxu0 %v1689
      %v1894 = vpop.f32.mrb[0].mxu0
      %v1895 = vadd.f32 0.0, %v1894
      %v1896 = vpop.f32.mrb[0].mxu0
      %v1897 = vpop.f32.mrb[0].mxu0
      %v1898 = vadd.f32 0.0, %v1897
      %v1899 = vpop.f32.mrb[0].mxu0
      %1900 = vmatprep.mubr.bf16.mxu0 0
      %1901 = vmatmul.mubr.bf16.gmra.mrb[0].mxu0 %v1692
      %v1902 = vpop.f32.mrb[0].mxu0
      %v1903 = vadd.f32 0.0, %v1902
      %v1904 = vpop.f32.mrb[0].mxu0
      %v1905 = vpop.f32.mrb[0].mxu0
      %v1906 = vadd.f32 0.0, %v1905
      %v1907 = vpop.f32.mrb[0].mxu0
      %1908 = vmatprep.mubr.bf16.mxu0 0
      %1909 = vmatmul.mubr.bf16.gmra.mrb[0].mxu0 %v1695
      %v1910 = vpop.f32.mrb[0].mxu0
      %v1911 = vadd.f32 0.0, %v1910
      %v1912 = vpop.f32.mrb[0].mxu0
      %v1913 = vpop.f32.mrb[0].mxu0
      %v1914 = vpop.f32.mrb[0].mxu0
      %1915 = vdwg.mxu0
      %v1916 = vadd.f32 %v1531, %v1735
      %v1917 = vadd.f32 %v1532, %v1738
      %v1918 = vadd.f32 %v1533, %v1743
      %v1919 = vadd.f32 %v1534, %v1746
      %v1920 = vadd.f32 %v1535, %v1751
      %v1921 = vadd.f32 %v1536, %v1754
      %v1922 = vadd.f32 %v1537, %v1759
      %v1923 = vadd.f32 %v1538, %v1762
      %v1924 = vadd.f32 %v1539, %v1767
      %v1925 = vadd.f32 %v1540, %v1770
      %v1926 = vadd.f32 %v1541, %v1775
      %v1927 = vadd.f32 %v1542, %v1778
      %v1928 = vadd.f32 %v1543, %v1783
      %v1929 = vadd.f32 %v1544, %v1786
      %v1930 = vadd.f32 %v1545, %v1791
      %v1931 = vadd.f32 %v1546, %v1794
      %v1932 = vadd.f32 %v1547, %v1799
      %v1933 = vadd.f32 %v1548, %v1802
      %v1934 = vadd.f32 %v1549, %v1807
      %v1935 = vadd.f32 %v1550, %v1810
      %v1936 = vadd.f32 %v1551, %v1815
      %v1937 = vadd.f32 %v1552, %v1818
      %v1938 = vadd.f32 %v1553, %v1823
      %v1939 = vadd.f32 %v1554, %v1826
      %v1940 = vadd.f32 %v1555, %v1831
      %v1941 = vadd.f32 %v1556, %v1834
      %v1942 = vadd.f32 %v1557, %v1839
      %v1943 = vadd.f32 %v1558, %v1842
      %v1944 = vadd.f32 %v1559, %v1847
      %v1945 = vadd.f32 %v1560, %v1850
      %v1946 = vadd.f32 %v1561, %v1855
      %v1947 = vadd.f32 %v1562, %v1858
      %v1948 = vadd.f32 %v1563, %v1863
      %v1949 = vadd.f32 %v1564, %v1866
      %v1950 = vadd.f32 %v1565, %v1871
      %v1951 = vadd.f32 %v1566, %v1874
      %v1952 = vadd.f32 %v1567, %v1879
      %v1953 = vadd.f32 %v1568, %v1882
      %v1954 = vadd.f32 %v1569, %v1887
      %v1955 = vadd.f32 %v1570, %v1890
      %v1956 = vadd.f32 %v1571, %v1895
      %v1957 = vadd.f32 %v1572, %v1898
      %v1958 = vadd.f32 %v1573, %v1903
      %v1959 = vadd.f32 %v1574, %v1906
      %v1960 = vadd.f32 %v1575, %v1911
      %s1961 = scalar_lea.vmem %s2, 8
      %v1962 = vld [vmem:[%s1961] sm:$0x3]
      %vm1963 = vsmask.f32 5376
      %v1964 = vrot.slane %v446, 2
      %v1965 = vrot.slane %v442, 3
      %v1966 = vor.u32 %v1964, %v1965
      %v1967 = vrot.slane %v454, 2
      %v1968 = vrot.slane %v450, 3
      %v1969 = vor.u32 %v1967, %v1968
      %v1970 = vsel %vm1963, %v1966, %v1969
      %v1971 = vrot.slane %v462, 2
      %v1972 = vrot.slane %v458, 3
      %v1973 = vor.u32 %v1971, %v1972
      %v1974 = vsel %vm1963, %v1969, %v1973
      %v1975 = vrot.slane %v470, 2
      %v1976 = vrot.slane %v466, 3
      %v1977 = vor.u32 %v1975, %v1976
      %v1978 = vsel %vm1963, %v1973, %v1977
      %v1979 = vrot.slane %v478, 2
      %v1980 = vrot.slane %v474, 3
      %v1981 = vor.u32 %v1979, %v1980
      %v1982 = vsel %vm1963, %v1977, %v1981
      %v1983 = vrot.slane %v486, 2
      %v1984 = vrot.slane %v482, 3
      %v1985 = vor.u32 %v1983, %v1984
      %v1986 = vsel %vm1963, %v1981, %v1985
      %v1987 = vrot.slane %v494, 2
      %v1988 = vrot.slane %v490, 3
      %v1989 = vor.u32 %v1987, %v1988
      %v1990 = vsel %vm1963, %v1985, %v1989
      %v1991 = vrot.slane %v502, 2
      %v1992 = vrot.slane %v498, 3
      %v1993 = vor.u32 %v1991, %v1992
      %v1994 = vsel %vm1963, %v1989, %v1993
      %v1995 = vrot.slane %v510, 2
      %v1996 = vrot.slane %v506, 3
      %v1997 = vor.u32 %v1995, %v1996
      %v1998 = vsel %vm1963, %v1993, %v1997
      %v1999 = vrot.slane %v518, 2
      %v2000 = vrot.slane %v514, 3
      %v2001 = vor.u32 %v1999, %v2000
      %v2002 = vsel %vm1963, %v1997, %v2001
      %v2003 = vrot.slane %v526, 2
      %v2004 = vrot.slane %v522, 3
      %v2005 = vor.u32 %v2003, %v2004
      %v2006 = vsel %vm1963, %v2001, %v2005
      %v2007 = vrot.slane %v534, 2
      %v2008 = vrot.slane %v530, 3
      %v2009 = vor.u32 %v2007, %v2008
      %v2010 = vsel %vm1963, %v2005, %v2009
      %v2011 = vrot.slane %v542, 2
      %v2012 = vrot.slane %v538, 3
      %v2013 = vor.u32 %v2011, %v2012
      %v2014 = vsel %vm1963, %v2009, %v2013
      %v2015 = vrot.slane %v550, 2
      %v2016 = vrot.slane %v546, 3
      %v2017 = vor.u32 %v2015, %v2016
      %v2018 = vsel %vm1963, %v2013, %v2017
      %v2019 = vrot.slane %v558, 2
      %v2020 = vrot.slane %v554, 3
      %v2021 = vor.u32 %v2019, %v2020
      %v2022 = vsel %vm1963, %v2017, %v2021
      %v2023 = vrot.slane %v566, 2
      %v2024 = vrot.slane %v562, 3
      %v2025 = vor.u32 %v2023, %v2024
      %v2026 = vsel %vm1963, %v2021, %v2025
      %v2027 = vrot.slane %v574, 2
      %v2028 = vrot.slane %v570, 3
      %v2029 = vor.u32 %v2027, %v2028
      %v2030 = vsel %vm1963, %v2025, %v2029
      %v2031 = vrot.slane %v582, 2
      %v2032 = vrot.slane %v578, 3
      %v2033 = vor.u32 %v2031, %v2032
      %v2034 = vsel %vm1963, %v2029, %v2033
      %v2035 = vrot.slane %v590, 2
      %v2036 = vrot.slane %v586, 3
      %v2037 = vor.u32 %v2035, %v2036
      %v2038 = vsel %vm1963, %v2033, %v2037
      %v2039 = vrot.slane %v598, 2
      %v2040 = vrot.slane %v594, 3
      %v2041 = vor.u32 %v2039, %v2040
      %v2042 = vsel %vm1963, %v2037, %v2041
      %v2043 = vrot.slane %v606, 2
      %v2044 = vrot.slane %v602, 3
      %v2045 = vor.u32 %v2043, %v2044
      %v2046 = vsel %vm1963, %v2041, %v2045
      %v2048 = vshrl.u32 %v1576, 16
      %v2050 = vrot.slane %v2048, 2
      %v2051 = vshll.u32 %v1576, 16
      %v2053 = vrot.slane %v2051, 3
      %v2054 = vor.u32 %v2050, %v2053
      %v2055 = vsel %vm1963, %v2045, %v2054
      %v2057 = vshrl.u32 %v1577, 16
      %v2059 = vrot.slane %v2057, 2
      %v2060 = vshll.u32 %v1577, 16
      %v2062 = vrot.slane %v2060, 3
      %v2063 = vor.u32 %v2059, %v2062
      %v2064 = vsel %vm1963, %v2054, %v2063
      %v2066 = vsel %vm617, %v1970, 0
      %v2069 = vsel %vm617, %v1974, 0
      %v2072 = vsel %vm617, %v1978, 0
      %v2075 = vsel %vm617, %v1982, 0
      %v2078 = vsel %vm617, %v1986, 0
      %v2081 = vsel %vm617, %v1990, 0
      %v2084 = vsel %vm617, %v1994, 0
      %v2087 = vsel %vm617, %v1998, 0
      %v2090 = vsel %vm617, %v2002, 0
      %v2093 = vsel %vm617, %v2006, 0
      %v2096 = vsel %vm617, %v2010, 0
      %v2099 = vsel %vm617, %v2014, 0
      %v2102 = vsel %vm617, %v2018, 0
      %v2105 = vsel %vm617, %v2022, 0
      %v2108 = vsel %vm617, %v2026, 0
      %v2111 = vsel %vm617, %v2030, 0
      %v2114 = vsel %vm617, %v2034, 0
      %v2117 = vsel %vm617, %v2038, 0
      %v2120 = vsel %vm617, %v2042, 0
      %v2123 = vsel %vm617, %v2046, 0
      %v2126 = vsel %vm617, %v2055, 0
      %v2129 = vsel %vm617, %v2064, 0
      %v2132 = vsel %vm617, %v2063, 0
      %v2135 = vsel %vm687, %v1962, 0
      %2137 = vmatprep.subr.bf16.mxu0 0
      %2138 = vmatpush1.bf16.msra.mxu0 %v2135
      %2139 = vmatprep.subr.bf16.mxu0 0
      %2140 = vmatpush1.bf16.msra.mxu0 0
      %2141 = vmatprep.subr.bf16.mxu0 0
      %2142 = vmatpush1.bf16.msra.mxu0 0
      %2143 = vmatprep.subr.bf16.mxu0 0
      %2144 = vmatpush1.bf16.msra.mxu0 0
      %2145 = vmatprep.subr.bf16.mxu0 0
      %2146 = vmatpush1.bf16.msra.mxu0 0
      %2147 = vmatprep.subr.bf16.mxu0 0
      %2148 = vmatpush1.bf16.msra.mxu0 0
      %2149 = vmatprep.subr.bf16.mxu0 0
      %2150 = vmatpush1.bf16.msra.mxu0 0
      %2151 = vmatprep.subr.bf16.mxu0 0
      %2152 = vmatpush1.bf16.msra.mxu0 0
      %2153 = vmatprep.subr.bf16.mxu0 0
      %2154 = vmatpush1.bf16.msra.mxu0 0
      %2155 = vmatprep.subr.bf16.mxu0 0
      %2156 = vmatpush1.bf16.msra.mxu0 0
      %2157 = vmatprep.subr.bf16.mxu0 0
      %2158 = vmatpush1.bf16.msra.mxu0 0
      %2159 = vmatprep.subr.bf16.mxu0 0
      %2160 = vmatpush1.bf16.msra.mxu0 0
      %2161 = vmatprep.subr.bf16.mxu0 0
      %2162 = vmatpush1.bf16.msra.mxu0 0
      %2163 = vmatprep.subr.bf16.mxu0 0
      %2164 = vmatpush1.bf16.msra.mxu0 0
      %2165 = vmatprep.subr.bf16.mxu0 0
      %2166 = vmatpush1.bf16.msra.mxu0 0
      %2167 = vmatprep.subr.bf16.mxu0 0
      %2168 = vmatpush1.bf16.msra.mxu0 0
      %2169 = vmatprep.mubr.bf16.mxu0 0
      %2170 = vmatmul.mubr.bf16.gmra.mrb[0].mxu0 %v2066
      %v2171 = vpop.f32.mrb[0].mxu0
      %v2172 = vadd.f32 0.0, %v2171
      %v2173 = vpop.f32.mrb[0].mxu0
      %v2174 = vpop.f32.mrb[0].mxu0
      %v2175 = vadd.f32 0.0, %v2174
      %v2176 = vpop.f32.mrb[0].mxu0
      %2177 = vmatprep.mubr.bf16.mxu0 0
      %2178 = vmatmul.mubr.bf16.gmra.mrb[0].mxu0 %v2069
      %v2179 = vpop.f32.mrb[0].mxu0
      %v2180 = vadd.f32 0.0, %v2179
      %v2181 = vpop.f32.mrb[0].mxu0
      %v2182 = vpop.f32.mrb[0].mxu0
      %v2183 = vadd.f32 0.0, %v2182
      %v2184 = vpop.f32.mrb[0].mxu0
      %2185 = vmatprep.mubr.bf16.mxu0 0
      %2186 = vmatmul.mubr.bf16.gmra.mrb[0].mxu0 %v2072
      %v2187 = vpop.f32.mrb[0].mxu0
      %v2188 = vadd.f32 0.0, %v2187
      %v2189 = vpop.f32.mrb[0].mxu0
      %v2190 = vpop.f32.mrb[0].mxu0
      %v2191 = vadd.f32 0.0, %v2190
      %v2192 = vpop.f32.mrb[0].mxu0
      %2193 = vmatprep.mubr.bf16.mxu0 0
      %2194 = vmatmul.mubr.bf16.gmra.mrb[0].mxu0 %v2075
      %v2195 = vpop.f32.mrb[0].mxu0
      %v2196 = vadd.f32 0.0, %v2195
      %v2197 = vpop.f32.mrb[0].mxu0
      %v2198 = vpop.f32.mrb[0].mxu0
      %v2199 = vadd.f32 0.0, %v2198
      %v2200 = vpop.f32.mrb[0].mxu0
      %2201 = vmatprep.mubr.bf16.mxu0 0
      %2202 = vmatmul.mubr.bf16.gmra.mrb[0].mxu0 %v2078
      %v2203 = vpop.f32.mrb[0].mxu0
      %v2204 = vadd.f32 0.0, %v2203
      %v2205 = vpop.f32.mrb[0].mxu0
      %v2206 = vpop.f32.mrb[0].mxu0
      %v2207 = vadd.f32 0.0, %v2206
      %v2208 = vpop.f32.mrb[0].mxu0
      %2209 = vmatprep.mubr.bf16.mxu0 0
      %2210 = vmatmul.mubr.bf16.gmra.mrb[0].mxu0 %v2081
      %v2211 = vpop.f32.mrb[0].mxu0
      %v2212 = vadd.f32 0.0, %v2211
      %v2213 = vpop.f32.mrb[0].mxu0
      %v2214 = vpop.f32.mrb[0].mxu0
      %v2215 = vadd.f32 0.0, %v2214
      %v2216 = vpop.f32.mrb[0].mxu0
      %2217 = vmatprep.mubr.bf16.mxu0 0
      %2218 = vmatmul.mubr.bf16.gmra.mrb[0].mxu0 %v2084
      %v2219 = vpop.f32.mrb[0].mxu0
      %v2220 = vadd.f32 0.0, %v2219
      %v2221 = vpop.f32.mrb[0].mxu0
      %v2222 = vpop.f32.mrb[0].mxu0
      %v2223 = vadd.f32 0.0, %v2222
      %v2224 = vpop.f32.mrb[0].mxu0
      %2225 = vmatprep.mubr.bf16.mxu0 0
      %2226 = vmatmul.mubr.bf16.gmra.mrb[0].mxu0 %v2087
      %v2227 = vpop.f32.mrb[0].mxu0
      %v2228 = vadd.f32 0.0, %v2227
      %v2229 = vpop.f32.mrb[0].mxu0
      %v2230 = vpop.f32.mrb[0].mxu0
      %v2231 = vadd.f32 0.0, %v2230
      %v2232 = vpop.f32.mrb[0].mxu0
      %2233 = vmatprep.mubr.bf16.mxu0 0
      %2234 = vmatmul.mubr.bf16.gmra.mrb[0].mxu0 %v2090
      %v2235 = vpop.f32.mrb[0].mxu0
      %v2236 = vadd.f32 0.0, %v2235
      %v2237 = vpop.f32.mrb[0].mxu0
      %v2238 = vpop.f32.mrb[0].mxu0
      %v2239 = vadd.f32 0.0, %v2238
      %v2240 = vpop.f32.mrb[0].mxu0
      %2241 = vmatprep.mubr.bf16.mxu0 0
      %2242 = vmatmul.mubr.bf16.gmra.mrb[0].mxu0 %v2093
      %v2243 = vpop.f32.mrb[0].mxu0
      %v2244 = vadd.f32 0.0, %v2243
      %v2245 = vpop.f32.mrb[0].mxu0
      %v2246 = vpop.f32.mrb[0].mxu0
      %v2247 = vadd.f32 0.0, %v2246
      %v2248 = vpop.f32.mrb[0].mxu0
      %2249 = vmatprep.mubr.bf16.mxu0 0
      %2250 = vmatmul.mubr.bf16.gmra.mrb[0].mxu0 %v2096
      %v2251 = vpop.f32.mrb[0].mxu0
      %v2252 = vadd.f32 0.0, %v2251
      %v2253 = vpop.f32.mrb[0].mxu0
      %v2254 = vpop.f32.mrb[0].mxu0
      %v2255 = vadd.f32 0.0, %v2254
      %v2256 = vpop.f32.mrb[0].mxu0
      %2257 = vmatprep.mubr.bf16.mxu0 0
      %2258 = vmatmul.mubr.bf16.gmra.mrb[0].mxu0 %v2099
      %v2259 = vpop.f32.mrb[0].mxu0
      %v2260 = vadd.f32 0.0, %v2259
      %v2261 = vpop.f32.mrb[0].mxu0
      %v2262 = vpop.f32.mrb[0].mxu0
      %v2263 = vadd.f32 0.0, %v2262
      %v2264 = vpop.f32.mrb[0].mxu0
      %2265 = vmatprep.mubr.bf16.mxu0 0
      %2266 = vmatmul.mubr.bf16.gmra.mrb[0].mxu0 %v2102
      %v2267 = vpop.f32.mrb[0].mxu0
      %v2268 = vadd.f32 0.0, %v2267
      %v2269 = vpop.f32.mrb[0].mxu0
      %v2270 = vpop.f32.mrb[0].mxu0
      %v2271 = vadd.f32 0.0, %v2270
      %v2272 = vpop.f32.mrb[0].mxu0
      %2273 = vmatprep.mubr.bf16.mxu0 0
      %2274 = vmatmul.mubr.bf16.gmra.mrb[0].mxu0 %v2105
      %v2275 = vpop.f32.mrb[0].mxu0
      %v2276 = vadd.f32 0.0, %v2275
      %v2277 = vpop.f32.mrb[0].mxu0
      %v2278 = vpop.f32.mrb[0].mxu0
      %v2279 = vadd.f32 0.0, %v2278
      %v2280 = vpop.f32.mrb[0].mxu0
      %2281 = vmatprep.mubr.bf16.mxu0 0
      %2282 = vmatmul.mubr.bf16.gmra.mrb[0].mxu0 %v2108
      %v2283 = vpop.f32.mrb[0].mxu0
      %v2284 = vadd.f32 0.0, %v2283
      %v2285 = vpop.f32.mrb[0].mxu0
      %v2286 = vpop.f32.mrb[0].mxu0
      %v2287 = vadd.f32 0.0, %v2286
      %v2288 = vpop.f32.mrb[0].mxu0
      %2289 = vmatprep.mubr.bf16.mxu0 0
      %2290 = vmatmul.mubr.bf16.gmra.mrb[0].mxu0 %v2111
      %v2291 = vpop.f32.mrb[0].mxu0
      %v2292 = vadd.f32 0.0, %v2291
      %v2293 = vpop.f32.mrb[0].mxu0
      %v2294 = vpop.f32.mrb[0].mxu0
      %v2295 = vadd.f32 0.0, %v2294
      %v2296 = vpop.f32.mrb[0].mxu0
      %2297 = vmatprep.mubr.bf16.mxu0 0
      %2298 = vmatmul.mubr.bf16.gmra.mrb[0].mxu0 %v2114
      %v2299 = vpop.f32.mrb[0].mxu0
      %v2300 = vadd.f32 0.0, %v2299
      %v2301 = vpop.f32.mrb[0].mxu0
      %v2302 = vpop.f32.mrb[0].mxu0
      %v2303 = vadd.f32 0.0, %v2302
      %v2304 = vpop.f32.mrb[0].mxu0
      %2305 = vmatprep.mubr.bf16.mxu0 0
      %2306 = vmatmul.mubr.bf16.gmra.mrb[0].mxu0 %v2117
      %v2307 = vpop.f32.mrb[0].mxu0
      %v2308 = vadd.f32 0.0, %v2307
      %v2309 = vpop.f32.mrb[0].mxu0
      %v2310 = vpop.f32.mrb[0].mxu0
      %v2311 = vadd.f32 0.0, %v2310
      %v2312 = vpop.f32.mrb[0].mxu0
      %2313 = vmatprep.mubr.bf16.mxu0 0
      %2314 = vmatmul.mubr.bf16.gmra.mrb[0].mxu0 %v2120
      %v2315 = vpop.f32.mrb[0].mxu0
      %v2316 = vadd.f32 0.0, %v2315
      %v2317 = vpop.f32.mrb[0].mxu0
      %v2318 = vpop.f32.mrb[0].mxu0
      %v2319 = vadd.f32 0.0, %v2318
      %v2320 = vpop.f32.mrb[0].mxu0
      %2321 = vmatprep.mubr.bf16.mxu0 0
      %2322 = vmatmul.mubr.bf16.gmra.mrb[0].mxu0 %v2123
      %v2323 = vpop.f32.mrb[0].mxu0
      %v2324 = vadd.f32 0.0, %v2323
      %v2325 = vpop.f32.mrb[0].mxu0
      %v2326 = vpop.f32.mrb[0].mxu0
      %v2327 = vadd.f32 0.0, %v2326
      %v2328 = vpop.f32.mrb[0].mxu0
      %2329 = vmatprep.mubr.bf16.mxu0 0
      %2330 = vmatmul.mubr.bf16.gmra.mrb[0].mxu0 %v2126
      %v2331 = vpop.f32.mrb[0].mxu0
      %v2332 = vadd.f32 0.0, %v2331
      %v2333 = vpop.f32.mrb[0].mxu0
      %v2334 = vpop.f32.mrb[0].mxu0
      %v2335 = vadd.f32 0.0, %v2334
      %v2336 = vpop.f32.mrb[0].mxu0
      %2337 = vmatprep.mubr.bf16.mxu0 0
      %2338 = vmatmul.mubr.bf16.gmra.mrb[0].mxu0 %v2129
      %v2339 = vpop.f32.mrb[0].mxu0
      %v2340 = vadd.f32 0.0, %v2339
      %v2341 = vpop.f32.mrb[0].mxu0
      %v2342 = vpop.f32.mrb[0].mxu0
      %v2343 = vadd.f32 0.0, %v2342
      %v2344 = vpop.f32.mrb[0].mxu0
      %2345 = vmatprep.mubr.bf16.mxu0 0
      %2346 = vmatmul.mubr.bf16.gmra.mrb[0].mxu0 %v2132
      %v2347 = vpop.f32.mrb[0].mxu0
      %v2348 = vadd.f32 0.0, %v2347
      %v2349 = vpop.f32.mrb[0].mxu0
      %v2350 = vpop.f32.mrb[0].mxu0
      %v2351 = vpop.f32.mrb[0].mxu0
      %2352 = vdwg.mxu0
      %v2353 = vadd.f32 %v1916, %v2172
      %v2354 = vadd.f32 %v1917, %v2175
      %v2355 = vadd.f32 %v1918, %v2180
      %v2356 = vadd.f32 %v1919, %v2183
      %v2357 = vadd.f32 %v1920, %v2188
      %v2358 = vadd.f32 %v1921, %v2191
      %v2359 = vadd.f32 %v1922, %v2196
      %v2360 = vadd.f32 %v1923, %v2199
      %v2361 = vadd.f32 %v1924, %v2204
      %v2362 = vadd.f32 %v1925, %v2207
      %v2363 = vadd.f32 %v1926, %v2212
      %v2364 = vadd.f32 %v1927, %v2215
      %v2365 = vadd.f32 %v1928, %v2220
      %v2366 = vadd.f32 %v1929, %v2223
      %v2367 = vadd.f32 %v1930, %v2228
      %v2368 = vadd.f32 %v1931, %v2231
      %v2369 = vadd.f32 %v1932, %v2236
      %v2370 = vadd.f32 %v1933, %v2239
      %v2371 = vadd.f32 %v1934, %v2244
      %v2372 = vadd.f32 %v1935, %v2247
      %v2373 = vadd.f32 %v1936, %v2252
      %v2374 = vadd.f32 %v1937, %v2255
      %v2375 = vadd.f32 %v1938, %v2260
      %v2376 = vadd.f32 %v1939, %v2263
      %v2377 = vadd.f32 %v1940, %v2268
      %v2378 = vadd.f32 %v1941, %v2271
      %v2379 = vadd.f32 %v1942, %v2276
      %v2380 = vadd.f32 %v1943, %v2279
      %v2381 = vadd.f32 %v1944, %v2284
      %v2382 = vadd.f32 %v1945, %v2287
      %v2383 = vadd.f32 %v1946, %v2292
      %v2384 = vadd.f32 %v1947, %v2295
      %v2385 = vadd.f32 %v1948, %v2300
      %v2386 = vadd.f32 %v1949, %v2303
      %v2387 = vadd.f32 %v1950, %v2308
      %v2388 = vadd.f32 %v1951, %v2311
      %v2389 = vadd.f32 %v1952, %v2316
      %v2390 = vadd.f32 %v1953, %v2319
      %v2391 = vadd.f32 %v1954, %v2324
      %v2392 = vadd.f32 %v1955, %v2327
      %v2393 = vadd.f32 %v1956, %v2332
      %v2394 = vadd.f32 %v1957, %v2335
      %v2395 = vadd.f32 %v1958, %v2340
      %v2396 = vadd.f32 %v1959, %v2343
      %v2397 = vadd.f32 %v1960, %v2348
      %s2398 = scalar_lea.vmem %s2, 10
      %v2399 = vld [vmem:[%s2398] sm:$0x3]
      %vm2400 = vcmask 1044480
      %v2401 = vrot.slane %v408, 3
      %v2402 = vrot.slane %v409, 3
      %v2403 = vsel %vm2400, %v2401, %v2402
      %v2404 = vrot.slane %v410, 3
      %v2405 = vsel %vm2400, %v2402, %v2404
      %v2406 = vrot.slane %v411, 3
      %v2407 = vsel %vm2400, %v2404, %v2406
      %v2408 = vrot.slane %v412, 3
      %v2409 = vsel %vm2400, %v2406, %v2408
      %v2410 = vrot.slane %v413, 3
      %v2411 = vsel %vm2400, %v2408, %v2410
      %v2412 = vrot.slane %v414, 3
      %v2413 = vsel %vm2400, %v2410, %v2412
      %v2414 = vrot.slane %v415, 3
      %v2415 = vsel %vm2400, %v2412, %v2414
      %v2416 = vrot.slane %v416, 3
      %v2417 = vsel %vm2400, %v2414, %v2416
      %v2418 = vrot.slane %v417, 3
      %v2419 = vsel %vm2400, %v2416, %v2418
      %v2420 = vrot.slane %v418, 3
      %v2421 = vsel %vm2400, %v2418, %v2420
      %v2422 = vrot.slane %v419, 3
      %v2423 = vsel %vm2400, %v2420, %v2422
      %v2424 = vrot.slane %v420, 3
      %v2425 = vsel %vm2400, %v2422, %v2424
      %v2426 = vrot.slane %v421, 3
      %v2427 = vsel %vm2400, %v2424, %v2426
      %v2428 = vrot.slane %v422, 3
      %v2429 = vsel %vm2400, %v2426, %v2428
      %v2430 = vrot.slane %v423, 3
      %v2431 = vsel %vm2400, %v2428, %v2430
      %v2432 = vrot.slane %v424, 3
      %v2433 = vsel %vm2400, %v2430, %v2432
      %v2434 = vrot.slane %v425, 3
      %v2435 = vsel %vm2400, %v2432, %v2434
      %v2436 = vrot.slane %v426, 3
      %v2437 = vsel %vm2400, %v2434, %v2436
      %v2438 = vrot.slane %v427, 3
      %v2439 = vsel %vm2400, %v2436, %v2438
      %v2440 = vrot.slane %v428, 3
      %v2441 = vsel %vm2400, %v2438, %v2440
      %v2442 = vrot.slane %v1576, 3
      %v2443 = vsel %vm2400, %v2440, %v2442
      %v2444 = vrot.slane %v1577, 3
      %v2445 = vsel %vm2400, %v2442, %v2444
      %v2447 = vsel %vm617, %v2403, 0
      %v2450 = vsel %vm617, %v2405, 0
      %v2453 = vsel %vm617, %v2407, 0
      %v2456 = vsel %vm617, %v2409, 0
      %v2459 = vsel %vm617, %v2411, 0
      %v2462 = vsel %vm617, %v2413, 0
      %v2465 = vsel %vm617, %v2415, 0
      %v2468 = vsel %vm617, %v2417, 0
      %v2471 = vsel %vm617, %v2419, 0
      %v2474 = vsel %vm617, %v2421, 0
      %v2477 = vsel %vm617, %v2423, 0
      %v2480 = vsel %vm617, %v2425, 0
      %v2483 = vsel %vm617, %v2427, 0
      %v2486 = vsel %vm617, %v2429, 0
      %v2489 = vsel %vm617, %v2431, 0
      %v2492 = vsel %vm617, %v2433, 0
      %v2495 = vsel %vm617, %v2435, 0
      %v2498 = vsel %vm617, %v2437, 0
      %v2501 = vsel %vm617, %v2439, 0
      %v2504 = vsel %vm617, %v2441, 0
      %v2507 = vsel %vm617, %v2443, 0
      %v2510 = vsel %vm617, %v2445, 0
      %v2513 = vsel %vm617, %v2444, 0
      %v2516 = vsel %vm687, %v2399, 0
      %2518 = vmatprep.subr.bf16.mxu0 0
      %2519 = vmatpush1.bf16.msra.mxu0 %v2516
      %2520 = vmatprep.subr.bf16.mxu0 0
      %2521 = vmatpush1.bf16.msra.mxu0 0
      %2522 = vmatprep.subr.bf16.mxu0 0
      %2523 = vmatpush1.bf16.msra.mxu0 0
      %2524 = vmatprep.subr.bf16.mxu0 0
      %2525 = vmatpush1.bf16.msra.mxu0 0
      %2526 = vmatprep.subr.bf16.mxu0 0
      %2527 = vmatpush1.bf16.msra.mxu0 0
      %2528 = vmatprep.subr.bf16.mxu0 0
      %2529 = vmatpush1.bf16.msra.mxu0 0
      %2530 = vmatprep.subr.bf16.mxu0 0
      %2531 = vmatpush1.bf16.msra.mxu0 0
      %2532 = vmatprep.subr.bf16.mxu0 0
      %2533 = vmatpush1.bf16.msra.mxu0 0
      %2534 = vmatprep.subr.bf16.mxu0 0
      %2535 = vmatpush1.bf16.msra.mxu0 0
      %2536 = vmatprep.subr.bf16.mxu0 0
      %2537 = vmatpush1.bf16.msra.mxu0 0
      %2538 = vmatprep.subr.bf16.mxu0 0
      %2539 = vmatpush1.bf16.msra.mxu0 0
      %2540 = vmatprep.subr.bf16.mxu0 0
      %2541 = vmatpush1.bf16.msra.mxu0 0
      %2542 = vmatprep.subr.bf16.mxu0 0
      %2543 = vmatpush1.bf16.msra.mxu0 0
      %2544 = vmatprep.subr.bf16.mxu0 0
      %2545 = vmatpush1.bf16.msra.mxu0 0
      %2546 = vmatprep.subr.bf16.mxu0 0
      %2547 = vmatpush1.bf16.msra.mxu0 0
      %2548 = vmatprep.subr.bf16.mxu0 0
      %2549 = vmatpush1.bf16.msra.mxu0 0
      %2550 = vmatprep.mubr.bf16.mxu0 0
      %2551 = vmatmul.mubr.bf16.gmra.mrb[0].mxu0 %v2447
      %v2552 = vpop.f32.mrb[0].mxu0
      %v2553 = vadd.f32 0.0, %v2552
      %v2554 = vpop.f32.mrb[0].mxu0
      %v2555 = vpop.f32.mrb[0].mxu0
      %v2556 = vadd.f32 0.0, %v2555
      %v2557 = vpop.f32.mrb[0].mxu0
      %2558 = vmatprep.mubr.bf16.mxu0 0
      %2559 = vmatmul.mubr.bf16.gmra.mrb[0].mxu0 %v2450
      %v2560 = vpop.f32.mrb[0].mxu0
      %v2561 = vadd.f32 0.0, %v2560
      %v2562 = vpop.f32.mrb[0].mxu0
      %v2563 = vpop.f32.mrb[0].mxu0
      %v2564 = vadd.f32 0.0, %v2563
      %v2565 = vpop.f32.mrb[0].mxu0
      %2566 = vmatprep.mubr.bf16.mxu0 0
      %2567 = vmatmul.mubr.bf16.gmra.mrb[0].mxu0 %v2453
      %v2568 = vpop.f32.mrb[0].mxu0
      %v2569 = vadd.f32 0.0, %v2568
      %v2570 = vpop.f32.mrb[0].mxu0
      %v2571 = vpop.f32.mrb[0].mxu0
      %v2572 = vadd.f32 0.0, %v2571
      %v2573 = vpop.f32.mrb[0].mxu0
      %2574 = vmatprep.mubr.bf16.mxu0 0
      %2575 = vmatmul.mubr.bf16.gmra.mrb[0].mxu0 %v2456
      %v2576 = vpop.f32.mrb[0].mxu0
      %v2577 = vadd.f32 0.0, %v2576
      %v2578 = vpop.f32.mrb[0].mxu0
      %v2579 = vpop.f32.mrb[0].mxu0
      %v2580 = vadd.f32 0.0, %v2579
      %v2581 = vpop.f32.mrb[0].mxu0
      %2582 = vmatprep.mubr.bf16.mxu0 0
      %2583 = vmatmul.mubr.bf16.gmra.mrb[0].mxu0 %v2459
      %v2584 = vpop.f32.mrb[0].mxu0
      %v2585 = vadd.f32 0.0, %v2584
      %v2586 = vpop.f32.mrb[0].mxu0
      %v2587 = vpop.f32.mrb[0].mxu0
      %v2588 = vadd.f32 0.0, %v2587
      %v2589 = vpop.f32.mrb[0].mxu0
      %2590 = vmatprep.mubr.bf16.mxu0 0
      %2591 = vmatmul.mubr.bf16.gmra.mrb[0].mxu0 %v2462
      %v2592 = vpop.f32.mrb[0].mxu0
      %v2593 = vadd.f32 0.0, %v2592
      %v2594 = vpop.f32.mrb[0].mxu0
      %v2595 = vpop.f32.mrb[0].mxu0
      %v2596 = vadd.f32 0.0, %v2595
      %v2597 = vpop.f32.mrb[0].mxu0
      %2598 = vmatprep.mubr.bf16.mxu0 0
      %2599 = vmatmul.mubr.bf16.gmra.mrb[0].mxu0 %v2465
      %v2600 = vpop.f32.mrb[0].mxu0
      %v2601 = vadd.f32 0.0, %v2600
      %v2602 = vpop.f32.mrb[0].mxu0
      %v2603 = vpop.f32.mrb[0].mxu0
      %v2604 = vadd.f32 0.0, %v2603
      %v2605 = vpop.f32.mrb[0].mxu0
      %2606 = vmatprep.mubr.bf16.mxu0 0
      %2607 = vmatmul.mubr.bf16.gmra.mrb[0].mxu0 %v2468
      %v2608 = vpop.f32.mrb[0].mxu0
      %v2609 = vadd.f32 0.0, %v2608
      %v2610 = vpop.f32.mrb[0].mxu0
      %v2611 = vpop.f32.mrb[0].mxu0
      %v2612 = vadd.f32 0.0, %v2611
      %v2613 = vpop.f32.mrb[0].mxu0
      %2614 = vmatprep.mubr.bf16.mxu0 0
      %2615 = vmatmul.mubr.bf16.gmra.mrb[0].mxu0 %v2471
      %v2616 = vpop.f32.mrb[0].mxu0
      %v2617 = vadd.f32 0.0, %v2616
      %v2618 = vpop.f32.mrb[0].mxu0
      %v2619 = vpop.f32.mrb[0].mxu0
      %v2620 = vadd.f32 0.0, %v2619
      %v2621 = vpop.f32.mrb[0].mxu0
      %2622 = vmatprep.mubr.bf16.mxu0 0
      %2623 = vmatmul.mubr.bf16.gmra.mrb[0].mxu0 %v2474
      %v2624 = vpop.f32.mrb[0].mxu0
      %v2625 = vadd.f32 0.0, %v2624
      %v2626 = vpop.f32.mrb[0].mxu0
      %v2627 = vpop.f32.mrb[0].mxu0
      %v2628 = vadd.f32 0.0, %v2627
      %v2629 = vpop.f32.mrb[0].mxu0
      %2630 = vmatprep.mubr.bf16.mxu0 0
      %2631 = vmatmul.mubr.bf16.gmra.mrb[0].mxu0 %v2477
      %v2632 = vpop.f32.mrb[0].mxu0
      %v2633 = vadd.f32 0.0, %v2632
      %v2634 = vpop.f32.mrb[0].mxu0
      %v2635 = vpop.f32.mrb[0].mxu0
      %v2636 = vadd.f32 0.0, %v2635
      %v2637 = vpop.f32.mrb[0].mxu0
      %2638 = vmatprep.mubr.bf16.mxu0 0
      %2639 = vmatmul.mubr.bf16.gmra.mrb[0].mxu0 %v2480
      %v2640 = vpop.f32.mrb[0].mxu0
      %v2641 = vadd.f32 0.0, %v2640
      %v2642 = vpop.f32.mrb[0].mxu0
      %v2643 = vpop.f32.mrb[0].mxu0
      %v2644 = vadd.f32 0.0, %v2643
      %v2645 = vpop.f32.mrb[0].mxu0
      %2646 = vmatprep.mubr.bf16.mxu0 0
      %2647 = vmatmul.mubr.bf16.gmra.mrb[0].mxu0 %v2483
      %v2648 = vpop.f32.mrb[0].mxu0
      %v2649 = vadd.f32 0.0, %v2648
      %v2650 = vpop.f32.mrb[0].mxu0
      %v2651 = vpop.f32.mrb[0].mxu0
      %v2652 = vadd.f32 0.0, %v2651
      %v2653 = vpop.f32.mrb[0].mxu0
      %2654 = vmatprep.mubr.bf16.mxu0 0
      %2655 = vmatmul.mubr.bf16.gmra.mrb[0].mxu0 %v2486
      %v2656 = vpop.f32.mrb[0].mxu0
      %v2657 = vadd.f32 0.0, %v2656
      %v2658 = vpop.f32.mrb[0].mxu0
      %v2659 = vpop.f32.mrb[0].mxu0
      %v2660 = vadd.f32 0.0, %v2659
      %v2661 = vpop.f32.mrb[0].mxu0
      %2662 = vmatprep.mubr.bf16.mxu0 0
      %2663 = vmatmul.mubr.bf16.gmra.mrb[0].mxu0 %v2489
      %v2664 = vpop.f32.mrb[0].mxu0
      %v2665 = vadd.f32 0.0, %v2664
      %v2666 = vpop.f32.mrb[0].mxu0
      %v2667 = vpop.f32.mrb[0].mxu0
      %v2668 = vadd.f32 0.0, %v2667
      %v2669 = vpop.f32.mrb[0].mxu0
      %2670 = vmatprep.mubr.bf16.mxu0 0
      %2671 = vmatmul.mubr.bf16.gmra.mrb[0].mxu0 %v2492
      %v2672 = vpop.f32.mrb[0].mxu0
      %v2673 = vadd.f32 0.0, %v2672
      %v2674 = vpop.f32.mrb[0].mxu0
      %v2675 = vpop.f32.mrb[0].mxu0
      %v2676 = vadd.f32 0.0, %v2675
      %v2677 = vpop.f32.mrb[0].mxu0
      %2678 = vmatprep.mubr.bf16.mxu0 0
      %2679 = vmatmul.mubr.bf16.gmra.mrb[0].mxu0 %v2495
      %v2680 = vpop.f32.mrb[0].mxu0
      %v2681 = vadd.f32 0.0, %v2680
      %v2682 = vpop.f32.mrb[0].mxu0
      %v2683 = vpop.f32.mrb[0].mxu0
      %v2684 = vadd.f32 0.0, %v2683
      %v2685 = vpop.f32.mrb[0].mxu0
      %2686 = vmatprep.mubr.bf16.mxu0 0
      %2687 = vmatmul.mubr.bf16.gmra.mrb[0].mxu0 %v2498
      %v2688 = vpop.f32.mrb[0].mxu0
      %v2689 = vadd.f32 0.0, %v2688
      %v2690 = vpop.f32.mrb[0].mxu0
      %v2691 = vpop.f32.mrb[0].mxu0
      %v2692 = vadd.f32 0.0, %v2691
      %v2693 = vpop.f32.mrb[0].mxu0
      %2694 = vmatprep.mubr.bf16.mxu0 0
      %2695 = vmatmul.mubr.bf16.gmra.mrb[0].mxu0 %v2501
      %v2696 = vpop.f32.mrb[0].mxu0
      %v2697 = vadd.f32 0.0, %v2696
      %v2698 = vpop.f32.mrb[0].mxu0
      %v2699 = vpop.f32.mrb[0].mxu0
      %v2700 = vadd.f32 0.0, %v2699
      %v2701 = vpop.f32.mrb[0].mxu0
      %2702 = vmatprep.mubr.bf16.mxu0 0
      %2703 = vmatmul.mubr.bf16.gmra.mrb[0].mxu0 %v2504
      %v2704 = vpop.f32.mrb[0].mxu0
      %v2705 = vadd.f32 0.0, %v2704
      %v2706 = vpop.f32.mrb[0].mxu0
      %v2707 = vpop.f32.mrb[0].mxu0
      %v2708 = vadd.f32 0.0, %v2707
      %v2709 = vpop.f32.mrb[0].mxu0
      %2710 = vmatprep.mubr.bf16.mxu0 0
      %2711 = vmatmul.mubr.bf16.gmra.mrb[0].mxu0 %v2507
      %v2712 = vpop.f32.mrb[0].mxu0
      %v2713 = vadd.f32 0.0, %v2712
      %v2714 = vpop.f32.mrb[0].mxu0
      %v2715 = vpop.f32.mrb[0].mxu0
      %v2716 = vadd.f32 0.0, %v2715
      %v2717 = vpop.f32.mrb[0].mxu0
      %2718 = vmatprep.mubr.bf16.mxu0 0
      %2719 = vmatmul.mubr.bf16.gmra.mrb[0].mxu0 %v2510
      %v2720 = vpop.f32.mrb[0].mxu0
      %v2721 = vadd.f32 0.0, %v2720
      %v2722 = vpop.f32.mrb[0].mxu0
      %v2723 = vpop.f32.mrb[0].mxu0
      %v2724 = vadd.f32 0.0, %v2723
      %v2725 = vpop.f32.mrb[0].mxu0
      %2726 = vmatprep.mubr.bf16.mxu0 0
      %2727 = vmatmul.mubr.bf16.gmra.mrb[0].mxu0 %v2513
      %v2728 = vpop.f32.mrb[0].mxu0
      %v2729 = vadd.f32 0.0, %v2728
      %v2730 = vpop.f32.mrb[0].mxu0
      %v2731 = vpop.f32.mrb[0].mxu0
      %v2732 = vpop.f32.mrb[0].mxu0
      %2733 = vdwg.mxu0
      %v2734 = vadd.f32 %v2353, %v2553
      %v2735 = vadd.f32 %v2354, %v2556
      %v2736 = vadd.f32 %v2355, %v2561
      %v2737 = vadd.f32 %v2356, %v2564
      %v2738 = vadd.f32 %v2357, %v2569
      %v2739 = vadd.f32 %v2358, %v2572
      %v2740 = vadd.f32 %v2359, %v2577
      %v2741 = vadd.f32 %v2360, %v2580
      %v2742 = vadd.f32 %v2361, %v2585
      %v2743 = vadd.f32 %v2362, %v2588
      %v2744 = vadd.f32 %v2363, %v2593
      %v2745 = vadd.f32 %v2364, %v2596
      %v2746 = vadd.f32 %v2365, %v2601
      %v2747 = vadd.f32 %v2366, %v2604
      %v2748 = vadd.f32 %v2367, %v2609
      %v2749 = vadd.f32 %v2368, %v2612
      %v2750 = vadd.f32 %v2369, %v2617
      %v2751 = vadd.f32 %v2370, %v2620
      %v2752 = vadd.f32 %v2371, %v2625
      %v2753 = vadd.f32 %v2372, %v2628
      %v2754 = vadd.f32 %v2373, %v2633
      %v2755 = vadd.f32 %v2374, %v2636
      %v2756 = vadd.f32 %v2375, %v2641
      %v2757 = vadd.f32 %v2376, %v2644
      %v2758 = vadd.f32 %v2377, %v2649
      %v2759 = vadd.f32 %v2378, %v2652
      %v2760 = vadd.f32 %v2379, %v2657
      %v2761 = vadd.f32 %v2380, %v2660
      %v2762 = vadd.f32 %v2381, %v2665
      %v2763 = vadd.f32 %v2382, %v2668
      %v2764 = vadd.f32 %v2383, %v2673
      %v2765 = vadd.f32 %v2384, %v2676
      %v2766 = vadd.f32 %v2385, %v2681
      %v2767 = vadd.f32 %v2386, %v2684
      %v2768 = vadd.f32 %v2387, %v2689
      %v2769 = vadd.f32 %v2388, %v2692
      %v2770 = vadd.f32 %v2389, %v2697
      %v2771 = vadd.f32 %v2390, %v2700
      %v2772 = vadd.f32 %v2391, %v2705
      %v2773 = vadd.f32 %v2392, %v2708
      %v2774 = vadd.f32 %v2393, %v2713
      %v2775 = vadd.f32 %v2394, %v2716
      %v2776 = vadd.f32 %v2395, %v2721
      %v2777 = vadd.f32 %v2396, %v2724
      %v2778 = vadd.f32 %v2397, %v2729
      %v2779 = vpack.c.bf16 %v363, %v362
      %v2780 = vpack.c.bf16 %v365, %v364
      %v2781 = vpack.c.bf16 %v367, %v366
      %v2782 = vpack.c.bf16 %v369, %v368
      %v2783 = vpack.c.bf16 %v371, %v370
      %v2784 = vpack.c.bf16 %v373, %v372
      %v2785 = vpack.c.bf16 %v375, %v374
      %v2786 = vpack.c.bf16 %v377, %v376
      %v2787 = vpack.c.bf16 %v379, %v378
      %v2788 = vpack.c.bf16 %v381, %v380
      %v2789 = vpack.c.bf16 %v383, %v382
      %v2790 = vpack.c.bf16 %v385, %v384
      %v2791 = vpack.c.bf16 %v387, %v386
      %v2792 = vpack.c.bf16 %v389, %v388
      %v2793 = vpack.c.bf16 %v391, %v390
      %v2794 = vpack.c.bf16 %v393, %v392
      %v2795 = vpack.c.bf16 %v395, %v394
      %v2796 = vpack.c.bf16 %v397, %v396
      %v2797 = vpack.c.bf16 %v399, %v398
      %v2798 = vpack.c.bf16 %v401, %v400
      %v2799 = vpack.c.bf16 %v403, %v402
      %v2800 = vpack.c.bf16 %v405, %v404
      %v2801 = vpack.c.bf16 %v406, %v406
      %s2802 = scalar_lea.vmem %s2, 12
      %v2803 = vld [vmem:[%s2802] sm:$0x3]
      %v2805 = vsel %vm617, %v2779, 0
      %v2808 = vsel %vm617, %v2780, 0
      %v2811 = vsel %vm617, %v2781, 0
      %v2814 = vsel %vm617, %v2782, 0
      %v2817 = vsel %vm617, %v2783, 0
      %v2820 = vsel %vm617, %v2784, 0
      %v2823 = vsel %vm617, %v2785, 0
      %v2826 = vsel %vm617, %v2786, 0
      %v2829 = vsel %vm617, %v2787, 0
      %v2832 = vsel %vm617, %v2788, 0
      %v2835 = vsel %vm617, %v2789, 0
      %v2838 = vsel %vm617, %v2790, 0
      %v2841 = vsel %vm617, %v2791, 0
      %v2844 = vsel %vm617, %v2792, 0
      %v2847 = vsel %vm617, %v2793, 0
      %v2850 = vsel %vm617, %v2794, 0
      %v2853 = vsel %vm617, %v2795, 0
      %v2856 = vsel %vm617, %v2796, 0
      %v2859 = vsel %vm617, %v2797, 0
      %v2862 = vsel %vm617, %v2798, 0
      %v2865 = vsel %vm617, %v2799, 0
      %v2868 = vsel %vm617, %v2800, 0
      %v2871 = vsel %vm617, %v2801, 0
      %v2874 = vsel %vm687, %v2803, 0
      %2876 = vmatprep.subr.bf16.mxu0 0
      %2877 = vmatpush1.bf16.msra.mxu0 %v2874
      %2878 = vmatprep.subr.bf16.mxu0 0
      %2879 = vmatpush1.bf16.msra.mxu0 0
      %2880 = vmatprep.subr.bf16.mxu0 0
      %2881 = vmatpush1.bf16.msra.mxu0 0
      %2882 = vmatprep.subr.bf16.mxu0 0
      %2883 = vmatpush1.bf16.msra.mxu0 0
      %2884 = vmatprep.subr.bf16.mxu0 0
      %2885 = vmatpush1.bf16.msra.mxu0 0
      %2886 = vmatprep.subr.bf16.mxu0 0
      %2887 = vmatpush1.bf16.msra.mxu0 0
      %2888 = vmatprep.subr.bf16.mxu0 0
      %2889 = vmatpush1.bf16.msra.mxu0 0
      %2890 = vmatprep.subr.bf16.mxu0 0
      %2891 = vmatpush1.bf16.msra.mxu0 0
      %2892 = vmatprep.subr.bf16.mxu0 0
      %2893 = vmatpush1.bf16.msra.mxu0 0
      %2894 = vmatprep.subr.bf16.mxu0 0
      %2895 = vmatpush1.bf16.msra.mxu0 0
      %2896 = vmatprep.subr.bf16.mxu0 0
      %2897 = vmatpush1.bf16.msra.mxu0 0
      %2898 = vmatprep.subr.bf16.mxu0 0
      %2899 = vmatpush1.bf16.msra.mxu0 0
      %2900 = vmatprep.subr.bf16.mxu0 0
      %2901 = vmatpush1.bf16.msra.mxu0 0
      %2902 = vmatprep.subr.bf16.mxu0 0
      %2903 = vmatpush1.bf16.msra.mxu0 0
      %2904 = vmatprep.subr.bf16.mxu0 0
      %2905 = vmatpush1.bf16.msra.mxu0 0
      %2906 = vmatprep.subr.bf16.mxu0 0
      %2907 = vmatpush1.bf16.msra.mxu0 0
      %2908 = vmatprep.mubr.bf16.mxu0 0
      %2909 = vmatmul.mubr.bf16.gmra.mrb[0].mxu0 %v2805
      %v2910 = vpop.f32.mrb[0].mxu0
      %v2911 = vadd.f32 0.0, %v2910
      %v2912 = vpop.f32.mrb[0].mxu0
      %v2913 = vpop.f32.mrb[0].mxu0
      %v2914 = vadd.f32 0.0, %v2913
      %v2915 = vpop.f32.mrb[0].mxu0
      %2916 = vmatprep.mubr.bf16.mxu0 0
      %2917 = vmatmul.mubr.bf16.gmra.mrb[0].mxu0 %v2808
      %v2918 = vpop.f32.mrb[0].mxu0
      %v2919 = vadd.f32 0.0, %v2918
      %v2920 = vpop.f32.mrb[0].mxu0
      %v2921 = vpop.f32.mrb[0].mxu0
      %v2922 = vadd.f32 0.0, %v2921
      %v2923 = vpop.f32.mrb[0].mxu0
      %2924 = vmatprep.mubr.bf16.mxu0 0
      %2925 = vmatmul.mubr.bf16.gmra.mrb[0].mxu0 %v2811
      %v2926 = vpop.f32.mrb[0].mxu0
      %v2927 = vadd.f32 0.0, %v2926
      %v2928 = vpop.f32.mrb[0].mxu0
      %v2929 = vpop.f32.mrb[0].mxu0
      %v2930 = vadd.f32 0.0, %v2929
      %v2931 = vpop.f32.mrb[0].mxu0
      %2932 = vmatprep.mubr.bf16.mxu0 0
      %2933 = vmatmul.mubr.bf16.gmra.mrb[0].mxu0 %v2814
      %v2934 = vpop.f32.mrb[0].mxu0
      %v2935 = vadd.f32 0.0, %v2934
      %v2936 = vpop.f32.mrb[0].mxu0
      %v2937 = vpop.f32.mrb[0].mxu0
      %v2938 = vadd.f32 0.0, %v2937
      %v2939 = vpop.f32.mrb[0].mxu0
      %2940 = vmatprep.mubr.bf16.mxu0 0
      %2941 = vmatmul.mubr.bf16.gmra.mrb[0].mxu0 %v2817
      %v2942 = vpop.f32.mrb[0].mxu0
      %v2943 = vadd.f32 0.0, %v2942
      %v2944 = vpop.f32.mrb[0].mxu0
      %v2945 = vpop.f32.mrb[0].mxu0
      %v2946 = vadd.f32 0.0, %v2945
      %v2947 = vpop.f32.mrb[0].mxu0
      %2948 = vmatprep.mubr.bf16.mxu0 0
      %2949 = vmatmul.mubr.bf16.gmra.mrb[0].mxu0 %v2820
      %v2950 = vpop.f32.mrb[0].mxu0
      %v2951 = vadd.f32 0.0, %v2950
      %v2952 = vpop.f32.mrb[0].mxu0
      %v2953 = vpop.f32.mrb[0].mxu0
      %v2954 = vadd.f32 0.0, %v2953
      %v2955 = vpop.f32.mrb[0].mxu0
      %2956 = vmatprep.mubr.bf16.mxu0 0
      %2957 = vmatmul.mubr.bf16.gmra.mrb[0].mxu0 %v2823
      %v2958 = vpop.f32.mrb[0].mxu0
      %v2959 = vadd.f32 0.0, %v2958
      %v2960 = vpop.f32.mrb[0].mxu0
      %v2961 = vpop.f32.mrb[0].mxu0
      %v2962 = vadd.f32 0.0, %v2961
      %v2963 = vpop.f32.mrb[0].mxu0
      %2964 = vmatprep.mubr.bf16.mxu0 0
      %2965 = vmatmul.mubr.bf16.gmra.mrb[0].mxu0 %v2826
      %v2966 = vpop.f32.mrb[0].mxu0
      %v2967 = vadd.f32 0.0, %v2966
      %v2968 = vpop.f32.mrb[0].mxu0
      %v2969 = vpop.f32.mrb[0].mxu0
      %v2970 = vadd.f32 0.0, %v2969
      %v2971 = vpop.f32.mrb[0].mxu0
      %2972 = vmatprep.mubr.bf16.mxu0 0
      %2973 = vmatmul.mubr.bf16.gmra.mrb[0].mxu0 %v2829
      %v2974 = vpop.f32.mrb[0].mxu0
      %v2975 = vadd.f32 0.0, %v2974
      %v2976 = vpop.f32.mrb[0].mxu0
      %v2977 = vpop.f32.mrb[0].mxu0
      %v2978 = vadd.f32 0.0, %v2977
      %v2979 = vpop.f32.mrb[0].mxu0
      %2980 = vmatprep.mubr.bf16.mxu0 0
      %2981 = vmatmul.mubr.bf16.gmra.mrb[0].mxu0 %v2832
      %v2982 = vpop.f32.mrb[0].mxu0
      %v2983 = vadd.f32 0.0, %v2982
      %v2984 = vpop.f32.mrb[0].mxu0
      %v2985 = vpop.f32.mrb[0].mxu0
      %v2986 = vadd.f32 0.0, %v2985
      %v2987 = vpop.f32.mrb[0].mxu0
      %2988 = vmatprep.mubr.bf16.mxu0 0
      %2989 = vmatmul.mubr.bf16.gmra.mrb[0].mxu0 %v2835
      %v2990 = vpop.f32.mrb[0].mxu0
      %v2991 = vadd.f32 0.0, %v2990
      %v2992 = vpop.f32.mrb[0].mxu0
      %v2993 = vpop.f32.mrb[0].mxu0
      %v2994 = vadd.f32 0.0, %v2993
      %v2995 = vpop.f32.mrb[0].mxu0
      %2996 = vmatprep.mubr.bf16.mxu0 0
      %2997 = vmatmul.mubr.bf16.gmra.mrb[0].mxu0 %v2838
      %v2998 = vpop.f32.mrb[0].mxu0
      %v2999 = vadd.f32 0.0, %v2998
      %v3000 = vpop.f32.mrb[0].mxu0
      %v3001 = vpop.f32.mrb[0].mxu0
      %v3002 = vadd.f32 0.0, %v3001
      %v3003 = vpop.f32.mrb[0].mxu0
      %3004 = vmatprep.mubr.bf16.mxu0 0
      %3005 = vmatmul.mubr.bf16.gmra.mrb[0].mxu0 %v2841
      %v3006 = vpop.f32.mrb[0].mxu0
      %v3007 = vadd.f32 0.0, %v3006
      %v3008 = vpop.f32.mrb[0].mxu0
      %v3009 = vpop.f32.mrb[0].mxu0
      %v3010 = vadd.f32 0.0, %v3009
      %v3011 = vpop.f32.mrb[0].mxu0
      %3012 = vmatprep.mubr.bf16.mxu0 0
      %3013 = vmatmul.mubr.bf16.gmra.mrb[0].mxu0 %v2844
      %v3014 = vpop.f32.mrb[0].mxu0
      %v3015 = vadd.f32 0.0, %v3014
      %v3016 = vpop.f32.mrb[0].mxu0
      %v3017 = vpop.f32.mrb[0].mxu0
      %v3018 = vadd.f32 0.0, %v3017
      %v3019 = vpop.f32.mrb[0].mxu0
      %3020 = vmatprep.mubr.bf16.mxu0 0
      %3021 = vmatmul.mubr.bf16.gmra.mrb[0].mxu0 %v2847
      %v3022 = vpop.f32.mrb[0].mxu0
      %v3023 = vadd.f32 0.0, %v3022
      %v3024 = vpop.f32.mrb[0].mxu0
      %v3025 = vpop.f32.mrb[0].mxu0
      %v3026 = vadd.f32 0.0, %v3025
      %v3027 = vpop.f32.mrb[0].mxu0
      %3028 = vmatprep.mubr.bf16.mxu0 0
      %3029 = vmatmul.mubr.bf16.gmra.mrb[0].mxu0 %v2850
      %v3030 = vpop.f32.mrb[0].mxu0
      %v3031 = vadd.f32 0.0, %v3030
      %v3032 = vpop.f32.mrb[0].mxu0
      %v3033 = vpop.f32.mrb[0].mxu0
      %v3034 = vadd.f32 0.0, %v3033
      %v3035 = vpop.f32.mrb[0].mxu0
      %3036 = vmatprep.mubr.bf16.mxu0 0
      %3037 = vmatmul.mubr.bf16.gmra.mrb[0].mxu0 %v2853
      %v3038 = vpop.f32.mrb[0].mxu0
      %v3039 = vadd.f32 0.0, %v3038
      %v3040 = vpop.f32.mrb[0].mxu0
      %v3041 = vpop.f32.mrb[0].mxu0
      %v3042 = vadd.f32 0.0, %v3041
      %v3043 = vpop.f32.mrb[0].mxu0
      %3044 = vmatprep.mubr.bf16.mxu0 0
      %3045 = vmatmul.mubr.bf16.gmra.mrb[0].mxu0 %v2856
      %v3046 = vpop.f32.mrb[0].mxu0
      %v3047 = vadd.f32 0.0, %v3046
      %v3048 = vpop.f32.mrb[0].mxu0
      %v3049 = vpop.f32.mrb[0].mxu0
      %v3050 = vadd.f32 0.0, %v3049
      %v3051 = vpop.f32.mrb[0].mxu0
      %3052 = vmatprep.mubr.bf16.mxu0 0
      %3053 = vmatmul.mubr.bf16.gmra.mrb[0].mxu0 %v2859
      %v3054 = vpop.f32.mrb[0].mxu0
      %v3055 = vadd.f32 0.0, %v3054
      %v3056 = vpop.f32.mrb[0].mxu0
      %v3057 = vpop.f32.mrb[0].mxu0
      %v3058 = vadd.f32 0.0, %v3057
      %v3059 = vpop.f32.mrb[0].mxu0
      %3060 = vmatprep.mubr.bf16.mxu0 0
      %3061 = vmatmul.mubr.bf16.gmra.mrb[0].mxu0 %v2862
      %v3062 = vpop.f32.mrb[0].mxu0
      %v3063 = vadd.f32 0.0, %v3062
      %v3064 = vpop.f32.mrb[0].mxu0
      %v3065 = vpop.f32.mrb[0].mxu0
      %v3066 = vadd.f32 0.0, %v3065
      %v3067 = vpop.f32.mrb[0].mxu0
      %3068 = vmatprep.mubr.bf16.mxu0 0
      %3069 = vmatmul.mubr.bf16.gmra.mrb[0].mxu0 %v2865
      %v3070 = vpop.f32.mrb[0].mxu0
      %v3071 = vadd.f32 0.0, %v3070
      %v3072 = vpop.f32.mrb[0].mxu0
      %v3073 = vpop.f32.mrb[0].mxu0
      %v3074 = vadd.f32 0.0, %v3073
      %v3075 = vpop.f32.mrb[0].mxu0
      %3076 = vmatprep.mubr.bf16.mxu0 0
      %3077 = vmatmul.mubr.bf16.gmra.mrb[0].mxu0 %v2868
      %v3078 = vpop.f32.mrb[0].mxu0
      %v3079 = vadd.f32 0.0, %v3078
      %v3080 = vpop.f32.mrb[0].mxu0
      %v3081 = vpop.f32.mrb[0].mxu0
      %v3082 = vadd.f32 0.0, %v3081
      %v3083 = vpop.f32.mrb[0].mxu0
      %3084 = vmatprep.mubr.bf16.mxu0 0
      %3085 = vmatmul.mubr.bf16.gmra.mrb[0].mxu0 %v2871
      %v3086 = vpop.f32.mrb[0].mxu0
      %v3087 = vadd.f32 0.0, %v3086
      %v3088 = vpop.f32.mrb[0].mxu0
      %v3089 = vpop.f32.mrb[0].mxu0
      %v3090 = vpop.f32.mrb[0].mxu0
      %3091 = vdwg.mxu0
      %v3092 = vadd.f32 %v2734, %v2911
      %v3093 = vadd.f32 %v2735, %v2914
      %v3094 = vadd.f32 %v2736, %v2919
      %v3095 = vadd.f32 %v2737, %v2922
      %v3096 = vadd.f32 %v2738, %v2927
      %v3097 = vadd.f32 %v2739, %v2930
      %v3098 = vadd.f32 %v2740, %v2935
      %v3099 = vadd.f32 %v2741, %v2938
      %v3100 = vadd.f32 %v2742, %v2943
      %v3101 = vadd.f32 %v2743, %v2946
      %v3102 = vadd.f32 %v2744, %v2951
      %v3103 = vadd.f32 %v2745, %v2954
      %v3104 = vadd.f32 %v2746, %v2959
      %v3105 = vadd.f32 %v2747, %v2962
      %v3106 = vadd.f32 %v2748, %v2967
      %v3107 = vadd.f32 %v2749, %v2970
      %v3108 = vadd.f32 %v2750, %v2975
      %v3109 = vadd.f32 %v2751, %v2978
      %v3110 = vadd.f32 %v2752, %v2983
      %v3111 = vadd.f32 %v2753, %v2986
      %v3112 = vadd.f32 %v2754, %v2991
      %v3113 = vadd.f32 %v2755, %v2994
      %v3114 = vadd.f32 %v2756, %v2999
      %v3115 = vadd.f32 %v2757, %v3002
      %v3116 = vadd.f32 %v2758, %v3007
      %v3117 = vadd.f32 %v2759, %v3010
      %v3118 = vadd.f32 %v2760, %v3015
      %v3119 = vadd.f32 %v2761, %v3018
      %v3120 = vadd.f32 %v2762, %v3023
      %v3121 = vadd.f32 %v2763, %v3026
      %v3122 = vadd.f32 %v2764, %v3031
      %v3123 = vadd.f32 %v2765, %v3034
      %v3124 = vadd.f32 %v2766, %v3039
      %v3125 = vadd.f32 %v2767, %v3042
      %v3126 = vadd.f32 %v2768, %v3047
      %v3127 = vadd.f32 %v2769, %v3050
      %v3128 = vadd.f32 %v2770, %v3055
      %v3129 = vadd.f32 %v2771, %v3058
      %v3130 = vadd.f32 %v2772, %v3063
      %v3131 = vadd.f32 %v2773, %v3066
      %v3132 = vadd.f32 %v2774, %v3071
      %v3133 = vadd.f32 %v2775, %v3074
      %v3134 = vadd.f32 %v2776, %v3079
      %v3135 = vadd.f32 %v2777, %v3082
      %v3136 = vadd.f32 %v2778, %v3087
      %s3137 = scalar_lea.vmem %s2, 14
      %v3138 = vld [vmem:[%s3137] sm:$0x3]
      %v3139 = vshrl.u32 %v2779, 16
      %v3141 = vshll.u32 %v2779, 16
      %v3143 = vrot.slane %v3141, 1
      %v3144 = vor.u32 %v3139, %v3143
      %v3145 = vshll.u32 %v2780, 16
      %v3147 = vrot.slane %v3145, 1
      %v3148 = vsel %vm433, %v3144, %v3147
      %v3149 = vshrl.u32 %v2780, 16
      %v3151 = vor.u32 %v3149, %v3147
      %v3152 = vshll.u32 %v2781, 16
      %v3154 = vrot.slane %v3152, 1
      %v3155 = vsel %vm433, %v3151, %v3154
      %v3156 = vshrl.u32 %v2781, 16
      %v3158 = vor.u32 %v3156, %v3154
      %v3159 = vshll.u32 %v2782, 16
      %v3161 = vrot.slane %v3159, 1
      %v3162 = vsel %vm433, %v3158, %v3161
      %v3163 = vshrl.u32 %v2782, 16
      %v3165 = vor.u32 %v3163, %v3161
      %v3166 = vshll.u32 %v2783, 16
      %v3168 = vrot.slane %v3166, 1
      %v3169 = vsel %vm433, %v3165, %v3168
      %v3170 = vshrl.u32 %v2783, 16
      %v3172 = vor.u32 %v3170, %v3168
      %v3173 = vshll.u32 %v2784, 16
      %v3175 = vrot.slane %v3173, 1
      %v3176 = vsel %vm433, %v3172, %v3175
      %v3177 = vshrl.u32 %v2784, 16
      %v3179 = vor.u32 %v3177, %v3175
      %v3180 = vshll.u32 %v2785, 16
      %v3182 = vrot.slane %v3180, 1
      %v3183 = vsel %vm433, %v3179, %v3182
      %v3184 = vshrl.u32 %v2785, 16
      %v3186 = vor.u32 %v3184, %v3182
      %v3187 = vshll.u32 %v2786, 16
      %v3189 = vrot.slane %v3187, 1
      %v3190 = vsel %vm433, %v3186, %v3189
      %v3191 = vshrl.u32 %v2786, 16
      %v3193 = vor.u32 %v3191, %v3189
      %v3194 = vshll.u32 %v2787, 16
      %v3196 = vrot.slane %v3194, 1
      %v3197 = vsel %vm433, %v3193, %v3196
      %v3198 = vshrl.u32 %v2787, 16
      %v3200 = vor.u32 %v3198, %v3196
      %v3201 = vshll.u32 %v2788, 16
      %v3203 = vrot.slane %v3201, 1
      %v3204 = vsel %vm433, %v3200, %v3203
      %v3205 = vshrl.u32 %v2788, 16
      %v3207 = vor.u32 %v3205, %v3203
      %v3208 = vshll.u32 %v2789, 16
      %v3210 = vrot.slane %v3208, 1
      %v3211 = vsel %vm433, %v3207, %v3210
      %v3212 = vshrl.u32 %v2789, 16
      %v3214 = vor.u32 %v3212, %v3210
      %v3215 = vshll.u32 %v2790, 16
      %v3217 = vrot.slane %v3215, 1
      %v3218 = vsel %vm433, %v3214, %v3217
      %v3219 = vshrl.u32 %v2790, 16
      %v3221 = vor.u32 %v3219, %v3217
      %v3222 = vshll.u32 %v2791, 16
      %v3224 = vrot.slane %v3222, 1
      %v3225 = vsel %vm433, %v3221, %v3224
      %v3226 = vshrl.u32 %v2791, 16
      %v3228 = vor.u32 %v3226, %v3224
      %v3229 = vshll.u32 %v2792, 16
      %v3231 = vrot.slane %v3229, 1
      %v3232 = vsel %vm433, %v3228, %v3231
      %v3233 = vshrl.u32 %v2792, 16
      %v3235 = vor.u32 %v3233, %v3231
      %v3236 = vshll.u32 %v2793, 16
      %v3238 = vrot.slane %v3236, 1
      %v3239 = vsel %vm433, %v3235, %v3238
      %v3240 = vshrl.u32 %v2793, 16
      %v3242 = vor.u32 %v3240, %v3238
      %v3243 = vshll.u32 %v2794, 16
      %v3245 = vrot.slane %v3243, 1
      %v3246 = vsel %vm433, %v3242, %v3245
      %v3247 = vshrl.u32 %v2794, 16
      %v3249 = vor.u32 %v3247, %v3245
      %v3250 = vshll.u32 %v2795, 16
      %v3252 = vrot.slane %v3250, 1
      %v3253 = vsel %vm433, %v3249, %v3252
      %v3254 = vshrl.u32 %v2795, 16
      %v3256 = vor.u32 %v3254, %v3252
      %v3257 = vshll.u32 %v2796, 16
      %v3259 = vrot.slane %v3257, 1
      %v3260 = vsel %vm433, %v3256, %v3259
      %v3261 = vshrl.u32 %v2796, 16
      %v3263 = vor.u32 %v3261, %v3259
      %v3264 = vshll.u32 %v2797, 16
      %v3266 = vrot.slane %v3264, 1
      %v3267 = vsel %vm433, %v3263, %v3266
      %v3268 = vshrl.u32 %v2797, 16
      %v3270 = vor.u32 %v3268, %v3266
      %v3271 = vshll.u32 %v2798, 16
      %v3273 = vrot.slane %v3271, 1
      %v3274 = vsel %vm433, %v3270, %v3273
      %v3275 = vshrl.u32 %v2798, 16
      %v3277 = vor.u32 %v3275, %v3273
      %v3278 = vshll.u32 %v2799, 16
      %v3280 = vrot.slane %v3278, 1
      %v3281 = vsel %vm433, %v3277, %v3280
      %v3282 = vshrl.u32 %v2799, 16
      %v3284 = vor.u32 %v3282, %v3280
      %v3285 = vshll.u32 %v2800, 16
      %v3287 = vrot.slane %v3285, 1
      %v3288 = vsel %vm433, %v3284, %v3287
      %v3289 = vshrl.u32 %v2800, 16
      %v3291 = vor.u32 %v3289, %v3287
      %v3292 = vshll.u32 %v2801, 16
      %v3294 = vrot.slane %v3292, 1
      %v3295 = vsel %vm433, %v3291, %v3294
      %v3296 = vshrl.u32 %v2801, 16
      %v3298 = vor.u32 %v3296, %v3294
      %v3300 = vsel %vm617, %v3148, 0
      %v3303 = vsel %vm617, %v3155, 0
      %v3306 = vsel %vm617, %v3162, 0
      %v3309 = vsel %vm617, %v3169, 0
      %v3312 = vsel %vm617, %v3176, 0
      %v3315 = vsel %vm617, %v3183, 0
      %v3318 = vsel %vm617, %v3190, 0
      %v3321 = vsel %vm617, %v3197, 0
      %v3324 = vsel %vm617, %v3204, 0
      %v3327 = vsel %vm617, %v3211, 0
      %v3330 = vsel %vm617, %v3218, 0
      %v3333 = vsel %vm617, %v3225, 0
      %v3336 = vsel %vm617, %v3232, 0
      %v3339 = vsel %vm617, %v3239, 0
      %v3342 = vsel %vm617, %v3246, 0
      %v3345 = vsel %vm617, %v3253, 0
      %v3348 = vsel %vm617, %v3260, 0
      %v3351 = vsel %vm617, %v3267, 0
      %v3354 = vsel %vm617, %v3274, 0
      %v3357 = vsel %vm617, %v3281, 0
      %v3360 = vsel %vm617, %v3288, 0
      %v3363 = vsel %vm617, %v3295, 0
      %v3366 = vsel %vm617, %v3298, 0
      %v3369 = vsel %vm687, %v3138, 0
      %3371 = vmatprep.subr.bf16.mxu0 0
      %3372 = vmatpush1.bf16.msra.mxu0 %v3369
      %3373 = vmatprep.subr.bf16.mxu0 0
      %3374 = vmatpush1.bf16.msra.mxu0 0
      %3375 = vmatprep.subr.bf16.mxu0 0
      %3376 = vmatpush1.bf16.msra.mxu0 0
      %3377 = vmatprep.subr.bf16.mxu0 0
      %3378 = vmatpush1.bf16.msra.mxu0 0
      %3379 = vmatprep.subr.bf16.mxu0 0
      %3380 = vmatpush1.bf16.msra.mxu0 0
      %3381 = vmatprep.subr.bf16.mxu0 0
      %3382 = vmatpush1.bf16.msra.mxu0 0
      %3383 = vmatprep.subr.bf16.mxu0 0
      %3384 = vmatpush1.bf16.msra.mxu0 0
      %3385 = vmatprep.subr.bf16.mxu0 0
      %3386 = vmatpush1.bf16.msra.mxu0 0
      %3387 = vmatprep.subr.bf16.mxu0 0
      %3388 = vmatpush1.bf16.msra.mxu0 0
      %3389 = vmatprep.subr.bf16.mxu0 0
      %3390 = vmatpush1.bf16.msra.mxu0 0
      %3391 = vmatprep.subr.bf16.mxu0 0
      %3392 = vmatpush1.bf16.msra.mxu0 0
      %3393 = vmatprep.subr.bf16.mxu0 0
      %3394 = vmatpush1.bf16.msra.mxu0 0
      %3395 = vmatprep.subr.bf16.mxu0 0
      %3396 = vmatpush1.bf16.msra.mxu0 0
      %3397 = vmatprep.subr.bf16.mxu0 0
      %3398 = vmatpush1.bf16.msra.mxu0 0
      %3399 = vmatprep.subr.bf16.mxu0 0
      %3400 = vmatpush1.bf16.msra.mxu0 0
      %3401 = vmatprep.subr.bf16.mxu0 0
      %3402 = vmatpush1.bf16.msra.mxu0 0
      %3403 = vmatprep.mubr.bf16.mxu0 0
      %3404 = vmatmul.mubr.bf16.gmra.mrb[0].mxu0 %v3300
      %v3405 = vpop.f32.mrb[0].mxu0
      %v3406 = vadd.f32 0.0, %v3405
      %v3407 = vpop.f32.mrb[0].mxu0
      %v3408 = vpop.f32.mrb[0].mxu0
      %v3409 = vadd.f32 0.0, %v3408
      %v3410 = vpop.f32.mrb[0].mxu0
      %3411 = vmatprep.mubr.bf16.mxu0 0
      %3412 = vmatmul.mubr.bf16.gmra.mrb[0].mxu0 %v3303
      %v3413 = vpop.f32.mrb[0].mxu0
      %v3414 = vadd.f32 0.0, %v3413
      %v3415 = vpop.f32.mrb[0].mxu0
      %v3416 = vpop.f32.mrb[0].mxu0
      %v3417 = vadd.f32 0.0, %v3416
      %v3418 = vpop.f32.mrb[0].mxu0
      %3419 = vmatprep.mubr.bf16.mxu0 0
      %3420 = vmatmul.mubr.bf16.gmra.mrb[0].mxu0 %v3306
      %v3421 = vpop.f32.mrb[0].mxu0
      %v3422 = vadd.f32 0.0, %v3421
      %v3423 = vpop.f32.mrb[0].mxu0
      %v3424 = vpop.f32.mrb[0].mxu0
      %v3425 = vadd.f32 0.0, %v3424
      %v3426 = vpop.f32.mrb[0].mxu0
      %3427 = vmatprep.mubr.bf16.mxu0 0
      %3428 = vmatmul.mubr.bf16.gmra.mrb[0].mxu0 %v3309
      %v3429 = vpop.f32.mrb[0].mxu0
      %v3430 = vadd.f32 0.0, %v3429
      %v3431 = vpop.f32.mrb[0].mxu0
      %v3432 = vpop.f32.mrb[0].mxu0
      %v3433 = vadd.f32 0.0, %v3432
      %v3434 = vpop.f32.mrb[0].mxu0
      %3435 = vmatprep.mubr.bf16.mxu0 0
      %3436 = vmatmul.mubr.bf16.gmra.mrb[0].mxu0 %v3312
      %v3437 = vpop.f32.mrb[0].mxu0
      %v3438 = vadd.f32 0.0, %v3437
      %v3439 = vpop.f32.mrb[0].mxu0
      %v3440 = vpop.f32.mrb[0].mxu0
      %v3441 = vadd.f32 0.0, %v3440
      %v3442 = vpop.f32.mrb[0].mxu0
      %3443 = vmatprep.mubr.bf16.mxu0 0
      %3444 = vmatmul.mubr.bf16.gmra.mrb[0].mxu0 %v3315
      %v3445 = vpop.f32.mrb[0].mxu0
      %v3446 = vadd.f32 0.0, %v3445
      %v3447 = vpop.f32.mrb[0].mxu0
      %v3448 = vpop.f32.mrb[0].mxu0
      %v3449 = vadd.f32 0.0, %v3448
      %v3450 = vpop.f32.mrb[0].mxu0
      %3451 = vmatprep.mubr.bf16.mxu0 0
      %3452 = vmatmul.mubr.bf16.gmra.mrb[0].mxu0 %v3318
      %v3453 = vpop.f32.mrb[0].mxu0
      %v3454 = vadd.f32 0.0, %v3453
      %v3455 = vpop.f32.mrb[0].mxu0
      %v3456 = vpop.f32.mrb[0].mxu0
      %v3457 = vadd.f32 0.0, %v3456
      %v3458 = vpop.f32.mrb[0].mxu0
      %3459 = vmatprep.mubr.bf16.mxu0 0
      %3460 = vmatmul.mubr.bf16.gmra.mrb[0].mxu0 %v3321
      %v3461 = vpop.f32.mrb[0].mxu0
      %v3462 = vadd.f32 0.0, %v3461
      %v3463 = vpop.f32.mrb[0].mxu0
      %v3464 = vpop.f32.mrb[0].mxu0
      %v3465 = vadd.f32 0.0, %v3464
      %v3466 = vpop.f32.mrb[0].mxu0
      %3467 = vmatprep.mubr.bf16.mxu0 0
      %3468 = vmatmul.mubr.bf16.gmra.mrb[0].mxu0 %v3324
      %v3469 = vpop.f32.mrb[0].mxu0
      %v3470 = vadd.f32 0.0, %v3469
      %v3471 = vpop.f32.mrb[0].mxu0
      %v3472 = vpop.f32.mrb[0].mxu0
      %v3473 = vadd.f32 0.0, %v3472
      %v3474 = vpop.f32.mrb[0].mxu0
      %3475 = vmatprep.mubr.bf16.mxu0 0
      %3476 = vmatmul.mubr.bf16.gmra.mrb[0].mxu0 %v3327
      %v3477 = vpop.f32.mrb[0].mxu0
      %v3478 = vadd.f32 0.0, %v3477
      %v3479 = vpop.f32.mrb[0].mxu0
      %v3480 = vpop.f32.mrb[0].mxu0
      %v3481 = vadd.f32 0.0, %v3480
      %v3482 = vpop.f32.mrb[0].mxu0
      %3483 = vmatprep.mubr.bf16.mxu0 0
      %3484 = vmatmul.mubr.bf16.gmra.mrb[0].mxu0 %v3330
      %v3485 = vpop.f32.mrb[0].mxu0
      %v3486 = vadd.f32 0.0, %v3485
      %v3487 = vpop.f32.mrb[0].mxu0
      %v3488 = vpop.f32.mrb[0].mxu0
      %v3489 = vadd.f32 0.0, %v3488
      %v3490 = vpop.f32.mrb[0].mxu0
      %3491 = vmatprep.mubr.bf16.mxu0 0
      %3492 = vmatmul.mubr.bf16.gmra.mrb[0].mxu0 %v3333
      %v3493 = vpop.f32.mrb[0].mxu0
      %v3494 = vadd.f32 0.0, %v3493
      %v3495 = vpop.f32.mrb[0].mxu0
      %v3496 = vpop.f32.mrb[0].mxu0
      %v3497 = vadd.f32 0.0, %v3496
      %v3498 = vpop.f32.mrb[0].mxu0
      %3499 = vmatprep.mubr.bf16.mxu0 0
      %3500 = vmatmul.mubr.bf16.gmra.mrb[0].mxu0 %v3336
      %v3501 = vpop.f32.mrb[0].mxu0
      %v3502 = vadd.f32 0.0, %v3501
      %v3503 = vpop.f32.mrb[0].mxu0
      %v3504 = vpop.f32.mrb[0].mxu0
      %v3505 = vadd.f32 0.0, %v3504
      %v3506 = vpop.f32.mrb[0].mxu0
      %3507 = vmatprep.mubr.bf16.mxu0 0
      %3508 = vmatmul.mubr.bf16.gmra.mrb[0].mxu0 %v3339
      %v3509 = vpop.f32.mrb[0].mxu0
      %v3510 = vadd.f32 0.0, %v3509
      %v3511 = vpop.f32.mrb[0].mxu0
      %v3512 = vpop.f32.mrb[0].mxu0
      %v3513 = vadd.f32 0.0, %v3512
      %v3514 = vpop.f32.mrb[0].mxu0
      %3515 = vmatprep.mubr.bf16.mxu0 0
      %3516 = vmatmul.mubr.bf16.gmra.mrb[0].mxu0 %v3342
      %v3517 = vpop.f32.mrb[0].mxu0
      %v3518 = vadd.f32 0.0, %v3517
      %v3519 = vpop.f32.mrb[0].mxu0
      %v3520 = vpop.f32.mrb[0].mxu0
      %v3521 = vadd.f32 0.0, %v3520
      %v3522 = vpop.f32.mrb[0].mxu0
      %3523 = vmatprep.mubr.bf16.mxu0 0
      %3524 = vmatmul.mubr.bf16.gmra.mrb[0].mxu0 %v3345
      %v3525 = vpop.f32.mrb[0].mxu0
      %v3526 = vadd.f32 0.0, %v3525
      %v3527 = vpop.f32.mrb[0].mxu0
      %v3528 = vpop.f32.mrb[0].mxu0
      %v3529 = vadd.f32 0.0, %v3528
      %v3530 = vpop.f32.mrb[0].mxu0
      %3531 = vmatprep.mubr.bf16.mxu0 0
      %3532 = vmatmul.mubr.bf16.gmra.mrb[0].mxu0 %v3348
      %v3533 = vpop.f32.mrb[0].mxu0
      %v3534 = vadd.f32 0.0, %v3533
      %v3535 = vpop.f32.mrb[0].mxu0
      %v3536 = vpop.f32.mrb[0].mxu0
      %v3537 = vadd.f32 0.0, %v3536
      %v3538 = vpop.f32.mrb[0].mxu0
      %3539 = vmatprep.mubr.bf16.mxu0 0
      %3540 = vmatmul.mubr.bf16.gmra.mrb[0].mxu0 %v3351
      %v3541 = vpop.f32.mrb[0].mxu0
      %v3542 = vadd.f32 0.0, %v3541
      %v3543 = vpop.f32.mrb[0].mxu0
      %v3544 = vpop.f32.mrb[0].mxu0
      %v3545 = vadd.f32 0.0, %v3544
      %v3546 = vpop.f32.mrb[0].mxu0
      %3547 = vmatprep.mubr.bf16.mxu0 0
      %3548 = vmatmul.mubr.bf16.gmra.mrb[0].mxu0 %v3354
      %v3549 = vpop.f32.mrb[0].mxu0
      %v3550 = vadd.f32 0.0, %v3549
      %v3551 = vpop.f32.mrb[0].mxu0
      %v3552 = vpop.f32.mrb[0].mxu0
      %v3553 = vadd.f32 0.0, %v3552
      %v3554 = vpop.f32.mrb[0].mxu0
      %3555 = vmatprep.mubr.bf16.mxu0 0
      %3556 = vmatmul.mubr.bf16.gmra.mrb[0].mxu0 %v3357
      %v3557 = vpop.f32.mrb[0].mxu0
      %v3558 = vadd.f32 0.0, %v3557
      %v3559 = vpop.f32.mrb[0].mxu0
      %v3560 = vpop.f32.mrb[0].mxu0
      %v3561 = vadd.f32 0.0, %v3560
      %v3562 = vpop.f32.mrb[0].mxu0
      %3563 = vmatprep.mubr.bf16.mxu0 0
      %3564 = vmatmul.mubr.bf16.gmra.mrb[0].mxu0 %v3360
      %v3565 = vpop.f32.mrb[0].mxu0
      %v3566 = vadd.f32 0.0, %v3565
      %v3567 = vpop.f32.mrb[0].mxu0
      %v3568 = vpop.f32.mrb[0].mxu0
      %v3569 = vadd.f32 0.0, %v3568
      %v3570 = vpop.f32.mrb[0].mxu0
      %3571 = vmatprep.mubr.bf16.mxu0 0
      %3572 = vmatmul.mubr.bf16.gmra.mrb[0].mxu0 %v3363
      %v3573 = vpop.f32.mrb[0].mxu0
      %v3574 = vadd.f32 0.0, %v3573
      %v3575 = vpop.f32.mrb[0].mxu0
      %v3576 = vpop.f32.mrb[0].mxu0
      %v3577 = vadd.f32 0.0, %v3576
      %v3578 = vpop.f32.mrb[0].mxu0
      %3579 = vmatprep.mubr.bf16.mxu0 0
      %3580 = vmatmul.mubr.bf16.gmra.mrb[0].mxu0 %v3366
      %v3581 = vpop.f32.mrb[0].mxu0
      %v3582 = vadd.f32 0.0, %v3581
      %v3583 = vpop.f32.mrb[0].mxu0
      %v3584 = vpop.f32.mrb[0].mxu0
      %v3585 = vpop.f32.mrb[0].mxu0
      %3586 = vdwg.mxu0
      %v3587 = vadd.f32 %v3092, %v3406
      %v3588 = vadd.f32 %v3093, %v3409
      %v3589 = vadd.f32 %v3094, %v3414
      %v3590 = vadd.f32 %v3095, %v3417
      %v3591 = vadd.f32 %v3096, %v3422
      %v3592 = vadd.f32 %v3097, %v3425
      %v3593 = vadd.f32 %v3098, %v3430
      %v3594 = vadd.f32 %v3099, %v3433
      %v3595 = vadd.f32 %v3100, %v3438
      %v3596 = vadd.f32 %v3101, %v3441
      %v3597 = vadd.f32 %v3102, %v3446
      %v3598 = vadd.f32 %v3103, %v3449
      %v3599 = vadd.f32 %v3104, %v3454
      %v3600 = vadd.f32 %v3105, %v3457
      %v3601 = vadd.f32 %v3106, %v3462
      %v3602 = vadd.f32 %v3107, %v3465
      %v3603 = vadd.f32 %v3108, %v3470
      %v3604 = vadd.f32 %v3109, %v3473
      %v3605 = vadd.f32 %v3110, %v3478
      %v3606 = vadd.f32 %v3111, %v3481
      %v3607 = vadd.f32 %v3112, %v3486
      %v3608 = vadd.f32 %v3113, %v3489
      %v3609 = vadd.f32 %v3114, %v3494
      %v3610 = vadd.f32 %v3115, %v3497
      %v3611 = vadd.f32 %v3116, %v3502
      %v3612 = vadd.f32 %v3117, %v3505
      %v3613 = vadd.f32 %v3118, %v3510
      %v3614 = vadd.f32 %v3119, %v3513
      %v3615 = vadd.f32 %v3120, %v3518
      %v3616 = vadd.f32 %v3121, %v3521
      %v3617 = vadd.f32 %v3122, %v3526
      %v3618 = vadd.f32 %v3123, %v3529
      %v3619 = vadd.f32 %v3124, %v3534
      %v3620 = vadd.f32 %v3125, %v3537
      %v3621 = vadd.f32 %v3126, %v3542
      %v3622 = vadd.f32 %v3127, %v3545
      %v3623 = vadd.f32 %v3128, %v3550
      %v3624 = vadd.f32 %v3129, %v3553
      %v3625 = vadd.f32 %v3130, %v3558
      %v3626 = vadd.f32 %v3131, %v3561
      %v3627 = vadd.f32 %v3132, %v3566
      %v3628 = vadd.f32 %v3133, %v3569
      %v3629 = vadd.f32 %v3134, %v3574
      %v3630 = vadd.f32 %v3135, %v3577
      %v3631 = vadd.f32 %v3136, %v3582
      %s3632 = scalar_lea.vmem %s2, 16
      %v3633 = vld [vmem:[%s3632] sm:$0x3]
      %v3657 = vrot.slane %v2779, 1
      %v3658 = vrot.slane %v2780, 1
      %v3659 = vsel %vm1197, %v3657, %v3658
      %v3660 = vrot.slane %v2781, 1
      %v3661 = vsel %vm1197, %v3658, %v3660
      %v3662 = vrot.slane %v2782, 1
      %v3663 = vsel %vm1197, %v3660, %v3662
      %v3664 = vrot.slane %v2783, 1
      %v3665 = vsel %vm1197, %v3662, %v3664
      %v3666 = vrot.slane %v2784, 1
      %v3667 = vsel %vm1197, %v3664, %v3666
      %v3668 = vrot.slane %v2785, 1
      %v3669 = vsel %vm1197, %v3666, %v3668
      %v3670 = vrot.slane %v2786, 1
      %v3671 = vsel %vm1197, %v3668, %v3670
      %v3672 = vrot.slane %v2787, 1
      %v3673 = vsel %vm1197, %v3670, %v3672
      %v3674 = vrot.slane %v2788, 1
      %v3675 = vsel %vm1197, %v3672, %v3674
      %v3676 = vrot.slane %v2789, 1
      %v3677 = vsel %vm1197, %v3674, %v3676
      %v3678 = vrot.slane %v2790, 1
      %v3679 = vsel %vm1197, %v3676, %v3678
      %v3680 = vrot.slane %v2791, 1
      %v3681 = vsel %vm1197, %v3678, %v3680
      %v3682 = vrot.slane %v2792, 1
      %v3683 = vsel %vm1197, %v3680, %v3682
      %v3684 = vrot.slane %v2793, 1
      %v3685 = vsel %vm1197, %v3682, %v3684
      %v3686 = vrot.slane %v2794, 1
      %v3687 = vsel %vm1197, %v3684, %v3686
      %v3688 = vrot.slane %v2795, 1
      %v3689 = vsel %vm1197, %v3686, %v3688
      %v3690 = vrot.slane %v2796, 1
      %v3691 = vsel %vm1197, %v3688, %v3690
      %v3692 = vrot.slane %v2797, 1
      %v3693 = vsel %vm1197, %v3690, %v3692
      %v3694 = vrot.slane %v2798, 1
      %v3695 = vsel %vm1197, %v3692, %v3694
      %v3696 = vrot.slane %v2799, 1
      %v3697 = vsel %vm1197, %v3694, %v3696
      %v3698 = vrot.slane %v2800, 1
      %v3699 = vsel %vm1197, %v3696, %v3698
      %v3700 = vrot.slane %v2801, 1
      %v3701 = vsel %vm1197, %v3698, %v3700
      %v3703 = vsel %vm617, %v3659, 0
      %v3706 = vsel %vm617, %v3661, 0
      %v3709 = vsel %vm617, %v3663, 0
      %v3712 = vsel %vm617, %v3665, 0
      %v3715 = vsel %vm617, %v3667, 0
      %v3718 = vsel %vm617, %v3669, 0
      %v3721 = vsel %vm617, %v3671, 0
      %v3724 = vsel %vm617, %v3673, 0
      %v3727 = vsel %vm617, %v3675, 0
      %v3730 = vsel %vm617, %v3677, 0
      %v3733 = vsel %vm617, %v3679, 0
      %v3736 = vsel %vm617, %v3681, 0
      %v3739 = vsel %vm617, %v3683, 0
      %v3742 = vsel %vm617, %v3685, 0
      %v3745 = vsel %vm617, %v3687, 0
      %v3748 = vsel %vm617, %v3689, 0
      %v3751 = vsel %vm617, %v3691, 0
      %v3754 = vsel %vm617, %v3693, 0
      %v3757 = vsel %vm617, %v3695, 0
      %v3760 = vsel %vm617, %v3697, 0
      %v3763 = vsel %vm617, %v3699, 0
      %v3766 = vsel %vm617, %v3701, 0
      %v3769 = vsel %vm617, %v3700, 0
      %v3772 = vsel %vm687, %v3633, 0
      %3774 = vmatprep.subr.bf16.mxu0 0
      %3775 = vmatpush1.bf16.msra.mxu0 %v3772
      %3776 = vmatprep.subr.bf16.mxu0 0
      %3777 = vmatpush1.bf16.msra.mxu0 0
      %3778 = vmatprep.subr.bf16.mxu0 0
      %3779 = vmatpush1.bf16.msra.mxu0 0
      %3780 = vmatprep.subr.bf16.mxu0 0
      %3781 = vmatpush1.bf16.msra.mxu0 0
      %3782 = vmatprep.subr.bf16.mxu0 0
      %3783 = vmatpush1.bf16.msra.mxu0 0
      %3784 = vmatprep.subr.bf16.mxu0 0
      %3785 = vmatpush1.bf16.msra.mxu0 0
      %3786 = vmatprep.subr.bf16.mxu0 0
      %3787 = vmatpush1.bf16.msra.mxu0 0
      %3788 = vmatprep.subr.bf16.mxu0 0
      %3789 = vmatpush1.bf16.msra.mxu0 0
      %3790 = vmatprep.subr.bf16.mxu0 0
      %3791 = vmatpush1.bf16.msra.mxu0 0
      %3792 = vmatprep.subr.bf16.mxu0 0
      %3793 = vmatpush1.bf16.msra.mxu0 0
      %3794 = vmatprep.subr.bf16.mxu0 0
      %3795 = vmatpush1.bf16.msra.mxu0 0
      %3796 = vmatprep.subr.bf16.mxu0 0
      %3797 = vmatpush1.bf16.msra.mxu0 0
      %3798 = vmatprep.subr.bf16.mxu0 0
      %3799 = vmatpush1.bf16.msra.mxu0 0
      %3800 = vmatprep.subr.bf16.mxu0 0
      %3801 = vmatpush1.bf16.msra.mxu0 0
      %3802 = vmatprep.subr.bf16.mxu0 0
      %3803 = vmatpush1.bf16.msra.mxu0 0
      %3804 = vmatprep.subr.bf16.mxu0 0
      %3805 = vmatpush1.bf16.msra.mxu0 0
      %3806 = vmatprep.mubr.bf16.mxu0 0
      %3807 = vmatmul.mubr.bf16.gmra.mrb[0].mxu0 %v3703
      %v3808 = vpop.f32.mrb[0].mxu0
      %v3809 = vadd.f32 0.0, %v3808
      %v3810 = vpop.f32.mrb[0].mxu0
      %v3811 = vpop.f32.mrb[0].mxu0
      %v3812 = vadd.f32 0.0, %v3811
      %v3813 = vpop.f32.mrb[0].mxu0
      %3814 = vmatprep.mubr.bf16.mxu0 0
      %3815 = vmatmul.mubr.bf16.gmra.mrb[0].mxu0 %v3706
      %v3816 = vpop.f32.mrb[0].mxu0
      %v3817 = vadd.f32 0.0, %v3816
      %v3818 = vpop.f32.mrb[0].mxu0
      %v3819 = vpop.f32.mrb[0].mxu0
      %v3820 = vadd.f32 0.0, %v3819
      %v3821 = vpop.f32.mrb[0].mxu0
      %3822 = vmatprep.mubr.bf16.mxu0 0
      %3823 = vmatmul.mubr.bf16.gmra.mrb[0].mxu0 %v3709
      %v3824 = vpop.f32.mrb[0].mxu0
      %v3825 = vadd.f32 0.0, %v3824
      %v3826 = vpop.f32.mrb[0].mxu0
      %v3827 = vpop.f32.mrb[0].mxu0
      %v3828 = vadd.f32 0.0, %v3827
      %v3829 = vpop.f32.mrb[0].mxu0
      %3830 = vmatprep.mubr.bf16.mxu0 0
      %3831 = vmatmul.mubr.bf16.gmra.mrb[0].mxu0 %v3712
      %v3832 = vpop.f32.mrb[0].mxu0
      %v3833 = vadd.f32 0.0, %v3832
      %v3834 = vpop.f32.mrb[0].mxu0
      %v3835 = vpop.f32.mrb[0].mxu0
      %v3836 = vadd.f32 0.0, %v3835
      %v3837 = vpop.f32.mrb[0].mxu0
      %3838 = vmatprep.mubr.bf16.mxu0 0
      %3839 = vmatmul.mubr.bf16.gmra.mrb[0].mxu0 %v3715
      %v3840 = vpop.f32.mrb[0].mxu0
      %v3841 = vadd.f32 0.0, %v3840
      %v3842 = vpop.f32.mrb[0].mxu0
      %v3843 = vpop.f32.mrb[0].mxu0
      %v3844 = vadd.f32 0.0, %v3843
      %v3845 = vpop.f32.mrb[0].mxu0
      %3846 = vmatprep.mubr.bf16.mxu0 0
      %3847 = vmatmul.mubr.bf16.gmra.mrb[0].mxu0 %v3718
      %v3848 = vpop.f32.mrb[0].mxu0
      %v3849 = vadd.f32 0.0, %v3848
      %v3850 = vpop.f32.mrb[0].mxu0
      %v3851 = vpop.f32.mrb[0].mxu0
      %v3852 = vadd.f32 0.0, %v3851
      %v3853 = vpop.f32.mrb[0].mxu0
      %3854 = vmatprep.mubr.bf16.mxu0 0
      %3855 = vmatmul.mubr.bf16.gmra.mrb[0].mxu0 %v3721
      %v3856 = vpop.f32.mrb[0].mxu0
      %v3857 = vadd.f32 0.0, %v3856
      %v3858 = vpop.f32.mrb[0].mxu0
      %v3859 = vpop.f32.mrb[0].mxu0
      %v3860 = vadd.f32 0.0, %v3859
      %v3861 = vpop.f32.mrb[0].mxu0
      %3862 = vmatprep.mubr.bf16.mxu0 0
      %3863 = vmatmul.mubr.bf16.gmra.mrb[0].mxu0 %v3724
      %v3864 = vpop.f32.mrb[0].mxu0
      %v3865 = vadd.f32 0.0, %v3864
      %v3866 = vpop.f32.mrb[0].mxu0
      %v3867 = vpop.f32.mrb[0].mxu0
      %v3868 = vadd.f32 0.0, %v3867
      %v3869 = vpop.f32.mrb[0].mxu0
      %3870 = vmatprep.mubr.bf16.mxu0 0
      %3871 = vmatmul.mubr.bf16.gmra.mrb[0].mxu0 %v3727
      %v3872 = vpop.f32.mrb[0].mxu0
      %v3873 = vadd.f32 0.0, %v3872
      %v3874 = vpop.f32.mrb[0].mxu0
      %v3875 = vpop.f32.mrb[0].mxu0
      %v3876 = vadd.f32 0.0, %v3875
      %v3877 = vpop.f32.mrb[0].mxu0
      %3878 = vmatprep.mubr.bf16.mxu0 0
      %3879 = vmatmul.mubr.bf16.gmra.mrb[0].mxu0 %v3730
      %v3880 = vpop.f32.mrb[0].mxu0
      %v3881 = vadd.f32 0.0, %v3880
      %v3882 = vpop.f32.mrb[0].mxu0
      %v3883 = vpop.f32.mrb[0].mxu0
      %v3884 = vadd.f32 0.0, %v3883
      %v3885 = vpop.f32.mrb[0].mxu0
      %3886 = vmatprep.mubr.bf16.mxu0 0
      %3887 = vmatmul.mubr.bf16.gmra.mrb[0].mxu0 %v3733
      %v3888 = vpop.f32.mrb[0].mxu0
      %v3889 = vadd.f32 0.0, %v3888
      %v3890 = vpop.f32.mrb[0].mxu0
      %v3891 = vpop.f32.mrb[0].mxu0
      %v3892 = vadd.f32 0.0, %v3891
      %v3893 = vpop.f32.mrb[0].mxu0
      %3894 = vmatprep.mubr.bf16.mxu0 0
      %3895 = vmatmul.mubr.bf16.gmra.mrb[0].mxu0 %v3736
      %v3896 = vpop.f32.mrb[0].mxu0
      %v3897 = vadd.f32 0.0, %v3896
      %v3898 = vpop.f32.mrb[0].mxu0
      %v3899 = vpop.f32.mrb[0].mxu0
      %v3900 = vadd.f32 0.0, %v3899
      %v3901 = vpop.f32.mrb[0].mxu0
      %3902 = vmatprep.mubr.bf16.mxu0 0
      %3903 = vmatmul.mubr.bf16.gmra.mrb[0].mxu0 %v3739
      %v3904 = vpop.f32.mrb[0].mxu0
      %v3905 = vadd.f32 0.0, %v3904
      %v3906 = vpop.f32.mrb[0].mxu0
      %v3907 = vpop.f32.mrb[0].mxu0
      %v3908 = vadd.f32 0.0, %v3907
      %v3909 = vpop.f32.mrb[0].mxu0
      %3910 = vmatprep.mubr.bf16.mxu0 0
      %3911 = vmatmul.mubr.bf16.gmra.mrb[0].mxu0 %v3742
      %v3912 = vpop.f32.mrb[0].mxu0
      %v3913 = vadd.f32 0.0, %v3912
      %v3914 = vpop.f32.mrb[0].mxu0
      %v3915 = vpop.f32.mrb[0].mxu0
      %v3916 = vadd.f32 0.0, %v3915
      %v3917 = vpop.f32.mrb[0].mxu0
      %3918 = vmatprep.mubr.bf16.mxu0 0
      %3919 = vmatmul.mubr.bf16.gmra.mrb[0].mxu0 %v3745
      %v3920 = vpop.f32.mrb[0].mxu0
      %v3921 = vadd.f32 0.0, %v3920
      %v3922 = vpop.f32.mrb[0].mxu0
      %v3923 = vpop.f32.mrb[0].mxu0
      %v3924 = vadd.f32 0.0, %v3923
      %v3925 = vpop.f32.mrb[0].mxu0
      %3926 = vmatprep.mubr.bf16.mxu0 0
      %3927 = vmatmul.mubr.bf16.gmra.mrb[0].mxu0 %v3748
      %v3928 = vpop.f32.mrb[0].mxu0
      %v3929 = vadd.f32 0.0, %v3928
      %v3930 = vpop.f32.mrb[0].mxu0
      %v3931 = vpop.f32.mrb[0].mxu0
      %v3932 = vadd.f32 0.0, %v3931
      %v3933 = vpop.f32.mrb[0].mxu0
      %3934 = vmatprep.mubr.bf16.mxu0 0
      %3935 = vmatmul.mubr.bf16.gmra.mrb[0].mxu0 %v3751
      %v3936 = vpop.f32.mrb[0].mxu0
      %v3937 = vadd.f32 0.0, %v3936
      %v3938 = vpop.f32.mrb[0].mxu0
      %v3939 = vpop.f32.mrb[0].mxu0
      %v3940 = vadd.f32 0.0, %v3939
      %v3941 = vpop.f32.mrb[0].mxu0
      %3942 = vmatprep.mubr.bf16.mxu0 0
      %3943 = vmatmul.mubr.bf16.gmra.mrb[0].mxu0 %v3754
      %v3944 = vpop.f32.mrb[0].mxu0
      %v3945 = vadd.f32 0.0, %v3944
      %v3946 = vpop.f32.mrb[0].mxu0
      %v3947 = vpop.f32.mrb[0].mxu0
      %v3948 = vadd.f32 0.0, %v3947
      %v3949 = vpop.f32.mrb[0].mxu0
      %3950 = vmatprep.mubr.bf16.mxu0 0
      %3951 = vmatmul.mubr.bf16.gmra.mrb[0].mxu0 %v3757
      %v3952 = vpop.f32.mrb[0].mxu0
      %v3953 = vadd.f32 0.0, %v3952
      %v3954 = vpop.f32.mrb[0].mxu0
      %v3955 = vpop.f32.mrb[0].mxu0
      %v3956 = vadd.f32 0.0, %v3955
      %v3957 = vpop.f32.mrb[0].mxu0
      %3958 = vmatprep.mubr.bf16.mxu0 0
      %3959 = vmatmul.mubr.bf16.gmra.mrb[0].mxu0 %v3760
      %v3960 = vpop.f32.mrb[0].mxu0
      %v3961 = vadd.f32 0.0, %v3960
      %v3962 = vpop.f32.mrb[0].mxu0
      %v3963 = vpop.f32.mrb[0].mxu0
      %v3964 = vadd.f32 0.0, %v3963
      %v3965 = vpop.f32.mrb[0].mxu0
      %3966 = vmatprep.mubr.bf16.mxu0 0
      %3967 = vmatmul.mubr.bf16.gmra.mrb[0].mxu0 %v3763
      %v3968 = vpop.f32.mrb[0].mxu0
      %v3969 = vadd.f32 0.0, %v3968
      %v3970 = vpop.f32.mrb[0].mxu0
      %v3971 = vpop.f32.mrb[0].mxu0
      %v3972 = vadd.f32 0.0, %v3971
      %v3973 = vpop.f32.mrb[0].mxu0
      %3974 = vmatprep.mubr.bf16.mxu0 0
      %3975 = vmatmul.mubr.bf16.gmra.mrb[0].mxu0 %v3766
      %v3976 = vpop.f32.mrb[0].mxu0
      %v3977 = vadd.f32 0.0, %v3976
      %v3978 = vpop.f32.mrb[0].mxu0
      %v3979 = vpop.f32.mrb[0].mxu0
      %v3980 = vadd.f32 0.0, %v3979
      %v3981 = vpop.f32.mrb[0].mxu0
      %3982 = vmatprep.mubr.bf16.mxu0 0
      %3983 = vmatmul.mubr.bf16.gmra.mrb[0].mxu0 %v3769
      %v3984 = vpop.f32.mrb[0].mxu0
      %v3985 = vadd.f32 0.0, %v3984
      %v3986 = vpop.f32.mrb[0].mxu0
      %v3987 = vpop.f32.mrb[0].mxu0
      %v3988 = vpop.f32.mrb[0].mxu0
      %3989 = vdwg.mxu0
      %v3990 = vadd.f32 %v3587, %v3809
      %v3991 = vadd.f32 %v3588, %v3812
      %v3992 = vadd.f32 %v3589, %v3817
      %v3993 = vadd.f32 %v3590, %v3820
      %v3994 = vadd.f32 %v3591, %v3825
      %v3995 = vadd.f32 %v3592, %v3828
      %v3996 = vadd.f32 %v3593, %v3833
      %v3997 = vadd.f32 %v3594, %v3836
      %v3998 = vadd.f32 %v3595, %v3841
      %v3999 = vadd.f32 %v3596, %v3844
      %v4000 = vadd.f32 %v3597, %v3849
      %v4001 = vadd.f32 %v3598, %v3852
      %v4002 = vadd.f32 %v3599, %v3857
      %v4003 = vadd.f32 %v3600, %v3860
      %v4004 = vadd.f32 %v3601, %v3865
      %v4005 = vadd.f32 %v3602, %v3868
      %v4006 = vadd.f32 %v3603, %v3873
      %v4007 = vadd.f32 %v3604, %v3876
      %v4008 = vadd.f32 %v3605, %v3881
      %v4009 = vadd.f32 %v3606, %v3884
      %v4010 = vadd.f32 %v3607, %v3889
      %v4011 = vadd.f32 %v3608, %v3892
      %v4012 = vadd.f32 %v3609, %v3897
      %v4013 = vadd.f32 %v3610, %v3900
      %v4014 = vadd.f32 %v3611, %v3905
      %v4015 = vadd.f32 %v3612, %v3908
      %v4016 = vadd.f32 %v3613, %v3913
      %v4017 = vadd.f32 %v3614, %v3916
      %v4018 = vadd.f32 %v3615, %v3921
      %v4019 = vadd.f32 %v3616, %v3924
      %v4020 = vadd.f32 %v3617, %v3929
      %v4021 = vadd.f32 %v3618, %v3932
      %v4022 = vadd.f32 %v3619, %v3937
      %v4023 = vadd.f32 %v3620, %v3940
      %v4024 = vadd.f32 %v3621, %v3945
      %v4025 = vadd.f32 %v3622, %v3948
      %v4026 = vadd.f32 %v3623, %v3953
      %v4027 = vadd.f32 %v3624, %v3956
      %v4028 = vadd.f32 %v3625, %v3961
      %v4029 = vadd.f32 %v3626, %v3964
      %v4030 = vadd.f32 %v3627, %v3969
      %v4031 = vadd.f32 %v3628, %v3972
      %v4032 = vadd.f32 %v3629, %v3977
      %v4033 = vadd.f32 %v3630, %v3980
      %v4034 = vadd.f32 %v3631, %v3985
      %v4035 = vld [vmem:[%s3] sm:$0x1]
      %v4037 = vlaneseq
      %v4038 = vshrl.u32 %v4037, 7
      %v4039 = vsub.s32 0, %v4038
      %v4040 = vrot.slane %v4035, %v4039
      %v4042 = vmul.f32 %v3990, %v4040
      %v4043 = vmul.f32 %v3991, %v4040
      %v4044 = vmul.f32 %v3992, %v4040
      %v4045 = vmul.f32 %v3993, %v4040
      %v4046 = vmul.f32 %v3994, %v4040
      %v4047 = vmul.f32 %v3995, %v4040
      %v4048 = vmul.f32 %v3996, %v4040
      %v4049 = vmul.f32 %v3997, %v4040
      %v4050 = vmul.f32 %v3998, %v4040
      %v4051 = vmul.f32 %v3999, %v4040
      %v4052 = vmul.f32 %v4000, %v4040
      %v4053 = vmul.f32 %v4001, %v4040
      %v4054 = vmul.f32 %v4002, %v4040
      %v4055 = vmul.f32 %v4003, %v4040
      %v4056 = vmul.f32 %v4004, %v4040
      %v4057 = vmul.f32 %v4005, %v4040
      %v4058 = vmul.f32 %v4006, %v4040
      %v4059 = vmul.f32 %v4007, %v4040
      %v4060 = vmul.f32 %v4008, %v4040
      %v4061 = vmul.f32 %v4009, %v4040
      %v4062 = vmul.f32 %v4010, %v4040
      %v4063 = vmul.f32 %v4011, %v4040
      %v4064 = vmul.f32 %v4012, %v4040
      %v4065 = vmul.f32 %v4013, %v4040
      %v4066 = vmul.f32 %v4014, %v4040
      %v4067 = vmul.f32 %v4015, %v4040
      %v4068 = vmul.f32 %v4016, %v4040
      %v4069 = vmul.f32 %v4017, %v4040
      %v4070 = vmul.f32 %v4018, %v4040
      %v4071 = vmul.f32 %v4019, %v4040
      %v4072 = vmul.f32 %v4020, %v4040
      %v4073 = vmul.f32 %v4021, %v4040
      %v4074 = vmul.f32 %v4022, %v4040
      %v4075 = vmul.f32 %v4023, %v4040
      %v4076 = vmul.f32 %v4024, %v4040
      %v4077 = vmul.f32 %v4025, %v4040
      %v4078 = vmul.f32 %v4026, %v4040
      %v4079 = vmul.f32 %v4027, %v4040
      %v4080 = vmul.f32 %v4028, %v4040
      %v4081 = vmul.f32 %v4029, %v4040
      %v4082 = vmul.f32 %v4030, %v4040
      %v4083 = vmul.f32 %v4031, %v4040
      %v4084 = vmul.f32 %v4032, %v4040
      %v4085 = vmul.f32 %v4033, %v4040
      %v4086 = vmul.f32 %v4034, %v4040
      %v4087 = vld [vmem:[%s4] sm:$0x1]
      %v4089 = vlaneseq
      %v4090 = vshrl.u32 %v4089, 7
      %v4091 = vsub.s32 0, %v4090
      %v4092 = vrot.slane %v4087, %v4091
      %v4094 = vadd.f32 %v4042, %v4092
      %v4095 = vadd.f32 %v4043, %v4092
      %v4096 = vadd.f32 %v4044, %v4092
      %v4097 = vadd.f32 %v4045, %v4092
      %v4098 = vadd.f32 %v4046, %v4092
      %v4099 = vadd.f32 %v4047, %v4092
      %v4100 = vadd.f32 %v4048, %v4092
      %v4101 = vadd.f32 %v4049, %v4092
      %v4102 = vadd.f32 %v4050, %v4092
      %v4103 = vadd.f32 %v4051, %v4092
      %v4104 = vadd.f32 %v4052, %v4092
      %v4105 = vadd.f32 %v4053, %v4092
      %v4106 = vadd.f32 %v4054, %v4092
      %v4107 = vadd.f32 %v4055, %v4092
      %v4108 = vadd.f32 %v4056, %v4092
      %v4109 = vadd.f32 %v4057, %v4092
      %v4110 = vadd.f32 %v4058, %v4092
      %v4111 = vadd.f32 %v4059, %v4092
      %v4112 = vadd.f32 %v4060, %v4092
      %v4113 = vadd.f32 %v4061, %v4092
      %v4114 = vadd.f32 %v4062, %v4092
      %v4115 = vadd.f32 %v4063, %v4092
      %v4116 = vadd.f32 %v4064, %v4092
      %v4117 = vadd.f32 %v4065, %v4092
      %v4118 = vadd.f32 %v4066, %v4092
      %v4119 = vadd.f32 %v4067, %v4092
      %v4120 = vadd.f32 %v4068, %v4092
      %v4121 = vadd.f32 %v4069, %v4092
      %v4122 = vadd.f32 %v4070, %v4092
      %v4123 = vadd.f32 %v4071, %v4092
      %v4124 = vadd.f32 %v4072, %v4092
      %v4125 = vadd.f32 %v4073, %v4092
      %v4126 = vadd.f32 %v4074, %v4092
      %v4127 = vadd.f32 %v4075, %v4092
      %v4128 = vadd.f32 %v4076, %v4092
      %v4129 = vadd.f32 %v4077, %v4092
      %v4130 = vadd.f32 %v4078, %v4092
      %v4131 = vadd.f32 %v4079, %v4092
      %v4132 = vadd.f32 %v4080, %v4092
      %v4133 = vadd.f32 %v4081, %v4092
      %v4134 = vadd.f32 %v4082, %v4092
      %v4135 = vadd.f32 %v4083, %v4092
      %v4136 = vadd.f32 %v4084, %v4092
      %v4137 = vadd.f32 %v4085, %v4092
      %v4138 = vadd.f32 %v4086, %v4092
      %v4139 = vmax.f32 %v4094, 0.0
      %v4140 = vmax.f32 %v4095, 0.0
      %v4141 = vmax.f32 %v4096, 0.0
      %v4142 = vmax.f32 %v4097, 0.0
      %v4143 = vmax.f32 %v4098, 0.0
      %v4144 = vmax.f32 %v4099, 0.0
      %v4145 = vmax.f32 %v4100, 0.0
      %v4146 = vmax.f32 %v4101, 0.0
      %v4147 = vmax.f32 %v4102, 0.0
      %v4148 = vmax.f32 %v4103, 0.0
      %v4149 = vmax.f32 %v4104, 0.0
      %v4150 = vmax.f32 %v4105, 0.0
      %v4151 = vmax.f32 %v4106, 0.0
      %v4152 = vmax.f32 %v4107, 0.0
      %v4153 = vmax.f32 %v4108, 0.0
      %v4154 = vmax.f32 %v4109, 0.0
      %v4155 = vmax.f32 %v4110, 0.0
      %v4156 = vmax.f32 %v4111, 0.0
      %v4157 = vmax.f32 %v4112, 0.0
      %v4158 = vmax.f32 %v4113, 0.0
      %v4159 = vmax.f32 %v4114, 0.0
      %v4160 = vmax.f32 %v4115, 0.0
      %v4161 = vmax.f32 %v4116, 0.0
      %v4162 = vmax.f32 %v4117, 0.0
      %v4163 = vmax.f32 %v4118, 0.0
      %v4164 = vmax.f32 %v4119, 0.0
      %v4165 = vmax.f32 %v4120, 0.0
      %v4166 = vmax.f32 %v4121, 0.0
      %v4167 = vmax.f32 %v4122, 0.0
      %v4168 = vmax.f32 %v4123, 0.0
      %v4169 = vmax.f32 %v4124, 0.0
      %v4170 = vmax.f32 %v4125, 0.0
      %v4171 = vmax.f32 %v4126, 0.0
      %v4172 = vmax.f32 %v4127, 0.0
      %v4173 = vmax.f32 %v4128, 0.0
      %v4174 = vmax.f32 %v4129, 0.0
      %v4175 = vmax.f32 %v4130, 0.0
      %v4176 = vmax.f32 %v4131, 0.0
      %v4177 = vmax.f32 %v4132, 0.0
      %v4178 = vmax.f32 %v4133, 0.0
      %v4179 = vmax.f32 %v4134, 0.0
      %v4180 = vmax.f32 %v4135, 0.0
      %v4181 = vmax.f32 %v4136, 0.0
      %v4182 = vmax.f32 %v4137, 0.0
      %v4183 = vmax.f32 %v4138, 0.0
      %v4184 = vld [vmem:[%s1] sm:$0xff]
      %v4185 = vld [vmem:[%s1 + $0x8] sm:$0xff]
      %v4186 = vld [vmem:[%s1 + $0x10] sm:$0xff]
      %v4187 = vld [vmem:[%s1 + $0x18] sm:$0xff]
      %v4188 = vld [vmem:[%s1 + $0x20] sm:$0xff]
      %v4189 = vld [vmem:[%s1 + $0x28] sm:$0xff]
      %v4190 = vld [vmem:[%s1 + $0x30] sm:$0xff]
      %v4191 = vld [vmem:[%s1 + $0x38] sm:$0xff]
      %v4192 = vld [vmem:[%s1 + $0x40] sm:$0xff]
      %v4193 = vld [vmem:[%s1 + $0x48] sm:$0xff]
      %v4194 = vld [vmem:[%s1 + $0x50] sm:$0xff]
      %v4195 = vld [vmem:[%s1 + $0x58] sm:$0xff]
      %v4196 = vld [vmem:[%s1 + $0x60] sm:$0xff]
      %v4197 = vld [vmem:[%s1 + $0x68] sm:$0xff]
      %v4198 = vld [vmem:[%s1 + $0x70] sm:$0xff]
      %v4199 = vld [vmem:[%s1 + $0x78] sm:$0xff]
      %v4200 = vld [vmem:[%s1 + $0x80] sm:$0xff]
      %v4201 = vld [vmem:[%s1 + $0x88] sm:$0xff]
      %v4202 = vld [vmem:[%s1 + $0x90] sm:$0xff]
      %v4203 = vld [vmem:[%s1 + $0x98] sm:$0xff]
      %v4204 = vld [vmem:[%s1 + $0xa0] sm:$0xff]
      %v4205 = vld [vmem:[%s1 + $0xa8] sm:$0xff]
      %v4206 = vld [vmem:[%s1 + $0xb0] sm:$0xff]
      %v4207 = vld [vmem:[%s1 + $0xb8] sm:$0xff]
      %v4208 = vld [vmem:[%s1 + $0xc0] sm:$0xff]
      %v4209 = vld [vmem:[%s1 + $0xc8] sm:$0xff]
      %v4210 = vld [vmem:[%s1 + $0xd0] sm:$0xff]
      %v4211 = vld [vmem:[%s1 + $0xd8] sm:$0xff]
      %v4212 = vld [vmem:[%s1 + $0xe0] sm:$0xff]
      %v4213 = vld [vmem:[%s1 + $0xe8] sm:$0xff]
      %v4214 = vld [vmem:[%s1 + $0xf0] sm:$0xff]
      %v4215 = vld [vmem:[%s1 + $0xf8] sm:$0xff]
      %v4216 = vld [vmem:[%s1 + $0x100] sm:$0xff]
      %v4217 = vld [vmem:[%s1 + $0x108] sm:$0xff]
      %v4218 = vld [vmem:[%s1 + $0x110] sm:$0xff]
      %v4219 = vld [vmem:[%s1 + $0x118] sm:$0xff]
      %v4220 = vld [vmem:[%s1 + $0x120] sm:$0xff]
      %v4221 = vld [vmem:[%s1 + $0x128] sm:$0xff]
      %v4222 = vld [vmem:[%s1 + $0x130] sm:$0xff]
      %v4223 = vld [vmem:[%s1 + $0x138] sm:$0xff]
      %v4224 = vld [vmem:[%s1 + $0x140] sm:$0xff]
      %v4225 = vld [vmem:[%s1 + $0x148] sm:$0xff]
      %v4226 = vld [vmem:[%s1 + $0x150] sm:$0xff]
      %v4227 = vld [vmem:[%s1 + $0x158] sm:$0xff]
      %v4228 = vld [vmem:[%s1 + $0x160] sm:$0x3f]
      %4230 = vset.pattern.permute.xlu0 0
      %4231 = vperm.xlu0 %4230, %v4184
      %v4232 = vpop.permute.xlu0 %4231
      %4235 = vset.pattern.permute.xlu0 0
      %4236 = vperm.xlu0 %4235, %v4185
      %v4237 = vpop.permute.xlu0 %4236
      %4240 = vset.pattern.permute.xlu0 0
      %4241 = vperm.xlu0 %4240, %v4186
      %v4242 = vpop.permute.xlu0 %4241
      %4245 = vset.pattern.permute.xlu0 0
      %4246 = vperm.xlu0 %4245, %v4187
      %v4247 = vpop.permute.xlu0 %4246
      %4250 = vset.pattern.permute.xlu0 0
      %4251 = vperm.xlu0 %4250, %v4188
      %v4252 = vpop.permute.xlu0 %4251
      %4255 = vset.pattern.permute.xlu0 0
      %4256 = vperm.xlu0 %4255, %v4189
      %v4257 = vpop.permute.xlu0 %4256
      %4260 = vset.pattern.permute.xlu0 0
      %4261 = vperm.xlu0 %4260, %v4190
      %v4262 = vpop.permute.xlu0 %4261
      %4265 = vset.pattern.permute.xlu0 0
      %4266 = vperm.xlu0 %4265, %v4191
      %v4267 = vpop.permute.xlu0 %4266
      %4270 = vset.pattern.permute.xlu0 0
      %4271 = vperm.xlu0 %4270, %v4192
      %v4272 = vpop.permute.xlu0 %4271
      %4275 = vset.pattern.permute.xlu0 0
      %4276 = vperm.xlu0 %4275, %v4193
      %v4277 = vpop.permute.xlu0 %4276
      %4280 = vset.pattern.permute.xlu0 0
      %4281 = vperm.xlu0 %4280, %v4194
      %v4282 = vpop.permute.xlu0 %4281
      %4285 = vset.pattern.permute.xlu0 0
      %4286 = vperm.xlu0 %4285, %v4195
      %v4287 = vpop.permute.xlu0 %4286
      %4290 = vset.pattern.permute.xlu0 0
      %4291 = vperm.xlu0 %4290, %v4196
      %v4292 = vpop.permute.xlu0 %4291
      %4295 = vset.pattern.permute.xlu0 0
      %4296 = vperm.xlu0 %4295, %v4197
      %v4297 = vpop.permute.xlu0 %4296
      %4300 = vset.pattern.permute.xlu0 0
      %4301 = vperm.xlu0 %4300, %v4198
      %v4302 = vpop.permute.xlu0 %4301
      %4305 = vset.pattern.permute.xlu0 0
      %4306 = vperm.xlu0 %4305, %v4199
      %v4307 = vpop.permute.xlu0 %4306
      %4310 = vset.pattern.permute.xlu0 0
      %4311 = vperm.xlu0 %4310, %v4200
      %v4312 = vpop.permute.xlu0 %4311
      %4315 = vset.pattern.permute.xlu0 0
      %4316 = vperm.xlu0 %4315, %v4201
      %v4317 = vpop.permute.xlu0 %4316
      %4320 = vset.pattern.permute.xlu0 0
      %4321 = vperm.xlu0 %4320, %v4202
      %v4322 = vpop.permute.xlu0 %4321
      %4325 = vset.pattern.permute.xlu0 0
      %4326 = vperm.xlu0 %4325, %v4203
      %v4327 = vpop.permute.xlu0 %4326
      %4330 = vset.pattern.permute.xlu0 0
      %4331 = vperm.xlu0 %4330, %v4204
      %v4332 = vpop.permute.xlu0 %4331
      %4335 = vset.pattern.permute.xlu0 0
      %4336 = vperm.xlu0 %4335, %v4205
      %v4337 = vpop.permute.xlu0 %4336
      %4340 = vset.pattern.permute.xlu0 0
      %4341 = vperm.xlu0 %4340, %v4206
      %v4342 = vpop.permute.xlu0 %4341
      %4345 = vset.pattern.permute.xlu0 0
      %4346 = vperm.xlu0 %4345, %v4207
      %v4347 = vpop.permute.xlu0 %4346
      %4350 = vset.pattern.permute.xlu0 0
      %4351 = vperm.xlu0 %4350, %v4208
      %v4352 = vpop.permute.xlu0 %4351
      %4355 = vset.pattern.permute.xlu0 0
      %4356 = vperm.xlu0 %4355, %v4209
      %v4357 = vpop.permute.xlu0 %4356
      %4360 = vset.pattern.permute.xlu0 0
      %4361 = vperm.xlu0 %4360, %v4210
      %v4362 = vpop.permute.xlu0 %4361
      %4365 = vset.pattern.permute.xlu0 0
      %4366 = vperm.xlu0 %4365, %v4211
      %v4367 = vpop.permute.xlu0 %4366
      %4370 = vset.pattern.permute.xlu0 0
      %4371 = vperm.xlu0 %4370, %v4212
      %v4372 = vpop.permute.xlu0 %4371
      %4375 = vset.pattern.permute.xlu0 0
      %4376 = vperm.xlu0 %4375, %v4213
      %v4377 = vpop.permute.xlu0 %4376
      %4380 = vset.pattern.permute.xlu0 0
      %4381 = vperm.xlu0 %4380, %v4214
      %v4382 = vpop.permute.xlu0 %4381
      %4385 = vset.pattern.permute.xlu0 0
      %4386 = vperm.xlu0 %4385, %v4215
      %v4387 = vpop.permute.xlu0 %4386
      %4390 = vset.pattern.permute.xlu0 0
      %4391 = vperm.xlu0 %4390, %v4216
      %v4392 = vpop.permute.xlu0 %4391
      %4395 = vset.pattern.permute.xlu0 0
      %4396 = vperm.xlu0 %4395, %v4217
      %v4397 = vpop.permute.xlu0 %4396
      %4400 = vset.pattern.permute.xlu0 0
      %4401 = vperm.xlu0 %4400, %v4218
      %v4402 = vpop.permute.xlu0 %4401
      %4405 = vset.pattern.permute.xlu0 0
      %4406 = vperm.xlu0 %4405, %v4219
      %v4407 = vpop.permute.xlu0 %4406
      %4410 = vset.pattern.permute.xlu0 0
      %4411 = vperm.xlu0 %4410, %v4220
      %v4412 = vpop.permute.xlu0 %4411
      %4415 = vset.pattern.permute.xlu0 0
      %4416 = vperm.xlu0 %4415, %v4221
      %v4417 = vpop.permute.xlu0 %4416
      %4420 = vset.pattern.permute.xlu0 0
      %4421 = vperm.xlu0 %4420, %v4222
      %v4422 = vpop.permute.xlu0 %4421
      %4425 = vset.pattern.permute.xlu0 0
      %4426 = vperm.xlu0 %4425, %v4223
      %v4427 = vpop.permute.xlu0 %4426
      %4430 = vset.pattern.permute.xlu0 0
      %4431 = vperm.xlu0 %4430, %v4224
      %v4432 = vpop.permute.xlu0 %4431
      %4435 = vset.pattern.permute.xlu0 0
      %4436 = vperm.xlu0 %4435, %v4225
      %v4437 = vpop.permute.xlu0 %4436
      %4440 = vset.pattern.permute.xlu0 0
      %4441 = vperm.xlu0 %4440, %v4226
      %v4442 = vpop.permute.xlu0 %4441
      %4445 = vset.pattern.permute.xlu0 0
      %4446 = vperm.xlu0 %4445, %v4227
      %v4447 = vpop.permute.xlu0 %4446
      %4450 = vset.pattern.permute.xlu0 0
      %4451 = vperm.xlu0 %4450, %v4228
      %v4452 = vpop.permute.xlu0 %4451
      %v4454 = vmul.f32 %v4139, %v4232
      %v4455 = vmul.f32 %v4140, %v4237
      %v4456 = vmul.f32 %v4141, %v4242
      %v4457 = vmul.f32 %v4142, %v4247
      %v4458 = vmul.f32 %v4143, %v4252
      %v4459 = vmul.f32 %v4144, %v4257
      %v4460 = vmul.f32 %v4145, %v4262
      %v4461 = vmul.f32 %v4146, %v4267
      %v4462 = vmul.f32 %v4147, %v4272
      %v4463 = vmul.f32 %v4148, %v4277
      %v4464 = vmul.f32 %v4149, %v4282
      %v4465 = vmul.f32 %v4150, %v4287
      %v4466 = vmul.f32 %v4151, %v4292
      %v4467 = vmul.f32 %v4152, %v4297
      %v4468 = vmul.f32 %v4153, %v4302
      %v4469 = vmul.f32 %v4154, %v4307
      %v4470 = vmul.f32 %v4155, %v4312
      %v4471 = vmul.f32 %v4156, %v4317
      %v4472 = vmul.f32 %v4157, %v4322
      %v4473 = vmul.f32 %v4158, %v4327
      %v4474 = vmul.f32 %v4159, %v4332
      %v4475 = vmul.f32 %v4160, %v4337
      %v4476 = vmul.f32 %v4161, %v4342
      %v4477 = vmul.f32 %v4162, %v4347
      %v4478 = vmul.f32 %v4163, %v4352
      %v4479 = vmul.f32 %v4164, %v4357
      %v4480 = vmul.f32 %v4165, %v4362
      %v4481 = vmul.f32 %v4166, %v4367
      %v4482 = vmul.f32 %v4167, %v4372
      %v4483 = vmul.f32 %v4168, %v4377
      %v4484 = vmul.f32 %v4169, %v4382
      %v4485 = vmul.f32 %v4170, %v4387
      %v4486 = vmul.f32 %v4171, %v4392
      %v4487 = vmul.f32 %v4172, %v4397
      %v4488 = vmul.f32 %v4173, %v4402
      %v4489 = vmul.f32 %v4174, %v4407
      %v4490 = vmul.f32 %v4175, %v4412
      %v4491 = vmul.f32 %v4176, %v4417
      %v4492 = vmul.f32 %v4177, %v4422
      %v4493 = vmul.f32 %v4178, %v4427
      %v4494 = vmul.f32 %v4179, %v4432
      %v4495 = vmul.f32 %v4180, %v4437
      %v4496 = vmul.f32 %v4181, %v4442
      %v4497 = vmul.f32 %v4182, %v4447
      %v4498 = vmul.f32 %v4183, %v4452
      %v4499 = vpack.c.bf16 %v4455, %v4454
      %v4500 = vpack.c.bf16 %v4457, %v4456
      %v4501 = vpack.c.bf16 %v4459, %v4458
      %v4502 = vpack.c.bf16 %v4461, %v4460
      %v4503 = vpack.c.bf16 %v4463, %v4462
      %v4504 = vpack.c.bf16 %v4465, %v4464
      %v4505 = vpack.c.bf16 %v4467, %v4466
      %v4506 = vpack.c.bf16 %v4469, %v4468
      %v4507 = vpack.c.bf16 %v4471, %v4470
      %v4508 = vpack.c.bf16 %v4473, %v4472
      %v4509 = vpack.c.bf16 %v4475, %v4474
      %v4510 = vpack.c.bf16 %v4477, %v4476
      %v4511 = vpack.c.bf16 %v4479, %v4478
      %v4512 = vpack.c.bf16 %v4481, %v4480
      %v4513 = vpack.c.bf16 %v4483, %v4482
      %v4514 = vpack.c.bf16 %v4485, %v4484
      %v4515 = vpack.c.bf16 %v4487, %v4486
      %v4516 = vpack.c.bf16 %v4489, %v4488
      %v4517 = vpack.c.bf16 %v4491, %v4490
      %v4518 = vpack.c.bf16 %v4493, %v4492
      %v4519 = vld [vmem:[%s5] sm:$0xf]
      %v4520 = vld [vmem:[%s5 + $0x4] sm:$0xf]
      %s4521 = scalar_lea.vmem %s5, 8
      %v4522 = vld [vmem:[%s4521] sm:$0xf]
      %v4523 = vld [vmem:[%s4521 + $0x4] sm:$0xf]
      %v4525 = vshrl.u32 %v4499, 16
      %v4527 = vshll.u32 %v4499, 16
      %v4529 = vrot.slane %v4527, 1
      %v4530 = vor.u32 %v4525, %v4529
      %v4532 = vshll.u32 %v4500, 16
      %v4534 = vrot.slane %v4532, 1
      %v4535 = vsel %vm433, %v4530, %v4534
      %v4536 = vshrl.u32 %v4500, 16
      %v4538 = vor.u32 %v4536, %v4534
      %v4540 = vshll.u32 %v4501, 16
      %v4542 = vrot.slane %v4540, 1
      %v4543 = vsel %vm433, %v4538, %v4542
      %v4544 = vshrl.u32 %v4501, 16
      %v4546 = vor.u32 %v4544, %v4542
      %v4548 = vshll.u32 %v4502, 16
      %v4550 = vrot.slane %v4548, 1
      %v4551 = vsel %vm433, %v4546, %v4550
      %v4552 = vshrl.u32 %v4502, 16
      %v4554 = vor.u32 %v4552, %v4550
      %v4556 = vshll.u32 %v4503, 16
      %v4558 = vrot.slane %v4556, 1
      %v4559 = vsel %vm433, %v4554, %v4558
      %v4560 = vshrl.u32 %v4503, 16
      %v4562 = vor.u32 %v4560, %v4558
      %v4564 = vshll.u32 %v4504, 16
      %v4566 = vrot.slane %v4564, 1
      %v4567 = vsel %vm433, %v4562, %v4566
      %v4568 = vshrl.u32 %v4504, 16
      %v4570 = vor.u32 %v4568, %v4566
      %v4572 = vshll.u32 %v4505, 16
      %v4574 = vrot.slane %v4572, 1
      %v4575 = vsel %vm433, %v4570, %v4574
      %v4576 = vshrl.u32 %v4505, 16
      %v4578 = vor.u32 %v4576, %v4574
      %v4580 = vshll.u32 %v4506, 16
      %v4582 = vrot.slane %v4580, 1
      %v4583 = vsel %vm433, %v4578, %v4582
      %v4584 = vshrl.u32 %v4506, 16
      %v4586 = vor.u32 %v4584, %v4582
      %v4588 = vshll.u32 %v4507, 16
      %v4590 = vrot.slane %v4588, 1
      %v4591 = vsel %vm433, %v4586, %v4590
      %v4592 = vshrl.u32 %v4507, 16
      %v4594 = vor.u32 %v4592, %v4590
      %v4596 = vshll.u32 %v4508, 16
      %v4598 = vrot.slane %v4596, 1
      %v4599 = vsel %vm433, %v4594, %v4598
      %v4600 = vshrl.u32 %v4508, 16
      %v4602 = vor.u32 %v4600, %v4598
      %v4604 = vshll.u32 %v4509, 16
      %v4606 = vrot.slane %v4604, 1
      %v4607 = vsel %vm433, %v4602, %v4606
      %v4608 = vshrl.u32 %v4509, 16
      %v4610 = vor.u32 %v4608, %v4606
      %v4612 = vshll.u32 %v4510, 16
      %v4614 = vrot.slane %v4612, 1
      %v4615 = vsel %vm433, %v4610, %v4614
      %v4616 = vshrl.u32 %v4510, 16
      %v4618 = vor.u32 %v4616, %v4614
      %v4620 = vshll.u32 %v4511, 16
      %v4622 = vrot.slane %v4620, 1
      %v4623 = vsel %vm433, %v4618, %v4622
      %v4624 = vshrl.u32 %v4511, 16
      %v4626 = vor.u32 %v4624, %v4622
      %v4628 = vshll.u32 %v4512, 16
      %v4630 = vrot.slane %v4628, 1
      %v4631 = vsel %vm433, %v4626, %v4630
      %v4632 = vshrl.u32 %v4512, 16
      %v4634 = vor.u32 %v4632, %v4630
      %v4636 = vshll.u32 %v4513, 16
      %v4638 = vrot.slane %v4636, 1
      %v4639 = vsel %vm433, %v4634, %v4638
      %v4640 = vshrl.u32 %v4513, 16
      %v4642 = vor.u32 %v4640, %v4638
      %v4644 = vshll.u32 %v4514, 16
      %v4646 = vrot.slane %v4644, 1
      %v4647 = vsel %vm433, %v4642, %v4646
      %v4648 = vshrl.u32 %v4514, 16
      %v4650 = vor.u32 %v4648, %v4646
      %v4652 = vshll.u32 %v4515, 16
      %v4654 = vrot.slane %v4652, 1
      %v4655 = vsel %vm433, %v4650, %v4654
      %v4656 = vshrl.u32 %v4515, 16
      %v4658 = vor.u32 %v4656, %v4654
      %v4660 = vshll.u32 %v4516, 16
      %v4662 = vrot.slane %v4660, 1
      %v4663 = vsel %vm433, %v4658, %v4662
      %v4664 = vshrl.u32 %v4516, 16
      %v4666 = vor.u32 %v4664, %v4662
      %v4668 = vshll.u32 %v4517, 16
      %v4670 = vrot.slane %v4668, 1
      %v4671 = vsel %vm433, %v4666, %v4670
      %v4672 = vshrl.u32 %v4517, 16
      %v4674 = vor.u32 %v4672, %v4670
      %v4676 = vshll.u32 %v4518, 16
      %v4678 = vrot.slane %v4676, 1
      %v4679 = vsel %vm433, %v4674, %v4678
      %v4680 = vshrl.u32 %v4518, 16
      %v4682 = vor.u32 %v4680, %v4678
      %v4685 = vunpack.c.l.b16 %v4522
      %v4686 = vunpack.c.l.b16 %v4523
      %v4687 = vpack.c.b16 %v4686, %v4685
      %vm4689 = vcmask 130048
      %v4691 = vsel %vm4689, %v4535, 0
      %v4694 = vsel %vm4689, %v4543, 0
      %v4697 = vsel %vm4689, %v4551, 0
      %v4700 = vsel %vm4689, %v4559, 0
      %v4703 = vsel %vm4689, %v4567, 0
      %v4706 = vsel %vm4689, %v4575, 0
      %v4709 = vsel %vm4689, %v4583, 0
      %v4712 = vsel %vm4689, %v4591, 0
      %v4715 = vsel %vm4689, %v4599, 0
      %v4718 = vsel %vm4689, %v4607, 0
      %v4721 = vsel %vm4689, %v4615, 0
      %v4724 = vsel %vm4689, %v4623, 0
      %v4727 = vsel %vm4689, %v4631, 0
      %v4730 = vsel %vm4689, %v4639, 0
      %v4733 = vsel %vm4689, %v4647, 0
      %v4736 = vsel %vm4689, %v4655, 0
      %v4739 = vsel %vm4689, %v4663, 0
      %v4742 = vsel %vm4689, %v4671, 0
      %v4745 = vsel %vm4689, %v4679, 0
      %v4748 = vsel %vm4689, %v4682, 0
      %4750 = vmatprep.subr.bf16.mxu0 0
      %4751 = vmatpush1.bf16.msra.mxu0 %v4687
      %4752 = vmatprep.subr.bf16.mxu0 0
      %4753 = vmatpush1.bf16.msra.mxu0 0
      %4754 = vmatprep.subr.bf16.mxu0 0
      %4755 = vmatpush1.bf16.msra.mxu0 0
      %4756 = vmatprep.subr.bf16.mxu0 0
      %4757 = vmatpush1.bf16.msra.mxu0 0
      %4758 = vmatprep.subr.bf16.mxu0 0
      %4759 = vmatpush1.bf16.msra.mxu0 0
      %4760 = vmatprep.subr.bf16.mxu0 0
      %4761 = vmatpush1.bf16.msra.mxu0 0
      %4762 = vmatprep.subr.bf16.mxu0 0
      %4763 = vmatpush1.bf16.msra.mxu0 0
      %4764 = vmatprep.subr.bf16.mxu0 0
      %4765 = vmatpush1.bf16.msra.mxu0 0
      %4766 = vmatprep.subr.bf16.mxu0 0
      %4767 = vmatpush1.bf16.msra.mxu0 0
      %4768 = vmatprep.subr.bf16.mxu0 0
      %4769 = vmatpush1.bf16.msra.mxu0 0
      %4770 = vmatprep.subr.bf16.mxu0 0
      %4771 = vmatpush1.bf16.msra.mxu0 0
      %4772 = vmatprep.subr.bf16.mxu0 0
      %4773 = vmatpush1.bf16.msra.mxu0 0
      %4774 = vmatprep.subr.bf16.mxu0 0
      %4775 = vmatpush1.bf16.msra.mxu0 0
      %4776 = vmatprep.subr.bf16.mxu0 0
      %4777 = vmatpush1.bf16.msra.mxu0 0
      %4778 = vmatprep.subr.bf16.mxu0 0
      %4779 = vmatpush1.bf16.msra.mxu0 0
      %4780 = vmatprep.subr.bf16.mxu0 0
      %4781 = vmatpush1.bf16.msra.mxu0 0
      %4782 = vmatprep.mubr.bf16.mxu0 0
      %4783 = vmatmul.mubr.bf16.gmra.mrb[0].mxu0 %v4691
      %v4784 = vpop.f32.mrb[0].mxu0
      %v4785 = vadd.f32 0.0, %v4784
      %v4786 = vpop.f32.mrb[0].mxu0
      %v4787 = vpop.f32.mrb[0].mxu0
      %v4788 = vadd.f32 0.0, %v4787
      %v4789 = vpop.f32.mrb[0].mxu0
      %4790 = vmatprep.mubr.bf16.mxu0 0
      %4791 = vmatmul.mubr.bf16.gmra.mrb[0].mxu0 %v4694
      %v4792 = vpop.f32.mrb[0].mxu0
      %v4793 = vadd.f32 0.0, %v4792
      %v4794 = vpop.f32.mrb[0].mxu0
      %v4795 = vpop.f32.mrb[0].mxu0
      %v4796 = vadd.f32 0.0, %v4795
      %v4797 = vpop.f32.mrb[0].mxu0
      %4798 = vmatprep.mubr.bf16.mxu0 0
      %4799 = vmatmul.mubr.bf16.gmra.mrb[0].mxu0 %v4697
      %v4800 = vpop.f32.mrb[0].mxu0
      %v4801 = vadd.f32 0.0, %v4800
      %v4802 = vpop.f32.mrb[0].mxu0
      %v4803 = vpop.f32.mrb[0].mxu0
      %v4804 = vadd.f32 0.0, %v4803
      %v4805 = vpop.f32.mrb[0].mxu0
      %4806 = vmatprep.mubr.bf16.mxu0 0
      %4807 = vmatmul.mubr.bf16.gmra.mrb[0].mxu0 %v4700
      %v4808 = vpop.f32.mrb[0].mxu0
      %v4809 = vadd.f32 0.0, %v4808
      %v4810 = vpop.f32.mrb[0].mxu0
      %v4811 = vpop.f32.mrb[0].mxu0
      %v4812 = vadd.f32 0.0, %v4811
      %v4813 = vpop.f32.mrb[0].mxu0
      %4814 = vmatprep.mubr.bf16.mxu0 0
      %4815 = vmatmul.mubr.bf16.gmra.mrb[0].mxu0 %v4703
      %v4816 = vpop.f32.mrb[0].mxu0
      %v4817 = vadd.f32 0.0, %v4816
      %v4818 = vpop.f32.mrb[0].mxu0
      %v4819 = vpop.f32.mrb[0].mxu0
      %v4820 = vadd.f32 0.0, %v4819
      %v4821 = vpop.f32.mrb[0].mxu0
      %4822 = vmatprep.mubr.bf16.mxu0 0
      %4823 = vmatmul.mubr.bf16.gmra.mrb[0].mxu0 %v4706
      %v4824 = vpop.f32.mrb[0].mxu0
      %v4825 = vadd.f32 0.0, %v4824
      %v4826 = vpop.f32.mrb[0].mxu0
      %v4827 = vpop.f32.mrb[0].mxu0
      %v4828 = vadd.f32 0.0, %v4827
      %v4829 = vpop.f32.mrb[0].mxu0
      %4830 = vmatprep.mubr.bf16.mxu0 0
      %4831 = vmatmul.mubr.bf16.gmra.mrb[0].mxu0 %v4709
      %v4832 = vpop.f32.mrb[0].mxu0
      %v4833 = vadd.f32 0.0, %v4832
      %v4834 = vpop.f32.mrb[0].mxu0
      %v4835 = vpop.f32.mrb[0].mxu0
      %v4836 = vadd.f32 0.0, %v4835
      %v4837 = vpop.f32.mrb[0].mxu0
      %4838 = vmatprep.mubr.bf16.mxu0 0
      %4839 = vmatmul.mubr.bf16.gmra.mrb[0].mxu0 %v4712
      %v4840 = vpop.f32.mrb[0].mxu0
      %v4841 = vadd.f32 0.0, %v4840
      %v4842 = vpop.f32.mrb[0].mxu0
      %v4843 = vpop.f32.mrb[0].mxu0
      %v4844 = vadd.f32 0.0, %v4843
      %v4845 = vpop.f32.mrb[0].mxu0
      %4846 = vmatprep.mubr.bf16.mxu0 0
      %4847 = vmatmul.mubr.bf16.gmra.mrb[0].mxu0 %v4715
      %v4848 = vpop.f32.mrb[0].mxu0
      %v4849 = vadd.f32 0.0, %v4848
      %v4850 = vpop.f32.mrb[0].mxu0
      %v4851 = vpop.f32.mrb[0].mxu0
      %v4852 = vadd.f32 0.0, %v4851
      %v4853 = vpop.f32.mrb[0].mxu0
      %4854 = vmatprep.mubr.bf16.mxu0 0
      %4855 = vmatmul.mubr.bf16.gmra.mrb[0].mxu0 %v4718
      %v4856 = vpop.f32.mrb[0].mxu0
      %v4857 = vadd.f32 0.0, %v4856
      %v4858 = vpop.f32.mrb[0].mxu0
      %v4859 = vpop.f32.mrb[0].mxu0
      %v4860 = vadd.f32 0.0, %v4859
      %v4861 = vpop.f32.mrb[0].mxu0
      %4862 = vmatprep.mubr.bf16.mxu0 0
      %4863 = vmatmul.mubr.bf16.gmra.mrb[0].mxu0 %v4721
      %v4864 = vpop.f32.mrb[0].mxu0
      %v4865 = vadd.f32 0.0, %v4864
      %v4866 = vpop.f32.mrb[0].mxu0
      %v4867 = vpop.f32.mrb[0].mxu0
      %v4868 = vadd.f32 0.0, %v4867
      %v4869 = vpop.f32.mrb[0].mxu0
      %4870 = vmatprep.mubr.bf16.mxu0 0
      %4871 = vmatmul.mubr.bf16.gmra.mrb[0].mxu0 %v4724
      %v4872 = vpop.f32.mrb[0].mxu0
      %v4873 = vadd.f32 0.0, %v4872
      %v4874 = vpop.f32.mrb[0].mxu0
      %v4875 = vpop.f32.mrb[0].mxu0
      %v4876 = vadd.f32 0.0, %v4875
      %v4877 = vpop.f32.mrb[0].mxu0
      %4878 = vmatprep.mubr.bf16.mxu0 0
      %4879 = vmatmul.mubr.bf16.gmra.mrb[0].mxu0 %v4727
      %v4880 = vpop.f32.mrb[0].mxu0
      %v4881 = vadd.f32 0.0, %v4880
      %v4882 = vpop.f32.mrb[0].mxu0
      %v4883 = vpop.f32.mrb[0].mxu0
      %v4884 = vadd.f32 0.0, %v4883
      %v4885 = vpop.f32.mrb[0].mxu0
      %4886 = vmatprep.mubr.bf16.mxu0 0
      %4887 = vmatmul.mubr.bf16.gmra.mrb[0].mxu0 %v4730
      %v4888 = vpop.f32.mrb[0].mxu0
      %v4889 = vadd.f32 0.0, %v4888
      %v4890 = vpop.f32.mrb[0].mxu0
      %v4891 = vpop.f32.mrb[0].mxu0
      %v4892 = vadd.f32 0.0, %v4891
      %v4893 = vpop.f32.mrb[0].mxu0
      %4894 = vmatprep.mubr.bf16.mxu0 0
      %4895 = vmatmul.mubr.bf16.gmra.mrb[0].mxu0 %v4733
      %v4896 = vpop.f32.mrb[0].mxu0
      %v4897 = vadd.f32 0.0, %v4896
      %v4898 = vpop.f32.mrb[0].mxu0
      %v4899 = vpop.f32.mrb[0].mxu0
      %v4900 = vadd.f32 0.0, %v4899
      %v4901 = vpop.f32.mrb[0].mxu0
      %4902 = vmatprep.mubr.bf16.mxu0 0
      %4903 = vmatmul.mubr.bf16.gmra.mrb[0].mxu0 %v4736
      %v4904 = vpop.f32.mrb[0].mxu0
      %v4905 = vadd.f32 0.0, %v4904
      %v4906 = vpop.f32.mrb[0].mxu0
      %v4907 = vpop.f32.mrb[0].mxu0
      %v4908 = vadd.f32 0.0, %v4907
      %v4909 = vpop.f32.mrb[0].mxu0
      %4910 = vmatprep.mubr.bf16.mxu0 0
      %4911 = vmatmul.mubr.bf16.gmra.mrb[0].mxu0 %v4739
      %v4912 = vpop.f32.mrb[0].mxu0
      %v4913 = vadd.f32 0.0, %v4912
      %v4914 = vpop.f32.mrb[0].mxu0
      %v4915 = vpop.f32.mrb[0].mxu0
      %v4916 = vadd.f32 0.0, %v4915
      %v4917 = vpop.f32.mrb[0].mxu0
      %4918 = vmatprep.mubr.bf16.mxu0 0
      %4919 = vmatmul.mubr.bf16.gmra.mrb[0].mxu0 %v4742
      %v4920 = vpop.f32.mrb[0].mxu0
      %v4921 = vadd.f32 0.0, %v4920
      %v4922 = vpop.f32.mrb[0].mxu0
      %v4923 = vpop.f32.mrb[0].mxu0
      %v4924 = vadd.f32 0.0, %v4923
      %v4925 = vpop.f32.mrb[0].mxu0
      %4926 = vmatprep.mubr.bf16.mxu0 0
      %4927 = vmatmul.mubr.bf16.gmra.mrb[0].mxu0 %v4745
      %v4928 = vpop.f32.mrb[0].mxu0
      %v4929 = vadd.f32 0.0, %v4928
      %v4930 = vpop.f32.mrb[0].mxu0
      %v4931 = vpop.f32.mrb[0].mxu0
      %v4932 = vadd.f32 0.0, %v4931
      %v4933 = vpop.f32.mrb[0].mxu0
      %4934 = vmatprep.mubr.bf16.mxu0 0
      %4935 = vmatmul.mubr.bf16.gmra.mrb[0].mxu0 %v4748
      %v4936 = vpop.f32.mrb[0].mxu0
      %v4937 = vadd.f32 0.0, %v4936
      %v4938 = vpop.f32.mrb[0].mxu0
      %v4939 = vpop.f32.mrb[0].mxu0
      %v4940 = vadd.f32 0.0, %v4939
      %v4941 = vpop.f32.mrb[0].mxu0
      %4942 = vdwg.mxu0
      %v4945 = vunpack.c.l.b16 %v4519
      %v4946 = vunpack.c.l.b16 %v4520
      %v4947 = vpack.c.b16 %v4946, %v4945
      %v4949 = vsel %vm4689, %v4499, 0
      %v4951 = vsel %vm4689, %v4500, 0
      %v4953 = vsel %vm4689, %v4501, 0
      %v4955 = vsel %vm4689, %v4502, 0
      %v4957 = vsel %vm4689, %v4503, 0
      %v4959 = vsel %vm4689, %v4504, 0
      %v4961 = vsel %vm4689, %v4505, 0
      %v4963 = vsel %vm4689, %v4506, 0
      %v4965 = vsel %vm4689, %v4507, 0
      %v4967 = vsel %vm4689, %v4508, 0
      %v4969 = vsel %vm4689, %v4509, 0
      %v4971 = vsel %vm4689, %v4510, 0
      %v4973 = vsel %vm4689, %v4511, 0
      %v4975 = vsel %vm4689, %v4512, 0
      %v4977 = vsel %vm4689, %v4513, 0
      %v4979 = vsel %vm4689, %v4514, 0
      %v4981 = vsel %vm4689, %v4515, 0
      %v4983 = vsel %vm4689, %v4516, 0
      %v4985 = vsel %vm4689, %v4517, 0
      %v4987 = vsel %vm4689, %v4518, 0
      %4989 = vmatprep.subr.bf16.mxu0 0
      %4990 = vmatpush1.bf16.msra.mxu0 %v4947
      %4991 = vmatprep.subr.bf16.mxu0 0
      %4992 = vmatpush1.bf16.msra.mxu0 0
      %4993 = vmatprep.subr.bf16.mxu0 0
      %4994 = vmatpush1.bf16.msra.mxu0 0
      %4995 = vmatprep.subr.bf16.mxu0 0
      %4996 = vmatpush1.bf16.msra.mxu0 0
      %4997 = vmatprep.subr.bf16.mxu0 0
      %4998 = vmatpush1.bf16.msra.mxu0 0
      %4999 = vmatprep.subr.bf16.mxu0 0
      %5000 = vmatpush1.bf16.msra.mxu0 0
      %5001 = vmatprep.subr.bf16.mxu0 0
      %5002 = vmatpush1.bf16.msra.mxu0 0
      %5003 = vmatprep.subr.bf16.mxu0 0
      %5004 = vmatpush1.bf16.msra.mxu0 0
      %5005 = vmatprep.subr.bf16.mxu0 0
      %5006 = vmatpush1.bf16.msra.mxu0 0
      %5007 = vmatprep.subr.bf16.mxu0 0
      %5008 = vmatpush1.bf16.msra.mxu0 0
      %5009 = vmatprep.subr.bf16.mxu0 0
      %5010 = vmatpush1.bf16.msra.mxu0 0
      %5011 = vmatprep.subr.bf16.mxu0 0
      %5012 = vmatpush1.bf16.msra.mxu0 0
      %5013 = vmatprep.subr.bf16.mxu0 0
      %5014 = vmatpush1.bf16.msra.mxu0 0
      %5015 = vmatprep.subr.bf16.mxu0 0
      %5016 = vmatpush1.bf16.msra.mxu0 0
      %5017 = vmatprep.subr.bf16.mxu0 0
      %5018 = vmatpush1.bf16.msra.mxu0 0
      %5019 = vmatprep.subr.bf16.mxu0 0
      %5020 = vmatpush1.bf16.msra.mxu0 0
      %5021 = vmatprep.mubr.bf16.mxu0 0
      %5022 = vmatmul.mubr.bf16.gmra.mrb[0].mxu0 %v4949
      %v5023 = vpop.f32.mrb[0].mxu0
      %v5024 = vadd.f32 %v4785, %v5023
      %v5025 = vpop.f32.mrb[0].mxu0
      %v5026 = vpop.f32.mrb[0].mxu0
      %v5027 = vadd.f32 %v4788, %v5026
      %v5028 = vpop.f32.mrb[0].mxu0
      %5029 = vmatprep.mubr.bf16.mxu0 0
      %5030 = vmatmul.mubr.bf16.gmra.mrb[0].mxu0 %v4951
      %v5031 = vpop.f32.mrb[0].mxu0
      %v5032 = vadd.f32 %v4793, %v5031
      %v5033 = vpop.f32.mrb[0].mxu0
      %v5034 = vpop.f32.mrb[0].mxu0
      %v5035 = vadd.f32 %v4796, %v5034
      %v5036 = vpop.f32.mrb[0].mxu0
      %5037 = vmatprep.mubr.bf16.mxu0 0
      %5038 = vmatmul.mubr.bf16.gmra.mrb[0].mxu0 %v4953
      %v5039 = vpop.f32.mrb[0].mxu0
      %v5040 = vadd.f32 %v4801, %v5039
      %v5041 = vpop.f32.mrb[0].mxu0
      %v5042 = vpop.f32.mrb[0].mxu0
      %v5043 = vadd.f32 %v4804, %v5042
      %v5044 = vpop.f32.mrb[0].mxu0
      %5045 = vmatprep.mubr.bf16.mxu0 0
      %5046 = vmatmul.mubr.bf16.gmra.mrb[0].mxu0 %v4955
      %v5047 = vpop.f32.mrb[0].mxu0
      %v5048 = vadd.f32 %v4809, %v5047
      %v5049 = vpop.f32.mrb[0].mxu0
      %v5050 = vpop.f32.mrb[0].mxu0
      %v5051 = vadd.f32 %v4812, %v5050
      %v5052 = vpop.f32.mrb[0].mxu0
      %5053 = vmatprep.mubr.bf16.mxu0 0
      %5054 = vmatmul.mubr.bf16.gmra.mrb[0].mxu0 %v4957
      %v5055 = vpop.f32.mrb[0].mxu0
      %v5056 = vadd.f32 %v4817, %v5055
      %v5057 = vpop.f32.mrb[0].mxu0
      %v5058 = vpop.f32.mrb[0].mxu0
      %v5059 = vadd.f32 %v4820, %v5058
      %v5060 = vpop.f32.mrb[0].mxu0
      %5061 = vmatprep.mubr.bf16.mxu0 0
      %5062 = vmatmul.mubr.bf16.gmra.mrb[0].mxu0 %v4959
      %v5063 = vpop.f32.mrb[0].mxu0
      %v5064 = vadd.f32 %v4825, %v5063
      %v5065 = vpop.f32.mrb[0].mxu0
      %v5066 = vpop.f32.mrb[0].mxu0
      %v5067 = vadd.f32 %v4828, %v5066
      %v5068 = vpop.f32.mrb[0].mxu0
      %5069 = vmatprep.mubr.bf16.mxu0 0
      %5070 = vmatmul.mubr.bf16.gmra.mrb[0].mxu0 %v4961
      %v5071 = vpop.f32.mrb[0].mxu0
      %v5072 = vadd.f32 %v4833, %v5071
      %v5073 = vpop.f32.mrb[0].mxu0
      %v5074 = vpop.f32.mrb[0].mxu0
      %v5075 = vadd.f32 %v4836, %v5074
      %v5076 = vpop.f32.mrb[0].mxu0
      %5077 = vmatprep.mubr.bf16.mxu0 0
      %5078 = vmatmul.mubr.bf16.gmra.mrb[0].mxu0 %v4963
      %v5079 = vpop.f32.mrb[0].mxu0
      %v5080 = vadd.f32 %v4841, %v5079
      %v5081 = vpop.f32.mrb[0].mxu0
      %v5082 = vpop.f32.mrb[0].mxu0
      %v5083 = vadd.f32 %v4844, %v5082
      %v5084 = vpop.f32.mrb[0].mxu0
      %5085 = vmatprep.mubr.bf16.mxu0 0
      %5086 = vmatmul.mubr.bf16.gmra.mrb[0].mxu0 %v4965
      %v5087 = vpop.f32.mrb[0].mxu0
      %v5088 = vadd.f32 %v4849, %v5087
      %v5089 = vpop.f32.mrb[0].mxu0
      %v5090 = vpop.f32.mrb[0].mxu0
      %v5091 = vadd.f32 %v4852, %v5090
      %v5092 = vpop.f32.mrb[0].mxu0
      %5093 = vmatprep.mubr.bf16.mxu0 0
      %5094 = vmatmul.mubr.bf16.gmra.mrb[0].mxu0 %v4967
      %v5095 = vpop.f32.mrb[0].mxu0
      %v5096 = vadd.f32 %v4857, %v5095
      %v5097 = vpop.f32.mrb[0].mxu0
      %v5098 = vpop.f32.mrb[0].mxu0
      %v5099 = vadd.f32 %v4860, %v5098
      %v5100 = vpop.f32.mrb[0].mxu0
      %5101 = vmatprep.mubr.bf16.mxu0 0
      %5102 = vmatmul.mubr.bf16.gmra.mrb[0].mxu0 %v4969
      %v5103 = vpop.f32.mrb[0].mxu0
      %v5104 = vadd.f32 %v4865, %v5103
      %v5105 = vpop.f32.mrb[0].mxu0
      %v5106 = vpop.f32.mrb[0].mxu0
      %v5107 = vadd.f32 %v4868, %v5106
      %v5108 = vpop.f32.mrb[0].mxu0
      %5109 = vmatprep.mubr.bf16.mxu0 0
      %5110 = vmatmul.mubr.bf16.gmra.mrb[0].mxu0 %v4971
      %v5111 = vpop.f32.mrb[0].mxu0
      %v5112 = vadd.f32 %v4873, %v5111
      %v5113 = vpop.f32.mrb[0].mxu0
      %v5114 = vpop.f32.mrb[0].mxu0
      %v5115 = vadd.f32 %v4876, %v5114
      %v5116 = vpop.f32.mrb[0].mxu0
      %5117 = vmatprep.mubr.bf16.mxu0 0
      %5118 = vmatmul.mubr.bf16.gmra.mrb[0].mxu0 %v4973
      %v5119 = vpop.f32.mrb[0].mxu0
      %v5120 = vadd.f32 %v4881, %v5119
      %v5121 = vpop.f32.mrb[0].mxu0
      %v5122 = vpop.f32.mrb[0].mxu0
      %v5123 = vadd.f32 %v4884, %v5122
      %v5124 = vpop.f32.mrb[0].mxu0
      %5125 = vmatprep.mubr.bf16.mxu0 0
      %5126 = vmatmul.mubr.bf16.gmra.mrb[0].mxu0 %v4975
      %v5127 = vpop.f32.mrb[0].mxu0
      %v5128 = vadd.f32 %v4889, %v5127
      %v5129 = vpop.f32.mrb[0].mxu0
      %v5130 = vpop.f32.mrb[0].mxu0
      %v5131 = vadd.f32 %v4892, %v5130
      %v5132 = vpop.f32.mrb[0].mxu0
      %5133 = vmatprep.mubr.bf16.mxu0 0
      %5134 = vmatmul.mubr.bf16.gmra.mrb[0].mxu0 %v4977
      %v5135 = vpop.f32.mrb[0].mxu0
      %v5136 = vadd.f32 %v4897, %v5135
      %v5137 = vpop.f32.mrb[0].mxu0
      %v5138 = vpop.f32.mrb[0].mxu0
      %v5139 = vadd.f32 %v4900, %v5138
      %v5140 = vpop.f32.mrb[0].mxu0
      %5141 = vmatprep.mubr.bf16.mxu0 0
      %5142 = vmatmul.mubr.bf16.gmra.mrb[0].mxu0 %v4979
      %v5143 = vpop.f32.mrb[0].mxu0
      %v5144 = vadd.f32 %v4905, %v5143
      %v5145 = vpop.f32.mrb[0].mxu0
      %v5146 = vpop.f32.mrb[0].mxu0
      %v5147 = vadd.f32 %v4908, %v5146
      %v5148 = vpop.f32.mrb[0].mxu0
      %5149 = vmatprep.mubr.bf16.mxu0 0
      %5150 = vmatmul.mubr.bf16.gmra.mrb[0].mxu0 %v4981
      %v5151 = vpop.f32.mrb[0].mxu0
      %v5152 = vadd.f32 %v4913, %v5151
      %v5153 = vpop.f32.mrb[0].mxu0
      %v5154 = vpop.f32.mrb[0].mxu0
      %v5155 = vadd.f32 %v4916, %v5154
      %v5156 = vpop.f32.mrb[0].mxu0
      %5157 = vmatprep.mubr.bf16.mxu0 0
      %5158 = vmatmul.mubr.bf16.gmra.mrb[0].mxu0 %v4983
      %v5159 = vpop.f32.mrb[0].mxu0
      %v5160 = vadd.f32 %v4921, %v5159
      %v5161 = vpop.f32.mrb[0].mxu0
      %v5162 = vpop.f32.mrb[0].mxu0
      %v5163 = vadd.f32 %v4924, %v5162
      %v5164 = vpop.f32.mrb[0].mxu0
      %5165 = vmatprep.mubr.bf16.mxu0 0
      %5166 = vmatmul.mubr.bf16.gmra.mrb[0].mxu0 %v4985
      %v5167 = vpop.f32.mrb[0].mxu0
      %v5168 = vadd.f32 %v4929, %v5167
      %v5169 = vpop.f32.mrb[0].mxu0
      %v5170 = vpop.f32.mrb[0].mxu0
      %v5171 = vadd.f32 %v4932, %v5170
      %v5172 = vpop.f32.mrb[0].mxu0
      %5173 = vmatprep.mubr.bf16.mxu0 0
      %5174 = vmatmul.mubr.bf16.gmra.mrb[0].mxu0 %v4987
      %v5175 = vpop.f32.mrb[0].mxu0
      %v5176 = vadd.f32 %v4937, %v5175
      %v5177 = vpop.f32.mrb[0].mxu0
      %v5178 = vpop.f32.mrb[0].mxu0
      %v5179 = vadd.f32 %v4940, %v5178
      %v5180 = vpop.f32.mrb[0].mxu0
      %5181 = vdwg.mxu0
      %s5182 = scalar_lea.vmem %s5, 16
      %v5183 = vld [vmem:[%s5182] sm:$0xf]
      %v5184 = vld [vmem:[%s5182 + $0x4] sm:$0xf]
      %v5205 = vrot.slane %v4499, 1
      %v5206 = vrot.slane %v4500, 1
      %v5207 = vsel %vm1197, %v5205, %v5206
      %v5208 = vrot.slane %v4501, 1
      %v5209 = vsel %vm1197, %v5206, %v5208
      %v5210 = vrot.slane %v4502, 1
      %v5211 = vsel %vm1197, %v5208, %v5210
      %v5212 = vrot.slane %v4503, 1
      %v5213 = vsel %vm1197, %v5210, %v5212
      %v5214 = vrot.slane %v4504, 1
      %v5215 = vsel %vm1197, %v5212, %v5214
      %v5216 = vrot.slane %v4505, 1
      %v5217 = vsel %vm1197, %v5214, %v5216
      %v5218 = vrot.slane %v4506, 1
      %v5219 = vsel %vm1197, %v5216, %v5218
      %v5220 = vrot.slane %v4507, 1
      %v5221 = vsel %vm1197, %v5218, %v5220
      %v5222 = vrot.slane %v4508, 1
      %v5223 = vsel %vm1197, %v5220, %v5222
      %v5224 = vrot.slane %v4509, 1
      %v5225 = vsel %vm1197, %v5222, %v5224
      %v5226 = vrot.slane %v4510, 1
      %v5227 = vsel %vm1197, %v5224, %v5226
      %v5228 = vrot.slane %v4511, 1
      %v5229 = vsel %vm1197, %v5226, %v5228
      %v5230 = vrot.slane %v4512, 1
      %v5231 = vsel %vm1197, %v5228, %v5230
      %v5232 = vrot.slane %v4513, 1
      %v5233 = vsel %vm1197, %v5230, %v5232
      %v5234 = vrot.slane %v4514, 1
      %v5235 = vsel %vm1197, %v5232, %v5234
      %v5236 = vrot.slane %v4515, 1
      %v5237 = vsel %vm1197, %v5234, %v5236
      %v5238 = vrot.slane %v4516, 1
      %v5239 = vsel %vm1197, %v5236, %v5238
      %v5240 = vrot.slane %v4517, 1
      %v5241 = vsel %vm1197, %v5238, %v5240
      %v5242 = vrot.slane %v4518, 1
      %v5243 = vsel %vm1197, %v5240, %v5242
      %v5246 = vunpack.c.l.b16 %v5183
      %v5247 = vunpack.c.l.b16 %v5184
      %v5248 = vpack.c.b16 %v5247, %v5246
      %v5251 = vsel %vm4689, %v5207, 0
      %v5254 = vsel %vm4689, %v5209, 0
      %v5257 = vsel %vm4689, %v5211, 0
      %v5260 = vsel %vm4689, %v5213, 0
      %v5263 = vsel %vm4689, %v5215, 0
      %v5266 = vsel %vm4689, %v5217, 0
      %v5269 = vsel %vm4689, %v5219, 0
      %v5272 = vsel %vm4689, %v5221, 0
      %v5275 = vsel %vm4689, %v5223, 0
      %v5278 = vsel %vm4689, %v5225, 0
      %v5281 = vsel %vm4689, %v5227, 0
      %v5284 = vsel %vm4689, %v5229, 0
      %v5287 = vsel %vm4689, %v5231, 0
      %v5290 = vsel %vm4689, %v5233, 0
      %v5293 = vsel %vm4689, %v5235, 0
      %v5296 = vsel %vm4689, %v5237, 0
      %v5299 = vsel %vm4689, %v5239, 0
      %v5302 = vsel %vm4689, %v5241, 0
      %v5305 = vsel %vm4689, %v5243, 0
      %v5308 = vsel %vm4689, %v5242, 0
      %5310 = vmatprep.subr.bf16.mxu0 0
      %5311 = vmatpush1.bf16.msra.mxu0 %v5248
      %5312 = vmatprep.subr.bf16.mxu0 0
      %5313 = vmatpush1.bf16.msra.mxu0 0
      %5314 = vmatprep.subr.bf16.mxu0 0
      %5315 = vmatpush1.bf16.msra.mxu0 0
      %5316 = vmatprep.subr.bf16.mxu0 0
      %5317 = vmatpush1.bf16.msra.mxu0 0
      %5318 = vmatprep.subr.bf16.mxu0 0
      %5319 = vmatpush1.bf16.msra.mxu0 0
      %5320 = vmatprep.subr.bf16.mxu0 0
      %5321 = vmatpush1.bf16.msra.mxu0 0
      %5322 = vmatprep.subr.bf16.mxu0 0
      %5323 = vmatpush1.bf16.msra.mxu0 0
      %5324 = vmatprep.subr.bf16.mxu0 0
      %5325 = vmatpush1.bf16.msra.mxu0 0
      %5326 = vmatprep.subr.bf16.mxu0 0
      %5327 = vmatpush1.bf16.msra.mxu0 0
      %5328 = vmatprep.subr.bf16.mxu0 0
      %5329 = vmatpush1.bf16.msra.mxu0 0
      %5330 = vmatprep.subr.bf16.mxu0 0
      %5331 = vmatpush1.bf16.msra.mxu0 0
      %5332 = vmatprep.subr.bf16.mxu0 0
      %5333 = vmatpush1.bf16.msra.mxu0 0
      %5334 = vmatprep.subr.bf16.mxu0 0
      %5335 = vmatpush1.bf16.msra.mxu0 0
      %5336 = vmatprep.subr.bf16.mxu0 0
      %5337 = vmatpush1.bf16.msra.mxu0 0
      %5338 = vmatprep.subr.bf16.mxu0 0
      %5339 = vmatpush1.bf16.msra.mxu0 0
      %5340 = vmatprep.subr.bf16.mxu0 0
      %5341 = vmatpush1.bf16.msra.mxu0 0
      %5342 = vmatprep.mubr.bf16.mxu0 0
      %5343 = vmatmul.mubr.bf16.gmra.mrb[0].mxu0 %v5251
      %v5344 = vpop.f32.mrb[0].mxu0
      %v5345 = vadd.f32 0.0, %v5344
      %v5346 = vpop.f32.mrb[0].mxu0
      %v5347 = vpop.f32.mrb[0].mxu0
      %v5348 = vadd.f32 0.0, %v5347
      %v5349 = vpop.f32.mrb[0].mxu0
      %5350 = vmatprep.mubr.bf16.mxu0 0
      %5351 = vmatmul.mubr.bf16.gmra.mrb[0].mxu0 %v5254
      %v5352 = vpop.f32.mrb[0].mxu0
      %v5353 = vadd.f32 0.0, %v5352
      %v5354 = vpop.f32.mrb[0].mxu0
      %v5355 = vpop.f32.mrb[0].mxu0
      %v5356 = vadd.f32 0.0, %v5355
      %v5357 = vpop.f32.mrb[0].mxu0
      %5358 = vmatprep.mubr.bf16.mxu0 0
      %5359 = vmatmul.mubr.bf16.gmra.mrb[0].mxu0 %v5257
      %v5360 = vpop.f32.mrb[0].mxu0
      %v5361 = vadd.f32 0.0, %v5360
      %v5362 = vpop.f32.mrb[0].mxu0
      %v5363 = vpop.f32.mrb[0].mxu0
      %v5364 = vadd.f32 0.0, %v5363
      %v5365 = vpop.f32.mrb[0].mxu0
      %5366 = vmatprep.mubr.bf16.mxu0 0
      %5367 = vmatmul.mubr.bf16.gmra.mrb[0].mxu0 %v5260
      %v5368 = vpop.f32.mrb[0].mxu0
      %v5369 = vadd.f32 0.0, %v5368
      %v5370 = vpop.f32.mrb[0].mxu0
      %v5371 = vpop.f32.mrb[0].mxu0
      %v5372 = vadd.f32 0.0, %v5371
      %v5373 = vpop.f32.mrb[0].mxu0
      %5374 = vmatprep.mubr.bf16.mxu0 0
      %5375 = vmatmul.mubr.bf16.gmra.mrb[0].mxu0 %v5263
      %v5376 = vpop.f32.mrb[0].mxu0
      %v5377 = vadd.f32 0.0, %v5376
      %v5378 = vpop.f32.mrb[0].mxu0
      %v5379 = vpop.f32.mrb[0].mxu0
      %v5380 = vadd.f32 0.0, %v5379
      %v5381 = vpop.f32.mrb[0].mxu0
      %5382 = vmatprep.mubr.bf16.mxu0 0
      %5383 = vmatmul.mubr.bf16.gmra.mrb[0].mxu0 %v5266
      %v5384 = vpop.f32.mrb[0].mxu0
      %v5385 = vadd.f32 0.0, %v5384
      %v5386 = vpop.f32.mrb[0].mxu0
      %v5387 = vpop.f32.mrb[0].mxu0
      %v5388 = vadd.f32 0.0, %v5387
      %v5389 = vpop.f32.mrb[0].mxu0
      %5390 = vmatprep.mubr.bf16.mxu0 0
      %5391 = vmatmul.mubr.bf16.gmra.mrb[0].mxu0 %v5269
      %v5392 = vpop.f32.mrb[0].mxu0
      %v5393 = vadd.f32 0.0, %v5392
      %v5394 = vpop.f32.mrb[0].mxu0
      %v5395 = vpop.f32.mrb[0].mxu0
      %v5396 = vadd.f32 0.0, %v5395
      %v5397 = vpop.f32.mrb[0].mxu0
      %5398 = vmatprep.mubr.bf16.mxu0 0
      %5399 = vmatmul.mubr.bf16.gmra.mrb[0].mxu0 %v5272
      %v5400 = vpop.f32.mrb[0].mxu0
      %v5401 = vadd.f32 0.0, %v5400
      %v5402 = vpop.f32.mrb[0].mxu0
      %v5403 = vpop.f32.mrb[0].mxu0
      %v5404 = vadd.f32 0.0, %v5403
      %v5405 = vpop.f32.mrb[0].mxu0
      %5406 = vmatprep.mubr.bf16.mxu0 0
      %5407 = vmatmul.mubr.bf16.gmra.mrb[0].mxu0 %v5275
      %v5408 = vpop.f32.mrb[0].mxu0
      %v5409 = vadd.f32 0.0, %v5408
      %v5410 = vpop.f32.mrb[0].mxu0
      %v5411 = vpop.f32.mrb[0].mxu0
      %v5412 = vadd.f32 0.0, %v5411
      %v5413 = vpop.f32.mrb[0].mxu0
      %5414 = vmatprep.mubr.bf16.mxu0 0
      %5415 = vmatmul.mubr.bf16.gmra.mrb[0].mxu0 %v5278
      %v5416 = vpop.f32.mrb[0].mxu0
      %v5417 = vadd.f32 0.0, %v5416
      %v5418 = vpop.f32.mrb[0].mxu0
      %v5419 = vpop.f32.mrb[0].mxu0
      %v5420 = vadd.f32 0.0, %v5419
      %v5421 = vpop.f32.mrb[0].mxu0
      %5422 = vmatprep.mubr.bf16.mxu0 0
      %5423 = vmatmul.mubr.bf16.gmra.mrb[0].mxu0 %v5281
      %v5424 = vpop.f32.mrb[0].mxu0
      %v5425 = vadd.f32 0.0, %v5424
      %v5426 = vpop.f32.mrb[0].mxu0
      %v5427 = vpop.f32.mrb[0].mxu0
      %v5428 = vadd.f32 0.0, %v5427
      %v5429 = vpop.f32.mrb[0].mxu0
      %5430 = vmatprep.mubr.bf16.mxu0 0
      %5431 = vmatmul.mubr.bf16.gmra.mrb[0].mxu0 %v5284
      %v5432 = vpop.f32.mrb[0].mxu0
      %v5433 = vadd.f32 0.0, %v5432
      %v5434 = vpop.f32.mrb[0].mxu0
      %v5435 = vpop.f32.mrb[0].mxu0
      %v5436 = vadd.f32 0.0, %v5435
      %v5437 = vpop.f32.mrb[0].mxu0
      %5438 = vmatprep.mubr.bf16.mxu0 0
      %5439 = vmatmul.mubr.bf16.gmra.mrb[0].mxu0 %v5287
      %v5440 = vpop.f32.mrb[0].mxu0
      %v5441 = vadd.f32 0.0, %v5440
      %v5442 = vpop.f32.mrb[0].mxu0
      %v5443 = vpop.f32.mrb[0].mxu0
      %v5444 = vadd.f32 0.0, %v5443
      %v5445 = vpop.f32.mrb[0].mxu0
      %5446 = vmatprep.mubr.bf16.mxu0 0
      %5447 = vmatmul.mubr.bf16.gmra.mrb[0].mxu0 %v5290
      %v5448 = vpop.f32.mrb[0].mxu0
      %v5449 = vadd.f32 0.0, %v5448
      %v5450 = vpop.f32.mrb[0].mxu0
      %v5451 = vpop.f32.mrb[0].mxu0
      %v5452 = vadd.f32 0.0, %v5451
      %v5453 = vpop.f32.mrb[0].mxu0
      %5454 = vmatprep.mubr.bf16.mxu0 0
      %5455 = vmatmul.mubr.bf16.gmra.mrb[0].mxu0 %v5293
      %v5456 = vpop.f32.mrb[0].mxu0
      %v5457 = vadd.f32 0.0, %v5456
      %v5458 = vpop.f32.mrb[0].mxu0
      %v5459 = vpop.f32.mrb[0].mxu0
      %v5460 = vadd.f32 0.0, %v5459
      %v5461 = vpop.f32.mrb[0].mxu0
      %5462 = vmatprep.mubr.bf16.mxu0 0
      %5463 = vmatmul.mubr.bf16.gmra.mrb[0].mxu0 %v5296
      %v5464 = vpop.f32.mrb[0].mxu0
      %v5465 = vadd.f32 0.0, %v5464
      %v5466 = vpop.f32.mrb[0].mxu0
      %v5467 = vpop.f32.mrb[0].mxu0
      %v5468 = vadd.f32 0.0, %v5467
      %v5469 = vpop.f32.mrb[0].mxu0
      %5470 = vmatprep.mubr.bf16.mxu0 0
      %5471 = vmatmul.mubr.bf16.gmra.mrb[0].mxu0 %v5299
      %v5472 = vpop.f32.mrb[0].mxu0
      %v5473 = vadd.f32 0.0, %v5472
      %v5474 = vpop.f32.mrb[0].mxu0
      %v5475 = vpop.f32.mrb[0].mxu0
      %v5476 = vadd.f32 0.0, %v5475
      %v5477 = vpop.f32.mrb[0].mxu0
      %5478 = vmatprep.mubr.bf16.mxu0 0
      %5479 = vmatmul.mubr.bf16.gmra.mrb[0].mxu0 %v5302
      %v5480 = vpop.f32.mrb[0].mxu0
      %v5481 = vadd.f32 0.0, %v5480
      %v5482 = vpop.f32.mrb[0].mxu0
      %v5483 = vpop.f32.mrb[0].mxu0
      %v5484 = vadd.f32 0.0, %v5483
      %v5485 = vpop.f32.mrb[0].mxu0
      %5486 = vmatprep.mubr.bf16.mxu0 0
      %5487 = vmatmul.mubr.bf16.gmra.mrb[0].mxu0 %v5305
      %v5488 = vpop.f32.mrb[0].mxu0
      %v5489 = vadd.f32 0.0, %v5488
      %v5490 = vpop.f32.mrb[0].mxu0
      %v5491 = vpop.f32.mrb[0].mxu0
      %v5492 = vadd.f32 0.0, %v5491
      %v5493 = vpop.f32.mrb[0].mxu0
      %5494 = vmatprep.mubr.bf16.mxu0 0
      %5495 = vmatmul.mubr.bf16.gmra.mrb[0].mxu0 %v5308
      %v5496 = vpop.f32.mrb[0].mxu0
      %v5497 = vadd.f32 0.0, %v5496
      %v5498 = vpop.f32.mrb[0].mxu0
      %v5499 = vpop.f32.mrb[0].mxu0
      %v5500 = vadd.f32 0.0, %v5499
      %v5501 = vpop.f32.mrb[0].mxu0
      %5502 = vdwg.mxu0
      %v5503 = vadd.f32 %v5024, %v5345
      %v5504 = vadd.f32 %v5027, %v5348
      %v5505 = vadd.f32 %v5032, %v5353
      %v5506 = vadd.f32 %v5035, %v5356
      %v5507 = vadd.f32 %v5040, %v5361
      %v5508 = vadd.f32 %v5043, %v5364
      %v5509 = vadd.f32 %v5048, %v5369
      %v5510 = vadd.f32 %v5051, %v5372
      %v5511 = vadd.f32 %v5056, %v5377
      %v5512 = vadd.f32 %v5059, %v5380
      %v5513 = vadd.f32 %v5064, %v5385
      %v5514 = vadd.f32 %v5067, %v5388
      %v5515 = vadd.f32 %v5072, %v5393
      %v5516 = vadd.f32 %v5075, %v5396
      %v5517 = vadd.f32 %v5080, %v5401
      %v5518 = vadd.f32 %v5083, %v5404
      %v5519 = vadd.f32 %v5088, %v5409
      %v5520 = vadd.f32 %v5091, %v5412
      %v5521 = vadd.f32 %v5096, %v5417
      %v5522 = vadd.f32 %v5099, %v5420
      %v5523 = vadd.f32 %v5104, %v5425
      %v5524 = vadd.f32 %v5107, %v5428
      %v5525 = vadd.f32 %v5112, %v5433
      %v5526 = vadd.f32 %v5115, %v5436
      %v5527 = vadd.f32 %v5120, %v5441
      %v5528 = vadd.f32 %v5123, %v5444
      %v5529 = vadd.f32 %v5128, %v5449
      %v5530 = vadd.f32 %v5131, %v5452
      %v5531 = vadd.f32 %v5136, %v5457
      %v5532 = vadd.f32 %v5139, %v5460
      %v5533 = vadd.f32 %v5144, %v5465
      %v5534 = vadd.f32 %v5147, %v5468
      %v5535 = vadd.f32 %v5152, %v5473
      %v5536 = vadd.f32 %v5155, %v5476
      %v5537 = vadd.f32 %v5160, %v5481
      %v5538 = vadd.f32 %v5163, %v5484
      %v5539 = vadd.f32 %v5168, %v5489
      %v5540 = vadd.f32 %v5171, %v5492
      %v5541 = vadd.f32 %v5176, %v5497
      %v5542 = vadd.f32 %v5179, %v5500
      %v5543 = vpack.c.bf16 %v4495, %v4494
      %s5544 = scalar_lea.vmem %s5, 24
      %v5545 = vld [vmem:[%s5544] sm:$0xf]
      %v5546 = vld [vmem:[%s5544 + $0x4] sm:$0xf]
      %v5548 = vrot.slane %v4500, 2
      %v5549 = vrot.slane %v4501, 2
      %v5550 = vsel %vm1582, %v5548, %v5549
      %v5551 = vrot.slane %v4502, 2
      %v5552 = vsel %vm1582, %v5549, %v5551
      %v5553 = vrot.slane %v4503, 2
      %v5554 = vsel %vm1582, %v5551, %v5553
      %v5555 = vrot.slane %v4504, 2
      %v5556 = vsel %vm1582, %v5553, %v5555
      %v5557 = vrot.slane %v4505, 2
      %v5558 = vsel %vm1582, %v5555, %v5557
      %v5559 = vrot.slane %v4506, 2
      %v5560 = vsel %vm1582, %v5557, %v5559
      %v5561 = vrot.slane %v4507, 2
      %v5562 = vsel %vm1582, %v5559, %v5561
      %v5563 = vrot.slane %v4508, 2
      %v5564 = vsel %vm1582, %v5561, %v5563
      %v5565 = vrot.slane %v4509, 2
      %v5566 = vsel %vm1582, %v5563, %v5565
      %v5567 = vrot.slane %v4510, 2
      %v5568 = vsel %vm1582, %v5565, %v5567
      %v5569 = vrot.slane %v4511, 2
      %v5570 = vsel %vm1582, %v5567, %v5569
      %v5571 = vrot.slane %v4512, 2
      %v5572 = vsel %vm1582, %v5569, %v5571
      %v5573 = vrot.slane %v4513, 2
      %v5574 = vsel %vm1582, %v5571, %v5573
      %v5575 = vrot.slane %v4514, 2
      %v5576 = vsel %vm1582, %v5573, %v5575
      %v5577 = vrot.slane %v4515, 2
      %v5578 = vsel %vm1582, %v5575, %v5577
      %v5579 = vrot.slane %v4516, 2
      %v5580 = vsel %vm1582, %v5577, %v5579
      %v5581 = vrot.slane %v4517, 2
      %v5582 = vsel %vm1582, %v5579, %v5581
      %v5583 = vrot.slane %v4518, 2
      %v5584 = vsel %vm1582, %v5581, %v5583
      %v5585 = vrot.slane %v5543, 2
      %v5586 = vsel %vm1582, %v5583, %v5585
      %v5589 = vunpack.c.l.b16 %v5545
      %v5590 = vunpack.c.l.b16 %v5546
      %v5591 = vpack.c.b16 %v5590, %v5589
      %v5594 = vsel %vm4689, %v5550, 0
      %v5597 = vsel %vm4689, %v5552, 0
      %v5600 = vsel %vm4689, %v5554, 0
      %v5603 = vsel %vm4689, %v5556, 0
      %v5606 = vsel %vm4689, %v5558, 0
      %v5609 = vsel %vm4689, %v5560, 0
      %v5612 = vsel %vm4689, %v5562, 0
      %v5615 = vsel %vm4689, %v5564, 0
      %v5618 = vsel %vm4689, %v5566, 0
      %v5621 = vsel %vm4689, %v5568, 0
      %v5624 = vsel %vm4689, %v5570, 0
      %v5627 = vsel %vm4689, %v5572, 0
      %v5630 = vsel %vm4689, %v5574, 0
      %v5633 = vsel %vm4689, %v5576, 0
      %v5636 = vsel %vm4689, %v5578, 0
      %v5639 = vsel %vm4689, %v5580, 0
      %v5642 = vsel %vm4689, %v5582, 0
      %v5645 = vsel %vm4689, %v5584, 0
      %v5648 = vsel %vm4689, %v5586, 0
      %v5651 = vsel %vm4689, %v5585, 0
      %5653 = vmatprep.subr.bf16.mxu0 0
      %5654 = vmatpush1.bf16.msra.mxu0 %v5591
      %5655 = vmatprep.subr.bf16.mxu0 0
      %5656 = vmatpush1.bf16.msra.mxu0 0
      %5657 = vmatprep.subr.bf16.mxu0 0
      %5658 = vmatpush1.bf16.msra.mxu0 0
      %5659 = vmatprep.subr.bf16.mxu0 0
      %5660 = vmatpush1.bf16.msra.mxu0 0
      %5661 = vmatprep.subr.bf16.mxu0 0
      %5662 = vmatpush1.bf16.msra.mxu0 0
      %5663 = vmatprep.subr.bf16.mxu0 0
      %5664 = vmatpush1.bf16.msra.mxu0 0
      %5665 = vmatprep.subr.bf16.mxu0 0
      %5666 = vmatpush1.bf16.msra.mxu0 0
      %5667 = vmatprep.subr.bf16.mxu0 0
      %5668 = vmatpush1.bf16.msra.mxu0 0
      %5669 = vmatprep.subr.bf16.mxu0 0
      %5670 = vmatpush1.bf16.msra.mxu0 0
      %5671 = vmatprep.subr.bf16.mxu0 0
      %5672 = vmatpush1.bf16.msra.mxu0 0
      %5673 = vmatprep.subr.bf16.mxu0 0
      %5674 = vmatpush1.bf16.msra.mxu0 0
      %5675 = vmatprep.subr.bf16.mxu0 0
      %5676 = vmatpush1.bf16.msra.mxu0 0
      %5677 = vmatprep.subr.bf16.mxu0 0
      %5678 = vmatpush1.bf16.msra.mxu0 0
      %5679 = vmatprep.subr.bf16.mxu0 0
      %5680 = vmatpush1.bf16.msra.mxu0 0
      %5681 = vmatprep.subr.bf16.mxu0 0
      %5682 = vmatpush1.bf16.msra.mxu0 0
      %5683 = vmatprep.subr.bf16.mxu0 0
      %5684 = vmatpush1.bf16.msra.mxu0 0
      %5685 = vmatprep.mubr.bf16.mxu0 0
      %5686 = vmatmul.mubr.bf16.gmra.mrb[0].mxu0 %v5594
      %v5687 = vpop.f32.mrb[0].mxu0
      %v5688 = vadd.f32 0.0, %v5687
      %v5689 = vpop.f32.mrb[0].mxu0
      %v5690 = vpop.f32.mrb[0].mxu0
      %v5691 = vadd.f32 0.0, %v5690
      %v5692 = vpop.f32.mrb[0].mxu0
      %5693 = vmatprep.mubr.bf16.mxu0 0
      %5694 = vmatmul.mubr.bf16.gmra.mrb[0].mxu0 %v5597
      %v5695 = vpop.f32.mrb[0].mxu0
      %v5696 = vadd.f32 0.0, %v5695
      %v5697 = vpop.f32.mrb[0].mxu0
      %v5698 = vpop.f32.mrb[0].mxu0
      %v5699 = vadd.f32 0.0, %v5698
      %v5700 = vpop.f32.mrb[0].mxu0
      %5701 = vmatprep.mubr.bf16.mxu0 0
      %5702 = vmatmul.mubr.bf16.gmra.mrb[0].mxu0 %v5600
      %v5703 = vpop.f32.mrb[0].mxu0
      %v5704 = vadd.f32 0.0, %v5703
      %v5705 = vpop.f32.mrb[0].mxu0
      %v5706 = vpop.f32.mrb[0].mxu0
      %v5707 = vadd.f32 0.0, %v5706
      %v5708 = vpop.f32.mrb[0].mxu0
      %5709 = vmatprep.mubr.bf16.mxu0 0
      %5710 = vmatmul.mubr.bf16.gmra.mrb[0].mxu0 %v5603
      %v5711 = vpop.f32.mrb[0].mxu0
      %v5712 = vadd.f32 0.0, %v5711
      %v5713 = vpop.f32.mrb[0].mxu0
      %v5714 = vpop.f32.mrb[0].mxu0
      %v5715 = vadd.f32 0.0, %v5714
      %v5716 = vpop.f32.mrb[0].mxu0
      %5717 = vmatprep.mubr.bf16.mxu0 0
      %5718 = vmatmul.mubr.bf16.gmra.mrb[0].mxu0 %v5606
      %v5719 = vpop.f32.mrb[0].mxu0
      %v5720 = vadd.f32 0.0, %v5719
      %v5721 = vpop.f32.mrb[0].mxu0
      %v5722 = vpop.f32.mrb[0].mxu0
      %v5723 = vadd.f32 0.0, %v5722
      %v5724 = vpop.f32.mrb[0].mxu0
      %5725 = vmatprep.mubr.bf16.mxu0 0
      %5726 = vmatmul.mubr.bf16.gmra.mrb[0].mxu0 %v5609
      %v5727 = vpop.f32.mrb[0].mxu0
      %v5728 = vadd.f32 0.0, %v5727
      %v5729 = vpop.f32.mrb[0].mxu0
      %v5730 = vpop.f32.mrb[0].mxu0
      %v5731 = vadd.f32 0.0, %v5730
      %v5732 = vpop.f32.mrb[0].mxu0
      %5733 = vmatprep.mubr.bf16.mxu0 0
      %5734 = vmatmul.mubr.bf16.gmra.mrb[0].mxu0 %v5612
      %v5735 = vpop.f32.mrb[0].mxu0
      %v5736 = vadd.f32 0.0, %v5735
      %v5737 = vpop.f32.mrb[0].mxu0
      %v5738 = vpop.f32.mrb[0].mxu0
      %v5739 = vadd.f32 0.0, %v5738
      %v5740 = vpop.f32.mrb[0].mxu0
      %5741 = vmatprep.mubr.bf16.mxu0 0
      %5742 = vmatmul.mubr.bf16.gmra.mrb[0].mxu0 %v5615
      %v5743 = vpop.f32.mrb[0].mxu0
      %v5744 = vadd.f32 0.0, %v5743
      %v5745 = vpop.f32.mrb[0].mxu0
      %v5746 = vpop.f32.mrb[0].mxu0
      %v5747 = vadd.f32 0.0, %v5746
      %v5748 = vpop.f32.mrb[0].mxu0
      %5749 = vmatprep.mubr.bf16.mxu0 0
      %5750 = vmatmul.mubr.bf16.gmra.mrb[0].mxu0 %v5618
      %v5751 = vpop.f32.mrb[0].mxu0
      %v5752 = vadd.f32 0.0, %v5751
      %v5753 = vpop.f32.mrb[0].mxu0
      %v5754 = vpop.f32.mrb[0].mxu0
      %v5755 = vadd.f32 0.0, %v5754
      %v5756 = vpop.f32.mrb[0].mxu0
      %5757 = vmatprep.mubr.bf16.mxu0 0
      %5758 = vmatmul.mubr.bf16.gmra.mrb[0].mxu0 %v5621
      %v5759 = vpop.f32.mrb[0].mxu0
      %v5760 = vadd.f32 0.0, %v5759
      %v5761 = vpop.f32.mrb[0].mxu0
      %v5762 = vpop.f32.mrb[0].mxu0
      %v5763 = vadd.f32 0.0, %v5762
      %v5764 = vpop.f32.mrb[0].mxu0
      %5765 = vmatprep.mubr.bf16.mxu0 0
      %5766 = vmatmul.mubr.bf16.gmra.mrb[0].mxu0 %v5624
      %v5767 = vpop.f32.mrb[0].mxu0
      %v5768 = vadd.f32 0.0, %v5767
      %v5769 = vpop.f32.mrb[0].mxu0
      %v5770 = vpop.f32.mrb[0].mxu0
      %v5771 = vadd.f32 0.0, %v5770
      %v5772 = vpop.f32.mrb[0].mxu0
      %5773 = vmatprep.mubr.bf16.mxu0 0
      %5774 = vmatmul.mubr.bf16.gmra.mrb[0].mxu0 %v5627
      %v5775 = vpop.f32.mrb[0].mxu0
      %v5776 = vadd.f32 0.0, %v5775
      %v5777 = vpop.f32.mrb[0].mxu0
      %v5778 = vpop.f32.mrb[0].mxu0
      %v5779 = vadd.f32 0.0, %v5778
      %v5780 = vpop.f32.mrb[0].mxu0
      %5781 = vmatprep.mubr.bf16.mxu0 0
      %5782 = vmatmul.mubr.bf16.gmra.mrb[0].mxu0 %v5630
      %v5783 = vpop.f32.mrb[0].mxu0
      %v5784 = vadd.f32 0.0, %v5783
      %v5785 = vpop.f32.mrb[0].mxu0
      %v5786 = vpop.f32.mrb[0].mxu0
      %v5787 = vadd.f32 0.0, %v5786
      %v5788 = vpop.f32.mrb[0].mxu0
      %5789 = vmatprep.mubr.bf16.mxu0 0
      %5790 = vmatmul.mubr.bf16.gmra.mrb[0].mxu0 %v5633
      %v5791 = vpop.f32.mrb[0].mxu0
      %v5792 = vadd.f32 0.0, %v5791
      %v5793 = vpop.f32.mrb[0].mxu0
      %v5794 = vpop.f32.mrb[0].mxu0
      %v5795 = vadd.f32 0.0, %v5794
      %v5796 = vpop.f32.mrb[0].mxu0
      %5797 = vmatprep.mubr.bf16.mxu0 0
      %5798 = vmatmul.mubr.bf16.gmra.mrb[0].mxu0 %v5636
      %v5799 = vpop.f32.mrb[0].mxu0
      %v5800 = vadd.f32 0.0, %v5799
      %v5801 = vpop.f32.mrb[0].mxu0
      %v5802 = vpop.f32.mrb[0].mxu0
      %v5803 = vadd.f32 0.0, %v5802
      %v5804 = vpop.f32.mrb[0].mxu0
      %5805 = vmatprep.mubr.bf16.mxu0 0
      %5806 = vmatmul.mubr.bf16.gmra.mrb[0].mxu0 %v5639
      %v5807 = vpop.f32.mrb[0].mxu0
      %v5808 = vadd.f32 0.0, %v5807
      %v5809 = vpop.f32.mrb[0].mxu0
      %v5810 = vpop.f32.mrb[0].mxu0
      %v5811 = vadd.f32 0.0, %v5810
      %v5812 = vpop.f32.mrb[0].mxu0
      %5813 = vmatprep.mubr.bf16.mxu0 0
      %5814 = vmatmul.mubr.bf16.gmra.mrb[0].mxu0 %v5642
      %v5815 = vpop.f32.mrb[0].mxu0
      %v5816 = vadd.f32 0.0, %v5815
      %v5817 = vpop.f32.mrb[0].mxu0
      %v5818 = vpop.f32.mrb[0].mxu0
      %v5819 = vadd.f32 0.0, %v5818
      %v5820 = vpop.f32.mrb[0].mxu0
      %5821 = vmatprep.mubr.bf16.mxu0 0
      %5822 = vmatmul.mubr.bf16.gmra.mrb[0].mxu0 %v5645
      %v5823 = vpop.f32.mrb[0].mxu0
      %v5824 = vadd.f32 0.0, %v5823
      %v5825 = vpop.f32.mrb[0].mxu0
      %v5826 = vpop.f32.mrb[0].mxu0
      %v5827 = vadd.f32 0.0, %v5826
      %v5828 = vpop.f32.mrb[0].mxu0
      %5829 = vmatprep.mubr.bf16.mxu0 0
      %5830 = vmatmul.mubr.bf16.gmra.mrb[0].mxu0 %v5648
      %v5831 = vpop.f32.mrb[0].mxu0
      %v5832 = vadd.f32 0.0, %v5831
      %v5833 = vpop.f32.mrb[0].mxu0
      %v5834 = vpop.f32.mrb[0].mxu0
      %v5835 = vadd.f32 0.0, %v5834
      %v5836 = vpop.f32.mrb[0].mxu0
      %5837 = vmatprep.mubr.bf16.mxu0 0
      %5838 = vmatmul.mubr.bf16.gmra.mrb[0].mxu0 %v5651
      %v5839 = vpop.f32.mrb[0].mxu0
      %v5840 = vadd.f32 0.0, %v5839
      %v5841 = vpop.f32.mrb[0].mxu0
      %v5842 = vpop.f32.mrb[0].mxu0
      %v5843 = vadd.f32 0.0, %v5842
      %v5844 = vpop.f32.mrb[0].mxu0
      %5845 = vdwg.mxu0
      %v5846 = vadd.f32 %v5503, %v5688
      %v5847 = vadd.f32 %v5504, %v5691
      %v5848 = vadd.f32 %v5505, %v5696
      %v5849 = vadd.f32 %v5506, %v5699
      %v5850 = vadd.f32 %v5507, %v5704
      %v5851 = vadd.f32 %v5508, %v5707
      %v5852 = vadd.f32 %v5509, %v5712
      %v5853 = vadd.f32 %v5510, %v5715
      %v5854 = vadd.f32 %v5511, %v5720
      %v5855 = vadd.f32 %v5512, %v5723
      %v5856 = vadd.f32 %v5513, %v5728
      %v5857 = vadd.f32 %v5514, %v5731
      %v5858 = vadd.f32 %v5515, %v5736
      %v5859 = vadd.f32 %v5516, %v5739
      %v5860 = vadd.f32 %v5517, %v5744
      %v5861 = vadd.f32 %v5518, %v5747
      %v5862 = vadd.f32 %v5519, %v5752
      %v5863 = vadd.f32 %v5520, %v5755
      %v5864 = vadd.f32 %v5521, %v5760
      %v5865 = vadd.f32 %v5522, %v5763
      %v5866 = vadd.f32 %v5523, %v5768
      %v5867 = vadd.f32 %v5524, %v5771
      %v5868 = vadd.f32 %v5525, %v5776
      %v5869 = vadd.f32 %v5526, %v5779
      %v5870 = vadd.f32 %v5527, %v5784
      %v5871 = vadd.f32 %v5528, %v5787
      %v5872 = vadd.f32 %v5529, %v5792
      %v5873 = vadd.f32 %v5530, %v5795
      %v5874 = vadd.f32 %v5531, %v5800
      %v5875 = vadd.f32 %v5532, %v5803
      %v5876 = vadd.f32 %v5533, %v5808
      %v5877 = vadd.f32 %v5534, %v5811
      %v5878 = vadd.f32 %v5535, %v5816
      %v5879 = vadd.f32 %v5536, %v5819
      %v5880 = vadd.f32 %v5537, %v5824
      %v5881 = vadd.f32 %v5538, %v5827
      %v5882 = vadd.f32 %v5539, %v5832
      %v5883 = vadd.f32 %v5540, %v5835
      %v5884 = vadd.f32 %v5541, %v5840
      %v5885 = vadd.f32 %v5542, %v5843
      %v5886 = vpack.c.bf16 %v4496, %v4496
      %s5887 = scalar_lea.vmem %s5, 32
      %v5888 = vld [vmem:[%s5887] sm:$0xf]
      %v5889 = vld [vmem:[%s5887 + $0x4] sm:$0xf]
      %v5890 = vrot.slane %v4536, 2
      %v5891 = vrot.slane %v4532, 3
      %v5892 = vor.u32 %v5890, %v5891
      %v5893 = vrot.slane %v4544, 2
      %v5894 = vrot.slane %v4540, 3
      %v5895 = vor.u32 %v5893, %v5894
      %v5896 = vsel %vm1963, %v5892, %v5895
      %v5897 = vrot.slane %v4552, 2
      %v5898 = vrot.slane %v4548, 3
      %v5899 = vor.u32 %v5897, %v5898
      %v5900 = vsel %vm1963, %v5895, %v5899
      %v5901 = vrot.slane %v4560, 2
      %v5902 = vrot.slane %v4556, 3
      %v5903 = vor.u32 %v5901, %v5902
      %v5904 = vsel %vm1963, %v5899, %v5903
      %v5905 = vrot.slane %v4568, 2
      %v5906 = vrot.slane %v4564, 3
      %v5907 = vor.u32 %v5905, %v5906
      %v5908 = vsel %vm1963, %v5903, %v5907
      %v5909 = vrot.slane %v4576, 2
      %v5910 = vrot.slane %v4572, 3
      %v5911 = vor.u32 %v5909, %v5910
      %v5912 = vsel %vm1963, %v5907, %v5911
      %v5913 = vrot.slane %v4584, 2
      %v5914 = vrot.slane %v4580, 3
      %v5915 = vor.u32 %v5913, %v5914
      %v5916 = vsel %vm1963, %v5911, %v5915
      %v5917 = vrot.slane %v4592, 2
      %v5918 = vrot.slane %v4588, 3
      %v5919 = vor.u32 %v5917, %v5918
      %v5920 = vsel %vm1963, %v5915, %v5919
      %v5921 = vrot.slane %v4600, 2
      %v5922 = vrot.slane %v4596, 3
      %v5923 = vor.u32 %v5921, %v5922
      %v5924 = vsel %vm1963, %v5919, %v5923
      %v5925 = vrot.slane %v4608, 2
      %v5926 = vrot.slane %v4604, 3
      %v5927 = vor.u32 %v5925, %v5926
      %v5928 = vsel %vm1963, %v5923, %v5927
      %v5929 = vrot.slane %v4616, 2
      %v5930 = vrot.slane %v4612, 3
      %v5931 = vor.u32 %v5929, %v5930
      %v5932 = vsel %vm1963, %v5927, %v5931
      %v5933 = vrot.slane %v4624, 2
      %v5934 = vrot.slane %v4620, 3
      %v5935 = vor.u32 %v5933, %v5934
      %v5936 = vsel %vm1963, %v5931, %v5935
      %v5937 = vrot.slane %v4632, 2
      %v5938 = vrot.slane %v4628, 3
      %v5939 = vor.u32 %v5937, %v5938
      %v5940 = vsel %vm1963, %v5935, %v5939
      %v5941 = vrot.slane %v4640, 2
      %v5942 = vrot.slane %v4636, 3
      %v5943 = vor.u32 %v5941, %v5942
      %v5944 = vsel %vm1963, %v5939, %v5943
      %v5945 = vrot.slane %v4648, 2
      %v5946 = vrot.slane %v4644, 3
      %v5947 = vor.u32 %v5945, %v5946
      %v5948 = vsel %vm1963, %v5943, %v5947
      %v5949 = vrot.slane %v4656, 2
      %v5950 = vrot.slane %v4652, 3
      %v5951 = vor.u32 %v5949, %v5950
      %v5952 = vsel %vm1963, %v5947, %v5951
      %v5953 = vrot.slane %v4664, 2
      %v5954 = vrot.slane %v4660, 3
      %v5955 = vor.u32 %v5953, %v5954
      %v5956 = vsel %vm1963, %v5951, %v5955
      %v5957 = vrot.slane %v4672, 2
      %v5958 = vrot.slane %v4668, 3
      %v5959 = vor.u32 %v5957, %v5958
      %v5960 = vsel %vm1963, %v5955, %v5959
      %v5961 = vrot.slane %v4680, 2
      %v5962 = vrot.slane %v4676, 3
      %v5963 = vor.u32 %v5961, %v5962
      %v5964 = vsel %vm1963, %v5959, %v5963
      %v5966 = vshrl.u32 %v5543, 16
      %v5968 = vrot.slane %v5966, 2
      %v5969 = vshll.u32 %v5543, 16
      %v5971 = vrot.slane %v5969, 3
      %v5972 = vor.u32 %v5968, %v5971
      %v5973 = vsel %vm1963, %v5963, %v5972
      %v5975 = vshll.u32 %v5886, 16
      %v5977 = vrot.slane %v5975, 3
      %v5978 = vsel %vm1963, %v5972, %v5977
      %v5981 = vunpack.c.l.b16 %v5888
      %v5982 = vunpack.c.l.b16 %v5889
      %v5983 = vpack.c.b16 %v5982, %v5981
      %v5986 = vsel %vm4689, %v5896, 0
      %v5989 = vsel %vm4689, %v5900, 0
      %v5992 = vsel %vm4689, %v5904, 0
      %v5995 = vsel %vm4689, %v5908, 0
      %v5998 = vsel %vm4689, %v5912, 0
      %v6001 = vsel %vm4689, %v5916, 0
      %v6004 = vsel %vm4689, %v5920, 0
      %v6007 = vsel %vm4689, %v5924, 0
      %v6010 = vsel %vm4689, %v5928, 0
      %v6013 = vsel %vm4689, %v5932, 0
      %v6016 = vsel %vm4689, %v5936, 0
      %v6019 = vsel %vm4689, %v5940, 0
      %v6022 = vsel %vm4689, %v5944, 0
      %v6025 = vsel %vm4689, %v5948, 0
      %v6028 = vsel %vm4689, %v5952, 0
      %v6031 = vsel %vm4689, %v5956, 0
      %v6034 = vsel %vm4689, %v5960, 0
      %v6037 = vsel %vm4689, %v5964, 0
      %v6040 = vsel %vm4689, %v5973, 0
      %v6043 = vsel %vm4689, %v5978, 0
      %6045 = vmatprep.subr.bf16.mxu0 0
      %6046 = vmatpush1.bf16.msra.mxu0 %v5983
      %6047 = vmatprep.subr.bf16.mxu0 0
      %6048 = vmatpush1.bf16.msra.mxu0 0
      %6049 = vmatprep.subr.bf16.mxu0 0
      %6050 = vmatpush1.bf16.msra.mxu0 0
      %6051 = vmatprep.subr.bf16.mxu0 0
      %6052 = vmatpush1.bf16.msra.mxu0 0
      %6053 = vmatprep.subr.bf16.mxu0 0
      %6054 = vmatpush1.bf16.msra.mxu0 0
      %6055 = vmatprep.subr.bf16.mxu0 0
      %6056 = vmatpush1.bf16.msra.mxu0 0
      %6057 = vmatprep.subr.bf16.mxu0 0
      %6058 = vmatpush1.bf16.msra.mxu0 0
      %6059 = vmatprep.subr.bf16.mxu0 0
      %6060 = vmatpush1.bf16.msra.mxu0 0
      %6061 = vmatprep.subr.bf16.mxu0 0
      %6062 = vmatpush1.bf16.msra.mxu0 0
      %6063 = vmatprep.subr.bf16.mxu0 0
      %6064 = vmatpush1.bf16.msra.mxu0 0
      %6065 = vmatprep.subr.bf16.mxu0 0
      %6066 = vmatpush1.bf16.msra.mxu0 0
      %6067 = vmatprep.subr.bf16.mxu0 0
      %6068 = vmatpush1.bf16.msra.mxu0 0
      %6069 = vmatprep.subr.bf16.mxu0 0
      %6070 = vmatpush1.bf16.msra.mxu0 0
      %6071 = vmatprep.subr.bf16.mxu0 0
      %6072 = vmatpush1.bf16.msra.mxu0 0
      %6073 = vmatprep.subr.bf16.mxu0 0
      %6074 = vmatpush1.bf16.msra.mxu0 0
      %6075 = vmatprep.subr.bf16.mxu0 0
      %6076 = vmatpush1.bf16.msra.mxu0 0
      %6077 = vmatprep.mubr.bf16.mxu0 0
      %6078 = vmatmul.mubr.bf16.gmra.mrb[0].mxu0 %v5986
      %v6079 = vpop.f32.mrb[0].mxu0
      %v6080 = vadd.f32 0.0, %v6079
      %v6081 = vpop.f32.mrb[0].mxu0
      %v6082 = vpop.f32.mrb[0].mxu0
      %v6083 = vadd.f32 0.0, %v6082
      %v6084 = vpop.f32.mrb[0].mxu0
      %6085 = vmatprep.mubr.bf16.mxu0 0
      %6086 = vmatmul.mubr.bf16.gmra.mrb[0].mxu0 %v5989
      %v6087 = vpop.f32.mrb[0].mxu0
      %v6088 = vadd.f32 0.0, %v6087
      %v6089 = vpop.f32.mrb[0].mxu0
      %v6090 = vpop.f32.mrb[0].mxu0
      %v6091 = vadd.f32 0.0, %v6090
      %v6092 = vpop.f32.mrb[0].mxu0
      %6093 = vmatprep.mubr.bf16.mxu0 0
      %6094 = vmatmul.mubr.bf16.gmra.mrb[0].mxu0 %v5992
      %v6095 = vpop.f32.mrb[0].mxu0
      %v6096 = vadd.f32 0.0, %v6095
      %v6097 = vpop.f32.mrb[0].mxu0
      %v6098 = vpop.f32.mrb[0].mxu0
      %v6099 = vadd.f32 0.0, %v6098
      %v6100 = vpop.f32.mrb[0].mxu0
      %6101 = vmatprep.mubr.bf16.mxu0 0
      %6102 = vmatmul.mubr.bf16.gmra.mrb[0].mxu0 %v5995
      %v6103 = vpop.f32.mrb[0].mxu0
      %v6104 = vadd.f32 0.0, %v6103
      %v6105 = vpop.f32.mrb[0].mxu0
      %v6106 = vpop.f32.mrb[0].mxu0
      %v6107 = vadd.f32 0.0, %v6106
      %v6108 = vpop.f32.mrb[0].mxu0
      %6109 = vmatprep.mubr.bf16.mxu0 0
      %6110 = vmatmul.mubr.bf16.gmra.mrb[0].mxu0 %v5998
      %v6111 = vpop.f32.mrb[0].mxu0
      %v6112 = vadd.f32 0.0, %v6111
      %v6113 = vpop.f32.mrb[0].mxu0
      %v6114 = vpop.f32.mrb[0].mxu0
      %v6115 = vadd.f32 0.0, %v6114
      %v6116 = vpop.f32.mrb[0].mxu0
      %6117 = vmatprep.mubr.bf16.mxu0 0
      %6118 = vmatmul.mubr.bf16.gmra.mrb[0].mxu0 %v6001
      %v6119 = vpop.f32.mrb[0].mxu0
      %v6120 = vadd.f32 0.0, %v6119
      %v6121 = vpop.f32.mrb[0].mxu0
      %v6122 = vpop.f32.mrb[0].mxu0
      %v6123 = vadd.f32 0.0, %v6122
      %v6124 = vpop.f32.mrb[0].mxu0
      %6125 = vmatprep.mubr.bf16.mxu0 0
      %6126 = vmatmul.mubr.bf16.gmra.mrb[0].mxu0 %v6004
      %v6127 = vpop.f32.mrb[0].mxu0
      %v6128 = vadd.f32 0.0, %v6127
      %v6129 = vpop.f32.mrb[0].mxu0
      %v6130 = vpop.f32.mrb[0].mxu0
      %v6131 = vadd.f32 0.0, %v6130
      %v6132 = vpop.f32.mrb[0].mxu0
      %6133 = vmatprep.mubr.bf16.mxu0 0
      %6134 = vmatmul.mubr.bf16.gmra.mrb[0].mxu0 %v6007
      %v6135 = vpop.f32.mrb[0].mxu0
      %v6136 = vadd.f32 0.0, %v6135
      %v6137 = vpop.f32.mrb[0].mxu0
      %v6138 = vpop.f32.mrb[0].mxu0
      %v6139 = vadd.f32 0.0, %v6138
      %v6140 = vpop.f32.mrb[0].mxu0
      %6141 = vmatprep.mubr.bf16.mxu0 0
      %6142 = vmatmul.mubr.bf16.gmra.mrb[0].mxu0 %v6010
      %v6143 = vpop.f32.mrb[0].mxu0
      %v6144 = vadd.f32 0.0, %v6143
      %v6145 = vpop.f32.mrb[0].mxu0
      %v6146 = vpop.f32.mrb[0].mxu0
      %v6147 = vadd.f32 0.0, %v6146
      %v6148 = vpop.f32.mrb[0].mxu0
      %6149 = vmatprep.mubr.bf16.mxu0 0
      %6150 = vmatmul.mubr.bf16.gmra.mrb[0].mxu0 %v6013
      %v6151 = vpop.f32.mrb[0].mxu0
      %v6152 = vadd.f32 0.0, %v6151
      %v6153 = vpop.f32.mrb[0].mxu0
      %v6154 = vpop.f32.mrb[0].mxu0
      %v6155 = vadd.f32 0.0, %v6154
      %v6156 = vpop.f32.mrb[0].mxu0
      %6157 = vmatprep.mubr.bf16.mxu0 0
      %6158 = vmatmul.mubr.bf16.gmra.mrb[0].mxu0 %v6016
      %v6159 = vpop.f32.mrb[0].mxu0
      %v6160 = vadd.f32 0.0, %v6159
      %v6161 = vpop.f32.mrb[0].mxu0
      %v6162 = vpop.f32.mrb[0].mxu0
      %v6163 = vadd.f32 0.0, %v6162
      %v6164 = vpop.f32.mrb[0].mxu0
      %6165 = vmatprep.mubr.bf16.mxu0 0
      %6166 = vmatmul.mubr.bf16.gmra.mrb[0].mxu0 %v6019
      %v6167 = vpop.f32.mrb[0].mxu0
      %v6168 = vadd.f32 0.0, %v6167
      %v6169 = vpop.f32.mrb[0].mxu0
      %v6170 = vpop.f32.mrb[0].mxu0
      %v6171 = vadd.f32 0.0, %v6170
      %v6172 = vpop.f32.mrb[0].mxu0
      %6173 = vmatprep.mubr.bf16.mxu0 0
      %6174 = vmatmul.mubr.bf16.gmra.mrb[0].mxu0 %v6022
      %v6175 = vpop.f32.mrb[0].mxu0
      %v6176 = vadd.f32 0.0, %v6175
      %v6177 = vpop.f32.mrb[0].mxu0
      %v6178 = vpop.f32.mrb[0].mxu0
      %v6179 = vadd.f32 0.0, %v6178
      %v6180 = vpop.f32.mrb[0].mxu0
      %6181 = vmatprep.mubr.bf16.mxu0 0
      %6182 = vmatmul.mubr.bf16.gmra.mrb[0].mxu0 %v6025
      %v6183 = vpop.f32.mrb[0].mxu0
      %v6184 = vadd.f32 0.0, %v6183
      %v6185 = vpop.f32.mrb[0].mxu0
      %v6186 = vpop.f32.mrb[0].mxu0
      %v6187 = vadd.f32 0.0, %v6186
      %v6188 = vpop.f32.mrb[0].mxu0
      %6189 = vmatprep.mubr.bf16.mxu0 0
      %6190 = vmatmul.mubr.bf16.gmra.mrb[0].mxu0 %v6028
      %v6191 = vpop.f32.mrb[0].mxu0
      %v6192 = vadd.f32 0.0, %v6191
      %v6193 = vpop.f32.mrb[0].mxu0
      %v6194 = vpop.f32.mrb[0].mxu0
      %v6195 = vadd.f32 0.0, %v6194
      %v6196 = vpop.f32.mrb[0].mxu0
      %6197 = vmatprep.mubr.bf16.mxu0 0
      %6198 = vmatmul.mubr.bf16.gmra.mrb[0].mxu0 %v6031
      %v6199 = vpop.f32.mrb[0].mxu0
      %v6200 = vadd.f32 0.0, %v6199
      %v6201 = vpop.f32.mrb[0].mxu0
      %v6202 = vpop.f32.mrb[0].mxu0
      %v6203 = vadd.f32 0.0, %v6202
      %v6204 = vpop.f32.mrb[0].mxu0
      %6205 = vmatprep.mubr.bf16.mxu0 0
      %6206 = vmatmul.mubr.bf16.gmra.mrb[0].mxu0 %v6034
      %v6207 = vpop.f32.mrb[0].mxu0
      %v6208 = vadd.f32 0.0, %v6207
      %v6209 = vpop.f32.mrb[0].mxu0
      %v6210 = vpop.f32.mrb[0].mxu0
      %v6211 = vadd.f32 0.0, %v6210
      %v6212 = vpop.f32.mrb[0].mxu0
      %6213 = vmatprep.mubr.bf16.mxu0 0
      %6214 = vmatmul.mubr.bf16.gmra.mrb[0].mxu0 %v6037
      %v6215 = vpop.f32.mrb[0].mxu0
      %v6216 = vadd.f32 0.0, %v6215
      %v6217 = vpop.f32.mrb[0].mxu0
      %v6218 = vpop.f32.mrb[0].mxu0
      %v6219 = vadd.f32 0.0, %v6218
      %v6220 = vpop.f32.mrb[0].mxu0
      %6221 = vmatprep.mubr.bf16.mxu0 0
      %6222 = vmatmul.mubr.bf16.gmra.mrb[0].mxu0 %v6040
      %v6223 = vpop.f32.mrb[0].mxu0
      %v6224 = vadd.f32 0.0, %v6223
      %v6225 = vpop.f32.mrb[0].mxu0
      %v6226 = vpop.f32.mrb[0].mxu0
      %v6227 = vadd.f32 0.0, %v6226
      %v6228 = vpop.f32.mrb[0].mxu0
      %6229 = vmatprep.mubr.bf16.mxu0 0
      %6230 = vmatmul.mubr.bf16.gmra.mrb[0].mxu0 %v6043
      %v6231 = vpop.f32.mrb[0].mxu0
      %v6232 = vadd.f32 0.0, %v6231
      %v6233 = vpop.f32.mrb[0].mxu0
      %v6234 = vpop.f32.mrb[0].mxu0
      %v6235 = vadd.f32 0.0, %v6234
      %v6236 = vpop.f32.mrb[0].mxu0
      %6237 = vdwg.mxu0
      %v6238 = vadd.f32 %v5846, %v6080
      %v6239 = vadd.f32 %v5847, %v6083
      %v6240 = vadd.f32 %v5848, %v6088
      %v6241 = vadd.f32 %v5849, %v6091
      %v6242 = vadd.f32 %v5850, %v6096
      %v6243 = vadd.f32 %v5851, %v6099
      %v6244 = vadd.f32 %v5852, %v6104
      %v6245 = vadd.f32 %v5853, %v6107
      %v6246 = vadd.f32 %v5854, %v6112
      %v6247 = vadd.f32 %v5855, %v6115
      %v6248 = vadd.f32 %v5856, %v6120
      %v6249 = vadd.f32 %v5857, %v6123
      %v6250 = vadd.f32 %v5858, %v6128
      %v6251 = vadd.f32 %v5859, %v6131
      %v6252 = vadd.f32 %v5860, %v6136
      %v6253 = vadd.f32 %v5861, %v6139
      %v6254 = vadd.f32 %v5862, %v6144
      %v6255 = vadd.f32 %v5863, %v6147
      %v6256 = vadd.f32 %v5864, %v6152
      %v6257 = vadd.f32 %v5865, %v6155
      %v6258 = vadd.f32 %v5866, %v6160
      %v6259 = vadd.f32 %v5867, %v6163
      %v6260 = vadd.f32 %v5868, %v6168
      %v6261 = vadd.f32 %v5869, %v6171
      %v6262 = vadd.f32 %v5870, %v6176
      %v6263 = vadd.f32 %v5871, %v6179
      %v6264 = vadd.f32 %v5872, %v6184
      %v6265 = vadd.f32 %v5873, %v6187
      %v6266 = vadd.f32 %v5874, %v6192
      %v6267 = vadd.f32 %v5875, %v6195
      %v6268 = vadd.f32 %v5876, %v6200
      %v6269 = vadd.f32 %v5877, %v6203
      %v6270 = vadd.f32 %v5878, %v6208
      %v6271 = vadd.f32 %v5879, %v6211
      %v6272 = vadd.f32 %v5880, %v6216
      %v6273 = vadd.f32 %v5881, %v6219
      %v6274 = vadd.f32 %v5882, %v6224
      %v6275 = vadd.f32 %v5883, %v6227
      %v6276 = vadd.f32 %v5884, %v6232
      %v6277 = vadd.f32 %v5885, %v6235
      %s6278 = scalar_lea.vmem %s5, 40
      %v6279 = vld [vmem:[%s6278] sm:$0xf]
      %v6280 = vld [vmem:[%s6278 + $0x4] sm:$0xf]
      %v6282 = vrot.slane %v4500, 3
      %v6283 = vrot.slane %v4501, 3
      %v6284 = vsel %vm2400, %v6282, %v6283
      %v6285 = vrot.slane %v4502, 3
      %v6286 = vsel %vm2400, %v6283, %v6285
      %v6287 = vrot.slane %v4503, 3
      %v6288 = vsel %vm2400, %v6285, %v6287
      %v6289 = vrot.slane %v4504, 3
      %v6290 = vsel %vm2400, %v6287, %v6289
      %v6291 = vrot.slane %v4505, 3
      %v6292 = vsel %vm2400, %v6289, %v6291
      %v6293 = vrot.slane %v4506, 3
      %v6294 = vsel %vm2400, %v6291, %v6293
      %v6295 = vrot.slane %v4507, 3
      %v6296 = vsel %vm2400, %v6293, %v6295
      %v6297 = vrot.slane %v4508, 3
      %v6298 = vsel %vm2400, %v6295, %v6297
      %v6299 = vrot.slane %v4509, 3
      %v6300 = vsel %vm2400, %v6297, %v6299
      %v6301 = vrot.slane %v4510, 3
      %v6302 = vsel %vm2400, %v6299, %v6301
      %v6303 = vrot.slane %v4511, 3
      %v6304 = vsel %vm2400, %v6301, %v6303
      %v6305 = vrot.slane %v4512, 3
      %v6306 = vsel %vm2400, %v6303, %v6305
      %v6307 = vrot.slane %v4513, 3
      %v6308 = vsel %vm2400, %v6305, %v6307
      %v6309 = vrot.slane %v4514, 3
      %v6310 = vsel %vm2400, %v6307, %v6309
      %v6311 = vrot.slane %v4515, 3
      %v6312 = vsel %vm2400, %v6309, %v6311
      %v6313 = vrot.slane %v4516, 3
      %v6314 = vsel %vm2400, %v6311, %v6313
      %v6315 = vrot.slane %v4517, 3
      %v6316 = vsel %vm2400, %v6313, %v6315
      %v6317 = vrot.slane %v4518, 3
      %v6318 = vsel %vm2400, %v6315, %v6317
      %v6319 = vrot.slane %v5543, 3
      %v6320 = vsel %vm2400, %v6317, %v6319
      %v6321 = vrot.slane %v5886, 3
      %v6322 = vsel %vm2400, %v6319, %v6321
      %v6325 = vunpack.c.l.b16 %v6279
      %v6326 = vunpack.c.l.b16 %v6280
      %v6327 = vpack.c.b16 %v6326, %v6325
      %v6330 = vsel %vm4689, %v6284, 0
      %v6333 = vsel %vm4689, %v6286, 0
      %v6336 = vsel %vm4689, %v6288, 0
      %v6339 = vsel %vm4689, %v6290, 0
      %v6342 = vsel %vm4689, %v6292, 0
      %v6345 = vsel %vm4689, %v6294, 0
      %v6348 = vsel %vm4689, %v6296, 0
      %v6351 = vsel %vm4689, %v6298, 0
      %v6354 = vsel %vm4689, %v6300, 0
      %v6357 = vsel %vm4689, %v6302, 0
      %v6360 = vsel %vm4689, %v6304, 0
      %v6363 = vsel %vm4689, %v6306, 0
      %v6366 = vsel %vm4689, %v6308, 0
      %v6369 = vsel %vm4689, %v6310, 0
      %v6372 = vsel %vm4689, %v6312, 0
      %v6375 = vsel %vm4689, %v6314, 0
      %v6378 = vsel %vm4689, %v6316, 0
      %v6381 = vsel %vm4689, %v6318, 0
      %v6384 = vsel %vm4689, %v6320, 0
      %v6387 = vsel %vm4689, %v6322, 0
      %6389 = vmatprep.subr.bf16.mxu0 0
      %6390 = vmatpush1.bf16.msra.mxu0 %v6327
      %6391 = vmatprep.subr.bf16.mxu0 0
      %6392 = vmatpush1.bf16.msra.mxu0 0
      %6393 = vmatprep.subr.bf16.mxu0 0
      %6394 = vmatpush1.bf16.msra.mxu0 0
      %6395 = vmatprep.subr.bf16.mxu0 0
      %6396 = vmatpush1.bf16.msra.mxu0 0
      %6397 = vmatprep.subr.bf16.mxu0 0
      %6398 = vmatpush1.bf16.msra.mxu0 0
      %6399 = vmatprep.subr.bf16.mxu0 0
      %6400 = vmatpush1.bf16.msra.mxu0 0
      %6401 = vmatprep.subr.bf16.mxu0 0
      %6402 = vmatpush1.bf16.msra.mxu0 0
      %6403 = vmatprep.subr.bf16.mxu0 0
      %6404 = vmatpush1.bf16.msra.mxu0 0
      %6405 = vmatprep.subr.bf16.mxu0 0
      %6406 = vmatpush1.bf16.msra.mxu0 0
      %6407 = vmatprep.subr.bf16.mxu0 0
      %6408 = vmatpush1.bf16.msra.mxu0 0
      %6409 = vmatprep.subr.bf16.mxu0 0
      %6410 = vmatpush1.bf16.msra.mxu0 0
      %6411 = vmatprep.subr.bf16.mxu0 0
      %6412 = vmatpush1.bf16.msra.mxu0 0
      %6413 = vmatprep.subr.bf16.mxu0 0
      %6414 = vmatpush1.bf16.msra.mxu0 0
      %6415 = vmatprep.subr.bf16.mxu0 0
      %6416 = vmatpush1.bf16.msra.mxu0 0
      %6417 = vmatprep.subr.bf16.mxu0 0
      %6418 = vmatpush1.bf16.msra.mxu0 0
      %6419 = vmatprep.subr.bf16.mxu0 0
      %6420 = vmatpush1.bf16.msra.mxu0 0
      %6421 = vmatprep.mubr.bf16.mxu0 0
      %6422 = vmatmul.mubr.bf16.gmra.mrb[0].mxu0 %v6330
      %v6423 = vpop.f32.mrb[0].mxu0
      %v6424 = vadd.f32 0.0, %v6423
      %v6425 = vpop.f32.mrb[0].mxu0
      %v6426 = vpop.f32.mrb[0].mxu0
      %v6427 = vadd.f32 0.0, %v6426
      %v6428 = vpop.f32.mrb[0].mxu0
      %6429 = vmatprep.mubr.bf16.mxu0 0
      %6430 = vmatmul.mubr.bf16.gmra.mrb[0].mxu0 %v6333
      %v6431 = vpop.f32.mrb[0].mxu0
      %v6432 = vadd.f32 0.0, %v6431
      %v6433 = vpop.f32.mrb[0].mxu0
      %v6434 = vpop.f32.mrb[0].mxu0
      %v6435 = vadd.f32 0.0, %v6434
      %v6436 = vpop.f32.mrb[0].mxu0
      %6437 = vmatprep.mubr.bf16.mxu0 0
      %6438 = vmatmul.mubr.bf16.gmra.mrb[0].mxu0 %v6336
      %v6439 = vpop.f32.mrb[0].mxu0
      %v6440 = vadd.f32 0.0, %v6439
      %v6441 = vpop.f32.mrb[0].mxu0
      %v6442 = vpop.f32.mrb[0].mxu0
      %v6443 = vadd.f32 0.0, %v6442
      %v6444 = vpop.f32.mrb[0].mxu0
      %6445 = vmatprep.mubr.bf16.mxu0 0
      %6446 = vmatmul.mubr.bf16.gmra.mrb[0].mxu0 %v6339
      %v6447 = vpop.f32.mrb[0].mxu0
      %v6448 = vadd.f32 0.0, %v6447
      %v6449 = vpop.f32.mrb[0].mxu0
      %v6450 = vpop.f32.mrb[0].mxu0
      %v6451 = vadd.f32 0.0, %v6450
      %v6452 = vpop.f32.mrb[0].mxu0
      %6453 = vmatprep.mubr.bf16.mxu0 0
      %6454 = vmatmul.mubr.bf16.gmra.mrb[0].mxu0 %v6342
      %v6455 = vpop.f32.mrb[0].mxu0
      %v6456 = vadd.f32 0.0, %v6455
      %v6457 = vpop.f32.mrb[0].mxu0
      %v6458 = vpop.f32.mrb[0].mxu0
      %v6459 = vadd.f32 0.0, %v6458
      %v6460 = vpop.f32.mrb[0].mxu0
      %6461 = vmatprep.mubr.bf16.mxu0 0
      %6462 = vmatmul.mubr.bf16.gmra.mrb[0].mxu0 %v6345
      %v6463 = vpop.f32.mrb[0].mxu0
      %v6464 = vadd.f32 0.0, %v6463
      %v6465 = vpop.f32.mrb[0].mxu0
      %v6466 = vpop.f32.mrb[0].mxu0
      %v6467 = vadd.f32 0.0, %v6466
      %v6468 = vpop.f32.mrb[0].mxu0
      %6469 = vmatprep.mubr.bf16.mxu0 0
      %6470 = vmatmul.mubr.bf16.gmra.mrb[0].mxu0 %v6348
      %v6471 = vpop.f32.mrb[0].mxu0
      %v6472 = vadd.f32 0.0, %v6471
      %v6473 = vpop.f32.mrb[0].mxu0
      %v6474 = vpop.f32.mrb[0].mxu0
      %v6475 = vadd.f32 0.0, %v6474
      %v6476 = vpop.f32.mrb[0].mxu0
      %6477 = vmatprep.mubr.bf16.mxu0 0
      %6478 = vmatmul.mubr.bf16.gmra.mrb[0].mxu0 %v6351
      %v6479 = vpop.f32.mrb[0].mxu0
      %v6480 = vadd.f32 0.0, %v6479
      %v6481 = vpop.f32.mrb[0].mxu0
      %v6482 = vpop.f32.mrb[0].mxu0
      %v6483 = vadd.f32 0.0, %v6482
      %v6484 = vpop.f32.mrb[0].mxu0
      %6485 = vmatprep.mubr.bf16.mxu0 0
      %6486 = vmatmul.mubr.bf16.gmra.mrb[0].mxu0 %v6354
      %v6487 = vpop.f32.mrb[0].mxu0
      %v6488 = vadd.f32 0.0, %v6487
      %v6489 = vpop.f32.mrb[0].mxu0
      %v6490 = vpop.f32.mrb[0].mxu0
      %v6491 = vadd.f32 0.0, %v6490
      %v6492 = vpop.f32.mrb[0].mxu0
      %6493 = vmatprep.mubr.bf16.mxu0 0
      %6494 = vmatmul.mubr.bf16.gmra.mrb[0].mxu0 %v6357
      %v6495 = vpop.f32.mrb[0].mxu0
      %v6496 = vadd.f32 0.0, %v6495
      %v6497 = vpop.f32.mrb[0].mxu0
      %v6498 = vpop.f32.mrb[0].mxu0
      %v6499 = vadd.f32 0.0, %v6498
      %v6500 = vpop.f32.mrb[0].mxu0
      %6501 = vmatprep.mubr.bf16.mxu0 0
      %6502 = vmatmul.mubr.bf16.gmra.mrb[0].mxu0 %v6360
      %v6503 = vpop.f32.mrb[0].mxu0
      %v6504 = vadd.f32 0.0, %v6503
      %v6505 = vpop.f32.mrb[0].mxu0
      %v6506 = vpop.f32.mrb[0].mxu0
      %v6507 = vadd.f32 0.0, %v6506
      %v6508 = vpop.f32.mrb[0].mxu0
      %6509 = vmatprep.mubr.bf16.mxu0 0
      %6510 = vmatmul.mubr.bf16.gmra.mrb[0].mxu0 %v6363
      %v6511 = vpop.f32.mrb[0].mxu0
      %v6512 = vadd.f32 0.0, %v6511
      %v6513 = vpop.f32.mrb[0].mxu0
      %v6514 = vpop.f32.mrb[0].mxu0
      %v6515 = vadd.f32 0.0, %v6514
      %v6516 = vpop.f32.mrb[0].mxu0
      %6517 = vmatprep.mubr.bf16.mxu0 0
      %6518 = vmatmul.mubr.bf16.gmra.mrb[0].mxu0 %v6366
      %v6519 = vpop.f32.mrb[0].mxu0
      %v6520 = vadd.f32 0.0, %v6519
      %v6521 = vpop.f32.mrb[0].mxu0
      %v6522 = vpop.f32.mrb[0].mxu0
      %v6523 = vadd.f32 0.0, %v6522
      %v6524 = vpop.f32.mrb[0].mxu0
      %6525 = vmatprep.mubr.bf16.mxu0 0
      %6526 = vmatmul.mubr.bf16.gmra.mrb[0].mxu0 %v6369
      %v6527 = vpop.f32.mrb[0].mxu0
      %v6528 = vadd.f32 0.0, %v6527
      %v6529 = vpop.f32.mrb[0].mxu0
      %v6530 = vpop.f32.mrb[0].mxu0
      %v6531 = vadd.f32 0.0, %v6530
      %v6532 = vpop.f32.mrb[0].mxu0
      %6533 = vmatprep.mubr.bf16.mxu0 0
      %6534 = vmatmul.mubr.bf16.gmra.mrb[0].mxu0 %v6372
      %v6535 = vpop.f32.mrb[0].mxu0
      %v6536 = vadd.f32 0.0, %v6535
      %v6537 = vpop.f32.mrb[0].mxu0
      %v6538 = vpop.f32.mrb[0].mxu0
      %v6539 = vadd.f32 0.0, %v6538
      %v6540 = vpop.f32.mrb[0].mxu0
      %6541 = vmatprep.mubr.bf16.mxu0 0
      %6542 = vmatmul.mubr.bf16.gmra.mrb[0].mxu0 %v6375
      %v6543 = vpop.f32.mrb[0].mxu0
      %v6544 = vadd.f32 0.0, %v6543
      %v6545 = vpop.f32.mrb[0].mxu0
      %v6546 = vpop.f32.mrb[0].mxu0
      %v6547 = vadd.f32 0.0, %v6546
      %v6548 = vpop.f32.mrb[0].mxu0
      %6549 = vmatprep.mubr.bf16.mxu0 0
      %6550 = vmatmul.mubr.bf16.gmra.mrb[0].mxu0 %v6378
      %v6551 = vpop.f32.mrb[0].mxu0
      %v6552 = vadd.f32 0.0, %v6551
      %v6553 = vpop.f32.mrb[0].mxu0
      %v6554 = vpop.f32.mrb[0].mxu0
      %v6555 = vadd.f32 0.0, %v6554
      %v6556 = vpop.f32.mrb[0].mxu0
      %6557 = vmatprep.mubr.bf16.mxu0 0
      %6558 = vmatmul.mubr.bf16.gmra.mrb[0].mxu0 %v6381
      %v6559 = vpop.f32.mrb[0].mxu0
      %v6560 = vadd.f32 0.0, %v6559
      %v6561 = vpop.f32.mrb[0].mxu0
      %v6562 = vpop.f32.mrb[0].mxu0
      %v6563 = vadd.f32 0.0, %v6562
      %v6564 = vpop.f32.mrb[0].mxu0
      %6565 = vmatprep.mubr.bf16.mxu0 0
      %6566 = vmatmul.mubr.bf16.gmra.mrb[0].mxu0 %v6384
      %v6567 = vpop.f32.mrb[0].mxu0
      %v6568 = vadd.f32 0.0, %v6567
      %v6569 = vpop.f32.mrb[0].mxu0
      %v6570 = vpop.f32.mrb[0].mxu0
      %v6571 = vadd.f32 0.0, %v6570
      %v6572 = vpop.f32.mrb[0].mxu0
      %6573 = vmatprep.mubr.bf16.mxu0 0
      %6574 = vmatmul.mubr.bf16.gmra.mrb[0].mxu0 %v6387
      %v6575 = vpop.f32.mrb[0].mxu0
      %v6576 = vadd.f32 0.0, %v6575
      %v6577 = vpop.f32.mrb[0].mxu0
      %v6578 = vpop.f32.mrb[0].mxu0
      %v6579 = vadd.f32 0.0, %v6578
      %v6580 = vpop.f32.mrb[0].mxu0
      %6581 = vdwg.mxu0
      %v6582 = vadd.f32 %v6238, %v6424
      %v6583 = vadd.f32 %v6239, %v6427
      %v6584 = vadd.f32 %v6240, %v6432
      %v6585 = vadd.f32 %v6241, %v6435
      %v6586 = vadd.f32 %v6242, %v6440
      %v6587 = vadd.f32 %v6243, %v6443
      %v6588 = vadd.f32 %v6244, %v6448
      %v6589 = vadd.f32 %v6245, %v6451
      %v6590 = vadd.f32 %v6246, %v6456
      %v6591 = vadd.f32 %v6247, %v6459
      %v6592 = vadd.f32 %v6248, %v6464
      %v6593 = vadd.f32 %v6249, %v6467
      %v6594 = vadd.f32 %v6250, %v6472
      %v6595 = vadd.f32 %v6251, %v6475
      %v6596 = vadd.f32 %v6252, %v6480
      %v6597 = vadd.f32 %v6253, %v6483
      %v6598 = vadd.f32 %v6254, %v6488
      %v6599 = vadd.f32 %v6255, %v6491
      %v6600 = vadd.f32 %v6256, %v6496
      %v6601 = vadd.f32 %v6257, %v6499
      %v6602 = vadd.f32 %v6258, %v6504
      %v6603 = vadd.f32 %v6259, %v6507
      %v6604 = vadd.f32 %v6260, %v6512
      %v6605 = vadd.f32 %v6261, %v6515
      %v6606 = vadd.f32 %v6262, %v6520
      %v6607 = vadd.f32 %v6263, %v6523
      %v6608 = vadd.f32 %v6264, %v6528
      %v6609 = vadd.f32 %v6265, %v6531
      %v6610 = vadd.f32 %v6266, %v6536
      %v6611 = vadd.f32 %v6267, %v6539
      %v6612 = vadd.f32 %v6268, %v6544
      %v6613 = vadd.f32 %v6269, %v6547
      %v6614 = vadd.f32 %v6270, %v6552
      %v6615 = vadd.f32 %v6271, %v6555
      %v6616 = vadd.f32 %v6272, %v6560
      %v6617 = vadd.f32 %v6273, %v6563
      %v6618 = vadd.f32 %v6274, %v6568
      %v6619 = vadd.f32 %v6275, %v6571
      %v6620 = vadd.f32 %v6276, %v6576
      %v6621 = vadd.f32 %v6277, %v6579
      %v6622 = vpack.c.bf16 %v4460, %v4459
      %v6623 = vpack.c.bf16 %v4462, %v4461
      %v6624 = vpack.c.bf16 %v4464, %v4463
      %v6625 = vpack.c.bf16 %v4466, %v4465
      %v6626 = vpack.c.bf16 %v4468, %v4467
      %v6627 = vpack.c.bf16 %v4470, %v4469
      %v6628 = vpack.c.bf16 %v4472, %v4471
      %v6629 = vpack.c.bf16 %v4474, %v4473
      %v6630 = vpack.c.bf16 %v4476, %v4475
      %v6631 = vpack.c.bf16 %v4478, %v4477
      %v6632 = vpack.c.bf16 %v4480, %v4479
      %v6633 = vpack.c.bf16 %v4482, %v4481
      %v6634 = vpack.c.bf16 %v4484, %v4483
      %v6635 = vpack.c.bf16 %v4486, %v4485
      %v6636 = vpack.c.bf16 %v4488, %v4487
      %v6637 = vpack.c.bf16 %v4490, %v4489
      %v6638 = vpack.c.bf16 %v4492, %v4491
      %v6639 = vpack.c.bf16 %v4494, %v4493
      %v6640 = vpack.c.bf16 %v4496, %v4495
      %v6641 = vpack.c.bf16 %v4498, %v4497
      %s6642 = scalar_lea.vmem %s5, 48
      %v6643 = vld [vmem:[%s6642] sm:$0xf]
      %v6644 = vld [vmem:[%s6642 + $0x4] sm:$0xf]
      %v6647 = vunpack.c.l.b16 %v6643
      %v6648 = vunpack.c.l.b16 %v6644
      %v6649 = vpack.c.b16 %v6648, %v6647
      %v6652 = vsel %vm4689, %v6622, 0
      %v6655 = vsel %vm4689, %v6623, 0
      %v6658 = vsel %vm4689, %v6624, 0
      %v6661 = vsel %vm4689, %v6625, 0
      %v6664 = vsel %vm4689, %v6626, 0
      %v6667 = vsel %vm4689, %v6627, 0
      %v6670 = vsel %vm4689, %v6628, 0
      %v6673 = vsel %vm4689, %v6629, 0
      %v6676 = vsel %vm4689, %v6630, 0
      %v6679 = vsel %vm4689, %v6631, 0
      %v6682 = vsel %vm4689, %v6632, 0
      %v6685 = vsel %vm4689, %v6633, 0
      %v6688 = vsel %vm4689, %v6634, 0
      %v6691 = vsel %vm4689, %v6635, 0
      %v6694 = vsel %vm4689, %v6636, 0
      %v6697 = vsel %vm4689, %v6637, 0
      %v6700 = vsel %vm4689, %v6638, 0
      %v6703 = vsel %vm4689, %v6639, 0
      %v6706 = vsel %vm4689, %v6640, 0
      %v6709 = vsel %vm4689, %v6641, 0
      %6711 = vmatprep.subr.bf16.mxu0 0
      %6712 = vmatpush1.bf16.msra.mxu0 %v6649
      %6713 = vmatprep.subr.bf16.mxu0 0
      %6714 = vmatpush1.bf16.msra.mxu0 0
      %6715 = vmatprep.subr.bf16.mxu0 0
      %6716 = vmatpush1.bf16.msra.mxu0 0
      %6717 = vmatprep.subr.bf16.mxu0 0
      %6718 = vmatpush1.bf16.msra.mxu0 0
      %6719 = vmatprep.subr.bf16.mxu0 0
      %6720 = vmatpush1.bf16.msra.mxu0 0
      %6721 = vmatprep.subr.bf16.mxu0 0
      %6722 = vmatpush1.bf16.msra.mxu0 0
      %6723 = vmatprep.subr.bf16.mxu0 0
      %6724 = vmatpush1.bf16.msra.mxu0 0
      %6725 = vmatprep.subr.bf16.mxu0 0
      %6726 = vmatpush1.bf16.msra.mxu0 0
      %6727 = vmatprep.subr.bf16.mxu0 0
      %6728 = vmatpush1.bf16.msra.mxu0 0
      %6729 = vmatprep.subr.bf16.mxu0 0
      %6730 = vmatpush1.bf16.msra.mxu0 0
      %6731 = vmatprep.subr.bf16.mxu0 0
      %6732 = vmatpush1.bf16.msra.mxu0 0
      %6733 = vmatprep.subr.bf16.mxu0 0
      %6734 = vmatpush1.bf16.msra.mxu0 0
      %6735 = vmatprep.subr.bf16.mxu0 0
      %6736 = vmatpush1.bf16.msra.mxu0 0
      %6737 = vmatprep.subr.bf16.mxu0 0
      %6738 = vmatpush1.bf16.msra.mxu0 0
      %6739 = vmatprep.subr.bf16.mxu0 0
      %6740 = vmatpush1.bf16.msra.mxu0 0
      %6741 = vmatprep.subr.bf16.mxu0 0
      %6742 = vmatpush1.bf16.msra.mxu0 0
      %6743 = vmatprep.mubr.bf16.mxu0 0
      %6744 = vmatmul.mubr.bf16.gmra.mrb[0].mxu0 %v6652
      %v6745 = vpop.f32.mrb[0].mxu0
      %v6746 = vadd.f32 0.0, %v6745
      %v6747 = vpop.f32.mrb[0].mxu0
      %v6748 = vpop.f32.mrb[0].mxu0
      %v6749 = vadd.f32 0.0, %v6748
      %v6750 = vpop.f32.mrb[0].mxu0
      %6751 = vmatprep.mubr.bf16.mxu0 0
      %6752 = vmatmul.mubr.bf16.gmra.mrb[0].mxu0 %v6655
      %v6753 = vpop.f32.mrb[0].mxu0
      %v6754 = vadd.f32 0.0, %v6753
      %v6755 = vpop.f32.mrb[0].mxu0
      %v6756 = vpop.f32.mrb[0].mxu0
      %v6757 = vadd.f32 0.0, %v6756
      %v6758 = vpop.f32.mrb[0].mxu0
      %6759 = vmatprep.mubr.bf16.mxu0 0
      %6760 = vmatmul.mubr.bf16.gmra.mrb[0].mxu0 %v6658
      %v6761 = vpop.f32.mrb[0].mxu0
      %v6762 = vadd.f32 0.0, %v6761
      %v6763 = vpop.f32.mrb[0].mxu0
      %v6764 = vpop.f32.mrb[0].mxu0
      %v6765 = vadd.f32 0.0, %v6764
      %v6766 = vpop.f32.mrb[0].mxu0
      %6767 = vmatprep.mubr.bf16.mxu0 0
      %6768 = vmatmul.mubr.bf16.gmra.mrb[0].mxu0 %v6661
      %v6769 = vpop.f32.mrb[0].mxu0
      %v6770 = vadd.f32 0.0, %v6769
      %v6771 = vpop.f32.mrb[0].mxu0
      %v6772 = vpop.f32.mrb[0].mxu0
      %v6773 = vadd.f32 0.0, %v6772
      %v6774 = vpop.f32.mrb[0].mxu0
      %6775 = vmatprep.mubr.bf16.mxu0 0
      %6776 = vmatmul.mubr.bf16.gmra.mrb[0].mxu0 %v6664
      %v6777 = vpop.f32.mrb[0].mxu0
      %v6778 = vadd.f32 0.0, %v6777
      %v6779 = vpop.f32.mrb[0].mxu0
      %v6780 = vpop.f32.mrb[0].mxu0
      %v6781 = vadd.f32 0.0, %v6780
      %v6782 = vpop.f32.mrb[0].mxu0
      %6783 = vmatprep.mubr.bf16.mxu0 0
      %6784 = vmatmul.mubr.bf16.gmra.mrb[0].mxu0 %v6667
      %v6785 = vpop.f32.mrb[0].mxu0
      %v6786 = vadd.f32 0.0, %v6785
      %v6787 = vpop.f32.mrb[0].mxu0
      %v6788 = vpop.f32.mrb[0].mxu0
      %v6789 = vadd.f32 0.0, %v6788
      %v6790 = vpop.f32.mrb[0].mxu0
      %6791 = vmatprep.mubr.bf16.mxu0 0
      %6792 = vmatmul.mubr.bf16.gmra.mrb[0].mxu0 %v6670
      %v6793 = vpop.f32.mrb[0].mxu0
      %v6794 = vadd.f32 0.0, %v6793
      %v6795 = vpop.f32.mrb[0].mxu0
      %v6796 = vpop.f32.mrb[0].mxu0
      %v6797 = vadd.f32 0.0, %v6796
      %v6798 = vpop.f32.mrb[0].mxu0
      %6799 = vmatprep.mubr.bf16.mxu0 0
      %6800 = vmatmul.mubr.bf16.gmra.mrb[0].mxu0 %v6673
      %v6801 = vpop.f32.mrb[0].mxu0
      %v6802 = vadd.f32 0.0, %v6801
      %v6803 = vpop.f32.mrb[0].mxu0
      %v6804 = vpop.f32.mrb[0].mxu0
      %v6805 = vadd.f32 0.0, %v6804
      %v6806 = vpop.f32.mrb[0].mxu0
      %6807 = vmatprep.mubr.bf16.mxu0 0
      %6808 = vmatmul.mubr.bf16.gmra.mrb[0].mxu0 %v6676
      %v6809 = vpop.f32.mrb[0].mxu0
      %v6810 = vadd.f32 0.0, %v6809
      %v6811 = vpop.f32.mrb[0].mxu0
      %v6812 = vpop.f32.mrb[0].mxu0
      %v6813 = vadd.f32 0.0, %v6812
      %v6814 = vpop.f32.mrb[0].mxu0
      %6815 = vmatprep.mubr.bf16.mxu0 0
      %6816 = vmatmul.mubr.bf16.gmra.mrb[0].mxu0 %v6679
      %v6817 = vpop.f32.mrb[0].mxu0
      %v6818 = vadd.f32 0.0, %v6817
      %v6819 = vpop.f32.mrb[0].mxu0
      %v6820 = vpop.f32.mrb[0].mxu0
      %v6821 = vadd.f32 0.0, %v6820
      %v6822 = vpop.f32.mrb[0].mxu0
      %6823 = vmatprep.mubr.bf16.mxu0 0
      %6824 = vmatmul.mubr.bf16.gmra.mrb[0].mxu0 %v6682
      %v6825 = vpop.f32.mrb[0].mxu0
      %v6826 = vadd.f32 0.0, %v6825
      %v6827 = vpop.f32.mrb[0].mxu0
      %v6828 = vpop.f32.mrb[0].mxu0
      %v6829 = vadd.f32 0.0, %v6828
      %v6830 = vpop.f32.mrb[0].mxu0
      %6831 = vmatprep.mubr.bf16.mxu0 0
      %6832 = vmatmul.mubr.bf16.gmra.mrb[0].mxu0 %v6685
      %v6833 = vpop.f32.mrb[0].mxu0
      %v6834 = vadd.f32 0.0, %v6833
      %v6835 = vpop.f32.mrb[0].mxu0
      %v6836 = vpop.f32.mrb[0].mxu0
      %v6837 = vadd.f32 0.0, %v6836
      %v6838 = vpop.f32.mrb[0].mxu0
      %6839 = vmatprep.mubr.bf16.mxu0 0
      %6840 = vmatmul.mubr.bf16.gmra.mrb[0].mxu0 %v6688
      %v6841 = vpop.f32.mrb[0].mxu0
      %v6842 = vadd.f32 0.0, %v6841
      %v6843 = vpop.f32.mrb[0].mxu0
      %v6844 = vpop.f32.mrb[0].mxu0
      %v6845 = vadd.f32 0.0, %v6844
      %v6846 = vpop.f32.mrb[0].mxu0
      %6847 = vmatprep.mubr.bf16.mxu0 0
      %6848 = vmatmul.mubr.bf16.gmra.mrb[0].mxu0 %v6691
      %v6849 = vpop.f32.mrb[0].mxu0
      %v6850 = vadd.f32 0.0, %v6849
      %v6851 = vpop.f32.mrb[0].mxu0
      %v6852 = vpop.f32.mrb[0].mxu0
      %v6853 = vadd.f32 0.0, %v6852
      %v6854 = vpop.f32.mrb[0].mxu0
      %6855 = vmatprep.mubr.bf16.mxu0 0
      %6856 = vmatmul.mubr.bf16.gmra.mrb[0].mxu0 %v6694
      %v6857 = vpop.f32.mrb[0].mxu0
      %v6858 = vadd.f32 0.0, %v6857
      %v6859 = vpop.f32.mrb[0].mxu0
      %v6860 = vpop.f32.mrb[0].mxu0
      %v6861 = vadd.f32 0.0, %v6860
      %v6862 = vpop.f32.mrb[0].mxu0
      %6863 = vmatprep.mubr.bf16.mxu0 0
      %6864 = vmatmul.mubr.bf16.gmra.mrb[0].mxu0 %v6697
      %v6865 = vpop.f32.mrb[0].mxu0
      %v6866 = vadd.f32 0.0, %v6865
      %v6867 = vpop.f32.mrb[0].mxu0
      %v6868 = vpop.f32.mrb[0].mxu0
      %v6869 = vadd.f32 0.0, %v6868
      %v6870 = vpop.f32.mrb[0].mxu0
      %6871 = vmatprep.mubr.bf16.mxu0 0
      %6872 = vmatmul.mubr.bf16.gmra.mrb[0].mxu0 %v6700
      %v6873 = vpop.f32.mrb[0].mxu0
      %v6874 = vadd.f32 0.0, %v6873
      %v6875 = vpop.f32.mrb[0].mxu0
      %v6876 = vpop.f32.mrb[0].mxu0
      %v6877 = vadd.f32 0.0, %v6876
      %v6878 = vpop.f32.mrb[0].mxu0
      %6879 = vmatprep.mubr.bf16.mxu0 0
      %6880 = vmatmul.mubr.bf16.gmra.mrb[0].mxu0 %v6703
      %v6881 = vpop.f32.mrb[0].mxu0
      %v6882 = vadd.f32 0.0, %v6881
      %v6883 = vpop.f32.mrb[0].mxu0
      %v6884 = vpop.f32.mrb[0].mxu0
      %v6885 = vadd.f32 0.0, %v6884
      %v6886 = vpop.f32.mrb[0].mxu0
      %6887 = vmatprep.mubr.bf16.mxu0 0
      %6888 = vmatmul.mubr.bf16.gmra.mrb[0].mxu0 %v6706
      %v6889 = vpop.f32.mrb[0].mxu0
      %v6890 = vadd.f32 0.0, %v6889
      %v6891 = vpop.f32.mrb[0].mxu0
      %v6892 = vpop.f32.mrb[0].mxu0
      %v6893 = vadd.f32 0.0, %v6892
      %v6894 = vpop.f32.mrb[0].mxu0
      %6895 = vmatprep.mubr.bf16.mxu0 0
      %6896 = vmatmul.mubr.bf16.gmra.mrb[0].mxu0 %v6709
      %v6897 = vpop.f32.mrb[0].mxu0
      %v6898 = vadd.f32 0.0, %v6897
      %v6899 = vpop.f32.mrb[0].mxu0
      %v6900 = vpop.f32.mrb[0].mxu0
      %v6901 = vadd.f32 0.0, %v6900
      %v6902 = vpop.f32.mrb[0].mxu0
      %6903 = vdwg.mxu0
      %v6904 = vadd.f32 %v6582, %v6746
      %v6905 = vadd.f32 %v6583, %v6749
      %v6906 = vadd.f32 %v6584, %v6754
      %v6907 = vadd.f32 %v6585, %v6757
      %v6908 = vadd.f32 %v6586, %v6762
      %v6909 = vadd.f32 %v6587, %v6765
      %v6910 = vadd.f32 %v6588, %v6770
      %v6911 = vadd.f32 %v6589, %v6773
      %v6912 = vadd.f32 %v6590, %v6778
      %v6913 = vadd.f32 %v6591, %v6781
      %v6914 = vadd.f32 %v6592, %v6786
      %v6915 = vadd.f32 %v6593, %v6789
      %v6916 = vadd.f32 %v6594, %v6794
      %v6917 = vadd.f32 %v6595, %v6797
      %v6918 = vadd.f32 %v6596, %v6802
      %v6919 = vadd.f32 %v6597, %v6805
      %v6920 = vadd.f32 %v6598, %v6810
      %v6921 = vadd.f32 %v6599, %v6813
      %v6922 = vadd.f32 %v6600, %v6818
      %v6923 = vadd.f32 %v6601, %v6821
      %v6924 = vadd.f32 %v6602, %v6826
      %v6925 = vadd.f32 %v6603, %v6829
      %v6926 = vadd.f32 %v6604, %v6834
      %v6927 = vadd.f32 %v6605, %v6837
      %v6928 = vadd.f32 %v6606, %v6842
      %v6929 = vadd.f32 %v6607, %v6845
      %v6930 = vadd.f32 %v6608, %v6850
      %v6931 = vadd.f32 %v6609, %v6853
      %v6932 = vadd.f32 %v6610, %v6858
      %v6933 = vadd.f32 %v6611, %v6861
      %v6934 = vadd.f32 %v6612, %v6866
      %v6935 = vadd.f32 %v6613, %v6869
      %v6936 = vadd.f32 %v6614, %v6874
      %v6937 = vadd.f32 %v6615, %v6877
      %v6938 = vadd.f32 %v6616, %v6882
      %v6939 = vadd.f32 %v6617, %v6885
      %v6940 = vadd.f32 %v6618, %v6890
      %v6941 = vadd.f32 %v6619, %v6893
      %v6942 = vadd.f32 %v6620, %v6898
      %v6943 = vadd.f32 %v6621, %v6901
      %s6944 = scalar_lea.vmem %s5, 56
      %v6945 = vld [vmem:[%s6944] sm:$0xf]
      %v6946 = vld [vmem:[%s6944 + $0x4] sm:$0xf]
      %v6947 = vshrl.u32 %v6622, 16
      %v6949 = vshll.u32 %v6622, 16
      %v6951 = vrot.slane %v6949, 1
      %v6952 = vor.u32 %v6947, %v6951
      %v6953 = vshll.u32 %v6623, 16
      %v6955 = vrot.slane %v6953, 1
      %v6956 = vsel %vm433, %v6952, %v6955
      %v6957 = vshrl.u32 %v6623, 16
      %v6959 = vor.u32 %v6957, %v6955
      %v6960 = vshll.u32 %v6624, 16
      %v6962 = vrot.slane %v6960, 1
      %v6963 = vsel %vm433, %v6959, %v6962
      %v6964 = vshrl.u32 %v6624, 16
      %v6966 = vor.u32 %v6964, %v6962
      %v6967 = vshll.u32 %v6625, 16
      %v6969 = vrot.slane %v6967, 1
      %v6970 = vsel %vm433, %v6966, %v6969
      %v6971 = vshrl.u32 %v6625, 16
      %v6973 = vor.u32 %v6971, %v6969
      %v6974 = vshll.u32 %v6626, 16
      %v6976 = vrot.slane %v6974, 1
      %v6977 = vsel %vm433, %v6973, %v6976
      %v6978 = vshrl.u32 %v6626, 16
      %v6980 = vor.u32 %v6978, %v6976
      %v6981 = vshll.u32 %v6627, 16
      %v6983 = vrot.slane %v6981, 1
      %v6984 = vsel %vm433, %v6980, %v6983
      %v6985 = vshrl.u32 %v6627, 16
      %v6987 = vor.u32 %v6985, %v6983
      %v6988 = vshll.u32 %v6628, 16
      %v6990 = vrot.slane %v6988, 1
      %v6991 = vsel %vm433, %v6987, %v6990
      %v6992 = vshrl.u32 %v6628, 16
      %v6994 = vor.u32 %v6992, %v6990
      %v6995 = vshll.u32 %v6629, 16
      %v6997 = vrot.slane %v6995, 1
      %v6998 = vsel %vm433, %v6994, %v6997
      %v6999 = vshrl.u32 %v6629, 16
      %v7001 = vor.u32 %v6999, %v6997
      %v7002 = vshll.u32 %v6630, 16
      %v7004 = vrot.slane %v7002, 1
      %v7005 = vsel %vm433, %v7001, %v7004
      %v7006 = vshrl.u32 %v6630, 16
      %v7008 = vor.u32 %v7006, %v7004
      %v7009 = vshll.u32 %v6631, 16
      %v7011 = vrot.slane %v7009, 1
      %v7012 = vsel %vm433, %v7008, %v7011
      %v7013 = vshrl.u32 %v6631, 16
      %v7015 = vor.u32 %v7013, %v7011
      %v7016 = vshll.u32 %v6632, 16
      %v7018 = vrot.slane %v7016, 1
      %v7019 = vsel %vm433, %v7015, %v7018
      %v7020 = vshrl.u32 %v6632, 16
      %v7022 = vor.u32 %v7020, %v7018
      %v7023 = vshll.u32 %v6633, 16
      %v7025 = vrot.slane %v7023, 1
      %v7026 = vsel %vm433, %v7022, %v7025
      %v7027 = vshrl.u32 %v6633, 16
      %v7029 = vor.u32 %v7027, %v7025
      %v7030 = vshll.u32 %v6634, 16
      %v7032 = vrot.slane %v7030, 1
      %v7033 = vsel %vm433, %v7029, %v7032
      %v7034 = vshrl.u32 %v6634, 16
      %v7036 = vor.u32 %v7034, %v7032
      %v7037 = vshll.u32 %v6635, 16
      %v7039 = vrot.slane %v7037, 1
      %v7040 = vsel %vm433, %v7036, %v7039
      %v7041 = vshrl.u32 %v6635, 16
      %v7043 = vor.u32 %v7041, %v7039
      %v7044 = vshll.u32 %v6636, 16
      %v7046 = vrot.slane %v7044, 1
      %v7047 = vsel %vm433, %v7043, %v7046
      %v7048 = vshrl.u32 %v6636, 16
      %v7050 = vor.u32 %v7048, %v7046
      %v7051 = vshll.u32 %v6637, 16
      %v7053 = vrot.slane %v7051, 1
      %v7054 = vsel %vm433, %v7050, %v7053
      %v7055 = vshrl.u32 %v6637, 16
      %v7057 = vor.u32 %v7055, %v7053
      %v7058 = vshll.u32 %v6638, 16
      %v7060 = vrot.slane %v7058, 1
      %v7061 = vsel %vm433, %v7057, %v7060
      %v7062 = vshrl.u32 %v6638, 16
      %v7064 = vor.u32 %v7062, %v7060
      %v7065 = vshll.u32 %v6639, 16
      %v7067 = vrot.slane %v7065, 1
      %v7068 = vsel %vm433, %v7064, %v7067
      %v7069 = vshrl.u32 %v6639, 16
      %v7071 = vor.u32 %v7069, %v7067
      %v7072 = vshll.u32 %v6640, 16
      %v7074 = vrot.slane %v7072, 1
      %v7075 = vsel %vm433, %v7071, %v7074
      %v7076 = vshrl.u32 %v6640, 16
      %v7078 = vor.u32 %v7076, %v7074
      %v7079 = vshll.u32 %v6641, 16
      %v7081 = vrot.slane %v7079, 1
      %v7082 = vsel %vm433, %v7078, %v7081
      %v7083 = vshrl.u32 %v6641, 16
      %v7085 = vor.u32 %v7083, %v7081
      %v7088 = vunpack.c.l.b16 %v6945
      %v7089 = vunpack.c.l.b16 %v6946
      %v7090 = vpack.c.b16 %v7089, %v7088
      %v7093 = vsel %vm4689, %v6956, 0
      %v7096 = vsel %vm4689, %v6963, 0
      %v7099 = vsel %vm4689, %v6970, 0
      %v7102 = vsel %vm4689, %v6977, 0
      %v7105 = vsel %vm4689, %v6984, 0
      %v7108 = vsel %vm4689, %v6991, 0
      %v7111 = vsel %vm4689, %v6998, 0
      %v7114 = vsel %vm4689, %v7005, 0
      %v7117 = vsel %vm4689, %v7012, 0
      %v7120 = vsel %vm4689, %v7019, 0
      %v7123 = vsel %vm4689, %v7026, 0
      %v7126 = vsel %vm4689, %v7033, 0
      %v7129 = vsel %vm4689, %v7040, 0
      %v7132 = vsel %vm4689, %v7047, 0
      %v7135 = vsel %vm4689, %v7054, 0
      %v7138 = vsel %vm4689, %v7061, 0
      %v7141 = vsel %vm4689, %v7068, 0
      %v7144 = vsel %vm4689, %v7075, 0
      %v7147 = vsel %vm4689, %v7082, 0
      %v7150 = vsel %vm4689, %v7085, 0
      %7152 = vmatprep.subr.bf16.mxu0 0
      %7153 = vmatpush1.bf16.msra.mxu0 %v7090
      %7154 = vmatprep.subr.bf16.mxu0 0
      %7155 = vmatpush1.bf16.msra.mxu0 0
      %7156 = vmatprep.subr.bf16.mxu0 0
      %7157 = vmatpush1.bf16.msra.mxu0 0
      %7158 = vmatprep.subr.bf16.mxu0 0
      %7159 = vmatpush1.bf16.msra.mxu0 0
      %7160 = vmatprep.subr.bf16.mxu0 0
      %7161 = vmatpush1.bf16.msra.mxu0 0
      %7162 = vmatprep.subr.bf16.mxu0 0
      %7163 = vmatpush1.bf16.msra.mxu0 0
      %7164 = vmatprep.subr.bf16.mxu0 0
      %7165 = vmatpush1.bf16.msra.mxu0 0
      %7166 = vmatprep.subr.bf16.mxu0 0
      %7167 = vmatpush1.bf16.msra.mxu0 0
      %7168 = vmatprep.subr.bf16.mxu0 0
      %7169 = vmatpush1.bf16.msra.mxu0 0
      %7170 = vmatprep.subr.bf16.mxu0 0
      %7171 = vmatpush1.bf16.msra.mxu0 0
      %7172 = vmatprep.subr.bf16.mxu0 0
      %7173 = vmatpush1.bf16.msra.mxu0 0
      %7174 = vmatprep.subr.bf16.mxu0 0
      %7175 = vmatpush1.bf16.msra.mxu0 0
      %7176 = vmatprep.subr.bf16.mxu0 0
      %7177 = vmatpush1.bf16.msra.mxu0 0
      %7178 = vmatprep.subr.bf16.mxu0 0
      %7179 = vmatpush1.bf16.msra.mxu0 0
      %7180 = vmatprep.subr.bf16.mxu0 0
      %7181 = vmatpush1.bf16.msra.mxu0 0
      %7182 = vmatprep.subr.bf16.mxu0 0
      %7183 = vmatpush1.bf16.msra.mxu0 0
      %7184 = vmatprep.mubr.bf16.mxu0 0
      %7185 = vmatmul.mubr.bf16.gmra.mrb[0].mxu0 %v7093
      %v7186 = vpop.f32.mrb[0].mxu0
      %v7187 = vadd.f32 0.0, %v7186
      %v7188 = vpop.f32.mrb[0].mxu0
      %v7189 = vpop.f32.mrb[0].mxu0
      %v7190 = vadd.f32 0.0, %v7189
      %v7191 = vpop.f32.mrb[0].mxu0
      %7192 = vmatprep.mubr.bf16.mxu0 0
      %7193 = vmatmul.mubr.bf16.gmra.mrb[0].mxu0 %v7096
      %v7194 = vpop.f32.mrb[0].mxu0
      %v7195 = vadd.f32 0.0, %v7194
      %v7196 = vpop.f32.mrb[0].mxu0
      %v7197 = vpop.f32.mrb[0].mxu0
      %v7198 = vadd.f32 0.0, %v7197
      %v7199 = vpop.f32.mrb[0].mxu0
      %7200 = vmatprep.mubr.bf16.mxu0 0
      %7201 = vmatmul.mubr.bf16.gmra.mrb[0].mxu0 %v7099
      %v7202 = vpop.f32.mrb[0].mxu0
      %v7203 = vadd.f32 0.0, %v7202
      %v7204 = vpop.f32.mrb[0].mxu0
      %v7205 = vpop.f32.mrb[0].mxu0
      %v7206 = vadd.f32 0.0, %v7205
      %v7207 = vpop.f32.mrb[0].mxu0
      %7208 = vmatprep.mubr.bf16.mxu0 0
      %7209 = vmatmul.mubr.bf16.gmra.mrb[0].mxu0 %v7102
      %v7210 = vpop.f32.mrb[0].mxu0
      %v7211 = vadd.f32 0.0, %v7210
      %v7212 = vpop.f32.mrb[0].mxu0
      %v7213 = vpop.f32.mrb[0].mxu0
      %v7214 = vadd.f32 0.0, %v7213
      %v7215 = vpop.f32.mrb[0].mxu0
      %7216 = vmatprep.mubr.bf16.mxu0 0
      %7217 = vmatmul.mubr.bf16.gmra.mrb[0].mxu0 %v7105
      %v7218 = vpop.f32.mrb[0].mxu0
      %v7219 = vadd.f32 0.0, %v7218
      %v7220 = vpop.f32.mrb[0].mxu0
      %v7221 = vpop.f32.mrb[0].mxu0
      %v7222 = vadd.f32 0.0, %v7221
      %v7223 = vpop.f32.mrb[0].mxu0
      %7224 = vmatprep.mubr.bf16.mxu0 0
      %7225 = vmatmul.mubr.bf16.gmra.mrb[0].mxu0 %v7108
      %v7226 = vpop.f32.mrb[0].mxu0
      %v7227 = vadd.f32 0.0, %v7226
      %v7228 = vpop.f32.mrb[0].mxu0
      %v7229 = vpop.f32.mrb[0].mxu0
      %v7230 = vadd.f32 0.0, %v7229
      %v7231 = vpop.f32.mrb[0].mxu0
      %7232 = vmatprep.mubr.bf16.mxu0 0
      %7233 = vmatmul.mubr.bf16.gmra.mrb[0].mxu0 %v7111
      %v7234 = vpop.f32.mrb[0].mxu0
      %v7235 = vadd.f32 0.0, %v7234
      %v7236 = vpop.f32.mrb[0].mxu0
      %v7237 = vpop.f32.mrb[0].mxu0
      %v7238 = vadd.f32 0.0, %v7237
      %v7239 = vpop.f32.mrb[0].mxu0
      %7240 = vmatprep.mubr.bf16.mxu0 0
      %7241 = vmatmul.mubr.bf16.gmra.mrb[0].mxu0 %v7114
      %v7242 = vpop.f32.mrb[0].mxu0
      %v7243 = vadd.f32 0.0, %v7242
      %v7244 = vpop.f32.mrb[0].mxu0
      %v7245 = vpop.f32.mrb[0].mxu0
      %v7246 = vadd.f32 0.0, %v7245
      %v7247 = vpop.f32.mrb[0].mxu0
      %7248 = vmatprep.mubr.bf16.mxu0 0
      %7249 = vmatmul.mubr.bf16.gmra.mrb[0].mxu0 %v7117
      %v7250 = vpop.f32.mrb[0].mxu0
      %v7251 = vadd.f32 0.0, %v7250
      %v7252 = vpop.f32.mrb[0].mxu0
      %v7253 = vpop.f32.mrb[0].mxu0
      %v7254 = vadd.f32 0.0, %v7253
      %v7255 = vpop.f32.mrb[0].mxu0
      %7256 = vmatprep.mubr.bf16.mxu0 0
      %7257 = vmatmul.mubr.bf16.gmra.mrb[0].mxu0 %v7120
      %v7258 = vpop.f32.mrb[0].mxu0
      %v7259 = vadd.f32 0.0, %v7258
      %v7260 = vpop.f32.mrb[0].mxu0
      %v7261 = vpop.f32.mrb[0].mxu0
      %v7262 = vadd.f32 0.0, %v7261
      %v7263 = vpop.f32.mrb[0].mxu0
      %7264 = vmatprep.mubr.bf16.mxu0 0
      %7265 = vmatmul.mubr.bf16.gmra.mrb[0].mxu0 %v7123
      %v7266 = vpop.f32.mrb[0].mxu0
      %v7267 = vadd.f32 0.0, %v7266
      %v7268 = vpop.f32.mrb[0].mxu0
      %v7269 = vpop.f32.mrb[0].mxu0
      %v7270 = vadd.f32 0.0, %v7269
      %v7271 = vpop.f32.mrb[0].mxu0
      %7272 = vmatprep.mubr.bf16.mxu0 0
      %7273 = vmatmul.mubr.bf16.gmra.mrb[0].mxu0 %v7126
      %v7274 = vpop.f32.mrb[0].mxu0
      %v7275 = vadd.f32 0.0, %v7274
      %v7276 = vpop.f32.mrb[0].mxu0
      %v7277 = vpop.f32.mrb[0].mxu0
      %v7278 = vadd.f32 0.0, %v7277
      %v7279 = vpop.f32.mrb[0].mxu0
      %7280 = vmatprep.mubr.bf16.mxu0 0
      %7281 = vmatmul.mubr.bf16.gmra.mrb[0].mxu0 %v7129
      %v7282 = vpop.f32.mrb[0].mxu0
      %v7283 = vadd.f32 0.0, %v7282
      %v7284 = vpop.f32.mrb[0].mxu0
      %v7285 = vpop.f32.mrb[0].mxu0
      %v7286 = vadd.f32 0.0, %v7285
      %v7287 = vpop.f32.mrb[0].mxu0
      %7288 = vmatprep.mubr.bf16.mxu0 0
      %7289 = vmatmul.mubr.bf16.gmra.mrb[0].mxu0 %v7132
      %v7290 = vpop.f32.mrb[0].mxu0
      %v7291 = vadd.f32 0.0, %v7290
      %v7292 = vpop.f32.mrb[0].mxu0
      %v7293 = vpop.f32.mrb[0].mxu0
      %v7294 = vadd.f32 0.0, %v7293
      %v7295 = vpop.f32.mrb[0].mxu0
      %7296 = vmatprep.mubr.bf16.mxu0 0
      %7297 = vmatmul.mubr.bf16.gmra.mrb[0].mxu0 %v7135
      %v7298 = vpop.f32.mrb[0].mxu0
      %v7299 = vadd.f32 0.0, %v7298
      %v7300 = vpop.f32.mrb[0].mxu0
      %v7301 = vpop.f32.mrb[0].mxu0
      %v7302 = vadd.f32 0.0, %v7301
      %v7303 = vpop.f32.mrb[0].mxu0
      %7304 = vmatprep.mubr.bf16.mxu0 0
      %7305 = vmatmul.mubr.bf16.gmra.mrb[0].mxu0 %v7138
      %v7306 = vpop.f32.mrb[0].mxu0
      %v7307 = vadd.f32 0.0, %v7306
      %v7308 = vpop.f32.mrb[0].mxu0
      %v7309 = vpop.f32.mrb[0].mxu0
      %v7310 = vadd.f32 0.0, %v7309
      %v7311 = vpop.f32.mrb[0].mxu0
      %7312 = vmatprep.mubr.bf16.mxu0 0
      %7313 = vmatmul.mubr.bf16.gmra.mrb[0].mxu0 %v7141
      %v7314 = vpop.f32.mrb[0].mxu0
      %v7315 = vadd.f32 0.0, %v7314
      %v7316 = vpop.f32.mrb[0].mxu0
      %v7317 = vpop.f32.mrb[0].mxu0
      %v7318 = vadd.f32 0.0, %v7317
      %v7319 = vpop.f32.mrb[0].mxu0
      %7320 = vmatprep.mubr.bf16.mxu0 0
      %7321 = vmatmul.mubr.bf16.gmra.mrb[0].mxu0 %v7144
      %v7322 = vpop.f32.mrb[0].mxu0
      %v7323 = vadd.f32 0.0, %v7322
      %v7324 = vpop.f32.mrb[0].mxu0
      %v7325 = vpop.f32.mrb[0].mxu0
      %v7326 = vadd.f32 0.0, %v7325
      %v7327 = vpop.f32.mrb[0].mxu0
      %7328 = vmatprep.mubr.bf16.mxu0 0
      %7329 = vmatmul.mubr.bf16.gmra.mrb[0].mxu0 %v7147
      %v7330 = vpop.f32.mrb[0].mxu0
      %v7331 = vadd.f32 0.0, %v7330
      %v7332 = vpop.f32.mrb[0].mxu0
      %v7333 = vpop.f32.mrb[0].mxu0
      %v7334 = vadd.f32 0.0, %v7333
      %v7335 = vpop.f32.mrb[0].mxu0
      %7336 = vmatprep.mubr.bf16.mxu0 0
      %7337 = vmatmul.mubr.bf16.gmra.mrb[0].mxu0 %v7150
      %v7338 = vpop.f32.mrb[0].mxu0
      %v7339 = vadd.f32 0.0, %v7338
      %v7340 = vpop.f32.mrb[0].mxu0
      %v7341 = vpop.f32.mrb[0].mxu0
      %v7342 = vadd.f32 0.0, %v7341
      %v7343 = vpop.f32.mrb[0].mxu0
      %7344 = vdwg.mxu0
      %v7345 = vadd.f32 %v6904, %v7187
      %v7346 = vadd.f32 %v6905, %v7190
      %v7347 = vadd.f32 %v6906, %v7195
      %v7348 = vadd.f32 %v6907, %v7198
      %v7349 = vadd.f32 %v6908, %v7203
      %v7350 = vadd.f32 %v6909, %v7206
      %v7351 = vadd.f32 %v6910, %v7211
      %v7352 = vadd.f32 %v6911, %v7214
      %v7353 = vadd.f32 %v6912, %v7219
      %v7354 = vadd.f32 %v6913, %v7222
      %v7355 = vadd.f32 %v6914, %v7227
      %v7356 = vadd.f32 %v6915, %v7230
      %v7357 = vadd.f32 %v6916, %v7235
      %v7358 = vadd.f32 %v6917, %v7238
      %v7359 = vadd.f32 %v6918, %v7243
      %v7360 = vadd.f32 %v6919, %v7246
      %v7361 = vadd.f32 %v6920, %v7251
      %v7362 = vadd.f32 %v6921, %v7254
      %v7363 = vadd.f32 %v6922, %v7259
      %v7364 = vadd.f32 %v6923, %v7262
      %v7365 = vadd.f32 %v6924, %v7267
      %v7366 = vadd.f32 %v6925, %v7270
      %v7367 = vadd.f32 %v6926, %v7275
      %v7368 = vadd.f32 %v6927, %v7278
      %v7369 = vadd.f32 %v6928, %v7283
      %v7370 = vadd.f32 %v6929, %v7286
      %v7371 = vadd.f32 %v6930, %v7291
      %v7372 = vadd.f32 %v6931, %v7294
      %v7373 = vadd.f32 %v6932, %v7299
      %v7374 = vadd.f32 %v6933, %v7302
      %v7375 = vadd.f32 %v6934, %v7307
      %v7376 = vadd.f32 %v6935, %v7310
      %v7377 = vadd.f32 %v6936, %v7315
      %v7378 = vadd.f32 %v6937, %v7318
      %v7379 = vadd.f32 %v6938, %v7323
      %v7380 = vadd.f32 %v6939, %v7326
      %v7381 = vadd.f32 %v6940, %v7331
      %v7382 = vadd.f32 %v6941, %v7334
      %v7383 = vadd.f32 %v6942, %v7339
      %v7384 = vadd.f32 %v6943, %v7342
      %s7385 = scalar_lea.vmem %s5, 64
      %v7386 = vld [vmem:[%s7385] sm:$0xf]
      %v7387 = vld [vmem:[%s7385 + $0x4] sm:$0xf]
      %v7408 = vrot.slane %v6622, 1
      %v7409 = vrot.slane %v6623, 1
      %v7410 = vsel %vm1197, %v7408, %v7409
      %v7411 = vrot.slane %v6624, 1
      %v7412 = vsel %vm1197, %v7409, %v7411
      %v7413 = vrot.slane %v6625, 1
      %v7414 = vsel %vm1197, %v7411, %v7413
      %v7415 = vrot.slane %v6626, 1
      %v7416 = vsel %vm1197, %v7413, %v7415
      %v7417 = vrot.slane %v6627, 1
      %v7418 = vsel %vm1197, %v7415, %v7417
      %v7419 = vrot.slane %v6628, 1
      %v7420 = vsel %vm1197, %v7417, %v7419
      %v7421 = vrot.slane %v6629, 1
      %v7422 = vsel %vm1197, %v7419, %v7421
      %v7423 = vrot.slane %v6630, 1
      %v7424 = vsel %vm1197, %v7421, %v7423
      %v7425 = vrot.slane %v6631, 1
      %v7426 = vsel %vm1197, %v7423, %v7425
      %v7427 = vrot.slane %v6632, 1
      %v7428 = vsel %vm1197, %v7425, %v7427
      %v7429 = vrot.slane %v6633, 1
      %v7430 = vsel %vm1197, %v7427, %v7429
      %v7431 = vrot.slane %v6634, 1
      %v7432 = vsel %vm1197, %v7429, %v7431
      %v7433 = vrot.slane %v6635, 1
      %v7434 = vsel %vm1197, %v7431, %v7433
      %v7435 = vrot.slane %v6636, 1
      %v7436 = vsel %vm1197, %v7433, %v7435
      %v7437 = vrot.slane %v6637, 1
      %v7438 = vsel %vm1197, %v7435, %v7437
      %v7439 = vrot.slane %v6638, 1
      %v7440 = vsel %vm1197, %v7437, %v7439
      %v7441 = vrot.slane %v6639, 1
      %v7442 = vsel %vm1197, %v7439, %v7441
      %v7443 = vrot.slane %v6640, 1
      %v7444 = vsel %vm1197, %v7441, %v7443
      %v7445 = vrot.slane %v6641, 1
      %v7446 = vsel %vm1197, %v7443, %v7445
      %v7449 = vunpack.c.l.b16 %v7386
      %v7450 = vunpack.c.l.b16 %v7387
      %v7451 = vpack.c.b16 %v7450, %v7449
      %v7454 = vsel %vm4689, %v7410, 0
      %v7457 = vsel %vm4689, %v7412, 0
      %v7460 = vsel %vm4689, %v7414, 0
      %v7463 = vsel %vm4689, %v7416, 0
      %v7466 = vsel %vm4689, %v7418, 0
      %v7469 = vsel %vm4689, %v7420, 0
      %v7472 = vsel %vm4689, %v7422, 0
      %v7475 = vsel %vm4689, %v7424, 0
      %v7478 = vsel %vm4689, %v7426, 0
      %v7481 = vsel %vm4689, %v7428, 0
      %v7484 = vsel %vm4689, %v7430, 0
      %v7487 = vsel %vm4689, %v7432, 0
      %v7490 = vsel %vm4689, %v7434, 0
      %v7493 = vsel %vm4689, %v7436, 0
      %v7496 = vsel %vm4689, %v7438, 0
      %v7499 = vsel %vm4689, %v7440, 0
      %v7502 = vsel %vm4689, %v7442, 0
      %v7505 = vsel %vm4689, %v7444, 0
      %v7508 = vsel %vm4689, %v7446, 0
      %v7511 = vsel %vm4689, %v7445, 0
      %7513 = vmatprep.subr.bf16.mxu0 0
      %7514 = vmatpush1.bf16.msra.mxu0 %v7451
      %7515 = vmatprep.subr.bf16.mxu0 0
      %7516 = vmatpush1.bf16.msra.mxu0 0
      %7517 = vmatprep.subr.bf16.mxu0 0
      %7518 = vmatpush1.bf16.msra.mxu0 0
      %7519 = vmatprep.subr.bf16.mxu0 0
      %7520 = vmatpush1.bf16.msra.mxu0 0
      %7521 = vmatprep.subr.bf16.mxu0 0
      %7522 = vmatpush1.bf16.msra.mxu0 0
      %7523 = vmatprep.subr.bf16.mxu0 0
      %7524 = vmatpush1.bf16.msra.mxu0 0
      %7525 = vmatprep.subr.bf16.mxu0 0
      %7526 = vmatpush1.bf16.msra.mxu0 0
      %7527 = vmatprep.subr.bf16.mxu0 0
      %7528 = vmatpush1.bf16.msra.mxu0 0
      %7529 = vmatprep.subr.bf16.mxu0 0
      %7530 = vmatpush1.bf16.msra.mxu0 0
      %7531 = vmatprep.subr.bf16.mxu0 0
      %7532 = vmatpush1.bf16.msra.mxu0 0
      %7533 = vmatprep.subr.bf16.mxu0 0
      %7534 = vmatpush1.bf16.msra.mxu0 0
      %7535 = vmatprep.subr.bf16.mxu0 0
      %7536 = vmatpush1.bf16.msra.mxu0 0
      %7537 = vmatprep.subr.bf16.mxu0 0
      %7538 = vmatpush1.bf16.msra.mxu0 0
      %7539 = vmatprep.subr.bf16.mxu0 0
      %7540 = vmatpush1.bf16.msra.mxu0 0
      %7541 = vmatprep.subr.bf16.mxu0 0
      %7542 = vmatpush1.bf16.msra.mxu0 0
      %7543 = vmatprep.subr.bf16.mxu0 0
      %7544 = vmatpush1.bf16.msra.mxu0 0
      %7545 = vmatprep.mubr.bf16.mxu0 0
      %7546 = vmatmul.mubr.bf16.gmra.mrb[0].mxu0 %v7454
      %v7547 = vpop.f32.mrb[0].mxu0
      %v7548 = vadd.f32 0.0, %v7547
      %v7549 = vpop.f32.mrb[0].mxu0
      %v7550 = vpop.f32.mrb[0].mxu0
      %v7551 = vadd.f32 0.0, %v7550
      %v7552 = vpop.f32.mrb[0].mxu0
      %7553 = vmatprep.mubr.bf16.mxu0 0
      %7554 = vmatmul.mubr.bf16.gmra.mrb[0].mxu0 %v7457
      %v7555 = vpop.f32.mrb[0].mxu0
      %v7556 = vadd.f32 0.0, %v7555
      %v7557 = vpop.f32.mrb[0].mxu0
      %v7558 = vpop.f32.mrb[0].mxu0
      %v7559 = vadd.f32 0.0, %v7558
      %v7560 = vpop.f32.mrb[0].mxu0
      %7561 = vmatprep.mubr.bf16.mxu0 0
      %7562 = vmatmul.mubr.bf16.gmra.mrb[0].mxu0 %v7460
      %v7563 = vpop.f32.mrb[0].mxu0
      %v7564 = vadd.f32 0.0, %v7563
      %v7565 = vpop.f32.mrb[0].mxu0
      %v7566 = vpop.f32.mrb[0].mxu0
      %v7567 = vadd.f32 0.0, %v7566
      %v7568 = vpop.f32.mrb[0].mxu0
      %7569 = vmatprep.mubr.bf16.mxu0 0
      %7570 = vmatmul.mubr.bf16.gmra.mrb[0].mxu0 %v7463
      %v7571 = vpop.f32.mrb[0].mxu0
      %v7572 = vadd.f32 0.0, %v7571
      %v7573 = vpop.f32.mrb[0].mxu0
      %v7574 = vpop.f32.mrb[0].mxu0
      %v7575 = vadd.f32 0.0, %v7574
      %v7576 = vpop.f32.mrb[0].mxu0
      %7577 = vmatprep.mubr.bf16.mxu0 0
      %7578 = vmatmul.mubr.bf16.gmra.mrb[0].mxu0 %v7466
      %v7579 = vpop.f32.mrb[0].mxu0
      %v7580 = vadd.f32 0.0, %v7579
      %v7581 = vpop.f32.mrb[0].mxu0
      %v7582 = vpop.f32.mrb[0].mxu0
      %v7583 = vadd.f32 0.0, %v7582
      %v7584 = vpop.f32.mrb[0].mxu0
      %7585 = vmatprep.mubr.bf16.mxu0 0
      %7586 = vmatmul.mubr.bf16.gmra.mrb[0].mxu0 %v7469
      %v7587 = vpop.f32.mrb[0].mxu0
      %v7588 = vadd.f32 0.0, %v7587
      %v7589 = vpop.f32.mrb[0].mxu0
      %v7590 = vpop.f32.mrb[0].mxu0
      %v7591 = vadd.f32 0.0, %v7590
      %v7592 = vpop.f32.mrb[0].mxu0
      %7593 = vmatprep.mubr.bf16.mxu0 0
      %7594 = vmatmul.mubr.bf16.gmra.mrb[0].mxu0 %v7472
      %v7595 = vpop.f32.mrb[0].mxu0
      %v7596 = vadd.f32 0.0, %v7595
      %v7597 = vpop.f32.mrb[0].mxu0
      %v7598 = vpop.f32.mrb[0].mxu0
      %v7599 = vadd.f32 0.0, %v7598
      %v7600 = vpop.f32.mrb[0].mxu0
      %7601 = vmatprep.mubr.bf16.mxu0 0
      %7602 = vmatmul.mubr.bf16.gmra.mrb[0].mxu0 %v7475
      %v7603 = vpop.f32.mrb[0].mxu0
      %v7604 = vadd.f32 0.0, %v7603
      %v7605 = vpop.f32.mrb[0].mxu0
      %v7606 = vpop.f32.mrb[0].mxu0
      %v7607 = vadd.f32 0.0, %v7606
      %v7608 = vpop.f32.mrb[0].mxu0
      %7609 = vmatprep.mubr.bf16.mxu0 0
      %7610 = vmatmul.mubr.bf16.gmra.mrb[0].mxu0 %v7478
      %v7611 = vpop.f32.mrb[0].mxu0
      %v7612 = vadd.f32 0.0, %v7611
      %v7613 = vpop.f32.mrb[0].mxu0
      %v7614 = vpop.f32.mrb[0].mxu0
      %v7615 = vadd.f32 0.0, %v7614
      %v7616 = vpop.f32.mrb[0].mxu0
      %7617 = vmatprep.mubr.bf16.mxu0 0
      %7618 = vmatmul.mubr.bf16.gmra.mrb[0].mxu0 %v7481
      %v7619 = vpop.f32.mrb[0].mxu0
      %v7620 = vadd.f32 0.0, %v7619
      %v7621 = vpop.f32.mrb[0].mxu0
      %v7622 = vpop.f32.mrb[0].mxu0
      %v7623 = vadd.f32 0.0, %v7622
      %v7624 = vpop.f32.mrb[0].mxu0
      %7625 = vmatprep.mubr.bf16.mxu0 0
      %7626 = vmatmul.mubr.bf16.gmra.mrb[0].mxu0 %v7484
      %v7627 = vpop.f32.mrb[0].mxu0
      %v7628 = vadd.f32 0.0, %v7627
      %v7629 = vpop.f32.mrb[0].mxu0
      %v7630 = vpop.f32.mrb[0].mxu0
      %v7631 = vadd.f32 0.0, %v7630
      %v7632 = vpop.f32.mrb[0].mxu0
      %7633 = vmatprep.mubr.bf16.mxu0 0
      %7634 = vmatmul.mubr.bf16.gmra.mrb[0].mxu0 %v7487
      %v7635 = vpop.f32.mrb[0].mxu0
      %v7636 = vadd.f32 0.0, %v7635
      %v7637 = vpop.f32.mrb[0].mxu0
      %v7638 = vpop.f32.mrb[0].mxu0
      %v7639 = vadd.f32 0.0, %v7638
      %v7640 = vpop.f32.mrb[0].mxu0
      %7641 = vmatprep.mubr.bf16.mxu0 0
      %7642 = vmatmul.mubr.bf16.gmra.mrb[0].mxu0 %v7490
      %v7643 = vpop.f32.mrb[0].mxu0
      %v7644 = vadd.f32 0.0, %v7643
      %v7645 = vpop.f32.mrb[0].mxu0
      %v7646 = vpop.f32.mrb[0].mxu0
      %v7647 = vadd.f32 0.0, %v7646
      %v7648 = vpop.f32.mrb[0].mxu0
      %7649 = vmatprep.mubr.bf16.mxu0 0
      %7650 = vmatmul.mubr.bf16.gmra.mrb[0].mxu0 %v7493
      %v7651 = vpop.f32.mrb[0].mxu0
      %v7652 = vadd.f32 0.0, %v7651
      %v7653 = vpop.f32.mrb[0].mxu0
      %v7654 = vpop.f32.mrb[0].mxu0
      %v7655 = vadd.f32 0.0, %v7654
      %v7656 = vpop.f32.mrb[0].mxu0
      %7657 = vmatprep.mubr.bf16.mxu0 0
      %7658 = vmatmul.mubr.bf16.gmra.mrb[0].mxu0 %v7496
      %v7659 = vpop.f32.mrb[0].mxu0
      %v7660 = vadd.f32 0.0, %v7659
      %v7661 = vpop.f32.mrb[0].mxu0
      %v7662 = vpop.f32.mrb[0].mxu0
      %v7663 = vadd.f32 0.0, %v7662
      %v7664 = vpop.f32.mrb[0].mxu0
      %7665 = vmatprep.mubr.bf16.mxu0 0
      %7666 = vmatmul.mubr.bf16.gmra.mrb[0].mxu0 %v7499
      %v7667 = vpop.f32.mrb[0].mxu0
      %v7668 = vadd.f32 0.0, %v7667
      %v7669 = vpop.f32.mrb[0].mxu0
      %v7670 = vpop.f32.mrb[0].mxu0
      %v7671 = vadd.f32 0.0, %v7670
      %v7672 = vpop.f32.mrb[0].mxu0
      %7673 = vmatprep.mubr.bf16.mxu0 0
      %7674 = vmatmul.mubr.bf16.gmra.mrb[0].mxu0 %v7502
      %v7675 = vpop.f32.mrb[0].mxu0
      %v7676 = vadd.f32 0.0, %v7675
      %v7677 = vpop.f32.mrb[0].mxu0
      %v7678 = vpop.f32.mrb[0].mxu0
      %v7679 = vadd.f32 0.0, %v7678
      %v7680 = vpop.f32.mrb[0].mxu0
      %7681 = vmatprep.mubr.bf16.mxu0 0
      %7682 = vmatmul.mubr.bf16.gmra.mrb[0].mxu0 %v7505
      %v7683 = vpop.f32.mrb[0].mxu0
      %v7684 = vadd.f32 0.0, %v7683
      %v7685 = vpop.f32.mrb[0].mxu0
      %v7686 = vpop.f32.mrb[0].mxu0
      %v7687 = vadd.f32 0.0, %v7686
      %v7688 = vpop.f32.mrb[0].mxu0
      %7689 = vmatprep.mubr.bf16.mxu0 0
      %7690 = vmatmul.mubr.bf16.gmra.mrb[0].mxu0 %v7508
      %v7691 = vpop.f32.mrb[0].mxu0
      %v7692 = vadd.f32 0.0, %v7691
      %v7693 = vpop.f32.mrb[0].mxu0
      %v7694 = vpop.f32.mrb[0].mxu0
      %v7695 = vadd.f32 0.0, %v7694
      %v7696 = vpop.f32.mrb[0].mxu0
      %7697 = vmatprep.mubr.bf16.mxu0 0
      %7698 = vmatmul.mubr.bf16.gmra.mrb[0].mxu0 %v7511
      %v7699 = vpop.f32.mrb[0].mxu0
      %v7700 = vadd.f32 0.0, %v7699
      %v7701 = vpop.f32.mrb[0].mxu0
      %v7702 = vpop.f32.mrb[0].mxu0
      %v7703 = vadd.f32 0.0, %v7702
      %v7704 = vpop.f32.mrb[0].mxu0
      %7705 = vdwg.mxu0
      %v7706 = vadd.f32 %v7345, %v7548
      %v7707 = vadd.f32 %v7346, %v7551
      %v7708 = vadd.f32 %v7347, %v7556
      %v7709 = vadd.f32 %v7348, %v7559
      %v7710 = vadd.f32 %v7349, %v7564
      %v7711 = vadd.f32 %v7350, %v7567
      %v7712 = vadd.f32 %v7351, %v7572
      %v7713 = vadd.f32 %v7352, %v7575
      %v7714 = vadd.f32 %v7353, %v7580
      %v7715 = vadd.f32 %v7354, %v7583
      %v7716 = vadd.f32 %v7355, %v7588
      %v7717 = vadd.f32 %v7356, %v7591
      %v7718 = vadd.f32 %v7357, %v7596
      %v7719 = vadd.f32 %v7358, %v7599
      %v7720 = vadd.f32 %v7359, %v7604
      %v7721 = vadd.f32 %v7360, %v7607
      %v7722 = vadd.f32 %v7361, %v7612
      %v7723 = vadd.f32 %v7362, %v7615
      %v7724 = vadd.f32 %v7363, %v7620
      %v7725 = vadd.f32 %v7364, %v7623
      %v7726 = vadd.f32 %v7365, %v7628
      %v7727 = vadd.f32 %v7366, %v7631
      %v7728 = vadd.f32 %v7367, %v7636
      %v7729 = vadd.f32 %v7368, %v7639
      %v7730 = vadd.f32 %v7369, %v7644
      %v7731 = vadd.f32 %v7370, %v7647
      %v7732 = vadd.f32 %v7371, %v7652
      %v7733 = vadd.f32 %v7372, %v7655
      %v7734 = vadd.f32 %v7373, %v7660
      %v7735 = vadd.f32 %v7374, %v7663
      %v7736 = vadd.f32 %v7375, %v7668
      %v7737 = vadd.f32 %v7376, %v7671
      %v7738 = vadd.f32 %v7377, %v7676
      %v7739 = vadd.f32 %v7378, %v7679
      %v7740 = vadd.f32 %v7379, %v7684
      %v7741 = vadd.f32 %v7380, %v7687
      %v7742 = vadd.f32 %v7381, %v7692
      %v7743 = vadd.f32 %v7382, %v7695
      %v7744 = vadd.f32 %v7383, %v7700
      %v7745 = vadd.f32 %v7384, %v7703
      %v7746 = vld [vmem:[%s6] sm:$0x1]
      %v7748 = vlaneseq
      %v7749 = vshrl.u32 %v7748, 7
      %v7750 = vsub.s32 0, %v7749
      %v7751 = vrot.slane %v7746, %v7750
      %v7753 = vmul.f32 %v7706, %v7751
      %v7754 = vmul.f32 %v7707, %v7751
      %v7755 = vmul.f32 %v7708, %v7751
      %v7756 = vmul.f32 %v7709, %v7751
      %v7757 = vmul.f32 %v7710, %v7751
      %v7758 = vmul.f32 %v7711, %v7751
      %v7759 = vmul.f32 %v7712, %v7751
      %v7760 = vmul.f32 %v7713, %v7751
      %v7761 = vmul.f32 %v7714, %v7751
      %v7762 = vmul.f32 %v7715, %v7751
      %v7763 = vmul.f32 %v7716, %v7751
      %v7764 = vmul.f32 %v7717, %v7751
      %v7765 = vmul.f32 %v7718, %v7751
      %v7766 = vmul.f32 %v7719, %v7751
      %v7767 = vmul.f32 %v7720, %v7751
      %v7768 = vmul.f32 %v7721, %v7751
      %v7769 = vmul.f32 %v7722, %v7751
      %v7770 = vmul.f32 %v7723, %v7751
      %v7771 = vmul.f32 %v7724, %v7751
      %v7772 = vmul.f32 %v7725, %v7751
      %v7773 = vmul.f32 %v7726, %v7751
      %v7774 = vmul.f32 %v7727, %v7751
      %v7775 = vmul.f32 %v7728, %v7751
      %v7776 = vmul.f32 %v7729, %v7751
      %v7777 = vmul.f32 %v7730, %v7751
      %v7778 = vmul.f32 %v7731, %v7751
      %v7779 = vmul.f32 %v7732, %v7751
      %v7780 = vmul.f32 %v7733, %v7751
      %v7781 = vmul.f32 %v7734, %v7751
      %v7782 = vmul.f32 %v7735, %v7751
      %v7783 = vmul.f32 %v7736, %v7751
      %v7784 = vmul.f32 %v7737, %v7751
      %v7785 = vmul.f32 %v7738, %v7751
      %v7786 = vmul.f32 %v7739, %v7751
      %v7787 = vmul.f32 %v7740, %v7751
      %v7788 = vmul.f32 %v7741, %v7751
      %v7789 = vmul.f32 %v7742, %v7751
      %v7790 = vmul.f32 %v7743, %v7751
      %v7791 = vmul.f32 %v7744, %v7751
      %v7792 = vmul.f32 %v7745, %v7751
      %v7793 = vld [vmem:[%s7] sm:$0x1]
      %v7795 = vlaneseq
      %v7796 = vshrl.u32 %v7795, 7
      %v7797 = vsub.s32 0, %v7796
      %v7798 = vrot.slane %v7793, %v7797
      %v7800 = vadd.f32 %v7753, %v7798
      %v7801 = vadd.f32 %v7754, %v7798
      %v7802 = vadd.f32 %v7755, %v7798
      %v7803 = vadd.f32 %v7756, %v7798
      %v7804 = vadd.f32 %v7757, %v7798
      %v7805 = vadd.f32 %v7758, %v7798
      %v7806 = vadd.f32 %v7759, %v7798
      %v7807 = vadd.f32 %v7760, %v7798
      %v7808 = vadd.f32 %v7761, %v7798
      %v7809 = vadd.f32 %v7762, %v7798
      %v7810 = vadd.f32 %v7763, %v7798
      %v7811 = vadd.f32 %v7764, %v7798
      %v7812 = vadd.f32 %v7765, %v7798
      %v7813 = vadd.f32 %v7766, %v7798
      %v7814 = vadd.f32 %v7767, %v7798
      %v7815 = vadd.f32 %v7768, %v7798
      %v7816 = vadd.f32 %v7769, %v7798
      %v7817 = vadd.f32 %v7770, %v7798
      %v7818 = vadd.f32 %v7771, %v7798
      %v7819 = vadd.f32 %v7772, %v7798
      %v7820 = vadd.f32 %v7773, %v7798
      %v7821 = vadd.f32 %v7774, %v7798
      %v7822 = vadd.f32 %v7775, %v7798
      %v7823 = vadd.f32 %v7776, %v7798
      %v7824 = vadd.f32 %v7777, %v7798
      %v7825 = vadd.f32 %v7778, %v7798
      %v7826 = vadd.f32 %v7779, %v7798
      %v7827 = vadd.f32 %v7780, %v7798
      %v7828 = vadd.f32 %v7781, %v7798
      %v7829 = vadd.f32 %v7782, %v7798
      %v7830 = vadd.f32 %v7783, %v7798
      %v7831 = vadd.f32 %v7784, %v7798
      %v7832 = vadd.f32 %v7785, %v7798
      %v7833 = vadd.f32 %v7786, %v7798
      %v7834 = vadd.f32 %v7787, %v7798
      %v7835 = vadd.f32 %v7788, %v7798
      %v7836 = vadd.f32 %v7789, %v7798
      %v7837 = vadd.f32 %v7790, %v7798
      %v7838 = vadd.f32 %v7791, %v7798
      %v7839 = vadd.f32 %v7792, %v7798
      %v7840 = vmax.f32 %v7800, 0.0
      %v7841 = vmax.f32 %v7801, 0.0
      %v7842 = vmax.f32 %v7802, 0.0
      %v7843 = vmax.f32 %v7803, 0.0
      %v7844 = vmax.f32 %v7804, 0.0
      %v7845 = vmax.f32 %v7805, 0.0
      %v7846 = vmax.f32 %v7806, 0.0
      %v7847 = vmax.f32 %v7807, 0.0
      %v7848 = vmax.f32 %v7808, 0.0
      %v7849 = vmax.f32 %v7809, 0.0
      %v7850 = vmax.f32 %v7810, 0.0
      %v7851 = vmax.f32 %v7811, 0.0
      %v7852 = vmax.f32 %v7812, 0.0
      %v7853 = vmax.f32 %v7813, 0.0
      %v7854 = vmax.f32 %v7814, 0.0
      %v7855 = vmax.f32 %v7815, 0.0
      %v7856 = vmax.f32 %v7816, 0.0
      %v7857 = vmax.f32 %v7817, 0.0
      %v7858 = vmax.f32 %v7818, 0.0
      %v7859 = vmax.f32 %v7819, 0.0
      %v7860 = vmax.f32 %v7820, 0.0
      %v7861 = vmax.f32 %v7821, 0.0
      %v7862 = vmax.f32 %v7822, 0.0
      %v7863 = vmax.f32 %v7823, 0.0
      %v7864 = vmax.f32 %v7824, 0.0
      %v7865 = vmax.f32 %v7825, 0.0
      %v7866 = vmax.f32 %v7826, 0.0
      %v7867 = vmax.f32 %v7827, 0.0
      %v7868 = vmax.f32 %v7828, 0.0
      %v7869 = vmax.f32 %v7829, 0.0
      %v7870 = vmax.f32 %v7830, 0.0
      %v7871 = vmax.f32 %v7831, 0.0
      %v7872 = vmax.f32 %v7832, 0.0
      %v7873 = vmax.f32 %v7833, 0.0
      %v7874 = vmax.f32 %v7834, 0.0
      %v7875 = vmax.f32 %v7835, 0.0
      %v7876 = vmax.f32 %v7836, 0.0
      %v7877 = vmax.f32 %v7837, 0.0
      %v7878 = vmax.f32 %v7838, 0.0
      %v7879 = vmax.f32 %v7839, 0.0
      %7880 = vst.msk [vmem:[%s305] sm:$0xff] %vm4689, %v7840
      %7881 = vst.msk [vmem:[%s305 + $0x8] sm:$0xff] %vm4689, %v7841
      %7882 = vst.msk [vmem:[%s305 + $0x10] sm:$0xff] %vm4689, %v7842
      %7883 = vst.msk [vmem:[%s305 + $0x18] sm:$0xff] %vm4689, %v7843
      %7884 = vst.msk [vmem:[%s305 + $0x20] sm:$0xff] %vm4689, %v7844
      %7885 = vst.msk [vmem:[%s305 + $0x28] sm:$0xff] %vm4689, %v7845
      %7886 = vst.msk [vmem:[%s305 + $0x30] sm:$0xff] %vm4689, %v7846
      %7887 = vst.msk [vmem:[%s305 + $0x38] sm:$0xff] %vm4689, %v7847
      %7888 = vst.msk [vmem:[%s305 + $0x40] sm:$0xff] %vm4689, %v7848
      %7889 = vst.msk [vmem:[%s305 + $0x48] sm:$0xff] %vm4689, %v7849
      %7890 = vst.msk [vmem:[%s305 + $0x50] sm:$0xff] %vm4689, %v7850
      %7891 = vst.msk [vmem:[%s305 + $0x58] sm:$0xff] %vm4689, %v7851
      %7892 = vst.msk [vmem:[%s305 + $0x60] sm:$0xff] %vm4689, %v7852
      %7893 = vst.msk [vmem:[%s305 + $0x68] sm:$0xff] %vm4689, %v7853
      %7894 = vst.msk [vmem:[%s305 + $0x70] sm:$0xff] %vm4689, %v7854
      %7895 = vst.msk [vmem:[%s305 + $0x78] sm:$0xff] %vm4689, %v7855
      %7896 = vst.msk [vmem:[%s305 + $0x80] sm:$0xff] %vm4689, %v7856
      %7897 = vst.msk [vmem:[%s305 + $0x88] sm:$0xff] %vm4689, %v7857
      %7898 = vst.msk [vmem:[%s305 + $0x90] sm:$0xff] %vm4689, %v7858
      %7899 = vst.msk [vmem:[%s305 + $0x98] sm:$0xff] %vm4689, %v7859
      %7900 = vst.msk [vmem:[%s305 + $0xa0] sm:$0xff] %vm4689, %v7860
      %7901 = vst.msk [vmem:[%s305 + $0xa8] sm:$0xff] %vm4689, %v7861
      %7902 = vst.msk [vmem:[%s305 + $0xb0] sm:$0xff] %vm4689, %v7862
      %7903 = vst.msk [vmem:[%s305 + $0xb8] sm:$0xff] %vm4689, %v7863
      %7904 = vst.msk [vmem:[%s305 + $0xc0] sm:$0xff] %vm4689, %v7864
      %7905 = vst.msk [vmem:[%s305 + $0xc8] sm:$0xff] %vm4689, %v7865
      %7906 = vst.msk [vmem:[%s305 + $0xd0] sm:$0xff] %vm4689, %v7866
      %7907 = vst.msk [vmem:[%s305 + $0xd8] sm:$0xff] %vm4689, %v7867
      %7908 = vst.msk [vmem:[%s305 + $0xe0] sm:$0xff] %vm4689, %v7868
      %7909 = vst.msk [vmem:[%s305 + $0xe8] sm:$0xff] %vm4689, %v7869
      %7910 = vst.msk [vmem:[%s305 + $0xf0] sm:$0xff] %vm4689, %v7870
      %7911 = vst.msk [vmem:[%s305 + $0xf8] sm:$0xff] %vm4689, %v7871
      %7912 = vst.msk [vmem:[%s305 + $0x100] sm:$0xff] %vm4689, %v7872
      %7913 = vst.msk [vmem:[%s305 + $0x108] sm:$0xff] %vm4689, %v7873
      %7914 = vst.msk [vmem:[%s305 + $0x110] sm:$0xff] %vm4689, %v7874
      %7915 = vst.msk [vmem:[%s305 + $0x118] sm:$0xff] %vm4689, %v7875
      %7916 = vst.msk [vmem:[%s305 + $0x120] sm:$0xff] %vm4689, %v7876
      %7917 = vst.msk [vmem:[%s305 + $0x128] sm:$0xff] %vm4689, %v7877
      %7918 = vst.msk [vmem:[%s305 + $0x130] sm:$0xff] %vm4689, %v7878
      %vm7919 = vcmask 125952
      %7920 = vst.msk [vmem:[%s305 + $0x138] sm:$0xf] %vm7919, %v7879
      %p7921 = scmp.lt.s32.totalorder %s19, 1
      %s7922 = scalar_select %p7921, %s19, 1
      %s7923 = smul.addr %s7922, 40
      %s7924 = smul.addr %s7923, 8
      %s7925 = scalar_lea.vmem %s8, %s7924
      // Predicated region
      $region53: #{conv_layer_forward.1} parent=51 // pred_check
        %p7926 = pneg %p210
      $region54: #{conv_layer_forward.1} parent=51 // pred_check_branch
        %7928 = sbr.rel (%p7926) target = $region56
      $region55: #{conv_layer_forward.1} parent=51 // pred_region
        _
      $region56: #{conv_layer_forward.1} parent=51 // pred_fallthru
        _
    $region52: #{conv_layer_forward.1} parent=5 // pred_fallthru
      _
    %p7929 = scmp.le.s32.totalorder 2, %s14
    // Predicated region
    $region57: #{conv_layer_forward.1} parent=5 // pred_check
      %p7930 = pneg %p7929
    $region58: #{conv_layer_forward.1} parent=5 // pred_check_branch
      %7932 = sbr.rel (%p7930) target = $region60
    $region59: #{conv_layer_forward.1} parent=5 // pred_region
      %s7933 = ssub.s32 %s14, 2
      // Predicated region
      $region61: #{conv_layer_forward.1} parent=59 // pred_check
        %p7934 = pneg %p216
      $region62: #{conv_layer_forward.1} parent=59 // pred_check_branch
        %7936 = sbr.rel (%p7934) target = $region64
      $region63: #{conv_layer_forward.1} parent=59 // pred_region
        %p7937 = scmp.lt.s32.totalorder %s20, 1
        %s7938 = scalar_select %p7937, %s20, 1
        %s7939 = smul.addr %s7938, 40
        %s7940 = smul.addr %s7939, 8
        %s7941 = scalar_lea.vmem %s8, %s7940
      $region64: #{conv_layer_forward.1} parent=59 // pred_fallthru
        _
    $region60: #{conv_layer_forward.1} parent=5 // pred_fallthru
      _
  $region6: #{conv_layer_forward.1} parent=0 // loop_footer
    %s18 = sadd.s32 1, %s14
  $region7: #{conv_layer_forward.1} parent=0 // loop_footer_branch
    %13 = sbr.rel target = $region3
  $region8: #{conv_layer_forward.1} parent=0 // loop_exit
    _

</llo_original>
